<compile_context>
chip_gen: v5e
topology: v5e:2x2
jax: 0.10.0
libtpu: 0.0.40
codegen_flags: <defaults>
</compile_context>

<pallas_src>
import functools
import math

import jax
import jax.numpy as jnp
from jax import lax
from jax.experimental import pallas as pl
from jax.experimental.pallas import tpu as pltpu

KSIZE = 7        # depthwise conv kernel size
PAD = 3          # padding=3 (same-length output)
EPS = 1e-6       # LayerNorm eps
LANE = 128
SUBLANE = 8
HALO = 8         # sublane-aligned right halo rows (>= KSIZE - 1)


def _round_up(n, m):
    return (n + m - 1) // m * m


def convnext_block_kernel(
    xmain_ref,   # (TT, Cp)     padded-input tile: rows [t*TT, t*TT + TT)
    xhalo_ref,   # (HALO, Cp)   next 8 rows of the padded input (halo)
    dww_ref,     # (7, Cp)      depthwise conv weight
    dwb_ref,     # (1, Cp)      depthwise conv bias
    lnw_ref,     # (1, Cp)      LayerNorm weight
    lnb_ref,     # (1, Cp)      LayerNorm bias
    w1_ref,      # (Cp, Ip)     pwconv1 weight, bf16, (in, out)
    b1_ref,      # (1, Ip)      pwconv1 bias, f32
    w2_ref,      # (Ip, Cp)     pwconv2 weight, bf16, (in, out)
    b2_ref,      # (1, Cp)      pwconv2 bias, f32
    gamma_ref,   # (1, Cp)      layer-scale gamma
    out_ref,     # (TT, Cp)
    win_ref,     # (TT+HALO, Cp) f32 VMEM scratch: conv window (tile + halo)
    *,
    c_real: int,
    i_chunk: int,
):
    TT, Cp = out_ref.shape
    Ip = w1_ref.shape[1]

    # Stitch the tile and its halo into one contiguous window (aligned stores).
    win_ref[0:TT, :] = xmain_ref[...]
    win_ref[TT:TT + HALO, :] = xhalo_ref[...]

    # ---- depthwise conv1d (groups=dim, k=7, pad=3) via 7 shifted mul-adds ----
    y = jnp.zeros((TT, Cp), jnp.float32)
    for k in range(KSIZE):
        y = y + win_ref[k:k + TT, :] * dww_ref[k, :]
    y = y + dwb_ref[0, :]

    # ---- LayerNorm over channels (eps=1e-6), single-pass statistics ----
    # Padded channel lanes of y are exactly zero, so sums only see real lanes;
    # divide by the real channel count.
    inv_c = 1.0 / float(c_real)
    s1 = jnp.sum(y, axis=-1, keepdims=True)
    s2 = jnp.sum(y * y, axis=-1, keepdims=True)
    mean = s1 * inv_c
    var = jnp.maximum(s2 * inv_c - mean * mean, 0.0)
    xn = (y - mean) * lax.rsqrt(var + EPS)
    xn = xn * lnw_ref[0, :] + lnb_ref[0, :]

    # ---- pwconv1 -> GELU(exact erf) -> pwconv2, chunked over I ----
    # bf16 MXU operands, f32 accumulation.
    xn_b = xn.astype(jnp.bfloat16)
    inv_sqrt2 = 1.0 / math.sqrt(2.0)
    z = jnp.zeros((TT, Cp), jnp.float32)
    for c0 in range(0, Ip, i_chunk):
        c1 = min(c0 + i_chunk, Ip)
        h = jnp.dot(xn_b, w1_ref[:, c0:c1],
                    preferred_element_type=jnp.float32) + b1_ref[0, c0:c1]
        h = 0.5 * h * (1.0 + lax.erf(h * inv_sqrt2))   # exact GELU (nn.GELU())
        z = z + jnp.dot(h.astype(jnp.bfloat16), w2_ref[c0:c1, :],
                        preferred_element_type=jnp.float32)
    z = z + b2_ref[0, :]

    # ---- layer scale + residual ----
    # Output row r of this tile corresponds to padded-input row r + PAD.
    z = gamma_ref[0, :] * z
    res = win_ref[PAD:PAD + TT, :]
    out_ref[...] = (res + z).astype(out_ref.dtype)


def convnext_block(x_ncl, params, *, block_t=512, i_chunk=512):
    """ConvNeXtBlock forward. x_ncl: (B, C, T) float32 (PyTorch NCL layout)."""
    B, C, T = x_ncl.shape
    I = params["w1"].shape[1]

    Cp = _round_up(C, LANE)
    Ip = _round_up(I, LANE)
    TT = min(_round_up(block_t, SUBLANE), _round_up(T, SUBLANE))
    nt = (T + TT - 1) // TT
    Tp = nt * TT + HALO                       # padded time incl. halo tail
    i_chunk = min(_round_up(i_chunk, LANE), Ip)

    # NOTE: in a full model these layout ops (NCL<->NTC transposes, padding,
    # bf16 weight cast) should be hoisted out of the per-block hot path /
    # done once at parameter load time; kept here so this is a drop-in
    # replacement for the PyTorch forward.
    x_ntc = jnp.transpose(x_ncl, (0, 2, 1))                          # (B, T, C)
    xp = jnp.pad(x_ntc, ((0, 0), (PAD, Tp - T - PAD), (0, Cp - C)))  # (B, Tp, Cp)

    dc, di = Cp - C, Ip - I
    dw_w = jnp.pad(params["dw_w"], ((0, 0), (0, dc)))
    dw_b = jnp.pad(params["dw_b"], ((0, 0), (0, dc)))
    ln_w = jnp.pad(params["ln_w"], ((0, 0), (0, dc)))
    ln_b = jnp.pad(params["ln_b"], ((0, 0), (0, dc)))
    b2p = jnp.pad(params["b2"], ((0, 0), (0, dc)))
    gamma = jnp.pad(params["gamma"], ((0, 0), (0, dc)))
    b1p = jnp.pad(params["b1"], ((0, 0), (0, di)))
    w1p = jnp.pad(params["w1"], ((0, dc), (0, di))).astype(jnp.bfloat16)
    w2p = jnp.pad(params["w2"], ((0, di), (0, dc))).astype(jnp.bfloat16)

    kernel = functools.partial(convnext_block_kernel, c_real=C, i_chunk=i_chunk)
    tt8 = TT // SUBLANE
    const = lambda b, t: (0, 0)

    out_padded = pl.pallas_call(
        kernel,
        out_shape=jax.ShapeDtypeStruct((B, nt * TT, Cp), x_ncl.dtype),
        grid=(B, nt),
        in_specs=[
            pl.BlockSpec((None, TT, Cp), lambda b, t: (b, t, 0)),               # tile
            pl.BlockSpec((None, HALO, Cp), lambda b, t: (b, (t + 1) * tt8, 0)),  # halo
            pl.BlockSpec((KSIZE, Cp), const),   # dw weight
            pl.BlockSpec((1, Cp), const),       # dw bias
            pl.BlockSpec((1, Cp), const),       # ln weight
            pl.BlockSpec((1, Cp), const),       # ln bias
            pl.BlockSpec((Cp, Ip), const),      # w1 (bf16)
            pl.BlockSpec((1, Ip), const),       # b1
            pl.BlockSpec((Ip, Cp), const),      # w2 (bf16)
            pl.BlockSpec((1, Cp), const),       # b2
            pl.BlockSpec((1, Cp), const),       # gamma
        ],
        out_specs=pl.BlockSpec((None, TT, Cp), lambda b, t: (b, t, 0)),
        scratch_shapes=[pltpu.VMEM((TT + HALO, Cp), jnp.float32)],
        compiler_params=pltpu.CompilerParams(
            dimension_semantics=("parallel", "parallel"),
            vmem_limit_bytes=48 * 1024 * 1024,
        ),
    )(xp, xp, dw_w, dw_b, ln_w, ln_b, w1p, b1p, w2p, b2p, gamma)

    # Drop time/channel padding, back to NCL to match PyTorch output layout.
    return jnp.transpose(out_padded[:, :T, :C], (0, 2, 1))


def make_params(key, dim, intermediate_dim, layer_scale_init_value):
    """Deterministic synthetic parameters matching the module's shapes."""
    ks = jax.random.split(key, 6)
    # torch Conv1d depthwise weight is (dim, 1, 7); stored here as (7, dim).
    dw_w = jax.random.normal(ks[0], (KSIZE, dim), jnp.float32) * 0.1
    dw_b = jax.random.normal(ks[1], (1, dim), jnp.float32) * 0.1
    ln_w = jnp.ones((1, dim), jnp.float32)       # nn.LayerNorm defaults
    ln_b = jnp.zeros((1, dim), jnp.float32)
    # torch Linear weight is (out, in); stored here as (in, out).
    w1 = jax.random.normal(ks[2], (dim, intermediate_dim), jnp.float32) * 0.1
    b1 = jax.random.normal(ks[3], (1, intermediate_dim), jnp.float32) * 0.1
    w2 = jax.random.normal(ks[4], (intermediate_dim, dim), jnp.float32) * 0.1
    b2 = jax.random.normal(ks[5], (1, dim), jnp.float32) * 0.1
    gamma = layer_scale_init_value * jnp.ones((1, dim), jnp.float32)
    return dict(dw_w=dw_w, dw_b=dw_b, ln_w=ln_w, ln_b=ln_b,
                w1=w1, b1=b1, w2=w2, b2=b2, gamma=gamma)


def convnext_block_ref(x_ncl, params, matmul_dtype=jnp.float32):
    """Pure-JAX reference of the PyTorch forward (non-adanorm path).

    matmul_dtype=jnp.bfloat16 mirrors the kernel's MXU-operand cast (f32 acc).
    """
    x = jnp.transpose(x_ncl, (0, 2, 1))  # (B, T, C)
    T = x.shape[1]
    xp = jnp.pad(x, ((0, 0), (PAD, PAD), (0, 0)))
    y = sum(xp[:, k:k + T, :] * params["dw_w"][k, :] for k in range(KSIZE))
    y = y + params["dw_b"][0]
    mean = y.mean(-1, keepdims=True)
    var = ((y - mean) ** 2).mean(-1, keepdims=True)
    yn = (y - mean) * lax.rsqrt(var + EPS) * params["ln_w"][0] + params["ln_b"][0]
    h = jnp.dot(yn.astype(matmul_dtype), params["w1"].astype(matmul_dtype),
                preferred_element_type=jnp.float32) + params["b1"][0]
    h = 0.5 * h * (1.0 + lax.erf(h / math.sqrt(2.0)))
    z = jnp.dot(h.astype(matmul_dtype), params["w2"].astype(matmul_dtype),
                preferred_element_type=jnp.float32) + params["b2"][0]
    out = x + params["gamma"][0] * z
    return jnp.transpose(out, (0, 2, 1))


if __name__ == "__main__":
    B, C, T = 2, 128, 512        # batch, dim (channels, lane-dense), seq length
    I = 384                      # intermediate_dim
    layer_scale_init_value = 1e-2

    key = jax.random.PRNGKey(0)
    kx, kp = jax.random.split(key)
    x = jax.random.normal(kx, (B, C, T), jnp.float32)   # PyTorch layout (N, C, L)
    params = make_params(kp, C, I, layer_scale_init_value)

    out = convnext_block(x, params, block_t=256, i_chunk=256)
    out = jax.block_until_ready(out)
    assert out.shape == (B, C, T)

    # Tight check vs a reference that mirrors the kernel's bf16 MXU operands.
    ref_mirror = convnext_block_ref(x, params, matmul_dtype=jnp.bfloat16)
    assert jnp.allclose(out, ref_mirror, atol=2e-3, rtol=2e-3), (
        f"mismatch vs bf16-mirrored ref: {jnp.max(jnp.abs(out - ref_mirror))}")

    # Loose check vs the exact f32 PyTorch-equivalent reference (bf16 matmul
    # operands are the only deviation from exact module numerics).
    ref_f32 = convnext_block_ref(x, params, matmul_dtype=jnp.float32)
    assert jnp.allclose(out, ref_f32, atol=3e-2, rtol=3e-2), (
        f"mismatch vs exact f32 ref: {jnp.max(jnp.abs(out - ref_f32))}")

    # TODO(synk): AdaLayerNorm (adanorm_num_embeddings) conditional branch is
    # not implemented; this kernel covers the default nn.LayerNorm path.
    print("KERNEL_OK")
</pallas_src>

<mosaic_0001>
module attributes {stable_mosaic.version = 11 : i64} {
  func.func @convnext_block_kernel(%arg0: i32, %arg1: i32, %arg2: memref<1x256x128xf32, #tpu.memory_space<vmem>>, %arg3: memref<1x8x128xf32, #tpu.memory_space<vmem>>, %arg4: memref<7x128xf32, #tpu.memory_space<vmem>>, %arg5: memref<1x128xf32, #tpu.memory_space<vmem>>, %arg6: memref<1x128xf32, #tpu.memory_space<vmem>>, %arg7: memref<1x128xf32, #tpu.memory_space<vmem>>, %arg8: memref<128x384xbf16, #tpu.memory_space<vmem>>, %arg9: memref<1x384xf32, #tpu.memory_space<vmem>>, %arg10: memref<384x128xbf16, #tpu.memory_space<vmem>>, %arg11: memref<1x128xf32, #tpu.memory_space<vmem>>, %arg12: memref<1x128xf32, #tpu.memory_space<vmem>>, %arg13: memref<1x256x128xf32, #tpu.memory_space<vmem>>, %arg14: memref<264x128xf32, #tpu.memory_space<vmem>>) attributes {dimension_semantics = [#tpu.dimension_semantics<parallel>, #tpu.dimension_semantics<parallel>], iteration_bounds = array<i64: 2, 2>, scalar_prefetch = 0 : i64, scratch_operands = 1 : i64, tpu.core_type = #tpu.core_type<tc>, window_params = [{transform_indices = @transform_0, window_bounds = array<i64: 1, 256, 128>}, {transform_indices = @transform_1, window_bounds = array<i64: 1, 8, 128>}, {pipeline_mode = #tpu.pipeline_mode<synchronous>, transform_indices = @transform_2, window_bounds = array<i64: 7, 128>}, {pipeline_mode = #tpu.pipeline_mode<synchronous>, transform_indices = @transform_3, window_bounds = array<i64: 1, 128>}, {pipeline_mode = #tpu.pipeline_mode<synchronous>, transform_indices = @transform_4, window_bounds = array<i64: 1, 128>}, {pipeline_mode = #tpu.pipeline_mode<synchronous>, transform_indices = @transform_5, window_bounds = array<i64: 1, 128>}, {pipeline_mode = #tpu.pipeline_mode<synchronous>, transform_indices = @transform_6, window_bounds = array<i64: 128, 384>}, {pipeline_mode = #tpu.pipeline_mode<synchronous>, transform_indices = @transform_7, window_bounds = array<i64: 1, 384>}, {pipeline_mode = #tpu.pipeline_mode<synchronous>, transform_indices = @transform_8, window_bounds = array<i64: 384, 128>}, {pipeline_mode = #tpu.pipeline_mode<synchronous>, transform_indices = @transform_9, window_bounds = array<i64: 1, 128>}, {pipeline_mode = #tpu.pipeline_mode<synchronous>, transform_indices = @transform_10, window_bounds = array<i64: 1, 128>}, {transform_indices = @transform_11, window_bounds = array<i64: 1, 256, 128>}]} {
    %c0 = arith.constant 0 : index
    %c0_0 = arith.constant 0 : index
    %c0_1 = arith.constant 0 : index
    %0 = vector.load %arg2[%c0, %c0_0, %c0_1] : memref<1x256x128xf32, #tpu.memory_space<vmem>>, vector<1x256x128xf32>
    %1 = vector.shape_cast %0 : vector<1x256x128xf32> to vector<256x128xf32>
    %c0_2 = arith.constant 0 : index
    %c0_3 = arith.constant 0 : index
    %2 = vector.load %arg14[%c0_2, %c0_3] : memref<264x128xf32, #tpu.memory_space<vmem>>, vector<256x128xf32>
    tpu.vector_store %arg14[%c0_2, %c0_3], %1 {strides = array<i32>} : memref<264x128xf32, #tpu.memory_space<vmem>>, vector<256x128xf32>,
    %c0_4 = arith.constant 0 : index
    %c0_5 = arith.constant 0 : index
    %c0_6 = arith.constant 0 : index
    %3 = vector.load %arg3[%c0_4, %c0_5, %c0_6] : memref<1x8x128xf32, #tpu.memory_space<vmem>>, vector<1x8x128xf32>
    %4 = vector.shape_cast %3 : vector<1x8x128xf32> to vector<8x128xf32>
    %c256 = arith.constant 256 : index
    %c0_7 = arith.constant 0 : index
    %5 = vector.load %arg14[%c256, %c0_7] : memref<264x128xf32, #tpu.memory_space<vmem>>, vector<8x128xf32>
    tpu.vector_store %arg14[%c256, %c0_7], %4 {strides = array<i32>} : memref<264x128xf32, #tpu.memory_space<vmem>>, vector<8x128xf32>,
    %cst = arith.constant 0.000000e+00 : f32
    %6 = vector.broadcast %cst : f32 to vector<256x128xf32>
    %c0_8 = arith.constant 0 : index
    %c0_9 = arith.constant 0 : index
    %7 = vector.load %arg14[%c0_8, %c0_9] : memref<264x128xf32, #tpu.memory_space<vmem>>, vector<256x128xf32>
    %c0_10 = arith.constant 0 : index
    %c0_11 = arith.constant 0 : index
    %8 = vector.load %arg4[%c0_10, %c0_11] : memref<7x128xf32, #tpu.memory_space<vmem>>, vector<1x128xf32>
    %9 = vector.shape_cast %8 : vector<1x128xf32> to vector<128xf32>
    %10 = vector.shape_cast %9 : vector<128xf32> to vector<1x128xf32>
    %11 = vector.broadcast %10 : vector<1x128xf32> to vector<256x128xf32>
    %12 = arith.mulf %7, %11 : vector<256x128xf32>
    %13 = arith.addf %6, %12 : vector<256x128xf32>
    %c1 = arith.constant 1 : index
    %c0_12 = arith.constant 0 : index
    %14 = vector.load %arg14[%c1, %c0_12] : memref<264x128xf32, #tpu.memory_space<vmem>>, vector<256x128xf32>
    %c1_13 = arith.constant 1 : index
    %c0_14 = arith.constant 0 : index
    %15 = vector.load %arg4[%c1_13, %c0_14] : memref<7x128xf32, #tpu.memory_space<vmem>>, vector<1x128xf32>
    %16 = vector.shape_cast %15 : vector<1x128xf32> to vector<128xf32>
    %17 = vector.shape_cast %16 : vector<128xf32> to vector<1x128xf32>
    %18 = vector.broadcast %17 : vector<1x128xf32> to vector<256x128xf32>
    %19 = arith.mulf %14, %18 : vector<256x128xf32>
    %20 = arith.addf %13, %19 : vector<256x128xf32>
    %c2 = arith.constant 2 : index
    %c0_15 = arith.constant 0 : index
    %21 = vector.load %arg14[%c2, %c0_15] : memref<264x128xf32, #tpu.memory_space<vmem>>, vector<256x128xf32>
    %c2_16 = arith.constant 2 : index
    %c0_17 = arith.constant 0 : index
    %22 = vector.load %arg4[%c2_16, %c0_17] : memref<7x128xf32, #tpu.memory_space<vmem>>, vector<1x128xf32>
    %23 = vector.shape_cast %22 : vector<1x128xf32> to vector<128xf32>
    %24 = vector.shape_cast %23 : vector<128xf32> to vector<1x128xf32>
    %25 = vector.broadcast %24 : vector<1x128xf32> to vector<256x128xf32>
    %26 = arith.mulf %21, %25 : vector<256x128xf32>
    %27 = arith.addf %20, %26 : vector<256x128xf32>
    %c3 = arith.constant 3 : index
    %c0_18 = arith.constant 0 : index
    %28 = vector.load %arg14[%c3, %c0_18] : memref<264x128xf32, #tpu.memory_space<vmem>>, vector<256x128xf32>
    %c3_19 = arith.constant 3 : index
    %c0_20 = arith.constant 0 : index
    %29 = vector.load %arg4[%c3_19, %c0_20] : memref<7x128xf32, #tpu.memory_space<vmem>>, vector<1x128xf32>
    %30 = vector.shape_cast %29 : vector<1x128xf32> to vector<128xf32>
    %31 = vector.shape_cast %30 : vector<128xf32> to vector<1x128xf32>
    %32 = vector.broadcast %31 : vector<1x128xf32> to vector<256x128xf32>
    %33 = arith.mulf %28, %32 : vector<256x128xf32>
    %34 = arith.addf %27, %33 : vector<256x128xf32>
    %c4 = arith.constant 4 : index
    %c0_21 = arith.constant 0 : index
    %35 = vector.load %arg14[%c4, %c0_21] : memref<264x128xf32, #tpu.memory_space<vmem>>, vector<256x128xf32>
    %c4_22 = arith.constant 4 : index
    %c0_23 = arith.constant 0 : index
    %36 = vector.load %arg4[%c4_22, %c0_23] : memref<7x128xf32, #tpu.memory_space<vmem>>, vector<1x128xf32>
    %37 = vector.shape_cast %36 : vector<1x128xf32> to vector<128xf32>
    %38 = vector.shape_cast %37 : vector<128xf32> to vector<1x128xf32>
    %39 = vector.broadcast %38 : vector<1x128xf32> to vector<256x128xf32>
    %40 = arith.mulf %35, %39 : vector<256x128xf32>
    %41 = arith.addf %34, %40 : vector<256x128xf32>
    %c5 = arith.constant 5 : index
    %c0_24 = arith.constant 0 : index
    %42 = vector.load %arg14[%c5, %c0_24] : memref<264x128xf32, #tpu.memory_space<vmem>>, vector<256x128xf32>
    %c5_25 = arith.constant 5 : index
    %c0_26 = arith.constant 0 : index
    %43 = vector.load %arg4[%c5_25, %c0_26] : memref<7x128xf32, #tpu.memory_space<vmem>>, vector<1x128xf32>
    %44 = vector.shape_cast %43 : vector<1x128xf32> to vector<128xf32>
    %45 = vector.shape_cast %44 : vector<128xf32> to vector<1x128xf32>
    %46 = vector.broadcast %45 : vector<1x128xf32> to vector<256x128xf32>
    %47 = arith.mulf %42, %46 : vector<256x128xf32>
    %48 = arith.addf %41, %47 : vector<256x128xf32>
    %c6 = arith.constant 6 : index
    %c0_27 = arith.constant 0 : index
    %49 = vector.load %arg14[%c6, %c0_27] : memref<264x128xf32, #tpu.memory_space<vmem>>, vector<256x128xf32>
    %c6_28 = arith.constant 6 : index
    %c0_29 = arith.constant 0 : index
    %50 = vector.load %arg4[%c6_28, %c0_29] : memref<7x128xf32, #tpu.memory_space<vmem>>, vector<1x128xf32>
    %51 = vector.shape_cast %50 : vector<1x128xf32> to vector<128xf32>
    %52 = vector.shape_cast %51 : vector<128xf32> to vector<1x128xf32>
    %53 = vector.broadcast %52 : vector<1x128xf32> to vector<256x128xf32>
    %54 = arith.mulf %49, %53 : vector<256x128xf32>
    %55 = arith.addf %48, %54 : vector<256x128xf32>
    %c0_30 = arith.constant 0 : index
    %c0_31 = arith.constant 0 : index
    %56 = vector.load %arg5[%c0_30, %c0_31] : memref<1x128xf32, #tpu.memory_space<vmem>>, vector<1x128xf32>
    %57 = vector.shape_cast %56 : vector<1x128xf32> to vector<128xf32>
    %58 = vector.shape_cast %57 : vector<128xf32> to vector<1x128xf32>
    %59 = vector.broadcast %58 : vector<1x128xf32> to vector<256x128xf32>
    %60 = arith.addf %55, %59 : vector<256x128xf32>
    %cst_32 = arith.constant dense<0.000000e+00> : vector<256xf32>
    %61 = vector.multi_reduction <add>, %60, %cst_32 [1] : vector<256x128xf32> to vector<256xf32>
    %62 = vector.shape_cast %61 : vector<256xf32> to vector<256x1xf32>
    %63 = arith.mulf %60, %60 : vector<256x128xf32>
    %cst_33 = arith.constant dense<0.000000e+00> : vector<256xf32>
    %64 = vector.multi_reduction <add>, %63, %cst_33 [1] : vector<256x128xf32> to vector<256xf32>
    %65 = vector.shape_cast %64 : vector<256xf32> to vector<256x1xf32>
    %cst_34 = arith.constant 7.812500e-03 : f32
    %66 = vector.broadcast %cst_34 : f32 to vector<256x1xf32>
    %67 = arith.mulf %62, %66 : vector<256x1xf32>
    %cst_35 = arith.constant 7.812500e-03 : f32
    %68 = vector.broadcast %cst_35 : f32 to vector<256x1xf32>
    %69 = arith.mulf %65, %68 : vector<256x1xf32>
    %70 = arith.mulf %67, %67 : vector<256x1xf32>
    %71 = arith.subf %69, %70 : vector<256x1xf32>
    %cst_36 = arith.constant 0.000000e+00 : f32
    %72 = vector.broadcast %cst_36 : f32 to vector<256x1xf32>
    %73 = arith.maximumf %71, %72 : vector<256x1xf32>
    %74 = vector.broadcast %67 : vector<256x1xf32> to vector<256x128xf32>
    %75 = arith.subf %60, %74 : vector<256x128xf32>
    %cst_37 = arith.constant 9.99999997E-7 : f32
    %76 = vector.broadcast %cst_37 : f32 to vector<256x1xf32>
    %77 = arith.addf %73, %76 : vector<256x1xf32>
    %78 = math.rsqrt %77 : vector<256x1xf32>
    %79 = vector.broadcast %78 : vector<256x1xf32> to vector<256x128xf32>
    %80 = arith.mulf %75, %79 : vector<256x128xf32>
    %c0_38 = arith.constant 0 : index
    %c0_39 = arith.constant 0 : index
    %81 = vector.load %arg6[%c0_38, %c0_39] : memref<1x128xf32, #tpu.memory_space<vmem>>, vector<1x128xf32>
    %82 = vector.shape_cast %81 : vector<1x128xf32> to vector<128xf32>
    %83 = vector.shape_cast %82 : vector<128xf32> to vector<1x128xf32>
    %84 = vector.broadcast %83 : vector<1x128xf32> to vector<256x128xf32>
    %85 = arith.mulf %80, %84 : vector<256x128xf32>
    %c0_40 = arith.constant 0 : index
    %c0_41 = arith.constant 0 : index
    %86 = vector.load %arg7[%c0_40, %c0_41] : memref<1x128xf32, #tpu.memory_space<vmem>>, vector<1x128xf32>
    %87 = vector.shape_cast %86 : vector<1x128xf32> to vector<128xf32>
    %88 = vector.shape_cast %87 : vector<128xf32> to vector<1x128xf32>
    %89 = vector.broadcast %88 : vector<1x128xf32> to vector<256x128xf32>
    %90 = arith.addf %85, %89 : vector<256x128xf32>
    %91 = arith.truncf %90 : vector<256x128xf32> to vector<256x128xbf16>
    %cst_42 = arith.constant 0.000000e+00 : f32
    %92 = vector.broadcast %cst_42 : f32 to vector<256x128xf32>
    %c0_43 = arith.constant 0 : index
    %c0_44 = arith.constant 0 : index
    %93 = vector.load %arg8[%c0_43, %c0_44] : memref<128x384xbf16, #tpu.memory_space<vmem>>, vector<128x256xbf16>
    %cst_45 = arith.constant dense<0.000000e+00> : vector<256x256xf32>
    %94 = tpu.matmul %91, %93, %cst_45 {dimension_numbers = #tpu.dot_dimension_numbers<[1], [0], [0], [1], [0, 0, 1, 1], [], []>} : vector<256x128xbf16>, vector<128x256xbf16>, vector<256x256xf32> -> vector<256x256xf32>
    %c0_46 = arith.constant 0 : index
    %c0_47 = arith.constant 0 : index
    %95 = vector.load %arg9[%c0_46, %c0_47] : memref<1x384xf32, #tpu.memory_space<vmem>>, vector<1x256xf32>
    %96 = vector.shape_cast %95 : vector<1x256xf32> to vector<256xf32>
    %97 = vector.shape_cast %96 : vector<256xf32> to vector<1x256xf32>
    %98 = vector.broadcast %97 : vector<1x256xf32> to vector<256x256xf32>
    %99 = arith.addf %94, %98 : vector<256x256xf32>
    %cst_48 = arith.constant 5.000000e-01 : f32
    %100 = vector.broadcast %cst_48 : f32 to vector<256x256xf32>
    %101 = arith.mulf %100, %99 : vector<256x256xf32>
    %cst_49 = arith.constant 0.707106769 : f32
    %102 = vector.broadcast %cst_49 : f32 to vector<256x256xf32>
    %103 = arith.mulf %99, %102 : vector<256x256xf32>
    %104 = math.erf %103 : vector<256x256xf32>
    %cst_50 = arith.constant 1.000000e+00 : f32
    %105 = vector.broadcast %cst_50 : f32 to vector<256x256xf32>
    %106 = arith.addf %105, %104 : vector<256x256xf32>
    %107 = arith.mulf %101, %106 : vector<256x256xf32>
    %108 = arith.truncf %107 : vector<256x256xf32> to vector<256x256xbf16>
    %c0_51 = arith.constant 0 : index
    %c0_52 = arith.constant 0 : index
    %109 = vector.load %arg10[%c0_51, %c0_52] : memref<384x128xbf16, #tpu.memory_space<vmem>>, vector<256x128xbf16>
    %cst_53 = arith.constant dense<0.000000e+00> : vector<256x128xf32>
    %110 = tpu.matmul %108, %109, %cst_53 {dimension_numbers = #tpu.dot_dimension_numbers<[1], [0], [0], [1], [0, 0, 1, 1], [], []>} : vector<256x256xbf16>, vector<256x128xbf16>, vector<256x128xf32> -> vector<256x128xf32>
    %111 = arith.addf %92, %110 : vector<256x128xf32>
    %c0_54 = arith.constant 0 : index
    %c256_55 = arith.constant 256 : index
    %112 = vector.load %arg8[%c0_54, %c256_55] : memref<128x384xbf16, #tpu.memory_space<vmem>>, vector<128x128xbf16>
    %cst_56 = arith.constant dense<0.000000e+00> : vector<256x128xf32>
    %113 = tpu.matmul %91, %112, %cst_56 {dimension_numbers = #tpu.dot_dimension_numbers<[1], [0], [0], [1], [0, 0, 1, 1], [], []>} : vector<256x128xbf16>, vector<128x128xbf16>, vector<256x128xf32> -> vector<256x128xf32>
    %c0_57 = arith.constant 0 : index
    %c256_58 = arith.constant 256 : index
    %114 = vector.load %arg9[%c0_57, %c256_58] : memref<1x384xf32, #tpu.memory_space<vmem>>, vector<1x128xf32>
    %115 = vector.shape_cast %114 : vector<1x128xf32> to vector<128xf32>
    %116 = vector.shape_cast %115 : vector<128xf32> to vector<1x128xf32>
    %117 = vector.broadcast %116 : vector<1x128xf32> to vector<256x128xf32>
    %118 = arith.addf %113, %117 : vector<256x128xf32>
    %cst_59 = arith.constant 5.000000e-01 : f32
    %119 = vector.broadcast %cst_59 : f32 to vector<256x128xf32>
    %120 = arith.mulf %119, %118 : vector<256x128xf32>
    %cst_60 = arith.constant 0.707106769 : f32
    %121 = vector.broadcast %cst_60 : f32 to vector<256x128xf32>
    %122 = arith.mulf %118, %121 : vector<256x128xf32>
    %123 = math.erf %122 : vector<256x128xf32>
    %cst_61 = arith.constant 1.000000e+00 : f32
    %124 = vector.broadcast %cst_61 : f32 to vector<256x128xf32>
    %125 = arith.addf %124, %123 : vector<256x128xf32>
    %126 = arith.mulf %120, %125 : vector<256x128xf32>
    %127 = arith.truncf %126 : vector<256x128xf32> to vector<256x128xbf16>
    %c256_62 = arith.constant 256 : index
    %c0_63 = arith.constant 0 : index
    %128 = vector.load %arg10[%c256_62, %c0_63] : memref<384x128xbf16, #tpu.memory_space<vmem>>, vector<128x128xbf16>
    %cst_64 = arith.constant dense<0.000000e+00> : vector<256x128xf32>
    %129 = tpu.matmul %127, %128, %cst_64 {dimension_numbers = #tpu.dot_dimension_numbers<[1], [0], [0], [1], [0, 0, 1, 1], [], []>} : vector<256x128xbf16>, vector<128x128xbf16>, vector<256x128xf32> -> vector<256x128xf32>
    %130 = arith.addf %111, %129 : vector<256x128xf32>
    %c0_65 = arith.constant 0 : index
    %c0_66 = arith.constant 0 : index
    %131 = vector.load %arg11[%c0_65, %c0_66] : memref<1x128xf32, #tpu.memory_space<vmem>>, vector<1x128xf32>
    %132 = vector.shape_cast %131 : vector<1x128xf32> to vector<128xf32>
    %133 = vector.shape_cast %132 : vector<128xf32> to vector<1x128xf32>
    %134 = vector.broadcast %133 : vector<1x128xf32> to vector<256x128xf32>
    %135 = arith.addf %130, %134 : vector<256x128xf32>
    %c0_67 = arith.constant 0 : index
    %c0_68 = arith.constant 0 : index
    %136 = vector.load %arg12[%c0_67, %c0_68] : memref<1x128xf32, #tpu.memory_space<vmem>>, vector<1x128xf32>
    %137 = vector.shape_cast %136 : vector<1x128xf32> to vector<128xf32>
    %138 = vector.shape_cast %137 : vector<128xf32> to vector<1x128xf32>
    %139 = vector.broadcast %138 : vector<1x128xf32> to vector<256x128xf32>
    %140 = arith.mulf %139, %135 : vector<256x128xf32>
    %c3_69 = arith.constant 3 : index
    %c0_70 = arith.constant 0 : index
    %141 = vector.load %arg14[%c3_69, %c0_70] : memref<264x128xf32, #tpu.memory_space<vmem>>, vector<256x128xf32>
    %142 = arith.addf %141, %140 : vector<256x128xf32>
    %c0_71 = arith.constant 0 : index
    %c0_72 = arith.constant 0 : index
    %c0_73 = arith.constant 0 : index
    %143 = vector.load %arg13[%c0_71, %c0_72, %c0_73] : memref<1x256x128xf32, #tpu.memory_space<vmem>>, vector<1x256x128xf32>
    %144 = vector.shape_cast %143 : vector<1x256x128xf32> to vector<256x128xf32>
    %145 = vector.shape_cast %142 : vector<256x128xf32> to vector<1x256x128xf32>
    tpu.vector_store %arg13[%c0_71, %c0_72, %c0_73], %145 {strides = array<i32>} : memref<1x256x128xf32, #tpu.memory_space<vmem>>, vector<1x256x128xf32>,
    return
  }
  func.func @transform_0(%arg0: i32, %arg1: i32) -> (i32, i32, i32) {
    %c0_i32 = arith.constant 0 : i32
    %c0_i32_0 = arith.constant 0 : i32
    return %arg0, %arg1, %c0_i32 : i32, i32, i32
  }
  func.func @transform_1(%arg0: i32, %arg1: i32) -> (i32, i32, i32) {
    %c1_i32 = arith.constant 1 : i32
    %0 = arith.addi %arg1, %c1_i32 : i32
    %c32_i32 = arith.constant 32 : i32
    %1 = arith.muli %0, %c32_i32 : i32
    %c0_i32 = arith.constant 0 : i32
    %c0_i32_0 = arith.constant 0 : i32
    return %arg0, %1, %c0_i32 : i32, i32, i32
  }
  func.func @transform_2(%arg0: i32, %arg1: i32) -> (i32, i32) {
    %c0_i32 = arith.constant 0 : i32
    %c0_i32_0 = arith.constant 0 : i32
    %c0_i32_1 = arith.constant 0 : i32
    return %c0_i32, %c0_i32_0 : i32, i32
  }
  func.func @transform_3(%arg0: i32, %arg1: i32) -> (i32, i32) {
    %c0_i32 = arith.constant 0 : i32
    %c0_i32_0 = arith.constant 0 : i32
    %c0_i32_1 = arith.constant 0 : i32
    return %c0_i32, %c0_i32_0 : i32, i32
  }
  func.func @transform_4(%arg0: i32, %arg1: i32) -> (i32, i32) {
    %c0_i32 = arith.constant 0 : i32
    %c0_i32_0 = arith.constant 0 : i32
    %c0_i32_1 = arith.constant 0 : i32
    return %c0_i32, %c0_i32_0 : i32, i32
  }
  func.func @transform_5(%arg0: i32, %arg1: i32) -> (i32, i32) {
    %c0_i32 = arith.constant 0 : i32
    %c0_i32_0 = arith.constant 0 : i32
    %c0_i32_1 = arith.constant 0 : i32
    return %c0_i32, %c0_i32_0 : i32, i32
  }
  func.func @transform_6(%arg0: i32, %arg1: i32) -> (i32, i32) {
    %c0_i32 = arith.constant 0 : i32
    %c0_i32_0 = arith.constant 0 : i32
    %c0_i32_1 = arith.constant 0 : i32
    return %c0_i32, %c0_i32_0 : i32, i32
  }
  func.func @transform_7(%arg0: i32, %arg1: i32) -> (i32, i32) {
    %c0_i32 = arith.constant 0 : i32
    %c0_i32_0 = arith.constant 0 : i32
    %c0_i32_1 = arith.constant 0 : i32
    return %c0_i32, %c0_i32_0 : i32, i32
  }
  func.func @transform_8(%arg0: i32, %arg1: i32) -> (i32, i32) {
    %c0_i32 = arith.constant 0 : i32
    %c0_i32_0 = arith.constant 0 : i32
    %c0_i32_1 = arith.constant 0 : i32
    return %c0_i32, %c0_i32_0 : i32, i32
  }
  func.func @transform_9(%arg0: i32, %arg1: i32) -> (i32, i32) {
    %c0_i32 = arith.constant 0 : i32
    %c0_i32_0 = arith.constant 0 : i32
    %c0_i32_1 = arith.constant 0 : i32
    return %c0_i32, %c0_i32_0 : i32, i32
  }
  func.func @transform_10(%arg0: i32, %arg1: i32) -> (i32, i32) {
    %c0_i32 = arith.constant 0 : i32
    %c0_i32_0 = arith.constant 0 : i32
    %c0_i32_1 = arith.constant 0 : i32
    return %c0_i32, %c0_i32_0 : i32, i32
  }
  func.func @transform_11(%arg0: i32, %arg1: i32) -> (i32, i32, i32) {
    %c0_i32 = arith.constant 0 : i32
    %c0_i32_0 = arith.constant 0 : i32
    return %arg0, %arg1, %c0_i32 : i32, i32, i32
  }
}

</mosaic_0001>

<llo_original>
// kernel: tpu_custom_call.1
$region0: #{tpu_custom_call.1}
  #allocation0 [shape = 'u32[]', space=smem, size = 0x4, offset = 0x4, fixed_abs, tag = 'smem constant byte address 0x4 - core index']
  #allocation1 [shape = 'u32[72,128]{1,0:T(1,128)}', space=vmem, size = 0x9000, scoped, tag = 'internal scratch']
  #allocation2 [shape = 'f32[264,128]{1,0:T(8,128)}', space=vmem, size = 0x21000, scoped, tag = 'scratch operand']
  %s0 = inlined_call_operand.hbm [shape: f32[2,520,128], index: 0, kind: input, shape index: {}]
  %s1 = inlined_call_operand.hbm [shape: f32[2,520,128], index: 1, kind: input, shape index: {}]
  %s2 = inlined_call_operand.hbm [shape: f32[7,128], index: 2, kind: input, shape index: {}]
  %s3 = inlined_call_operand.vmem [shape: f32[1,128], index: 3, kind: input, shape index: {}]
  %s4 = inlined_call_operand.vmem [shape: f32[1,128], index: 4, kind: input, shape index: {}]
  %s5 = inlined_call_operand.hbm [shape: f32[1,128], index: 5, kind: input, shape index: {}]
  %s6 = inlined_call_operand.hbm [shape: bf16[128,384], index: 6, kind: input, shape index: {}]
  %s7 = inlined_call_operand.vmem [shape: f32[1,384], index: 7, kind: input, shape index: {}]
  %s8 = inlined_call_operand.hbm [shape: bf16[384,128], index: 8, kind: input, shape index: {}]
  %s9 = inlined_call_operand.vmem [shape: f32[1,128], index: 9, kind: input, shape index: {}]
  %s10 = inlined_call_operand.vmem [shape: f32[1,128], index: 10, kind: input, shape index: {}]
  %s11 = inlined_call_operand.hbm [shape: f32[2,512,128], index: 11, kind: output, shape index: {}]
  %s12 = sld [smem:[#allocation0]]
  $region101: #{tpu_custom_call.1} parent=0
    _
  %s14 = ssub.s32 1, %s12
  %s15 = scalar_select 0, %s14, %s12
  $region1: #{tpu_custom_call.1} parent=0
    #allocation3 [shape = 'u8[262144]{0}', space=vmem, size = 0x40000, scoped, tag = 'input window, operand 0']
    #allocation4 [shape = 's32[2]{0}', space=sflag, size = 0x8, scoped, tag = 'scoped memory for tpu_custom_call.1']
    #allocation5 [shape = 's32[2]{0}', space=sflag, size = 0x8, scoped, tag = 'scoped memory for tpu_custom_call.1']
    #allocation6 [shape = 'u8[8192]{0}', space=vmem, size = 0x2000, scoped, tag = 'input window, operand 1']
    #allocation7 [shape = 's32[2]{0}', space=sflag, size = 0x8, scoped, tag = 'scoped memory for tpu_custom_call.1']
    #allocation8 [shape = 'u8[4096]{0}', space=vmem, size = 0x1000, scoped, tag = 'input window, operand 2, single buffered']
    #allocation9 [shape = 'u8[512]{0}', space=vmem, size = 0x400, scoped, tag = 'input window, operand 5, single buffered']
    #allocation10 [shape = 's32[1]{0}', space=sflag, size = 0x4, scoped, tag = 'scoped memory for tpu_custom_call.1']
    #allocation11 [shape = 'u8[98304]{0}', space=vmem, size = 0x18000, scoped, tag = 'input window, operand 6, single buffered']
    #allocation12 [shape = 'u8[98304]{0}', space=vmem, size = 0x18000, scoped, tag = 'input window, operand 8, single buffered']
    #allocation13 [shape = 's32[1]{0}', space=sflag, size = 0x4, scoped, tag = 'scoped memory for tpu_custom_call.1']
    #allocation14 [shape = 'u8[262144]{0}', space=vmem, size = 0x40000, scoped, tag = 'output window, operand 0']
    %16 = vsyncpa [#allocation4], 0
    %s17 = scalar_lea.sflag [#allocation4], 1
    %18 = vsyncpa %s17, 0
    %19 = vsyncpa [#allocation7], 0
    %s20 = scalar_lea.sflag [#allocation7], 1
    %21 = vsyncpa %s20, 0
    %22 = vsyncpa [#allocation10], 0
    %23 = vsyncpa [#allocation13], 0
    %24 = vsyncpa [#allocation5], 0
    %s25 = scalar_lea.sflag [#allocation5], 1
    %26 = vsyncpa %s25, 0
    loop: start=0, step=1, limit=6
    $region2: #{tpu_custom_call.1} parent=1 // loop_pre_header
      _
    $region3: #{tpu_custom_call.1} parent=1 // loop_header
      %s28 = sphi 0, %s32
      %p29 = scmp.ge.s32.totalorder %s28, 6
      %s35 = sphi 0, %s47
      %s36 = sphi 0, %s43
      %s37 = sphi 0, %s35
      %s38 = sphi 0, %s36
      %s39 = sphi 0, %s37
      %s40 = sphi 0, %s38
      %s52 = sphi 0, %s54
      %s55 = sphi 0, %s52
      %s56 = sphi 0, %s55
      %s72 = sphi 0, %s56
      %s84 = sphi 0, %s86
      %s87 = sphi 0, %s84
      %s88 = sphi 0, %s87
      %s104 = sphi 0, %s88
      %s108 = sphi 0, %s108
      %s110 = sphi 0, %s108
      %s111 = sphi 0, %s110
      %s125 = sphi 0, %s111
      %s129 = sphi 0, %s129
      %s131 = sphi 0, %s129
      %s132 = sphi 0, %s131
      %s146 = sphi 0, %s132
      %s150 = sphi 0, %s150
      %s152 = sphi 0, %s150
      %s153 = sphi 0, %s152
      %s167 = sphi 0, %s153
      %s171 = sphi 0, %s171
      %s173 = sphi 0, %s171
      %s174 = sphi 0, %s173
      %s188 = sphi 0, %s174
      %s192 = sphi 0, %s192
      %s194 = sphi 0, %s192
      %s195 = sphi 0, %s194
      %s209 = sphi 0, %s195
      %s213 = sphi 0, %s213
      %s215 = sphi 0, %s213
      %s216 = sphi 0, %s215
      %s230 = sphi 0, %s216
      %s234 = sphi 0, %s234
      %s236 = sphi 0, %s234
      %s237 = sphi 0, %s236
      %s251 = sphi 0, %s237
      %s255 = sphi 0, %s255
      %s257 = sphi 0, %s255
      %s258 = sphi 0, %s257
      %s272 = sphi 0, %s258
      %s276 = sphi 0, %s276
      %s278 = sphi 0, %s276
      %s279 = sphi 0, %s278
      %s293 = sphi 0, %s279
      %s301 = sphi 0, %s303
      %s304 = sphi 0, %s301
      %s305 = sphi 0, %s304
      %s321 = sphi 0, %s305
    $region4: #{tpu_custom_call.1} parent=1 // loop_header_branch
      %31 = sbr.rel (%p29) target = $region8
    $region5: #{tpu_custom_call.1} parent=1 // loop_body
      %s33 = ssub.s32 %s28, 1
      %s34 = ssub.s32 %s28, 2
      %s41 = sadd.s32 1, %s36
      %p42 = scmp.ge.s32.totalorder %s41, 2
      %s43 = scalar_select %p42, 0, %s41
      %s44 = sadd.s32 1, %s35
      %s45 = scalar_select %p42, %s44, %s35
      %p46 = scmp.ge.s32.totalorder %s45, 2
      %s47 = scalar_select %p46, 0, %s45
      %s48 = ssub.s32 %s35, %s47
      %s49 = ssub.s32 %s36, %s43
      %s50 = sor.u32 %s48, %s49
      %p51 = scmp.eq.s32.totalorder %s50, 0
      %s53 = sadd.s32 %s52, 1
      %s54 = scalar_select %p51, %s52, %s53
      %p57 = pneg %p51
      %p58 = scmp.eq.s32.totalorder %s28, 3
      %p59 = por %p57, %p58
      %p60 = scmp.ne.s32.totalorder %s52, %s55
      %p61 = scmp.eq.s32.totalorder %s28, 0
      %p62 = por %p60, %p61
      %p63 = scmp.ne.s32.totalorder %s52, %s55
      %p64 = scmp.eq.s32.totalorder %s33, 3
      %p65 = por %p63, %p64
      %p66 = scmp.ne.s32.totalorder %s55, %s56
      %p67 = scmp.eq.s32.totalorder %s33, 0
      %p68 = por %p66, %p67
      %p69 = scmp.ne.s32.totalorder %s55, %s56
      %p70 = scmp.eq.s32.totalorder %s34, 3
      %p71 = por %p69, %p70
      %p73 = scmp.ne.s32.totalorder %s56, %s72
      %p74 = scmp.eq.s32.totalorder %s34, 0
      %p75 = por %p73, %p74
      %s76 = sadd.s32 %s36, 1
      %s77 = smul.u32 %s76, 32
      %s78 = sadd.s32 %s43, 1
      %s79 = smul.u32 %s78, 32
      %s80 = ssub.s32 %s35, %s47
      %s81 = ssub.s32 %s77, %s79
      %s82 = sor.u32 %s80, %s81
      %p83 = scmp.eq.s32.totalorder %s82, 0
      %s85 = sadd.s32 %s84, 1
      %s86 = scalar_select %p83, %s84, %s85
      %p89 = pneg %p83
      %p90 = scmp.eq.s32.totalorder %s28, 3
      %p91 = por %p89, %p90
      %p92 = scmp.ne.s32.totalorder %s84, %s87
      %p93 = scmp.eq.s32.totalorder %s28, 0
      %p94 = por %p92, %p93
      %p95 = scmp.ne.s32.totalorder %s84, %s87
      %p96 = scmp.eq.s32.totalorder %s33, 3
      %p97 = por %p95, %p96
      %p98 = scmp.ne.s32.totalorder %s87, %s88
      %p99 = scmp.eq.s32.totalorder %s33, 0
      %p100 = por %p98, %p99
      %p101 = scmp.ne.s32.totalorder %s87, %s88
      %p102 = scmp.eq.s32.totalorder %s34, 3
      %p103 = por %p101, %p102
      %p105 = scmp.ne.s32.totalorder %s88, %s104
      %p106 = scmp.eq.s32.totalorder %s34, 0
      %p107 = por %p105, %p106
      %s109 = sadd.s32 %s108, 1
      %p112 = scmp.eq.s32.totalorder %s28, 3
      %p113 = scmp.ne.s32.totalorder %s108, %s110
      %p114 = scmp.eq.s32.totalorder %s28, 0
      %p115 = por %p113, %p114
      %p116 = scmp.ne.s32.totalorder %s108, %s110
      %p117 = scmp.eq.s32.totalorder %s33, 3
      %p118 = por %p116, %p117
      %p119 = scmp.ne.s32.totalorder %s110, %s111
      %p120 = scmp.eq.s32.totalorder %s33, 0
      %p121 = por %p119, %p120
      %p122 = scmp.ne.s32.totalorder %s110, %s111
      %p123 = scmp.eq.s32.totalorder %s34, 3
      %p124 = por %p122, %p123
      %p126 = scmp.ne.s32.totalorder %s111, %s125
      %p127 = scmp.eq.s32.totalorder %s34, 0
      %p128 = por %p126, %p127
      %s130 = sadd.s32 %s129, 1
      %p133 = scmp.eq.s32.totalorder %s28, 3
      %p134 = scmp.ne.s32.totalorder %s129, %s131
      %p135 = scmp.eq.s32.totalorder %s28, 0
      %p136 = por %p134, %p135
      %p137 = scmp.ne.s32.totalorder %s129, %s131
      %p138 = scmp.eq.s32.totalorder %s33, 3
      %p139 = por %p137, %p138
      %p140 = scmp.ne.s32.totalorder %s131, %s132
      %p141 = scmp.eq.s32.totalorder %s33, 0
      %p142 = por %p140, %p141
      %p143 = scmp.ne.s32.totalorder %s131, %s132
      %p144 = scmp.eq.s32.totalorder %s34, 3
      %p145 = por %p143, %p144
      %p147 = scmp.ne.s32.totalorder %s132, %s146
      %p148 = scmp.eq.s32.totalorder %s34, 0
      %p149 = por %p147, %p148
      %s151 = sadd.s32 %s150, 1
      %p154 = scmp.eq.s32.totalorder %s28, 3
      %p155 = scmp.ne.s32.totalorder %s150, %s152
      %p156 = scmp.eq.s32.totalorder %s28, 0
      %p157 = por %p155, %p156
      %p158 = scmp.ne.s32.totalorder %s150, %s152
      %p159 = scmp.eq.s32.totalorder %s33, 3
      %p160 = por %p158, %p159
      %p161 = scmp.ne.s32.totalorder %s152, %s153
      %p162 = scmp.eq.s32.totalorder %s33, 0
      %p163 = por %p161, %p162
      %p164 = scmp.ne.s32.totalorder %s152, %s153
      %p165 = scmp.eq.s32.totalorder %s34, 3
      %p166 = por %p164, %p165
      %p168 = scmp.ne.s32.totalorder %s153, %s167
      %p169 = scmp.eq.s32.totalorder %s34, 0
      %p170 = por %p168, %p169
      %s172 = sadd.s32 %s171, 1
      %p175 = scmp.eq.s32.totalorder %s28, 3
      %p176 = scmp.ne.s32.totalorder %s171, %s173
      %p177 = scmp.eq.s32.totalorder %s28, 0
      %p178 = por %p176, %p177
      %p179 = scmp.ne.s32.totalorder %s171, %s173
      %p180 = scmp.eq.s32.totalorder %s33, 3
      %p181 = por %p179, %p180
      %p182 = scmp.ne.s32.totalorder %s173, %s174
      %p183 = scmp.eq.s32.totalorder %s33, 0
      %p184 = por %p182, %p183
      %p185 = scmp.ne.s32.totalorder %s173, %s174
      %p186 = scmp.eq.s32.totalorder %s34, 3
      %p187 = por %p185, %p186
      %p189 = scmp.ne.s32.totalorder %s174, %s188
      %p190 = scmp.eq.s32.totalorder %s34, 0
      %p191 = por %p189, %p190
      %s193 = sadd.s32 %s192, 1
      %p196 = scmp.eq.s32.totalorder %s28, 3
      %p197 = scmp.ne.s32.totalorder %s192, %s194
      %p198 = scmp.eq.s32.totalorder %s28, 0
      %p199 = por %p197, %p198
      %p200 = scmp.ne.s32.totalorder %s192, %s194
      %p201 = scmp.eq.s32.totalorder %s33, 3
      %p202 = por %p200, %p201
      %p203 = scmp.ne.s32.totalorder %s194, %s195
      %p204 = scmp.eq.s32.totalorder %s33, 0
      %p205 = por %p203, %p204
      %p206 = scmp.ne.s32.totalorder %s194, %s195
      %p207 = scmp.eq.s32.totalorder %s34, 3
      %p208 = por %p206, %p207
      %p210 = scmp.ne.s32.totalorder %s195, %s209
      %p211 = scmp.eq.s32.totalorder %s34, 0
      %p212 = por %p210, %p211
      %s214 = sadd.s32 %s213, 1
      %p217 = scmp.eq.s32.totalorder %s28, 3
      %p218 = scmp.ne.s32.totalorder %s213, %s215
      %p219 = scmp.eq.s32.totalorder %s28, 0
      %p220 = por %p218, %p219
      %p221 = scmp.ne.s32.totalorder %s213, %s215
      %p222 = scmp.eq.s32.totalorder %s33, 3
      %p223 = por %p221, %p222
      %p224 = scmp.ne.s32.totalorder %s215, %s216
      %p225 = scmp.eq.s32.totalorder %s33, 0
      %p226 = por %p224, %p225
      %p227 = scmp.ne.s32.totalorder %s215, %s216
      %p228 = scmp.eq.s32.totalorder %s34, 3
      %p229 = por %p227, %p228
      %p231 = scmp.ne.s32.totalorder %s216, %s230
      %p232 = scmp.eq.s32.totalorder %s34, 0
      %p233 = por %p231, %p232
      %s235 = sadd.s32 %s234, 1
      %p238 = scmp.eq.s32.totalorder %s28, 3
      %p239 = scmp.ne.s32.totalorder %s234, %s236
      %p240 = scmp.eq.s32.totalorder %s28, 0
      %p241 = por %p239, %p240
      %p242 = scmp.ne.s32.totalorder %s234, %s236
      %p243 = scmp.eq.s32.totalorder %s33, 3
      %p244 = por %p242, %p243
      %p245 = scmp.ne.s32.totalorder %s236, %s237
      %p246 = scmp.eq.s32.totalorder %s33, 0
      %p247 = por %p245, %p246
      %p248 = scmp.ne.s32.totalorder %s236, %s237
      %p249 = scmp.eq.s32.totalorder %s34, 3
      %p250 = por %p248, %p249
      %p252 = scmp.ne.s32.totalorder %s237, %s251
      %p253 = scmp.eq.s32.totalorder %s34, 0
      %p254 = por %p252, %p253
      %s256 = sadd.s32 %s255, 1
      %p259 = scmp.eq.s32.totalorder %s28, 3
      %p260 = scmp.ne.s32.totalorder %s255, %s257
      %p261 = scmp.eq.s32.totalorder %s28, 0
      %p262 = por %p260, %p261
      %p263 = scmp.ne.s32.totalorder %s255, %s257
      %p264 = scmp.eq.s32.totalorder %s33, 3
      %p265 = por %p263, %p264
      %p266 = scmp.ne.s32.totalorder %s257, %s258
      %p267 = scmp.eq.s32.totalorder %s33, 0
      %p268 = por %p266, %p267
      %p269 = scmp.ne.s32.totalorder %s257, %s258
      %p270 = scmp.eq.s32.totalorder %s34, 3
      %p271 = por %p269, %p270
      %p273 = scmp.ne.s32.totalorder %s258, %s272
      %p274 = scmp.eq.s32.totalorder %s34, 0
      %p275 = por %p273, %p274
      %s277 = sadd.s32 %s276, 1
      %p280 = scmp.eq.s32.totalorder %s28, 3
      %p281 = scmp.ne.s32.totalorder %s276, %s278
      %p282 = scmp.eq.s32.totalorder %s28, 0
      %p283 = por %p281, %p282
      %p284 = scmp.ne.s32.totalorder %s276, %s278
      %p285 = scmp.eq.s32.totalorder %s33, 3
      %p286 = por %p284, %p285
      %p287 = scmp.ne.s32.totalorder %s278, %s279
      %p288 = scmp.eq.s32.totalorder %s33, 0
      %p289 = por %p287, %p288
      %p290 = scmp.ne.s32.totalorder %s278, %s279
      %p291 = scmp.eq.s32.totalorder %s34, 3
      %p292 = por %p290, %p291
      %p294 = scmp.ne.s32.totalorder %s279, %s293
      %p295 = scmp.eq.s32.totalorder %s34, 0
      %p296 = por %p294, %p295
      %s297 = ssub.s32 %s35, %s47
      %s298 = ssub.s32 %s36, %s43
      %s299 = sor.u32 %s297, %s298
      %p300 = scmp.eq.s32.totalorder %s299, 0
      %s302 = sadd.s32 %s301, 1
      %s303 = scalar_select %p300, %s301, %s302
      %p306 = pneg %p300
      %p307 = scmp.eq.s32.totalorder %s28, 3
      %p308 = por %p306, %p307
      %p309 = scmp.ne.s32.totalorder %s301, %s304
      %p310 = scmp.eq.s32.totalorder %s28, 0
      %p311 = por %p309, %p310
      %p312 = scmp.ne.s32.totalorder %s301, %s304
      %p313 = scmp.eq.s32.totalorder %s33, 3
      %p314 = por %p312, %p313
      %p315 = scmp.ne.s32.totalorder %s304, %s305
      %p316 = scmp.eq.s32.totalorder %s33, 0
      %p317 = por %p315, %p316
      %p318 = scmp.ne.s32.totalorder %s304, %s305
      %p319 = scmp.eq.s32.totalorder %s34, 3
      %p320 = por %p318, %p319
      %p322 = scmp.ne.s32.totalorder %s305, %s321
      %p323 = scmp.eq.s32.totalorder %s34, 0
      %p324 = por %p322, %p323
      %p325 = scmp.le.s32.totalorder 1, %s28
      %p326 = scmp.lt.s32.totalorder %s28, 5
      %p327 = pnand %p325, %p326
      %p328 = pneg %p327
      // Predicated region
      $region9: #{tpu_custom_call.1} parent=5 // pred_check
        _
      $region10: #{tpu_custom_call.1} parent=5 // pred_check_branch
        %330 = sbr.rel (%p327) target = $region12
      $region11: #{tpu_custom_call.1} parent=5 // pred_region
        %s331 = ssub.s32 %s28, 1
        // Predicated region
        $region13: #{tpu_custom_call.1} parent=11 // pred_check
          %p332 = pneg %p121
        $region14: #{tpu_custom_call.1} parent=11 // pred_check_branch
          %334 = sbr.rel (%p332) target = $region16
        $region15: #{tpu_custom_call.1} parent=11 // pred_region
          %336 = vsyncadd [#allocation7], 0
          %s338 = sshll.u32 %s2, 4
          %s339 = int_to_ptr.hbm [resolvable:$true] %s338
          %s340 = sshll.u32 [#allocation8], 4
          %s341 = int_to_ptr.vmem [resolvable:$true] %s340
          %343 = dma.hbm_to_vmem [thread:$0]  %s339, 128, %s341, [#allocation7]
        $region16: #{tpu_custom_call.1} parent=11 // pred_fallthru
          _
        // Predicated region
        $region17: #{tpu_custom_call.1} parent=11 // pred_check
          %p344 = pneg %p142
        $region18: #{tpu_custom_call.1} parent=11 // pred_check_branch
          %346 = sbr.rel (%p344) target = $region20
        $region19: #{tpu_custom_call.1} parent=11 // pred_region
          _
        $region20: #{tpu_custom_call.1} parent=11 // pred_fallthru
          _
        // Predicated region
        $region21: #{tpu_custom_call.1} parent=11 // pred_check
          %p347 = pneg %p163
        $region22: #{tpu_custom_call.1} parent=11 // pred_check_branch
          %349 = sbr.rel (%p347) target = $region24
        $region23: #{tpu_custom_call.1} parent=11 // pred_region
          _
        $region24: #{tpu_custom_call.1} parent=11 // pred_fallthru
          _
        // Predicated region
        $region25: #{tpu_custom_call.1} parent=11 // pred_check
          %p350 = pneg %p184
        $region26: #{tpu_custom_call.1} parent=11 // pred_check_branch
          %352 = sbr.rel (%p350) target = $region28
        $region27: #{tpu_custom_call.1} parent=11 // pred_region
          %354 = vsyncadd [#allocation10], 0
          %s356 = sshll.u32 %s5, 4
          %s357 = int_to_ptr.hbm [resolvable:$true] %s356
          %s358 = sshll.u32 [#allocation9], 4
          %s359 = int_to_ptr.vmem [resolvable:$true] %s358
          %361 = dma.hbm_to_vmem [thread:$0]  %s357, 16, %s359, [#allocation10]
        $region28: #{tpu_custom_call.1} parent=11 // pred_fallthru
          _
        // Predicated region
        $region29: #{tpu_custom_call.1} parent=11 // pred_check
          %p362 = pneg %p205
        $region30: #{tpu_custom_call.1} parent=11 // pred_check_branch
          %364 = sbr.rel (%p362) target = $region32
        $region31: #{tpu_custom_call.1} parent=11 // pred_region
          %366 = vsyncadd [#allocation10], 0
          %s367 = sshll.u32 %s6, 4
          %s368 = int_to_ptr.hbm [resolvable:$true] %s367
          %s369 = sshll.u32 [#allocation11], 4
          %s370 = int_to_ptr.vmem [resolvable:$true] %s369
          %375 = dma.hbm_to_vmem [thread:$0]  %s368, 3072, %s370, [#allocation10], 192, 192, 12
        $region32: #{tpu_custom_call.1} parent=11 // pred_fallthru
          _
        // Predicated region
        $region33: #{tpu_custom_call.1} parent=11 // pred_check
          %p376 = pneg %p226
        $region34: #{tpu_custom_call.1} parent=11 // pred_check_branch
          %378 = sbr.rel (%p376) target = $region36
        $region35: #{tpu_custom_call.1} parent=11 // pred_region
          _
        $region36: #{tpu_custom_call.1} parent=11 // pred_fallthru
          _
        // Predicated region
        $region37: #{tpu_custom_call.1} parent=11 // pred_check
          %p379 = pneg %p247
        $region38: #{tpu_custom_call.1} parent=11 // pred_check_branch
          %381 = sbr.rel (%p379) target = $region40
        $region39: #{tpu_custom_call.1} parent=11 // pred_region
          %383 = vsyncadd [#allocation13], 0
          %s384 = sshll.u32 %s8, 4
          %s385 = int_to_ptr.hbm [resolvable:$true] %s384
          %s386 = sshll.u32 [#allocation12], 4
          %s387 = int_to_ptr.vmem [resolvable:$true] %s386
          %392 = dma.hbm_to_vmem [thread:$0]  %s385, 3072, %s387, [#allocation13], 64, 64, 4
        $region40: #{tpu_custom_call.1} parent=11 // pred_fallthru
          _
        // Predicated region
        $region41: #{tpu_custom_call.1} parent=11 // pred_check
          %p393 = pneg %p268
        $region42: #{tpu_custom_call.1} parent=11 // pred_check_branch
          %395 = sbr.rel (%p393) target = $region44
        $region43: #{tpu_custom_call.1} parent=11 // pred_region
          _
        $region44: #{tpu_custom_call.1} parent=11 // pred_fallthru
          _
        // Predicated region
        $region45: #{tpu_custom_call.1} parent=11 // pred_check
          %p396 = pneg %p289
        $region46: #{tpu_custom_call.1} parent=11 // pred_check_branch
          %398 = sbr.rel (%p396) target = $region48
        $region47: #{tpu_custom_call.1} parent=11 // pred_region
          _
        $region48: #{tpu_custom_call.1} parent=11 // pred_fallthru
          _
      $region12: #{tpu_custom_call.1} parent=5 // pred_fallthru
        _
      %p399 = scmp.lt.s32.totalorder %s28, 4
      // Predicated region
      $region49: #{tpu_custom_call.1} parent=5 // pred_check
        %p400 = pneg %p399
      $region50: #{tpu_custom_call.1} parent=5 // pred_check_branch
        %402 = sbr.rel (%p400) target = $region52
      $region51: #{tpu_custom_call.1} parent=5 // pred_region
        // Predicated region
        $region53: #{tpu_custom_call.1} parent=51 // pred_check
          %p403 = pneg %p62
        $region54: #{tpu_custom_call.1} parent=51 // pred_check_branch
          %405 = sbr.rel (%p403) target = $region56
        $region55: #{tpu_custom_call.1} parent=51 // pred_region
          %s406 = sand.u32 %s52, 1
          %s407 = scalar_lea.sflag [#allocation4], %s406
          %s408 = sand.u32 %s52, 1
          %s409 = smul.addr %s408, 256
          %s410 = scalar_lea.vmem [#allocation3], %s409
          %s411 = smul.u32 32, %s36
          %s412 = ssub.s32 65, %s411
          %p413 = scmp.lt.s32.totalorder %s412, 32
          %s414 = scalar_select %p413, %s412, 32
          %s415 = smul.u32 8, %s414
          %s416 = ssub.s32 256, %s415
          %s417 = sshll.u32 %s416, 4
          %418 = vsyncadd %s407, %s417
          %p419 = scmp.ne.s32.totalorder 0, %s415
          %s420 = smul.addr %s35, 65
          %s421 = sadd.s32 %s411, %s420
          %s422 = smul.addr %s421, 8
          %s423 = scalar_lea.hbm %s0, %s422
          %s424 = smul.u32 8, %s414
          %s425 = sshll.u32 %s423, 4
          %s426 = int_to_ptr.hbm [resolvable:$true] %s425
          %s427 = sshll.u32 %s410, 4
          %s428 = int_to_ptr.vmem [resolvable:$true] %s427
          %s429 = sshll.u32 %s424, 4
          %433 = dma.hbm_to_vmem [thread:$0]  (%p419), %s426, %s429, %s428, %s407, 128, 128, 8
        $region56: #{tpu_custom_call.1} parent=51 // pred_fallthru
          _
        // Predicated region
        $region57: #{tpu_custom_call.1} parent=51 // pred_check
          %p434 = pneg %p94
        $region58: #{tpu_custom_call.1} parent=51 // pred_check_branch
          %436 = sbr.rel (%p434) target = $region60
        $region59: #{tpu_custom_call.1} parent=51 // pred_region
          %s437 = sand.u32 %s28, 1
          %s438 = scalar_lea.sflag [#allocation7], %s437
          %s439 = sand.u32 %s84, 1
          %s440 = smul.addr %s439, 8
          %s441 = scalar_lea.vmem [#allocation6], %s440
          %s442 = sadd.s32 %s36, 1
          %s443 = smul.u32 %s442, 32
          %445 = vsyncadd %s438, 0
          %s446 = smul.addr %s35, 65
          %s447 = sadd.s32 %s443, %s446
          %s448 = smul.addr %s447, 8
          %s449 = scalar_lea.hbm %s1, %s448
          %s451 = sshll.u32 %s449, 4
          %s452 = int_to_ptr.hbm [resolvable:$true] %s451
          %s453 = sshll.u32 %s441, 4
          %s454 = int_to_ptr.vmem [resolvable:$true] %s453
          %456 = dma.hbm_to_vmem [thread:$0]  %s452, 128, %s454, %s438
        $region60: #{tpu_custom_call.1} parent=51 // pred_fallthru
          _
      $region52: #{tpu_custom_call.1} parent=5 // pred_fallthru
        _
      %p457 = scmp.le.s32.totalorder 1, %s28
      %p458 = scmp.lt.s32.totalorder %s28, 5
      %p459 = pnand %p457, %p458
      %p460 = pneg %p459
      // Predicated region
      $region61: #{tpu_custom_call.1} parent=5 // pred_check
        _
      $region62: #{tpu_custom_call.1} parent=5 // pred_check_branch
        %462 = sbr.rel (%p459) target = $region64
      $region63: #{tpu_custom_call.1} parent=5 // pred_region
        %s463 = ssub.s32 %s28, 1
        %s464 = sand.u32 %s55, 1
        %s465 = scalar_lea.sflag [#allocation4], %s464
        %s466 = sand.u32 %s55, 1
        %s467 = smul.addr %s466, 256
        %s468 = scalar_lea.vmem [#allocation3], %s467
        // Predicated region
        $region65: #{tpu_custom_call.1} parent=63 // pred_check
          %p469 = pneg %p68
        $region66: #{tpu_custom_call.1} parent=63 // pred_check_branch
          %471 = sbr.rel (%p469) target = $region68
        $region67: #{tpu_custom_call.1} parent=63 // pred_region
          %473 = dma.done %s465, 4096
        $region68: #{tpu_custom_call.1} parent=63 // pred_fallthru
          _
        %s474 = sand.u32 %s33, 1
        %s475 = scalar_lea.sflag [#allocation7], %s474
        %s476 = sand.u32 %s87, 1
        %s477 = smul.addr %s476, 8
        %s478 = scalar_lea.vmem [#allocation6], %s477
        // Predicated region
        $region69: #{tpu_custom_call.1} parent=63 // pred_check
          %p479 = pneg %p100
        $region70: #{tpu_custom_call.1} parent=63 // pred_check_branch
          %481 = sbr.rel (%p479) target = $region72
        $region71: #{tpu_custom_call.1} parent=63 // pred_region
          %483 = dma.done %s475, 128
        $region72: #{tpu_custom_call.1} parent=63 // pred_fallthru
          _
        // Predicated region
        $region73: #{tpu_custom_call.1} parent=63 // pred_check
          %p484 = pneg %p121
        $region74: #{tpu_custom_call.1} parent=63 // pred_check_branch
          %486 = sbr.rel (%p484) target = $region76
        $region75: #{tpu_custom_call.1} parent=63 // pred_region
          %488 = dma.done [#allocation7], 128
        $region76: #{tpu_custom_call.1} parent=63 // pred_fallthru
          _
        // Predicated region
        $region77: #{tpu_custom_call.1} parent=63 // pred_check
          %p489 = pneg %p184
        $region78: #{tpu_custom_call.1} parent=63 // pred_check_branch
          %491 = sbr.rel (%p489) target = $region80
        $region79: #{tpu_custom_call.1} parent=63 // pred_region
          %493 = dma.done [#allocation10], 16
        $region80: #{tpu_custom_call.1} parent=63 // pred_fallthru
          _
        // Predicated region
        $region81: #{tpu_custom_call.1} parent=63 // pred_check
          %p494 = pneg %p205
        $region82: #{tpu_custom_call.1} parent=63 // pred_check_branch
          %496 = sbr.rel (%p494) target = $region84
        $region83: #{tpu_custom_call.1} parent=63 // pred_region
          %498 = dma.done [#allocation10], 3072
        $region84: #{tpu_custom_call.1} parent=63 // pred_fallthru
          _
        // Predicated region
        $region85: #{tpu_custom_call.1} parent=63 // pred_check
          %p499 = pneg %p247
        $region86: #{tpu_custom_call.1} parent=63 // pred_check_branch
          %501 = sbr.rel (%p499) target = $region88
        $region87: #{tpu_custom_call.1} parent=63 // pred_region
          %503 = dma.done [#allocation13], 3072
        $region88: #{tpu_custom_call.1} parent=63 // pred_fallthru
          _
        %s504 = sand.u32 %s55, 1
        %s505 = scalar_lea.sflag [#allocation4], %s504
        %s506 = sand.u32 %s55, 1
        %s507 = smul.addr %s506, 256
        %s508 = scalar_lea.vmem [#allocation3], %s507
        %p509 = pneg %p68
        %p510 = pneg %p65
        %s511 = sand.u32 %s33, 1
        %s512 = scalar_lea.sflag [#allocation7], %s511
        %s513 = sand.u32 %s87, 1
        %s514 = smul.addr %s513, 8
        %s515 = scalar_lea.vmem [#allocation6], %s514
        %p516 = pneg %p100
        %p517 = pneg %p97
        %p518 = pneg %p121
        %p519 = pneg %p118
        %p520 = pneg %p142
        %p521 = pneg %p139
        %p522 = pneg %p163
        %p523 = pneg %p160
        %p524 = pneg %p184
        %p525 = pneg %p181
        %p526 = pneg %p205
        %p527 = pneg %p202
        %p528 = pneg %p226
        %p529 = pneg %p223
        %p530 = pneg %p247
        %p531 = pneg %p244
        %p532 = pneg %p268
        %p533 = pneg %p265
        %p534 = pneg %p289
        %p535 = pneg %p286
        %p536 = pneg %p317
        %p537 = pneg %p314
        %s538 = sand.u32 %s304, 1
        %s539 = scalar_lea.sflag [#allocation5], %s538
        %s540 = sand.u32 %s304, 1
        %s541 = smul.addr %s540, 256
        %s542 = scalar_lea.vmem [#allocation14], %s541
        %s543 = smul.u32 32, %s38
        %s544 = ssub.s32 65, %s543
        %p545 = scmp.lt.s32.totalorder %s544, 32
        %s546 = scalar_select %p545, %s544, 32
        %s547 = smul.u32 8, %s546
        %s548 = sadd.s32 %s38, 1
        %s549 = smul.u32 %s548, 32
        %s550 = smul.u32 32, %s38
        %v551 = vld [vmem:[%s468] sm:$0xff]
        %v552 = vld [vmem:[%s468 + $0x8] sm:$0xff]
        %v553 = vld [vmem:[%s468 + $0x10] sm:$0xff]
        %v554 = vld [vmem:[%s468 + $0x18] sm:$0xff]
        %v555 = vld [vmem:[%s468 + $0x20] sm:$0xff]
        %v556 = vld [vmem:[%s468 + $0x28] sm:$0xff]
        %v557 = vld [vmem:[%s468 + $0x30] sm:$0xff]
        %v558 = vld [vmem:[%s468 + $0x38] sm:$0xff]
        %v559 = vld [vmem:[%s468 + $0x40] sm:$0xff]
        %v560 = vld [vmem:[%s468 + $0x48] sm:$0xff]
        %v561 = vld [vmem:[%s468 + $0x50] sm:$0xff]
        %v562 = vld [vmem:[%s468 + $0x58] sm:$0xff]
        %v563 = vld [vmem:[%s468 + $0x60] sm:$0xff]
        %v564 = vld [vmem:[%s468 + $0x68] sm:$0xff]
        %v565 = vld [vmem:[%s468 + $0x70] sm:$0xff]
        %v566 = vld [vmem:[%s468 + $0x78] sm:$0xff]
        %v567 = vld [vmem:[%s468 + $0x80] sm:$0xff]
        %v568 = vld [vmem:[%s468 + $0x88] sm:$0xff]
        %v569 = vld [vmem:[%s468 + $0x90] sm:$0xff]
        %v570 = vld [vmem:[%s468 + $0x98] sm:$0xff]
        %v571 = vld [vmem:[%s468 + $0xa0] sm:$0xff]
        %v572 = vld [vmem:[%s468 + $0xa8] sm:$0xff]
        %v573 = vld [vmem:[%s468 + $0xb0] sm:$0xff]
        %v574 = vld [vmem:[%s468 + $0xb8] sm:$0xff]
        %v575 = vld [vmem:[%s468 + $0xc0] sm:$0xff]
        %v576 = vld [vmem:[%s468 + $0xc8] sm:$0xff]
        %v577 = vld [vmem:[%s468 + $0xd0] sm:$0xff]
        %v578 = vld [vmem:[%s468 + $0xd8] sm:$0xff]
        %v579 = vld [vmem:[%s468 + $0xe0] sm:$0xff]
        %v580 = vld [vmem:[%s468 + $0xe8] sm:$0xff]
        %v581 = vld [vmem:[%s468 + $0xf0] sm:$0xff]
        %v582 = vld [vmem:[%s468 + $0xf8] sm:$0xff]
        %583 = vst [vmem:[#allocation2] sm:$0xff] %v551
        %584 = vst [vmem:[#allocation2 + $0x8] sm:$0xff] %v552
        %585 = vst [vmem:[#allocation2 + $0x10] sm:$0xff] %v553
        %586 = vst [vmem:[#allocation2 + $0x18] sm:$0xff] %v554
        %587 = vst [vmem:[#allocation2 + $0x20] sm:$0xff] %v555
        %588 = vst [vmem:[#allocation2 + $0x28] sm:$0xff] %v556
        %589 = vst [vmem:[#allocation2 + $0x30] sm:$0xff] %v557
        %590 = vst [vmem:[#allocation2 + $0x38] sm:$0xff] %v558
        %591 = vst [vmem:[#allocation2 + $0x40] sm:$0xff] %v559
        %592 = vst [vmem:[#allocation2 + $0x48] sm:$0xff] %v560
        %593 = vst [vmem:[#allocation2 + $0x50] sm:$0xff] %v561
        %594 = vst [vmem:[#allocation2 + $0x58] sm:$0xff] %v562
        %595 = vst [vmem:[#allocation2 + $0x60] sm:$0xff] %v563
        %596 = vst [vmem:[#allocation2 + $0x68] sm:$0xff] %v564
        %597 = vst [vmem:[#allocation2 + $0x70] sm:$0xff] %v565
        %598 = vst [vmem:[#allocation2 + $0x78] sm:$0xff] %v566
        %599 = vst [vmem:[#allocation2 + $0x80] sm:$0xff] %v567
        %600 = vst [vmem:[#allocation2 + $0x88] sm:$0xff] %v568
        %601 = vst [vmem:[#allocation2 + $0x90] sm:$0xff] %v569
        %602 = vst [vmem:[#allocation2 + $0x98] sm:$0xff] %v570
        %603 = vst [vmem:[#allocation2 + $0xa0] sm:$0xff] %v571
        %604 = vst [vmem:[#allocation2 + $0xa8] sm:$0xff] %v572
        %605 = vst [vmem:[#allocation2 + $0xb0] sm:$0xff] %v573
        %606 = vst [vmem:[#allocation2 + $0xb8] sm:$0xff] %v574
        %607 = vst [vmem:[#allocation2 + $0xc0] sm:$0xff] %v575
        %608 = vst [vmem:[#allocation2 + $0xc8] sm:$0xff] %v576
        %609 = vst [vmem:[#allocation2 + $0xd0] sm:$0xff] %v577
        %610 = vst [vmem:[#allocation2 + $0xd8] sm:$0xff] %v578
        %611 = vst [vmem:[#allocation2 + $0xe0] sm:$0xff] %v579
        %612 = vst [vmem:[#allocation2 + $0xe8] sm:$0xff] %v580
        %613 = vst [vmem:[#allocation2 + $0xf0] sm:$0xff] %v581
        %614 = vst [vmem:[#allocation2 + $0xf8] sm:$0xff] %v582
        %v615 = vld [vmem:[%s478] sm:$0xff]
        %616 = vst [vmem:[#allocation2 + $0x100] sm:$0xff] %v615
        %v617 = vld [vmem:[#allocation2] sm:$0xff]
        %v618 = vld [vmem:[#allocation2 + $0x8] sm:$0xff]
        %v619 = vld [vmem:[#allocation2 + $0x10] sm:$0xff]
        %v620 = vld [vmem:[#allocation2 + $0x18] sm:$0xff]
        %v621 = vld [vmem:[#allocation2 + $0x20] sm:$0xff]
        %v622 = vld [vmem:[#allocation2 + $0x28] sm:$0xff]
        %v623 = vld [vmem:[#allocation2 + $0x30] sm:$0xff]
        %v624 = vld [vmem:[#allocation2 + $0x38] sm:$0xff]
        %v625 = vld [vmem:[#allocation2 + $0x40] sm:$0xff]
        %v626 = vld [vmem:[#allocation2 + $0x48] sm:$0xff]
        %v627 = vld [vmem:[#allocation2 + $0x50] sm:$0xff]
        %v628 = vld [vmem:[#allocation2 + $0x58] sm:$0xff]
        %v629 = vld [vmem:[#allocation2 + $0x60] sm:$0xff]
        %v630 = vld [vmem:[#allocation2 + $0x68] sm:$0xff]
        %v631 = vld [vmem:[#allocation2 + $0x70] sm:$0xff]
        %v632 = vld [vmem:[#allocation2 + $0x78] sm:$0xff]
        %v633 = vld [vmem:[#allocation2 + $0x80] sm:$0xff]
        %v634 = vld [vmem:[#allocation2 + $0x88] sm:$0xff]
        %v635 = vld [vmem:[#allocation2 + $0x90] sm:$0xff]
        %v636 = vld [vmem:[#allocation2 + $0x98] sm:$0xff]
        %v637 = vld [vmem:[#allocation2 + $0xa0] sm:$0xff]
        %v638 = vld [vmem:[#allocation2 + $0xa8] sm:$0xff]
        %v639 = vld [vmem:[#allocation2 + $0xb0] sm:$0xff]
        %v640 = vld [vmem:[#allocation2 + $0xb8] sm:$0xff]
        %v641 = vld [vmem:[#allocation2 + $0xc0] sm:$0xff]
        %v642 = vld [vmem:[#allocation2 + $0xc8] sm:$0xff]
        %v643 = vld [vmem:[#allocation2 + $0xd0] sm:$0xff]
        %v644 = vld [vmem:[#allocation2 + $0xd8] sm:$0xff]
        %v645 = vld [vmem:[#allocation2 + $0xe0] sm:$0xff]
        %v646 = vld [vmem:[#allocation2 + $0xe8] sm:$0xff]
        %v647 = vld [vmem:[#allocation2 + $0xf0] sm:$0xff]
        %v648 = vld [vmem:[#allocation2 + $0xf8] sm:$0xff]
        %v649 = vld [vmem:[#allocation8] sm:$0x1]
        %v650 = vperm.slane %v649, 0
        %v651 = vmul.f32 %v617, %v650
        %v652 = vmul.f32 %v618, %v650
        %v653 = vmul.f32 %v619, %v650
        %v654 = vmul.f32 %v620, %v650
        %v655 = vmul.f32 %v621, %v650
        %v656 = vmul.f32 %v622, %v650
        %v657 = vmul.f32 %v623, %v650
        %v658 = vmul.f32 %v624, %v650
        %v659 = vmul.f32 %v625, %v650
        %v660 = vmul.f32 %v626, %v650
        %v661 = vmul.f32 %v627, %v650
        %v662 = vmul.f32 %v628, %v650
        %v663 = vmul.f32 %v629, %v650
        %v664 = vmul.f32 %v630, %v650
        %v665 = vmul.f32 %v631, %v650
        %v666 = vmul.f32 %v632, %v650
        %v667 = vmul.f32 %v633, %v650
        %v668 = vmul.f32 %v634, %v650
        %v669 = vmul.f32 %v635, %v650
        %v670 = vmul.f32 %v636, %v650
        %v671 = vmul.f32 %v637, %v650
        %v672 = vmul.f32 %v638, %v650
        %v673 = vmul.f32 %v639, %v650
        %v674 = vmul.f32 %v640, %v650
        %v675 = vmul.f32 %v641, %v650
        %v676 = vmul.f32 %v642, %v650
        %v677 = vmul.f32 %v643, %v650
        %v678 = vmul.f32 %v644, %v650
        %v679 = vmul.f32 %v645, %v650
        %v680 = vmul.f32 %v646, %v650
        %v681 = vmul.f32 %v647, %v650
        %v682 = vmul.f32 %v648, %v650
        %v683 = vadd.f32 %v651, 0.0
        %v684 = vadd.f32 %v652, 0.0
        %v685 = vadd.f32 %v653, 0.0
        %v686 = vadd.f32 %v654, 0.0
        %v687 = vadd.f32 %v655, 0.0
        %v688 = vadd.f32 %v656, 0.0
        %v689 = vadd.f32 %v657, 0.0
        %v690 = vadd.f32 %v658, 0.0
        %v691 = vadd.f32 %v659, 0.0
        %v692 = vadd.f32 %v660, 0.0
        %v693 = vadd.f32 %v661, 0.0
        %v694 = vadd.f32 %v662, 0.0
        %v695 = vadd.f32 %v663, 0.0
        %v696 = vadd.f32 %v664, 0.0
        %v697 = vadd.f32 %v665, 0.0
        %v698 = vadd.f32 %v666, 0.0
        %v699 = vadd.f32 %v667, 0.0
        %v700 = vadd.f32 %v668, 0.0
        %v701 = vadd.f32 %v669, 0.0
        %v702 = vadd.f32 %v670, 0.0
        %v703 = vadd.f32 %v671, 0.0
        %v704 = vadd.f32 %v672, 0.0
        %v705 = vadd.f32 %v673, 0.0
        %v706 = vadd.f32 %v674, 0.0
        %v707 = vadd.f32 %v675, 0.0
        %v708 = vadd.f32 %v676, 0.0
        %v709 = vadd.f32 %v677, 0.0
        %v710 = vadd.f32 %v678, 0.0
        %v711 = vadd.f32 %v679, 0.0
        %v712 = vadd.f32 %v680, 0.0
        %v713 = vadd.f32 %v681, 0.0
        %v714 = vadd.f32 %v682, 0.0
        %v715 = vld [vmem:[#allocation2 + $0x1] sm:$0xff]
        %v716 = vld [vmem:[#allocation2 + $0x9] sm:$0xff]
        %v717 = vld [vmem:[#allocation2 + $0x11] sm:$0xff]
        %v718 = vld [vmem:[#allocation2 + $0x19] sm:$0xff]
        %v719 = vld [vmem:[#allocation2 + $0x21] sm:$0xff]
        %v720 = vld [vmem:[#allocation2 + $0x29] sm:$0xff]
        %v721 = vld [vmem:[#allocation2 + $0x31] sm:$0xff]
        %v722 = vld [vmem:[#allocation2 + $0x39] sm:$0xff]
        %v723 = vld [vmem:[#allocation2 + $0x41] sm:$0xff]
        %v724 = vld [vmem:[#allocation2 + $0x49] sm:$0xff]
        %v725 = vld [vmem:[#allocation2 + $0x51] sm:$0xff]
        %v726 = vld [vmem:[#allocation2 + $0x59] sm:$0xff]
        %v727 = vld [vmem:[#allocation2 + $0x61] sm:$0xff]
        %v728 = vld [vmem:[#allocation2 + $0x69] sm:$0xff]
        %v729 = vld [vmem:[#allocation2 + $0x71] sm:$0xff]
        %v730 = vld [vmem:[#allocation2 + $0x79] sm:$0xff]
        %v731 = vld [vmem:[#allocation2 + $0x81] sm:$0xff]
        %v732 = vld [vmem:[#allocation2 + $0x89] sm:$0xff]
        %v733 = vld [vmem:[#allocation2 + $0x91] sm:$0xff]
        %v734 = vld [vmem:[#allocation2 + $0x99] sm:$0xff]
        %v735 = vld [vmem:[#allocation2 + $0xa1] sm:$0xff]
        %v736 = vld [vmem:[#allocation2 + $0xa9] sm:$0xff]
        %v737 = vld [vmem:[#allocation2 + $0xb1] sm:$0xff]
        %v738 = vld [vmem:[#allocation2 + $0xb9] sm:$0xff]
        %v739 = vld [vmem:[#allocation2 + $0xc1] sm:$0xff]
        %v740 = vld [vmem:[#allocation2 + $0xc9] sm:$0xff]
        %v741 = vld [vmem:[#allocation2 + $0xd1] sm:$0xff]
        %v742 = vld [vmem:[#allocation2 + $0xd9] sm:$0xff]
        %v743 = vld [vmem:[#allocation2 + $0xe1] sm:$0xff]
        %v744 = vld [vmem:[#allocation2 + $0xe9] sm:$0xff]
        %v745 = vld [vmem:[#allocation2 + $0xf1] sm:$0xff]
        %v746 = vld [vmem:[#allocation2 + $0xf9] sm:$0xff]
        %v747 = vld [vmem:[#allocation8 + $0x1] sm:$0x1]
        %v748 = vperm.slane %v747, 0
        %v749 = vmul.f32 %v715, %v748
        %v750 = vmul.f32 %v716, %v748
        %v751 = vmul.f32 %v717, %v748
        %v752 = vmul.f32 %v718, %v748
        %v753 = vmul.f32 %v719, %v748
        %v754 = vmul.f32 %v720, %v748
        %v755 = vmul.f32 %v721, %v748
        %v756 = vmul.f32 %v722, %v748
        %v757 = vmul.f32 %v723, %v748
        %v758 = vmul.f32 %v724, %v748
        %v759 = vmul.f32 %v725, %v748
        %v760 = vmul.f32 %v726, %v748
        %v761 = vmul.f32 %v727, %v748
        %v762 = vmul.f32 %v728, %v748
        %v763 = vmul.f32 %v729, %v748
        %v764 = vmul.f32 %v730, %v748
        %v765 = vmul.f32 %v731, %v748
        %v766 = vmul.f32 %v732, %v748
        %v767 = vmul.f32 %v733, %v748
        %v768 = vmul.f32 %v734, %v748
        %v769 = vmul.f32 %v735, %v748
        %v770 = vmul.f32 %v736, %v748
        %v771 = vmul.f32 %v737, %v748
        %v772 = vmul.f32 %v738, %v748
        %v773 = vmul.f32 %v739, %v748
        %v774 = vmul.f32 %v740, %v748
        %v775 = vmul.f32 %v741, %v748
        %v776 = vmul.f32 %v742, %v748
        %v777 = vmul.f32 %v743, %v748
        %v778 = vmul.f32 %v744, %v748
        %v779 = vmul.f32 %v745, %v748
        %v780 = vmul.f32 %v746, %v748
        %v781 = vadd.f32 %v683, %v749
        %v782 = vadd.f32 %v684, %v750
        %v783 = vadd.f32 %v685, %v751
        %v784 = vadd.f32 %v686, %v752
        %v785 = vadd.f32 %v687, %v753
        %v786 = vadd.f32 %v688, %v754
        %v787 = vadd.f32 %v689, %v755
        %v788 = vadd.f32 %v690, %v756
        %v789 = vadd.f32 %v691, %v757
        %v790 = vadd.f32 %v692, %v758
        %v791 = vadd.f32 %v693, %v759
        %v792 = vadd.f32 %v694, %v760
        %v793 = vadd.f32 %v695, %v761
        %v794 = vadd.f32 %v696, %v762
        %v795 = vadd.f32 %v697, %v763
        %v796 = vadd.f32 %v698, %v764
        %v797 = vadd.f32 %v699, %v765
        %v798 = vadd.f32 %v700, %v766
        %v799 = vadd.f32 %v701, %v767
        %v800 = vadd.f32 %v702, %v768
        %v801 = vadd.f32 %v703, %v769
        %v802 = vadd.f32 %v704, %v770
        %v803 = vadd.f32 %v705, %v771
        %v804 = vadd.f32 %v706, %v772
        %v805 = vadd.f32 %v707, %v773
        %v806 = vadd.f32 %v708, %v774
        %v807 = vadd.f32 %v709, %v775
        %v808 = vadd.f32 %v710, %v776
        %v809 = vadd.f32 %v711, %v777
        %v810 = vadd.f32 %v712, %v778
        %v811 = vadd.f32 %v713, %v779
        %v812 = vadd.f32 %v714, %v780
        %v813 = vld [vmem:[#allocation2 + $0x2] sm:$0xff]
        %v814 = vld [vmem:[#allocation2 + $0xa] sm:$0xff]
        %v815 = vld [vmem:[#allocation2 + $0x12] sm:$0xff]
        %v816 = vld [vmem:[#allocation2 + $0x1a] sm:$0xff]
        %v817 = vld [vmem:[#allocation2 + $0x22] sm:$0xff]
        %v818 = vld [vmem:[#allocation2 + $0x2a] sm:$0xff]
        %v819 = vld [vmem:[#allocation2 + $0x32] sm:$0xff]
        %v820 = vld [vmem:[#allocation2 + $0x3a] sm:$0xff]
        %v821 = vld [vmem:[#allocation2 + $0x42] sm:$0xff]
        %v822 = vld [vmem:[#allocation2 + $0x4a] sm:$0xff]
        %v823 = vld [vmem:[#allocation2 + $0x52] sm:$0xff]
        %v824 = vld [vmem:[#allocation2 + $0x5a] sm:$0xff]
        %v825 = vld [vmem:[#allocation2 + $0x62] sm:$0xff]
        %v826 = vld [vmem:[#allocation2 + $0x6a] sm:$0xff]
        %v827 = vld [vmem:[#allocation2 + $0x72] sm:$0xff]
        %v828 = vld [vmem:[#allocation2 + $0x7a] sm:$0xff]
        %v829 = vld [vmem:[#allocation2 + $0x82] sm:$0xff]
        %v830 = vld [vmem:[#allocation2 + $0x8a] sm:$0xff]
        %v831 = vld [vmem:[#allocation2 + $0x92] sm:$0xff]
        %v832 = vld [vmem:[#allocation2 + $0x9a] sm:$0xff]
        %v833 = vld [vmem:[#allocation2 + $0xa2] sm:$0xff]
        %v834 = vld [vmem:[#allocation2 + $0xaa] sm:$0xff]
        %v835 = vld [vmem:[#allocation2 + $0xb2] sm:$0xff]
        %v836 = vld [vmem:[#allocation2 + $0xba] sm:$0xff]
        %v837 = vld [vmem:[#allocation2 + $0xc2] sm:$0xff]
        %v838 = vld [vmem:[#allocation2 + $0xca] sm:$0xff]
        %v839 = vld [vmem:[#allocation2 + $0xd2] sm:$0xff]
        %v840 = vld [vmem:[#allocation2 + $0xda] sm:$0xff]
        %v841 = vld [vmem:[#allocation2 + $0xe2] sm:$0xff]
        %v842 = vld [vmem:[#allocation2 + $0xea] sm:$0xff]
        %v843 = vld [vmem:[#allocation2 + $0xf2] sm:$0xff]
        %v844 = vld [vmem:[#allocation2 + $0xfa] sm:$0xff]
        %v845 = vld [vmem:[#allocation8 + $0x2] sm:$0x1]
        %v846 = vperm.slane %v845, 0
        %v847 = vmul.f32 %v813, %v846
        %v848 = vmul.f32 %v814, %v846
        %v849 = vmul.f32 %v815, %v846
        %v850 = vmul.f32 %v816, %v846
        %v851 = vmul.f32 %v817, %v846
        %v852 = vmul.f32 %v818, %v846
        %v853 = vmul.f32 %v819, %v846
        %v854 = vmul.f32 %v820, %v846
        %v855 = vmul.f32 %v821, %v846
        %v856 = vmul.f32 %v822, %v846
        %v857 = vmul.f32 %v823, %v846
        %v858 = vmul.f32 %v824, %v846
        %v859 = vmul.f32 %v825, %v846
        %v860 = vmul.f32 %v826, %v846
        %v861 = vmul.f32 %v827, %v846
        %v862 = vmul.f32 %v828, %v846
        %v863 = vmul.f32 %v829, %v846
        %v864 = vmul.f32 %v830, %v846
        %v865 = vmul.f32 %v831, %v846
        %v866 = vmul.f32 %v832, %v846
        %v867 = vmul.f32 %v833, %v846
        %v868 = vmul.f32 %v834, %v846
        %v869 = vmul.f32 %v835, %v846
        %v870 = vmul.f32 %v836, %v846
        %v871 = vmul.f32 %v837, %v846
        %v872 = vmul.f32 %v838, %v846
        %v873 = vmul.f32 %v839, %v846
        %v874 = vmul.f32 %v840, %v846
        %v875 = vmul.f32 %v841, %v846
        %v876 = vmul.f32 %v842, %v846
        %v877 = vmul.f32 %v843, %v846
        %v878 = vmul.f32 %v844, %v846
        %v879 = vadd.f32 %v781, %v847
        %v880 = vadd.f32 %v782, %v848
        %v881 = vadd.f32 %v783, %v849
        %v882 = vadd.f32 %v784, %v850
        %v883 = vadd.f32 %v785, %v851
        %v884 = vadd.f32 %v786, %v852
        %v885 = vadd.f32 %v787, %v853
        %v886 = vadd.f32 %v788, %v854
        %v887 = vadd.f32 %v789, %v855
        %v888 = vadd.f32 %v790, %v856
        %v889 = vadd.f32 %v791, %v857
        %v890 = vadd.f32 %v792, %v858
        %v891 = vadd.f32 %v793, %v859
        %v892 = vadd.f32 %v794, %v860
        %v893 = vadd.f32 %v795, %v861
        %v894 = vadd.f32 %v796, %v862
        %v895 = vadd.f32 %v797, %v863
        %v896 = vadd.f32 %v798, %v864
        %v897 = vadd.f32 %v799, %v865
        %v898 = vadd.f32 %v800, %v866
        %v899 = vadd.f32 %v801, %v867
        %v900 = vadd.f32 %v802, %v868
        %v901 = vadd.f32 %v803, %v869
        %v902 = vadd.f32 %v804, %v870
        %v903 = vadd.f32 %v805, %v871
        %v904 = vadd.f32 %v806, %v872
        %v905 = vadd.f32 %v807, %v873
        %v906 = vadd.f32 %v808, %v874
        %v907 = vadd.f32 %v809, %v875
        %v908 = vadd.f32 %v810, %v876
        %v909 = vadd.f32 %v811, %v877
        %v910 = vadd.f32 %v812, %v878
        %v911 = vld [vmem:[#allocation2 + $0x3] sm:$0xff]
        %v912 = vld [vmem:[#allocation2 + $0xb] sm:$0xff]
        %v913 = vld [vmem:[#allocation2 + $0x13] sm:$0xff]
        %v914 = vld [vmem:[#allocation2 + $0x1b] sm:$0xff]
        %v915 = vld [vmem:[#allocation2 + $0x23] sm:$0xff]
        %v916 = vld [vmem:[#allocation2 + $0x2b] sm:$0xff]
        %v917 = vld [vmem:[#allocation2 + $0x33] sm:$0xff]
        %v918 = vld [vmem:[#allocation2 + $0x3b] sm:$0xff]
        %v919 = vld [vmem:[#allocation2 + $0x43] sm:$0xff]
        %v920 = vld [vmem:[#allocation2 + $0x4b] sm:$0xff]
        %v921 = vld [vmem:[#allocation2 + $0x53] sm:$0xff]
        %v922 = vld [vmem:[#allocation2 + $0x5b] sm:$0xff]
        %v923 = vld [vmem:[#allocation2 + $0x63] sm:$0xff]
        %v924 = vld [vmem:[#allocation2 + $0x6b] sm:$0xff]
        %v925 = vld [vmem:[#allocation2 + $0x73] sm:$0xff]
        %v926 = vld [vmem:[#allocation2 + $0x7b] sm:$0xff]
        %v927 = vld [vmem:[#allocation2 + $0x83] sm:$0xff]
        %v928 = vld [vmem:[#allocation2 + $0x8b] sm:$0xff]
        %v929 = vld [vmem:[#allocation2 + $0x93] sm:$0xff]
        %v930 = vld [vmem:[#allocation2 + $0x9b] sm:$0xff]
        %v931 = vld [vmem:[#allocation2 + $0xa3] sm:$0xff]
        %v932 = vld [vmem:[#allocation2 + $0xab] sm:$0xff]
        %v933 = vld [vmem:[#allocation2 + $0xb3] sm:$0xff]
        %v934 = vld [vmem:[#allocation2 + $0xbb] sm:$0xff]
        %v935 = vld [vmem:[#allocation2 + $0xc3] sm:$0xff]
        %v936 = vld [vmem:[#allocation2 + $0xcb] sm:$0xff]
        %v937 = vld [vmem:[#allocation2 + $0xd3] sm:$0xff]
        %v938 = vld [vmem:[#allocation2 + $0xdb] sm:$0xff]
        %v939 = vld [vmem:[#allocation2 + $0xe3] sm:$0xff]
        %v940 = vld [vmem:[#allocation2 + $0xeb] sm:$0xff]
        %v941 = vld [vmem:[#allocation2 + $0xf3] sm:$0xff]
        %v942 = vld [vmem:[#allocation2 + $0xfb] sm:$0xff]
        %v943 = vld [vmem:[#allocation8 + $0x3] sm:$0x1]
        %v944 = vperm.slane %v943, 0
        %v945 = vmul.f32 %v911, %v944
        %v946 = vmul.f32 %v912, %v944
        %v947 = vmul.f32 %v913, %v944
        %v948 = vmul.f32 %v914, %v944
        %v949 = vmul.f32 %v915, %v944
        %v950 = vmul.f32 %v916, %v944
        %v951 = vmul.f32 %v917, %v944
        %v952 = vmul.f32 %v918, %v944
        %v953 = vmul.f32 %v919, %v944
        %v954 = vmul.f32 %v920, %v944
        %v955 = vmul.f32 %v921, %v944
        %v956 = vmul.f32 %v922, %v944
        %v957 = vmul.f32 %v923, %v944
        %v958 = vmul.f32 %v924, %v944
        %v959 = vmul.f32 %v925, %v944
        %v960 = vmul.f32 %v926, %v944
        %v961 = vmul.f32 %v927, %v944
        %v962 = vmul.f32 %v928, %v944
        %v963 = vmul.f32 %v929, %v944
        %v964 = vmul.f32 %v930, %v944
        %v965 = vmul.f32 %v931, %v944
        %v966 = vmul.f32 %v932, %v944
        %v967 = vmul.f32 %v933, %v944
        %v968 = vmul.f32 %v934, %v944
        %v969 = vmul.f32 %v935, %v944
        %v970 = vmul.f32 %v936, %v944
        %v971 = vmul.f32 %v937, %v944
        %v972 = vmul.f32 %v938, %v944
        %v973 = vmul.f32 %v939, %v944
        %v974 = vmul.f32 %v940, %v944
        %v975 = vmul.f32 %v941, %v944
        %v976 = vmul.f32 %v942, %v944
        %v977 = vadd.f32 %v879, %v945
        %v978 = vadd.f32 %v880, %v946
        %v979 = vadd.f32 %v881, %v947
        %v980 = vadd.f32 %v882, %v948
        %v981 = vadd.f32 %v883, %v949
        %v982 = vadd.f32 %v884, %v950
        %v983 = vadd.f32 %v885, %v951
        %v984 = vadd.f32 %v886, %v952
        %v985 = vadd.f32 %v887, %v953
        %v986 = vadd.f32 %v888, %v954
        %v987 = vadd.f32 %v889, %v955
        %v988 = vadd.f32 %v890, %v956
        %v989 = vadd.f32 %v891, %v957
        %v990 = vadd.f32 %v892, %v958
        %v991 = vadd.f32 %v893, %v959
        %v992 = vadd.f32 %v894, %v960
        %v993 = vadd.f32 %v895, %v961
        %v994 = vadd.f32 %v896, %v962
        %v995 = vadd.f32 %v897, %v963
        %v996 = vadd.f32 %v898, %v964
        %v997 = vadd.f32 %v899, %v965
        %v998 = vadd.f32 %v900, %v966
        %v999 = vadd.f32 %v901, %v967
        %v1000 = vadd.f32 %v902, %v968
        %v1001 = vadd.f32 %v903, %v969
        %v1002 = vadd.f32 %v904, %v970
        %v1003 = vadd.f32 %v905, %v971
        %v1004 = vadd.f32 %v906, %v972
        %v1005 = vadd.f32 %v907, %v973
        %v1006 = vadd.f32 %v908, %v974
        %v1007 = vadd.f32 %v909, %v975
        %v1008 = vadd.f32 %v910, %v976
        %v1009 = vld [vmem:[#allocation2 + $0x4] sm:$0xff]
        %v1010 = vld [vmem:[#allocation2 + $0xc] sm:$0xff]
        %v1011 = vld [vmem:[#allocation2 + $0x14] sm:$0xff]
        %v1012 = vld [vmem:[#allocation2 + $0x1c] sm:$0xff]
        %v1013 = vld [vmem:[#allocation2 + $0x24] sm:$0xff]
        %v1014 = vld [vmem:[#allocation2 + $0x2c] sm:$0xff]
        %v1015 = vld [vmem:[#allocation2 + $0x34] sm:$0xff]
        %v1016 = vld [vmem:[#allocation2 + $0x3c] sm:$0xff]
        %v1017 = vld [vmem:[#allocation2 + $0x44] sm:$0xff]
        %v1018 = vld [vmem:[#allocation2 + $0x4c] sm:$0xff]
        %v1019 = vld [vmem:[#allocation2 + $0x54] sm:$0xff]
        %v1020 = vld [vmem:[#allocation2 + $0x5c] sm:$0xff]
        %v1021 = vld [vmem:[#allocation2 + $0x64] sm:$0xff]
        %v1022 = vld [vmem:[#allocation2 + $0x6c] sm:$0xff]
        %v1023 = vld [vmem:[#allocation2 + $0x74] sm:$0xff]
        %v1024 = vld [vmem:[#allocation2 + $0x7c] sm:$0xff]
        %v1025 = vld [vmem:[#allocation2 + $0x84] sm:$0xff]
        %v1026 = vld [vmem:[#allocation2 + $0x8c] sm:$0xff]
        %v1027 = vld [vmem:[#allocation2 + $0x94] sm:$0xff]
        %v1028 = vld [vmem:[#allocation2 + $0x9c] sm:$0xff]
        %v1029 = vld [vmem:[#allocation2 + $0xa4] sm:$0xff]
        %v1030 = vld [vmem:[#allocation2 + $0xac] sm:$0xff]
        %v1031 = vld [vmem:[#allocation2 + $0xb4] sm:$0xff]
        %v1032 = vld [vmem:[#allocation2 + $0xbc] sm:$0xff]
        %v1033 = vld [vmem:[#allocation2 + $0xc4] sm:$0xff]
        %v1034 = vld [vmem:[#allocation2 + $0xcc] sm:$0xff]
        %v1035 = vld [vmem:[#allocation2 + $0xd4] sm:$0xff]
        %v1036 = vld [vmem:[#allocation2 + $0xdc] sm:$0xff]
        %v1037 = vld [vmem:[#allocation2 + $0xe4] sm:$0xff]
        %v1038 = vld [vmem:[#allocation2 + $0xec] sm:$0xff]
        %v1039 = vld [vmem:[#allocation2 + $0xf4] sm:$0xff]
        %v1040 = vld [vmem:[#allocation2 + $0xfc] sm:$0xff]
        %v1041 = vld [vmem:[#allocation8 + $0x4] sm:$0x1]
        %v1042 = vperm.slane %v1041, 0
        %v1043 = vmul.f32 %v1009, %v1042
        %v1044 = vmul.f32 %v1010, %v1042
        %v1045 = vmul.f32 %v1011, %v1042
        %v1046 = vmul.f32 %v1012, %v1042
        %v1047 = vmul.f32 %v1013, %v1042
        %v1048 = vmul.f32 %v1014, %v1042
        %v1049 = vmul.f32 %v1015, %v1042
        %v1050 = vmul.f32 %v1016, %v1042
        %v1051 = vmul.f32 %v1017, %v1042
        %v1052 = vmul.f32 %v1018, %v1042
        %v1053 = vmul.f32 %v1019, %v1042
        %v1054 = vmul.f32 %v1020, %v1042
        %v1055 = vmul.f32 %v1021, %v1042
        %v1056 = vmul.f32 %v1022, %v1042
        %v1057 = vmul.f32 %v1023, %v1042
        %v1058 = vmul.f32 %v1024, %v1042
        %v1059 = vmul.f32 %v1025, %v1042
        %v1060 = vmul.f32 %v1026, %v1042
        %v1061 = vmul.f32 %v1027, %v1042
        %v1062 = vmul.f32 %v1028, %v1042
        %v1063 = vmul.f32 %v1029, %v1042
        %v1064 = vmul.f32 %v1030, %v1042
        %v1065 = vmul.f32 %v1031, %v1042
        %v1066 = vmul.f32 %v1032, %v1042
        %v1067 = vmul.f32 %v1033, %v1042
        %v1068 = vmul.f32 %v1034, %v1042
        %v1069 = vmul.f32 %v1035, %v1042
        %v1070 = vmul.f32 %v1036, %v1042
        %v1071 = vmul.f32 %v1037, %v1042
        %v1072 = vmul.f32 %v1038, %v1042
        %v1073 = vmul.f32 %v1039, %v1042
        %v1074 = vmul.f32 %v1040, %v1042
        %v1075 = vadd.f32 %v977, %v1043
        %v1076 = vadd.f32 %v978, %v1044
        %v1077 = vadd.f32 %v979, %v1045
        %v1078 = vadd.f32 %v980, %v1046
        %v1079 = vadd.f32 %v981, %v1047
        %v1080 = vadd.f32 %v982, %v1048
        %v1081 = vadd.f32 %v983, %v1049
        %v1082 = vadd.f32 %v984, %v1050
        %v1083 = vadd.f32 %v985, %v1051
        %v1084 = vadd.f32 %v986, %v1052
        %v1085 = vadd.f32 %v987, %v1053
        %v1086 = vadd.f32 %v988, %v1054
        %v1087 = vadd.f32 %v989, %v1055
        %v1088 = vadd.f32 %v990, %v1056
        %v1089 = vadd.f32 %v991, %v1057
        %v1090 = vadd.f32 %v992, %v1058
        %v1091 = vadd.f32 %v993, %v1059
        %v1092 = vadd.f32 %v994, %v1060
        %v1093 = vadd.f32 %v995, %v1061
        %v1094 = vadd.f32 %v996, %v1062
        %v1095 = vadd.f32 %v997, %v1063
        %v1096 = vadd.f32 %v998, %v1064
        %v1097 = vadd.f32 %v999, %v1065
        %v1098 = vadd.f32 %v1000, %v1066
        %v1099 = vadd.f32 %v1001, %v1067
        %v1100 = vadd.f32 %v1002, %v1068
        %v1101 = vadd.f32 %v1003, %v1069
        %v1102 = vadd.f32 %v1004, %v1070
        %v1103 = vadd.f32 %v1005, %v1071
        %v1104 = vadd.f32 %v1006, %v1072
        %v1105 = vadd.f32 %v1007, %v1073
        %v1106 = vadd.f32 %v1008, %v1074
        %v1107 = vld [vmem:[#allocation2 + $0x5] sm:$0xff]
        %v1108 = vld [vmem:[#allocation2 + $0xd] sm:$0xff]
        %v1109 = vld [vmem:[#allocation2 + $0x15] sm:$0xff]
        %v1110 = vld [vmem:[#allocation2 + $0x1d] sm:$0xff]
        %v1111 = vld [vmem:[#allocation2 + $0x25] sm:$0xff]
        %v1112 = vld [vmem:[#allocation2 + $0x2d] sm:$0xff]
        %v1113 = vld [vmem:[#allocation2 + $0x35] sm:$0xff]
        %v1114 = vld [vmem:[#allocation2 + $0x3d] sm:$0xff]
        %v1115 = vld [vmem:[#allocation2 + $0x45] sm:$0xff]
        %v1116 = vld [vmem:[#allocation2 + $0x4d] sm:$0xff]
        %v1117 = vld [vmem:[#allocation2 + $0x55] sm:$0xff]
        %v1118 = vld [vmem:[#allocation2 + $0x5d] sm:$0xff]
        %v1119 = vld [vmem:[#allocation2 + $0x65] sm:$0xff]
        %v1120 = vld [vmem:[#allocation2 + $0x6d] sm:$0xff]
        %v1121 = vld [vmem:[#allocation2 + $0x75] sm:$0xff]
        %v1122 = vld [vmem:[#allocation2 + $0x7d] sm:$0xff]
        %v1123 = vld [vmem:[#allocation2 + $0x85] sm:$0xff]
        %v1124 = vld [vmem:[#allocation2 + $0x8d] sm:$0xff]
        %v1125 = vld [vmem:[#allocation2 + $0x95] sm:$0xff]
        %v1126 = vld [vmem:[#allocation2 + $0x9d] sm:$0xff]
        %v1127 = vld [vmem:[#allocation2 + $0xa5] sm:$0xff]
        %v1128 = vld [vmem:[#allocation2 + $0xad] sm:$0xff]
        %v1129 = vld [vmem:[#allocation2 + $0xb5] sm:$0xff]
        %v1130 = vld [vmem:[#allocation2 + $0xbd] sm:$0xff]
        %v1131 = vld [vmem:[#allocation2 + $0xc5] sm:$0xff]
        %v1132 = vld [vmem:[#allocation2 + $0xcd] sm:$0xff]
        %v1133 = vld [vmem:[#allocation2 + $0xd5] sm:$0xff]
        %v1134 = vld [vmem:[#allocation2 + $0xdd] sm:$0xff]
        %v1135 = vld [vmem:[#allocation2 + $0xe5] sm:$0xff]
        %v1136 = vld [vmem:[#allocation2 + $0xed] sm:$0xff]
        %v1137 = vld [vmem:[#allocation2 + $0xf5] sm:$0xff]
        %v1138 = vld [vmem:[#allocation2 + $0xfd] sm:$0xff]
        %v1139 = vld [vmem:[#allocation8 + $0x5] sm:$0x1]
        %v1140 = vperm.slane %v1139, 0
        %v1141 = vmul.f32 %v1107, %v1140
        %v1142 = vmul.f32 %v1108, %v1140
        %v1143 = vmul.f32 %v1109, %v1140
        %v1144 = vmul.f32 %v1110, %v1140
        %v1145 = vmul.f32 %v1111, %v1140
        %v1146 = vmul.f32 %v1112, %v1140
        %v1147 = vmul.f32 %v1113, %v1140
        %v1148 = vmul.f32 %v1114, %v1140
        %v1149 = vmul.f32 %v1115, %v1140
        %v1150 = vmul.f32 %v1116, %v1140
        %v1151 = vmul.f32 %v1117, %v1140
        %v1152 = vmul.f32 %v1118, %v1140
        %v1153 = vmul.f32 %v1119, %v1140
        %v1154 = vmul.f32 %v1120, %v1140
        %v1155 = vmul.f32 %v1121, %v1140
        %v1156 = vmul.f32 %v1122, %v1140
        %v1157 = vmul.f32 %v1123, %v1140
        %v1158 = vmul.f32 %v1124, %v1140
        %v1159 = vmul.f32 %v1125, %v1140
        %v1160 = vmul.f32 %v1126, %v1140
        %v1161 = vmul.f32 %v1127, %v1140
        %v1162 = vmul.f32 %v1128, %v1140
        %v1163 = vmul.f32 %v1129, %v1140
        %v1164 = vmul.f32 %v1130, %v1140
        %v1165 = vmul.f32 %v1131, %v1140
        %v1166 = vmul.f32 %v1132, %v1140
        %v1167 = vmul.f32 %v1133, %v1140
        %v1168 = vmul.f32 %v1134, %v1140
        %v1169 = vmul.f32 %v1135, %v1140
        %v1170 = vmul.f32 %v1136, %v1140
        %v1171 = vmul.f32 %v1137, %v1140
        %v1172 = vmul.f32 %v1138, %v1140
        %v1173 = vadd.f32 %v1075, %v1141
        %v1174 = vadd.f32 %v1076, %v1142
        %v1175 = vadd.f32 %v1077, %v1143
        %v1176 = vadd.f32 %v1078, %v1144
        %v1177 = vadd.f32 %v1079, %v1145
        %v1178 = vadd.f32 %v1080, %v1146
        %v1179 = vadd.f32 %v1081, %v1147
        %v1180 = vadd.f32 %v1082, %v1148
        %v1181 = vadd.f32 %v1083, %v1149
        %v1182 = vadd.f32 %v1084, %v1150
        %v1183 = vadd.f32 %v1085, %v1151
        %v1184 = vadd.f32 %v1086, %v1152
        %v1185 = vadd.f32 %v1087, %v1153
        %v1186 = vadd.f32 %v1088, %v1154
        %v1187 = vadd.f32 %v1089, %v1155
        %v1188 = vadd.f32 %v1090, %v1156
        %v1189 = vadd.f32 %v1091, %v1157
        %v1190 = vadd.f32 %v1092, %v1158
        %v1191 = vadd.f32 %v1093, %v1159
        %v1192 = vadd.f32 %v1094, %v1160
        %v1193 = vadd.f32 %v1095, %v1161
        %v1194 = vadd.f32 %v1096, %v1162
        %v1195 = vadd.f32 %v1097, %v1163
        %v1196 = vadd.f32 %v1098, %v1164
        %v1197 = vadd.f32 %v1099, %v1165
        %v1198 = vadd.f32 %v1100, %v1166
        %v1199 = vadd.f32 %v1101, %v1167
        %v1200 = vadd.f32 %v1102, %v1168
        %v1201 = vadd.f32 %v1103, %v1169
        %v1202 = vadd.f32 %v1104, %v1170
        %v1203 = vadd.f32 %v1105, %v1171
        %v1204 = vadd.f32 %v1106, %v1172
        %v1205 = vld [vmem:[#allocation2 + $0x6] sm:$0xff]
        %v1206 = vld [vmem:[#allocation2 + $0xe] sm:$0xff]
        %v1207 = vld [vmem:[#allocation2 + $0x16] sm:$0xff]
        %v1208 = vld [vmem:[#allocation2 + $0x1e] sm:$0xff]
        %v1209 = vld [vmem:[#allocation2 + $0x26] sm:$0xff]
        %v1210 = vld [vmem:[#allocation2 + $0x2e] sm:$0xff]
        %v1211 = vld [vmem:[#allocation2 + $0x36] sm:$0xff]
        %v1212 = vld [vmem:[#allocation2 + $0x3e] sm:$0xff]
        %v1213 = vld [vmem:[#allocation2 + $0x46] sm:$0xff]
        %v1214 = vld [vmem:[#allocation2 + $0x4e] sm:$0xff]
        %v1215 = vld [vmem:[#allocation2 + $0x56] sm:$0xff]
        %v1216 = vld [vmem:[#allocation2 + $0x5e] sm:$0xff]
        %v1217 = vld [vmem:[#allocation2 + $0x66] sm:$0xff]
        %v1218 = vld [vmem:[#allocation2 + $0x6e] sm:$0xff]
        %v1219 = vld [vmem:[#allocation2 + $0x76] sm:$0xff]
        %v1220 = vld [vmem:[#allocation2 + $0x7e] sm:$0xff]
        %v1221 = vld [vmem:[#allocation2 + $0x86] sm:$0xff]
        %v1222 = vld [vmem:[#allocation2 + $0x8e] sm:$0xff]
        %v1223 = vld [vmem:[#allocation2 + $0x96] sm:$0xff]
        %v1224 = vld [vmem:[#allocation2 + $0x9e] sm:$0xff]
        %v1225 = vld [vmem:[#allocation2 + $0xa6] sm:$0xff]
        %v1226 = vld [vmem:[#allocation2 + $0xae] sm:$0xff]
        %v1227 = vld [vmem:[#allocation2 + $0xb6] sm:$0xff]
        %v1228 = vld [vmem:[#allocation2 + $0xbe] sm:$0xff]
        %v1229 = vld [vmem:[#allocation2 + $0xc6] sm:$0xff]
        %v1230 = vld [vmem:[#allocation2 + $0xce] sm:$0xff]
        %v1231 = vld [vmem:[#allocation2 + $0xd6] sm:$0xff]
        %v1232 = vld [vmem:[#allocation2 + $0xde] sm:$0xff]
        %v1233 = vld [vmem:[#allocation2 + $0xe6] sm:$0xff]
        %v1234 = vld [vmem:[#allocation2 + $0xee] sm:$0xff]
        %v1235 = vld [vmem:[#allocation2 + $0xf6] sm:$0xff]
        %v1236 = vld [vmem:[#allocation2 + $0xfe] sm:$0xff]
        %v1237 = vld [vmem:[#allocation8 + $0x6] sm:$0x1]
        %v1238 = vperm.slane %v1237, 0
        %v1239 = vmul.f32 %v1205, %v1238
        %v1240 = vmul.f32 %v1206, %v1238
        %v1241 = vmul.f32 %v1207, %v1238
        %v1242 = vmul.f32 %v1208, %v1238
        %v1243 = vmul.f32 %v1209, %v1238
        %v1244 = vmul.f32 %v1210, %v1238
        %v1245 = vmul.f32 %v1211, %v1238
        %v1246 = vmul.f32 %v1212, %v1238
        %v1247 = vmul.f32 %v1213, %v1238
        %v1248 = vmul.f32 %v1214, %v1238
        %v1249 = vmul.f32 %v1215, %v1238
        %v1250 = vmul.f32 %v1216, %v1238
        %v1251 = vmul.f32 %v1217, %v1238
        %v1252 = vmul.f32 %v1218, %v1238
        %v1253 = vmul.f32 %v1219, %v1238
        %v1254 = vmul.f32 %v1220, %v1238
        %v1255 = vmul.f32 %v1221, %v1238
        %v1256 = vmul.f32 %v1222, %v1238
        %v1257 = vmul.f32 %v1223, %v1238
        %v1258 = vmul.f32 %v1224, %v1238
        %v1259 = vmul.f32 %v1225, %v1238
        %v1260 = vmul.f32 %v1226, %v1238
        %v1261 = vmul.f32 %v1227, %v1238
        %v1262 = vmul.f32 %v1228, %v1238
        %v1263 = vmul.f32 %v1229, %v1238
        %v1264 = vmul.f32 %v1230, %v1238
        %v1265 = vmul.f32 %v1231, %v1238
        %v1266 = vmul.f32 %v1232, %v1238
        %v1267 = vmul.f32 %v1233, %v1238
        %v1268 = vmul.f32 %v1234, %v1238
        %v1269 = vmul.f32 %v1235, %v1238
        %v1270 = vmul.f32 %v1236, %v1238
        %v1271 = vadd.f32 %v1173, %v1239
        %v1272 = vadd.f32 %v1174, %v1240
        %v1273 = vadd.f32 %v1175, %v1241
        %v1274 = vadd.f32 %v1176, %v1242
        %v1275 = vadd.f32 %v1177, %v1243
        %v1276 = vadd.f32 %v1178, %v1244
        %v1277 = vadd.f32 %v1179, %v1245
        %v1278 = vadd.f32 %v1180, %v1246
        %v1279 = vadd.f32 %v1181, %v1247
        %v1280 = vadd.f32 %v1182, %v1248
        %v1281 = vadd.f32 %v1183, %v1249
        %v1282 = vadd.f32 %v1184, %v1250
        %v1283 = vadd.f32 %v1185, %v1251
        %v1284 = vadd.f32 %v1186, %v1252
        %v1285 = vadd.f32 %v1187, %v1253
        %v1286 = vadd.f32 %v1188, %v1254
        %v1287 = vadd.f32 %v1189, %v1255
        %v1288 = vadd.f32 %v1190, %v1256
        %v1289 = vadd.f32 %v1191, %v1257
        %v1290 = vadd.f32 %v1192, %v1258
        %v1291 = vadd.f32 %v1193, %v1259
        %v1292 = vadd.f32 %v1194, %v1260
        %v1293 = vadd.f32 %v1195, %v1261
        %v1294 = vadd.f32 %v1196, %v1262
        %v1295 = vadd.f32 %v1197, %v1263
        %v1296 = vadd.f32 %v1198, %v1264
        %v1297 = vadd.f32 %v1199, %v1265
        %v1298 = vadd.f32 %v1200, %v1266
        %v1299 = vadd.f32 %v1201, %v1267
        %v1300 = vadd.f32 %v1202, %v1268
        %v1301 = vadd.f32 %v1203, %v1269
        %v1302 = vadd.f32 %v1204, %v1270
        %v1303 = vld [vmem:[%s3] sm:$0x1]
        %v1305 = vperm.slane %v1303, 0
        %v1307 = vadd.f32 %v1271, %v1305
        %v1308 = vadd.f32 %v1272, %v1305
        %v1309 = vadd.f32 %v1273, %v1305
        %v1310 = vadd.f32 %v1274, %v1305
        %v1311 = vadd.f32 %v1275, %v1305
        %v1312 = vadd.f32 %v1276, %v1305
        %v1313 = vadd.f32 %v1277, %v1305
        %v1314 = vadd.f32 %v1278, %v1305
        %v1315 = vadd.f32 %v1279, %v1305
        %v1316 = vadd.f32 %v1280, %v1305
        %v1317 = vadd.f32 %v1281, %v1305
        %v1318 = vadd.f32 %v1282, %v1305
        %v1319 = vadd.f32 %v1283, %v1305
        %v1320 = vadd.f32 %v1284, %v1305
        %v1321 = vadd.f32 %v1285, %v1305
        %v1322 = vadd.f32 %v1286, %v1305
        %v1323 = vadd.f32 %v1287, %v1305
        %v1324 = vadd.f32 %v1288, %v1305
        %v1325 = vadd.f32 %v1289, %v1305
        %v1326 = vadd.f32 %v1290, %v1305
        %v1327 = vadd.f32 %v1291, %v1305
        %v1328 = vadd.f32 %v1292, %v1305
        %v1329 = vadd.f32 %v1293, %v1305
        %v1330 = vadd.f32 %v1294, %v1305
        %v1331 = vadd.f32 %v1295, %v1305
        %v1332 = vadd.f32 %v1296, %v1305
        %v1333 = vadd.f32 %v1297, %v1305
        %v1334 = vadd.f32 %v1298, %v1305
        %v1335 = vadd.f32 %v1299, %v1305
        %v1336 = vadd.f32 %v1300, %v1305
        %v1337 = vadd.f32 %v1301, %v1305
        %v1338 = vadd.f32 %v1302, %v1305
        %1339 = vadd.xlane.f32.xlu0 %v1307
        %v1340 = vpop.xlane.xlu0 %1339
        %1341 = vadd.xlane.f32.xlu0 %v1308
        %v1342 = vpop.xlane.xlu0 %1341
        %1343 = vadd.xlane.f32.xlu0 %v1309
        %v1344 = vpop.xlane.xlu0 %1343
        %1345 = vadd.xlane.f32.xlu0 %v1310
        %v1346 = vpop.xlane.xlu0 %1345
        %1347 = vadd.xlane.f32.xlu0 %v1311
        %v1348 = vpop.xlane.xlu0 %1347
        %1349 = vadd.xlane.f32.xlu0 %v1312
        %v1350 = vpop.xlane.xlu0 %1349
        %1351 = vadd.xlane.f32.xlu0 %v1313
        %v1352 = vpop.xlane.xlu0 %1351
        %1353 = vadd.xlane.f32.xlu0 %v1314
        %v1354 = vpop.xlane.xlu0 %1353
        %1355 = vadd.xlane.f32.xlu0 %v1315
        %v1356 = vpop.xlane.xlu0 %1355
        %1357 = vadd.xlane.f32.xlu0 %v1316
        %v1358 = vpop.xlane.xlu0 %1357
        %1359 = vadd.xlane.f32.xlu0 %v1317
        %v1360 = vpop.xlane.xlu0 %1359
        %1361 = vadd.xlane.f32.xlu0 %v1318
        %v1362 = vpop.xlane.xlu0 %1361
        %1363 = vadd.xlane.f32.xlu0 %v1319
        %v1364 = vpop.xlane.xlu0 %1363
        %1365 = vadd.xlane.f32.xlu0 %v1320
        %v1366 = vpop.xlane.xlu0 %1365
        %1367 = vadd.xlane.f32.xlu0 %v1321
        %v1368 = vpop.xlane.xlu0 %1367
        %1369 = vadd.xlane.f32.xlu0 %v1322
        %v1370 = vpop.xlane.xlu0 %1369
        %1371 = vadd.xlane.f32.xlu0 %v1323
        %v1372 = vpop.xlane.xlu0 %1371
        %1373 = vadd.xlane.f32.xlu0 %v1324
        %v1374 = vpop.xlane.xlu0 %1373
        %1375 = vadd.xlane.f32.xlu0 %v1325
        %v1376 = vpop.xlane.xlu0 %1375
        %1377 = vadd.xlane.f32.xlu0 %v1326
        %v1378 = vpop.xlane.xlu0 %1377
        %1379 = vadd.xlane.f32.xlu0 %v1327
        %v1380 = vpop.xlane.xlu0 %1379
        %1381 = vadd.xlane.f32.xlu0 %v1328
        %v1382 = vpop.xlane.xlu0 %1381
        %1383 = vadd.xlane.f32.xlu0 %v1329
        %v1384 = vpop.xlane.xlu0 %1383
        %1385 = vadd.xlane.f32.xlu0 %v1330
        %v1386 = vpop.xlane.xlu0 %1385
        %1387 = vadd.xlane.f32.xlu0 %v1331
        %v1388 = vpop.xlane.xlu0 %1387
        %1389 = vadd.xlane.f32.xlu0 %v1332
        %v1390 = vpop.xlane.xlu0 %1389
        %1391 = vadd.xlane.f32.xlu0 %v1333
        %v1392 = vpop.xlane.xlu0 %1391
        %1393 = vadd.xlane.f32.xlu0 %v1334
        %v1394 = vpop.xlane.xlu0 %1393
        %1395 = vadd.xlane.f32.xlu0 %v1335
        %v1396 = vpop.xlane.xlu0 %1395
        %1397 = vadd.xlane.f32.xlu0 %v1336
        %v1398 = vpop.xlane.xlu0 %1397
        %1399 = vadd.xlane.f32.xlu0 %v1337
        %v1400 = vpop.xlane.xlu0 %1399
        %1401 = vadd.xlane.f32.xlu0 %v1338
        %v1402 = vpop.xlane.xlu0 %1401
        %v1403 = vmul.f32 %v1307, %v1307
        %v1404 = vmul.f32 %v1308, %v1308
        %v1405 = vmul.f32 %v1309, %v1309
        %v1406 = vmul.f32 %v1310, %v1310
        %v1407 = vmul.f32 %v1311, %v1311
        %v1408 = vmul.f32 %v1312, %v1312
        %v1409 = vmul.f32 %v1313, %v1313
        %v1410 = vmul.f32 %v1314, %v1314
        %v1411 = vmul.f32 %v1315, %v1315
        %v1412 = vmul.f32 %v1316, %v1316
        %v1413 = vmul.f32 %v1317, %v1317
        %v1414 = vmul.f32 %v1318, %v1318
        %v1415 = vmul.f32 %v1319, %v1319
        %v1416 = vmul.f32 %v1320, %v1320
        %v1417 = vmul.f32 %v1321, %v1321
        %v1418 = vmul.f32 %v1322, %v1322
        %v1419 = vmul.f32 %v1323, %v1323
        %v1420 = vmul.f32 %v1324, %v1324
        %v1421 = vmul.f32 %v1325, %v1325
        %v1422 = vmul.f32 %v1326, %v1326
        %v1423 = vmul.f32 %v1327, %v1327
        %v1424 = vmul.f32 %v1328, %v1328
        %v1425 = vmul.f32 %v1329, %v1329
        %v1426 = vmul.f32 %v1330, %v1330
        %v1427 = vmul.f32 %v1331, %v1331
        %v1428 = vmul.f32 %v1332, %v1332
        %v1429 = vmul.f32 %v1333, %v1333
        %v1430 = vmul.f32 %v1334, %v1334
        %v1431 = vmul.f32 %v1335, %v1335
        %v1432 = vmul.f32 %v1336, %v1336
        %v1433 = vmul.f32 %v1337, %v1337
        %v1434 = vmul.f32 %v1338, %v1338
        %1435 = vadd.xlane.f32.xlu0 %v1403
        %v1436 = vpop.xlane.xlu0 %1435
        %1437 = vadd.xlane.f32.xlu0 %v1404
        %v1438 = vpop.xlane.xlu0 %1437
        %1439 = vadd.xlane.f32.xlu0 %v1405
        %v1440 = vpop.xlane.xlu0 %1439
        %1441 = vadd.xlane.f32.xlu0 %v1406
        %v1442 = vpop.xlane.xlu0 %1441
        %1443 = vadd.xlane.f32.xlu0 %v1407
        %v1444 = vpop.xlane.xlu0 %1443
        %1445 = vadd.xlane.f32.xlu0 %v1408
        %v1446 = vpop.xlane.xlu0 %1445
        %1447 = vadd.xlane.f32.xlu0 %v1409
        %v1448 = vpop.xlane.xlu0 %1447
        %1449 = vadd.xlane.f32.xlu0 %v1410
        %v1450 = vpop.xlane.xlu0 %1449
        %1451 = vadd.xlane.f32.xlu0 %v1411
        %v1452 = vpop.xlane.xlu0 %1451
        %1453 = vadd.xlane.f32.xlu0 %v1412
        %v1454 = vpop.xlane.xlu0 %1453
        %1455 = vadd.xlane.f32.xlu0 %v1413
        %v1456 = vpop.xlane.xlu0 %1455
        %1457 = vadd.xlane.f32.xlu0 %v1414
        %v1458 = vpop.xlane.xlu0 %1457
        %1459 = vadd.xlane.f32.xlu0 %v1415
        %v1460 = vpop.xlane.xlu0 %1459
        %1461 = vadd.xlane.f32.xlu0 %v1416
        %v1462 = vpop.xlane.xlu0 %1461
        %1463 = vadd.xlane.f32.xlu0 %v1417
        %v1464 = vpop.xlane.xlu0 %1463
        %1465 = vadd.xlane.f32.xlu0 %v1418
        %v1466 = vpop.xlane.xlu0 %1465
        %1467 = vadd.xlane.f32.xlu0 %v1419
        %v1468 = vpop.xlane.xlu0 %1467
        %1469 = vadd.xlane.f32.xlu0 %v1420
        %v1470 = vpop.xlane.xlu0 %1469
        %1471 = vadd.xlane.f32.xlu0 %v1421
        %v1472 = vpop.xlane.xlu0 %1471
        %1473 = vadd.xlane.f32.xlu0 %v1422
        %v1474 = vpop.xlane.xlu0 %1473
        %1475 = vadd.xlane.f32.xlu0 %v1423
        %v1476 = vpop.xlane.xlu0 %1475
        %1477 = vadd.xlane.f32.xlu0 %v1424
        %v1478 = vpop.xlane.xlu0 %1477
        %1479 = vadd.xlane.f32.xlu0 %v1425
        %v1480 = vpop.xlane.xlu0 %1479
        %1481 = vadd.xlane.f32.xlu0 %v1426
        %v1482 = vpop.xlane.xlu0 %1481
        %1483 = vadd.xlane.f32.xlu0 %v1427
        %v1484 = vpop.xlane.xlu0 %1483
        %1485 = vadd.xlane.f32.xlu0 %v1428
        %v1486 = vpop.xlane.xlu0 %1485
        %1487 = vadd.xlane.f32.xlu0 %v1429
        %v1488 = vpop.xlane.xlu0 %1487
        %1489 = vadd.xlane.f32.xlu0 %v1430
        %v1490 = vpop.xlane.xlu0 %1489
        %1491 = vadd.xlane.f32.xlu0 %v1431
        %v1492 = vpop.xlane.xlu0 %1491
        %1493 = vadd.xlane.f32.xlu0 %v1432
        %v1494 = vpop.xlane.xlu0 %1493
        %1495 = vadd.xlane.f32.xlu0 %v1433
        %v1496 = vpop.xlane.xlu0 %1495
        %1497 = vadd.xlane.f32.xlu0 %v1434
        %v1498 = vpop.xlane.xlu0 %1497
        %v1499 = vmul.f32 %v1340, 0.0078125
        %v1500 = vmul.f32 %v1342, 0.0078125
        %v1501 = vmul.f32 %v1344, 0.0078125
        %v1502 = vmul.f32 %v1346, 0.0078125
        %v1503 = vmul.f32 %v1348, 0.0078125
        %v1504 = vmul.f32 %v1350, 0.0078125
        %v1505 = vmul.f32 %v1352, 0.0078125
        %v1506 = vmul.f32 %v1354, 0.0078125
        %v1507 = vmul.f32 %v1356, 0.0078125
        %v1508 = vmul.f32 %v1358, 0.0078125
        %v1509 = vmul.f32 %v1360, 0.0078125
        %v1510 = vmul.f32 %v1362, 0.0078125
        %v1511 = vmul.f32 %v1364, 0.0078125
        %v1512 = vmul.f32 %v1366, 0.0078125
        %v1513 = vmul.f32 %v1368, 0.0078125
        %v1514 = vmul.f32 %v1370, 0.0078125
        %v1515 = vmul.f32 %v1372, 0.0078125
        %v1516 = vmul.f32 %v1374, 0.0078125
        %v1517 = vmul.f32 %v1376, 0.0078125
        %v1518 = vmul.f32 %v1378, 0.0078125
        %v1519 = vmul.f32 %v1380, 0.0078125
        %v1520 = vmul.f32 %v1382, 0.0078125
        %v1521 = vmul.f32 %v1384, 0.0078125
        %v1522 = vmul.f32 %v1386, 0.0078125
        %v1523 = vmul.f32 %v1388, 0.0078125
        %v1524 = vmul.f32 %v1390, 0.0078125
        %v1525 = vmul.f32 %v1392, 0.0078125
        %v1526 = vmul.f32 %v1394, 0.0078125
        %v1527 = vmul.f32 %v1396, 0.0078125
        %v1528 = vmul.f32 %v1398, 0.0078125
        %v1529 = vmul.f32 %v1400, 0.0078125
        %v1530 = vmul.f32 %v1402, 0.0078125
        %v1531 = vmul.f32 %v1436, 0.0078125
        %v1532 = vmul.f32 %v1438, 0.0078125
        %v1533 = vmul.f32 %v1440, 0.0078125
        %v1534 = vmul.f32 %v1442, 0.0078125
        %v1535 = vmul.f32 %v1444, 0.0078125
        %v1536 = vmul.f32 %v1446, 0.0078125
        %v1537 = vmul.f32 %v1448, 0.0078125
        %v1538 = vmul.f32 %v1450, 0.0078125
        %v1539 = vmul.f32 %v1452, 0.0078125
        %v1540 = vmul.f32 %v1454, 0.0078125
        %v1541 = vmul.f32 %v1456, 0.0078125
        %v1542 = vmul.f32 %v1458, 0.0078125
        %v1543 = vmul.f32 %v1460, 0.0078125
        %v1544 = vmul.f32 %v1462, 0.0078125
        %v1545 = vmul.f32 %v1464, 0.0078125
        %v1546 = vmul.f32 %v1466, 0.0078125
        %v1547 = vmul.f32 %v1468, 0.0078125
        %v1548 = vmul.f32 %v1470, 0.0078125
        %v1549 = vmul.f32 %v1472, 0.0078125
        %v1550 = vmul.f32 %v1474, 0.0078125
        %v1551 = vmul.f32 %v1476, 0.0078125
        %v1552 = vmul.f32 %v1478, 0.0078125
        %v1553 = vmul.f32 %v1480, 0.0078125
        %v1554 = vmul.f32 %v1482, 0.0078125
        %v1555 = vmul.f32 %v1484, 0.0078125
        %v1556 = vmul.f32 %v1486, 0.0078125
        %v1557 = vmul.f32 %v1488, 0.0078125
        %v1558 = vmul.f32 %v1490, 0.0078125
        %v1559 = vmul.f32 %v1492, 0.0078125
        %v1560 = vmul.f32 %v1494, 0.0078125
        %v1561 = vmul.f32 %v1496, 0.0078125
        %v1562 = vmul.f32 %v1498, 0.0078125
        %v1563 = vmul.f32 %v1499, %v1499
        %v1564 = vmul.f32 %v1500, %v1500
        %v1565 = vmul.f32 %v1501, %v1501
        %v1566 = vmul.f32 %v1502, %v1502
        %v1567 = vmul.f32 %v1503, %v1503
        %v1568 = vmul.f32 %v1504, %v1504
        %v1569 = vmul.f32 %v1505, %v1505
        %v1570 = vmul.f32 %v1506, %v1506
        %v1571 = vmul.f32 %v1507, %v1507
        %v1572 = vmul.f32 %v1508, %v1508
        %v1573 = vmul.f32 %v1509, %v1509
        %v1574 = vmul.f32 %v1510, %v1510
        %v1575 = vmul.f32 %v1511, %v1511
        %v1576 = vmul.f32 %v1512, %v1512
        %v1577 = vmul.f32 %v1513, %v1513
        %v1578 = vmul.f32 %v1514, %v1514
        %v1579 = vmul.f32 %v1515, %v1515
        %v1580 = vmul.f32 %v1516, %v1516
        %v1581 = vmul.f32 %v1517, %v1517
        %v1582 = vmul.f32 %v1518, %v1518
        %v1583 = vmul.f32 %v1519, %v1519
        %v1584 = vmul.f32 %v1520, %v1520
        %v1585 = vmul.f32 %v1521, %v1521
        %v1586 = vmul.f32 %v1522, %v1522
        %v1587 = vmul.f32 %v1523, %v1523
        %v1588 = vmul.f32 %v1524, %v1524
        %v1589 = vmul.f32 %v1525, %v1525
        %v1590 = vmul.f32 %v1526, %v1526
        %v1591 = vmul.f32 %v1527, %v1527
        %v1592 = vmul.f32 %v1528, %v1528
        %v1593 = vmul.f32 %v1529, %v1529
        %v1594 = vmul.f32 %v1530, %v1530
        %v1595 = vsub.f32 %v1531, %v1563
        %v1596 = vsub.f32 %v1532, %v1564
        %v1597 = vsub.f32 %v1533, %v1565
        %v1598 = vsub.f32 %v1534, %v1566
        %v1599 = vsub.f32 %v1535, %v1567
        %v1600 = vsub.f32 %v1536, %v1568
        %v1601 = vsub.f32 %v1537, %v1569
        %v1602 = vsub.f32 %v1538, %v1570
        %v1603 = vsub.f32 %v1539, %v1571
        %v1604 = vsub.f32 %v1540, %v1572
        %v1605 = vsub.f32 %v1541, %v1573
        %v1606 = vsub.f32 %v1542, %v1574
        %v1607 = vsub.f32 %v1543, %v1575
        %v1608 = vsub.f32 %v1544, %v1576
        %v1609 = vsub.f32 %v1545, %v1577
        %v1610 = vsub.f32 %v1546, %v1578
        %v1611 = vsub.f32 %v1547, %v1579
        %v1612 = vsub.f32 %v1548, %v1580
        %v1613 = vsub.f32 %v1549, %v1581
        %v1614 = vsub.f32 %v1550, %v1582
        %v1615 = vsub.f32 %v1551, %v1583
        %v1616 = vsub.f32 %v1552, %v1584
        %v1617 = vsub.f32 %v1553, %v1585
        %v1618 = vsub.f32 %v1554, %v1586
        %v1619 = vsub.f32 %v1555, %v1587
        %v1620 = vsub.f32 %v1556, %v1588
        %v1621 = vsub.f32 %v1557, %v1589
        %v1622 = vsub.f32 %v1558, %v1590
        %v1623 = vsub.f32 %v1559, %v1591
        %v1624 = vsub.f32 %v1560, %v1592
        %v1625 = vsub.f32 %v1561, %v1593
        %v1626 = vsub.f32 %v1562, %v1594
        %v1627 = vmax.f32 %v1595, 0.0
        %v1628 = vmax.f32 %v1596, 0.0
        %v1629 = vmax.f32 %v1597, 0.0
        %v1630 = vmax.f32 %v1598, 0.0
        %v1631 = vmax.f32 %v1599, 0.0
        %v1632 = vmax.f32 %v1600, 0.0
        %v1633 = vmax.f32 %v1601, 0.0
        %v1634 = vmax.f32 %v1602, 0.0
        %v1635 = vmax.f32 %v1603, 0.0
        %v1636 = vmax.f32 %v1604, 0.0
        %v1637 = vmax.f32 %v1605, 0.0
        %v1638 = vmax.f32 %v1606, 0.0
        %v1639 = vmax.f32 %v1607, 0.0
        %v1640 = vmax.f32 %v1608, 0.0
        %v1641 = vmax.f32 %v1609, 0.0
        %v1642 = vmax.f32 %v1610, 0.0
        %v1643 = vmax.f32 %v1611, 0.0
        %v1644 = vmax.f32 %v1612, 0.0
        %v1645 = vmax.f32 %v1613, 0.0
        %v1646 = vmax.f32 %v1614, 0.0
        %v1647 = vmax.f32 %v1615, 0.0
        %v1648 = vmax.f32 %v1616, 0.0
        %v1649 = vmax.f32 %v1617, 0.0
        %v1650 = vmax.f32 %v1618, 0.0
        %v1651 = vmax.f32 %v1619, 0.0
        %v1652 = vmax.f32 %v1620, 0.0
        %v1653 = vmax.f32 %v1621, 0.0
        %v1654 = vmax.f32 %v1622, 0.0
        %v1655 = vmax.f32 %v1623, 0.0
        %v1656 = vmax.f32 %v1624, 0.0
        %v1657 = vmax.f32 %v1625, 0.0
        %v1658 = vmax.f32 %v1626, 0.0
        %v1659 = vsub.f32 %v1307, %v1499
        %v1660 = vsub.f32 %v1308, %v1500
        %v1661 = vsub.f32 %v1309, %v1501
        %v1662 = vsub.f32 %v1310, %v1502
        %v1663 = vsub.f32 %v1311, %v1503
        %v1664 = vsub.f32 %v1312, %v1504
        %v1665 = vsub.f32 %v1313, %v1505
        %v1666 = vsub.f32 %v1314, %v1506
        %v1667 = vsub.f32 %v1315, %v1507
        %v1668 = vsub.f32 %v1316, %v1508
        %v1669 = vsub.f32 %v1317, %v1509
        %v1670 = vsub.f32 %v1318, %v1510
        %v1671 = vsub.f32 %v1319, %v1511
        %v1672 = vsub.f32 %v1320, %v1512
        %v1673 = vsub.f32 %v1321, %v1513
        %v1674 = vsub.f32 %v1322, %v1514
        %v1675 = vsub.f32 %v1323, %v1515
        %v1676 = vsub.f32 %v1324, %v1516
        %v1677 = vsub.f32 %v1325, %v1517
        %v1678 = vsub.f32 %v1326, %v1518
        %v1679 = vsub.f32 %v1327, %v1519
        %v1680 = vsub.f32 %v1328, %v1520
        %v1681 = vsub.f32 %v1329, %v1521
        %v1682 = vsub.f32 %v1330, %v1522
        %v1683 = vsub.f32 %v1331, %v1523
        %v1684 = vsub.f32 %v1332, %v1524
        %v1685 = vsub.f32 %v1333, %v1525
        %v1686 = vsub.f32 %v1334, %v1526
        %v1687 = vsub.f32 %v1335, %v1527
        %v1688 = vsub.f32 %v1336, %v1528
        %v1689 = vsub.f32 %v1337, %v1529
        %v1690 = vsub.f32 %v1338, %v1530
        %v1691 = vadd.f32 %v1627, 1e-06
        %v1692 = vadd.f32 %v1628, 1e-06
        %v1693 = vadd.f32 %v1629, 1e-06
        %v1694 = vadd.f32 %v1630, 1e-06
        %v1695 = vadd.f32 %v1631, 1e-06
        %v1696 = vadd.f32 %v1632, 1e-06
        %v1697 = vadd.f32 %v1633, 1e-06
        %v1698 = vadd.f32 %v1634, 1e-06
        %v1699 = vadd.f32 %v1635, 1e-06
        %v1700 = vadd.f32 %v1636, 1e-06
        %v1701 = vadd.f32 %v1637, 1e-06
        %v1702 = vadd.f32 %v1638, 1e-06
        %v1703 = vadd.f32 %v1639, 1e-06
        %v1704 = vadd.f32 %v1640, 1e-06
        %v1705 = vadd.f32 %v1641, 1e-06
        %v1706 = vadd.f32 %v1642, 1e-06
        %v1707 = vadd.f32 %v1643, 1e-06
        %v1708 = vadd.f32 %v1644, 1e-06
        %v1709 = vadd.f32 %v1645, 1e-06
        %v1710 = vadd.f32 %v1646, 1e-06
        %v1711 = vadd.f32 %v1647, 1e-06
        %v1712 = vadd.f32 %v1648, 1e-06
        %v1713 = vadd.f32 %v1649, 1e-06
        %v1714 = vadd.f32 %v1650, 1e-06
        %v1715 = vadd.f32 %v1651, 1e-06
        %v1716 = vadd.f32 %v1652, 1e-06
        %v1717 = vadd.f32 %v1653, 1e-06
        %v1718 = vadd.f32 %v1654, 1e-06
        %v1719 = vadd.f32 %v1655, 1e-06
        %v1720 = vadd.f32 %v1656, 1e-06
        %v1721 = vadd.f32 %v1657, 1e-06
        %v1722 = vadd.f32 %v1658, 1e-06
        %v1723 = vrsqrt.pop %v1691
        %v1724 = vmul.f32 %v1723, %v1691
        %v1725 = vmul.f32 %v1724, %v1723
        %v1726 = vmul.f32 0.5, %v1725
        %v1727 = vsub.f32 1.5, %v1726
        %v1728 = vmul.f32 %v1723, %v1727
        %vm1729 = vweird.f32 %v1691
        %vm1730 = vweird.f32 %v1723
        %vm1731 = vmor %vm1729, %vm1730
        %v1732 = vsel %vm1731, %v1723, %v1728
        %v1733 = vrsqrt.pop %v1692
        %v1734 = vmul.f32 %v1733, %v1692
        %v1735 = vmul.f32 %v1734, %v1733
        %v1736 = vmul.f32 0.5, %v1735
        %v1737 = vsub.f32 1.5, %v1736
        %v1738 = vmul.f32 %v1733, %v1737
        %vm1739 = vweird.f32 %v1692
        %vm1740 = vweird.f32 %v1733
        %vm1741 = vmor %vm1739, %vm1740
        %v1742 = vsel %vm1741, %v1733, %v1738
        %v1743 = vrsqrt.pop %v1693
        %v1744 = vmul.f32 %v1743, %v1693
        %v1745 = vmul.f32 %v1744, %v1743
        %v1746 = vmul.f32 0.5, %v1745
        %v1747 = vsub.f32 1.5, %v1746
        %v1748 = vmul.f32 %v1743, %v1747
        %vm1749 = vweird.f32 %v1693
        %vm1750 = vweird.f32 %v1743
        %vm1751 = vmor %vm1749, %vm1750
        %v1752 = vsel %vm1751, %v1743, %v1748
        %v1753 = vrsqrt.pop %v1694
        %v1754 = vmul.f32 %v1753, %v1694
        %v1755 = vmul.f32 %v1754, %v1753
        %v1756 = vmul.f32 0.5, %v1755
        %v1757 = vsub.f32 1.5, %v1756
        %v1758 = vmul.f32 %v1753, %v1757
        %vm1759 = vweird.f32 %v1694
        %vm1760 = vweird.f32 %v1753
        %vm1761 = vmor %vm1759, %vm1760
        %v1762 = vsel %vm1761, %v1753, %v1758
        %v1763 = vrsqrt.pop %v1695
        %v1764 = vmul.f32 %v1763, %v1695
        %v1765 = vmul.f32 %v1764, %v1763
        %v1766 = vmul.f32 0.5, %v1765
        %v1767 = vsub.f32 1.5, %v1766
        %v1768 = vmul.f32 %v1763, %v1767
        %vm1769 = vweird.f32 %v1695
        %vm1770 = vweird.f32 %v1763
        %vm1771 = vmor %vm1769, %vm1770
        %v1772 = vsel %vm1771, %v1763, %v1768
        %v1773 = vrsqrt.pop %v1696
        %v1774 = vmul.f32 %v1773, %v1696
        %v1775 = vmul.f32 %v1774, %v1773
        %v1776 = vmul.f32 0.5, %v1775
        %v1777 = vsub.f32 1.5, %v1776
        %v1778 = vmul.f32 %v1773, %v1777
        %vm1779 = vweird.f32 %v1696
        %vm1780 = vweird.f32 %v1773
        %vm1781 = vmor %vm1779, %vm1780
        %v1782 = vsel %vm1781, %v1773, %v1778
        %v1783 = vrsqrt.pop %v1697
        %v1784 = vmul.f32 %v1783, %v1697
        %v1785 = vmul.f32 %v1784, %v1783
        %v1786 = vmul.f32 0.5, %v1785
        %v1787 = vsub.f32 1.5, %v1786
        %v1788 = vmul.f32 %v1783, %v1787
        %vm1789 = vweird.f32 %v1697
        %vm1790 = vweird.f32 %v1783
        %vm1791 = vmor %vm1789, %vm1790
        %v1792 = vsel %vm1791, %v1783, %v1788
        %v1793 = vrsqrt.pop %v1698
        %v1794 = vmul.f32 %v1793, %v1698
        %v1795 = vmul.f32 %v1794, %v1793
        %v1796 = vmul.f32 0.5, %v1795
        %v1797 = vsub.f32 1.5, %v1796
        %v1798 = vmul.f32 %v1793, %v1797
        %vm1799 = vweird.f32 %v1698
        %vm1800 = vweird.f32 %v1793
        %vm1801 = vmor %vm1799, %vm1800
        %v1802 = vsel %vm1801, %v1793, %v1798
        %v1803 = vrsqrt.pop %v1699
        %v1804 = vmul.f32 %v1803, %v1699
        %v1805 = vmul.f32 %v1804, %v1803
        %v1806 = vmul.f32 0.5, %v1805
        %v1807 = vsub.f32 1.5, %v1806
        %v1808 = vmul.f32 %v1803, %v1807
        %vm1809 = vweird.f32 %v1699
        %vm1810 = vweird.f32 %v1803
        %vm1811 = vmor %vm1809, %vm1810
        %v1812 = vsel %vm1811, %v1803, %v1808
        %v1813 = vrsqrt.pop %v1700
        %v1814 = vmul.f32 %v1813, %v1700
        %v1815 = vmul.f32 %v1814, %v1813
        %v1816 = vmul.f32 0.5, %v1815
        %v1817 = vsub.f32 1.5, %v1816
        %v1818 = vmul.f32 %v1813, %v1817
        %vm1819 = vweird.f32 %v1700
        %vm1820 = vweird.f32 %v1813
        %vm1821 = vmor %vm1819, %vm1820
        %v1822 = vsel %vm1821, %v1813, %v1818
        %v1823 = vrsqrt.pop %v1701
        %v1824 = vmul.f32 %v1823, %v1701
        %v1825 = vmul.f32 %v1824, %v1823
        %v1826 = vmul.f32 0.5, %v1825
        %v1827 = vsub.f32 1.5, %v1826
        %v1828 = vmul.f32 %v1823, %v1827
        %vm1829 = vweird.f32 %v1701
        %vm1830 = vweird.f32 %v1823
        %vm1831 = vmor %vm1829, %vm1830
        %v1832 = vsel %vm1831, %v1823, %v1828
        %v1833 = vrsqrt.pop %v1702
        %v1834 = vmul.f32 %v1833, %v1702
        %v1835 = vmul.f32 %v1834, %v1833
        %v1836 = vmul.f32 0.5, %v1835
        %v1837 = vsub.f32 1.5, %v1836
        %v1838 = vmul.f32 %v1833, %v1837
        %vm1839 = vweird.f32 %v1702
        %vm1840 = vweird.f32 %v1833
        %vm1841 = vmor %vm1839, %vm1840
        %v1842 = vsel %vm1841, %v1833, %v1838
        %v1843 = vrsqrt.pop %v1703
        %v1844 = vmul.f32 %v1843, %v1703
        %v1845 = vmul.f32 %v1844, %v1843
        %v1846 = vmul.f32 0.5, %v1845
        %v1847 = vsub.f32 1.5, %v1846
        %v1848 = vmul.f32 %v1843, %v1847
        %vm1849 = vweird.f32 %v1703
        %vm1850 = vweird.f32 %v1843
        %vm1851 = vmor %vm1849, %vm1850
        %v1852 = vsel %vm1851, %v1843, %v1848
        %v1853 = vrsqrt.pop %v1704
        %v1854 = vmul.f32 %v1853, %v1704
        %v1855 = vmul.f32 %v1854, %v1853
        %v1856 = vmul.f32 0.5, %v1855
        %v1857 = vsub.f32 1.5, %v1856
        %v1858 = vmul.f32 %v1853, %v1857
        %vm1859 = vweird.f32 %v1704
        %vm1860 = vweird.f32 %v1853
        %vm1861 = vmor %vm1859, %vm1860
        %v1862 = vsel %vm1861, %v1853, %v1858
        %v1863 = vrsqrt.pop %v1705
        %v1864 = vmul.f32 %v1863, %v1705
        %v1865 = vmul.f32 %v1864, %v1863
        %v1866 = vmul.f32 0.5, %v1865
        %v1867 = vsub.f32 1.5, %v1866
        %v1868 = vmul.f32 %v1863, %v1867
        %vm1869 = vweird.f32 %v1705
        %vm1870 = vweird.f32 %v1863
        %vm1871 = vmor %vm1869, %vm1870
        %v1872 = vsel %vm1871, %v1863, %v1868
        %v1873 = vrsqrt.pop %v1706
        %v1874 = vmul.f32 %v1873, %v1706
        %v1875 = vmul.f32 %v1874, %v1873
        %v1876 = vmul.f32 0.5, %v1875
        %v1877 = vsub.f32 1.5, %v1876
        %v1878 = vmul.f32 %v1873, %v1877
        %vm1879 = vweird.f32 %v1706
        %vm1880 = vweird.f32 %v1873
        %vm1881 = vmor %vm1879, %vm1880
        %v1882 = vsel %vm1881, %v1873, %v1878
        %v1883 = vrsqrt.pop %v1707
        %v1884 = vmul.f32 %v1883, %v1707
        %v1885 = vmul.f32 %v1884, %v1883
        %v1886 = vmul.f32 0.5, %v1885
        %v1887 = vsub.f32 1.5, %v1886
        %v1888 = vmul.f32 %v1883, %v1887
        %vm1889 = vweird.f32 %v1707
        %vm1890 = vweird.f32 %v1883
        %vm1891 = vmor %vm1889, %vm1890
        %v1892 = vsel %vm1891, %v1883, %v1888
        %v1893 = vrsqrt.pop %v1708
        %v1894 = vmul.f32 %v1893, %v1708
        %v1895 = vmul.f32 %v1894, %v1893
        %v1896 = vmul.f32 0.5, %v1895
        %v1897 = vsub.f32 1.5, %v1896
        %v1898 = vmul.f32 %v1893, %v1897
        %vm1899 = vweird.f32 %v1708
        %vm1900 = vweird.f32 %v1893
        %vm1901 = vmor %vm1899, %vm1900
        %v1902 = vsel %vm1901, %v1893, %v1898
        %v1903 = vrsqrt.pop %v1709
        %v1904 = vmul.f32 %v1903, %v1709
        %v1905 = vmul.f32 %v1904, %v1903
        %v1906 = vmul.f32 0.5, %v1905
        %v1907 = vsub.f32 1.5, %v1906
        %v1908 = vmul.f32 %v1903, %v1907
        %vm1909 = vweird.f32 %v1709
        %vm1910 = vweird.f32 %v1903
        %vm1911 = vmor %vm1909, %vm1910
        %v1912 = vsel %vm1911, %v1903, %v1908
        %v1913 = vrsqrt.pop %v1710
        %v1914 = vmul.f32 %v1913, %v1710
        %v1915 = vmul.f32 %v1914, %v1913
        %v1916 = vmul.f32 0.5, %v1915
        %v1917 = vsub.f32 1.5, %v1916
        %v1918 = vmul.f32 %v1913, %v1917
        %vm1919 = vweird.f32 %v1710
        %vm1920 = vweird.f32 %v1913
        %vm1921 = vmor %vm1919, %vm1920
        %v1922 = vsel %vm1921, %v1913, %v1918
        %v1923 = vrsqrt.pop %v1711
        %v1924 = vmul.f32 %v1923, %v1711
        %v1925 = vmul.f32 %v1924, %v1923
        %v1926 = vmul.f32 0.5, %v1925
        %v1927 = vsub.f32 1.5, %v1926
        %v1928 = vmul.f32 %v1923, %v1927
        %vm1929 = vweird.f32 %v1711
        %vm1930 = vweird.f32 %v1923
        %vm1931 = vmor %vm1929, %vm1930
        %v1932 = vsel %vm1931, %v1923, %v1928
        %v1933 = vrsqrt.pop %v1712
        %v1934 = vmul.f32 %v1933, %v1712
        %v1935 = vmul.f32 %v1934, %v1933
        %v1936 = vmul.f32 0.5, %v1935
        %v1937 = vsub.f32 1.5, %v1936
        %v1938 = vmul.f32 %v1933, %v1937
        %vm1939 = vweird.f32 %v1712
        %vm1940 = vweird.f32 %v1933
        %vm1941 = vmor %vm1939, %vm1940
        %v1942 = vsel %vm1941, %v1933, %v1938
        %v1943 = vrsqrt.pop %v1713
        %v1944 = vmul.f32 %v1943, %v1713
        %v1945 = vmul.f32 %v1944, %v1943
        %v1946 = vmul.f32 0.5, %v1945
        %v1947 = vsub.f32 1.5, %v1946
        %v1948 = vmul.f32 %v1943, %v1947
        %vm1949 = vweird.f32 %v1713
        %vm1950 = vweird.f32 %v1943
        %vm1951 = vmor %vm1949, %vm1950
        %v1952 = vsel %vm1951, %v1943, %v1948
        %v1953 = vrsqrt.pop %v1714
        %v1954 = vmul.f32 %v1953, %v1714
        %v1955 = vmul.f32 %v1954, %v1953
        %v1956 = vmul.f32 0.5, %v1955
        %v1957 = vsub.f32 1.5, %v1956
        %v1958 = vmul.f32 %v1953, %v1957
        %vm1959 = vweird.f32 %v1714
        %vm1960 = vweird.f32 %v1953
        %vm1961 = vmor %vm1959, %vm1960
        %v1962 = vsel %vm1961, %v1953, %v1958
        %v1963 = vrsqrt.pop %v1715
        %v1964 = vmul.f32 %v1963, %v1715
        %v1965 = vmul.f32 %v1964, %v1963
        %v1966 = vmul.f32 0.5, %v1965
        %v1967 = vsub.f32 1.5, %v1966
        %v1968 = vmul.f32 %v1963, %v1967
        %vm1969 = vweird.f32 %v1715
        %vm1970 = vweird.f32 %v1963
        %vm1971 = vmor %vm1969, %vm1970
        %v1972 = vsel %vm1971, %v1963, %v1968
        %v1973 = vrsqrt.pop %v1716
        %v1974 = vmul.f32 %v1973, %v1716
        %v1975 = vmul.f32 %v1974, %v1973
        %v1976 = vmul.f32 0.5, %v1975
        %v1977 = vsub.f32 1.5, %v1976
        %v1978 = vmul.f32 %v1973, %v1977
        %vm1979 = vweird.f32 %v1716
        %vm1980 = vweird.f32 %v1973
        %vm1981 = vmor %vm1979, %vm1980
        %v1982 = vsel %vm1981, %v1973, %v1978
        %v1983 = vrsqrt.pop %v1717
        %v1984 = vmul.f32 %v1983, %v1717
        %v1985 = vmul.f32 %v1984, %v1983
        %v1986 = vmul.f32 0.5, %v1985
        %v1987 = vsub.f32 1.5, %v1986
        %v1988 = vmul.f32 %v1983, %v1987
        %vm1989 = vweird.f32 %v1717
        %vm1990 = vweird.f32 %v1983
        %vm1991 = vmor %vm1989, %vm1990
        %v1992 = vsel %vm1991, %v1983, %v1988
        %v1993 = vrsqrt.pop %v1718
        %v1994 = vmul.f32 %v1993, %v1718
        %v1995 = vmul.f32 %v1994, %v1993
        %v1996 = vmul.f32 0.5, %v1995
        %v1997 = vsub.f32 1.5, %v1996
        %v1998 = vmul.f32 %v1993, %v1997
        %vm1999 = vweird.f32 %v1718
        %vm2000 = vweird.f32 %v1993
        %vm2001 = vmor %vm1999, %vm2000
        %v2002 = vsel %vm2001, %v1993, %v1998
        %v2003 = vrsqrt.pop %v1719
        %v2004 = vmul.f32 %v2003, %v1719
        %v2005 = vmul.f32 %v2004, %v2003
        %v2006 = vmul.f32 0.5, %v2005
        %v2007 = vsub.f32 1.5, %v2006
        %v2008 = vmul.f32 %v2003, %v2007
        %vm2009 = vweird.f32 %v1719
        %vm2010 = vweird.f32 %v2003
        %vm2011 = vmor %vm2009, %vm2010
        %v2012 = vsel %vm2011, %v2003, %v2008
        %v2013 = vrsqrt.pop %v1720
        %v2014 = vmul.f32 %v2013, %v1720
        %v2015 = vmul.f32 %v2014, %v2013
        %v2016 = vmul.f32 0.5, %v2015
        %v2017 = vsub.f32 1.5, %v2016
        %v2018 = vmul.f32 %v2013, %v2017
        %vm2019 = vweird.f32 %v1720
        %vm2020 = vweird.f32 %v2013
        %vm2021 = vmor %vm2019, %vm2020
        %v2022 = vsel %vm2021, %v2013, %v2018
        %v2023 = vrsqrt.pop %v1721
        %v2024 = vmul.f32 %v2023, %v1721
        %v2025 = vmul.f32 %v2024, %v2023
        %v2026 = vmul.f32 0.5, %v2025
        %v2027 = vsub.f32 1.5, %v2026
        %v2028 = vmul.f32 %v2023, %v2027
        %vm2029 = vweird.f32 %v1721
        %vm2030 = vweird.f32 %v2023
        %vm2031 = vmor %vm2029, %vm2030
        %v2032 = vsel %vm2031, %v2023, %v2028
        %v2033 = vrsqrt.pop %v1722
        %v2034 = vmul.f32 %v2033, %v1722
        %v2035 = vmul.f32 %v2034, %v2033
        %v2036 = vmul.f32 0.5, %v2035
        %v2037 = vsub.f32 1.5, %v2036
        %v2038 = vmul.f32 %v2033, %v2037
        %vm2039 = vweird.f32 %v1722
        %vm2040 = vweird.f32 %v2033
        %vm2041 = vmor %vm2039, %vm2040
        %v2042 = vsel %vm2041, %v2033, %v2038
        %v2043 = vmul.f32 %v1659, %v1732
        %v2044 = vmul.f32 %v1660, %v1742
        %v2045 = vmul.f32 %v1661, %v1752
        %v2046 = vmul.f32 %v1662, %v1762
        %v2047 = vmul.f32 %v1663, %v1772
        %v2048 = vmul.f32 %v1664, %v1782
        %v2049 = vmul.f32 %v1665, %v1792
        %v2050 = vmul.f32 %v1666, %v1802
        %v2051 = vmul.f32 %v1667, %v1812
        %v2052 = vmul.f32 %v1668, %v1822
        %v2053 = vmul.f32 %v1669, %v1832
        %v2054 = vmul.f32 %v1670, %v1842
        %v2055 = vmul.f32 %v1671, %v1852
        %v2056 = vmul.f32 %v1672, %v1862
        %v2057 = vmul.f32 %v1673, %v1872
        %v2058 = vmul.f32 %v1674, %v1882
        %v2059 = vmul.f32 %v1675, %v1892
        %v2060 = vmul.f32 %v1676, %v1902
        %v2061 = vmul.f32 %v1677, %v1912
        %v2062 = vmul.f32 %v1678, %v1922
        %v2063 = vmul.f32 %v1679, %v1932
        %v2064 = vmul.f32 %v1680, %v1942
        %v2065 = vmul.f32 %v1681, %v1952
        %v2066 = vmul.f32 %v1682, %v1962
        %v2067 = vmul.f32 %v1683, %v1972
        %v2068 = vmul.f32 %v1684, %v1982
        %v2069 = vmul.f32 %v1685, %v1992
        %v2070 = vmul.f32 %v1686, %v2002
        %v2071 = vmul.f32 %v1687, %v2012
        %v2072 = vmul.f32 %v1688, %v2022
        %v2073 = vmul.f32 %v1689, %v2032
        %v2074 = vmul.f32 %v1690, %v2042
        %v2075 = vld [vmem:[%s4] sm:$0x1]
        %v2077 = vperm.slane %v2075, 0
        %v2079 = vmul.f32 %v2043, %v2077
        %v2080 = vmul.f32 %v2044, %v2077
        %v2081 = vmul.f32 %v2045, %v2077
        %v2082 = vmul.f32 %v2046, %v2077
        %v2083 = vmul.f32 %v2047, %v2077
        %v2084 = vmul.f32 %v2048, %v2077
        %v2085 = vmul.f32 %v2049, %v2077
        %v2086 = vmul.f32 %v2050, %v2077
        %v2087 = vmul.f32 %v2051, %v2077
        %v2088 = vmul.f32 %v2052, %v2077
        %v2089 = vmul.f32 %v2053, %v2077
        %v2090 = vmul.f32 %v2054, %v2077
        %v2091 = vmul.f32 %v2055, %v2077
        %v2092 = vmul.f32 %v2056, %v2077
        %v2093 = vmul.f32 %v2057, %v2077
        %v2094 = vmul.f32 %v2058, %v2077
        %v2095 = vmul.f32 %v2059, %v2077
        %v2096 = vmul.f32 %v2060, %v2077
        %v2097 = vmul.f32 %v2061, %v2077
        %v2098 = vmul.f32 %v2062, %v2077
        %v2099 = vmul.f32 %v2063, %v2077
        %v2100 = vmul.f32 %v2064, %v2077
        %v2101 = vmul.f32 %v2065, %v2077
        %v2102 = vmul.f32 %v2066, %v2077
        %v2103 = vmul.f32 %v2067, %v2077
        %v2104 = vmul.f32 %v2068, %v2077
        %v2105 = vmul.f32 %v2069, %v2077
        %v2106 = vmul.f32 %v2070, %v2077
        %v2107 = vmul.f32 %v2071, %v2077
        %v2108 = vmul.f32 %v2072, %v2077
        %v2109 = vmul.f32 %v2073, %v2077
        %v2110 = vmul.f32 %v2074, %v2077
        %v2111 = vld [vmem:[#allocation9] sm:$0x1]
        %v2113 = vperm.slane %v2111, 0
        %v2115 = vadd.f32 %v2079, %v2113
        %v2116 = vadd.f32 %v2080, %v2113
        %v2117 = vadd.f32 %v2081, %v2113
        %v2118 = vadd.f32 %v2082, %v2113
        %v2119 = vadd.f32 %v2083, %v2113
        %v2120 = vadd.f32 %v2084, %v2113
        %v2121 = vadd.f32 %v2085, %v2113
        %v2122 = vadd.f32 %v2086, %v2113
        %v2123 = vadd.f32 %v2087, %v2113
        %v2124 = vadd.f32 %v2088, %v2113
        %v2125 = vadd.f32 %v2089, %v2113
        %v2126 = vadd.f32 %v2090, %v2113
        %v2127 = vadd.f32 %v2091, %v2113
        %v2128 = vadd.f32 %v2092, %v2113
        %v2129 = vadd.f32 %v2093, %v2113
        %v2130 = vadd.f32 %v2094, %v2113
        %v2131 = vadd.f32 %v2095, %v2113
        %v2132 = vadd.f32 %v2096, %v2113
        %v2133 = vadd.f32 %v2097, %v2113
        %v2134 = vadd.f32 %v2098, %v2113
        %v2135 = vadd.f32 %v2099, %v2113
        %v2136 = vadd.f32 %v2100, %v2113
        %v2137 = vadd.f32 %v2101, %v2113
        %v2138 = vadd.f32 %v2102, %v2113
        %v2139 = vadd.f32 %v2103, %v2113
        %v2140 = vadd.f32 %v2104, %v2113
        %v2141 = vadd.f32 %v2105, %v2113
        %v2142 = vadd.f32 %v2106, %v2113
        %v2143 = vadd.f32 %v2107, %v2113
        %v2144 = vadd.f32 %v2108, %v2113
        %v2145 = vadd.f32 %v2109, %v2113
        %v2146 = vadd.f32 %v2110, %v2113
        %v2147 = vpack.c.bf16 %v2116, %v2115
        %v2148 = vpack.c.bf16 %v2118, %v2117
        %v2149 = vpack.c.bf16 %v2120, %v2119
        %v2150 = vpack.c.bf16 %v2122, %v2121
        %v2151 = vpack.c.bf16 %v2124, %v2123
        %v2152 = vpack.c.bf16 %v2126, %v2125
        %v2153 = vpack.c.bf16 %v2128, %v2127
        %v2154 = vpack.c.bf16 %v2130, %v2129
        %v2155 = vpack.c.bf16 %v2132, %v2131
        %v2156 = vpack.c.bf16 %v2134, %v2133
        %v2157 = vpack.c.bf16 %v2136, %v2135
        %v2158 = vpack.c.bf16 %v2138, %v2137
        %v2159 = vpack.c.bf16 %v2140, %v2139
        %v2160 = vpack.c.bf16 %v2142, %v2141
        %v2161 = vpack.c.bf16 %v2144, %v2143
        %v2162 = vpack.c.bf16 %v2146, %v2145
        %v2163 = vld [vmem:[#allocation11] sm:$0xff]
        %v2164 = vld [vmem:[#allocation11 + $0xc] sm:$0xff]
        %v2165 = vld [vmem:[#allocation11 + $0x18] sm:$0xff]
        %v2166 = vld [vmem:[#allocation11 + $0x24] sm:$0xff]
        %v2167 = vld [vmem:[#allocation11 + $0x30] sm:$0xff]
        %v2168 = vld [vmem:[#allocation11 + $0x3c] sm:$0xff]
        %v2169 = vld [vmem:[#allocation11 + $0x48] sm:$0xff]
        %v2170 = vld [vmem:[#allocation11 + $0x54] sm:$0xff]
        %v2171 = vld [vmem:[#allocation11 + $0x60] sm:$0xff]
        %v2172 = vld [vmem:[#allocation11 + $0x6c] sm:$0xff]
        %v2173 = vld [vmem:[#allocation11 + $0x78] sm:$0xff]
        %v2174 = vld [vmem:[#allocation11 + $0x84] sm:$0xff]
        %v2175 = vld [vmem:[#allocation11 + $0x90] sm:$0xff]
        %v2176 = vld [vmem:[#allocation11 + $0x9c] sm:$0xff]
        %v2177 = vld [vmem:[#allocation11 + $0xa8] sm:$0xff]
        %v2178 = vld [vmem:[#allocation11 + $0xb4] sm:$0xff]
        %v2179 = vld [vmem:[%s7] sm:$0x3]
        %v2181 = vperm.slane %v2179, 0
        %v2182 = vperm.slane %v2179, 1
        %v2201 = vunpack.c.l.b16 %v2163
        %v2202 = vunpack.c.h.b16 %v2163
        %v2203 = vunpack.c.l.b16 %v2164
        %v2204 = vunpack.c.h.b16 %v2164
        %v2205 = vunpack.c.l.b16 %v2165
        %v2206 = vunpack.c.h.b16 %v2165
        %v2207 = vunpack.c.l.b16 %v2166
        %v2208 = vunpack.c.h.b16 %v2166
        %v2209 = vunpack.c.l.b16 %v2167
        %v2210 = vunpack.c.h.b16 %v2167
        %v2211 = vunpack.c.l.b16 %v2168
        %v2212 = vunpack.c.h.b16 %v2168
        %v2213 = vunpack.c.l.b16 %v2169
        %v2214 = vunpack.c.h.b16 %v2169
        %v2215 = vunpack.c.l.b16 %v2170
        %v2216 = vunpack.c.h.b16 %v2170
        %v2217 = vunpack.c.l.b16 %v2171
        %v2218 = vunpack.c.h.b16 %v2171
        %v2219 = vunpack.c.l.b16 %v2172
        %v2220 = vunpack.c.h.b16 %v2172
        %v2221 = vunpack.c.l.b16 %v2173
        %v2222 = vunpack.c.h.b16 %v2173
        %v2223 = vunpack.c.l.b16 %v2174
        %v2224 = vunpack.c.h.b16 %v2174
        %v2225 = vunpack.c.l.b16 %v2175
        %v2226 = vunpack.c.h.b16 %v2175
        %v2227 = vunpack.c.l.b16 %v2176
        %v2228 = vunpack.c.h.b16 %v2176
        %v2229 = vunpack.c.l.b16 %v2177
        %v2230 = vunpack.c.h.b16 %v2177
        %v2231 = vunpack.c.l.b16 %v2178
        %v2232 = vunpack.c.h.b16 %v2178
        %v2233 = vpack.c.b16 %v2203, %v2201
        %v2234 = vpack.c.b16 %v2204, %v2202
        %v2235 = vpack.c.b16 %v2207, %v2205
        %v2236 = vpack.c.b16 %v2208, %v2206
        %v2237 = vpack.c.b16 %v2211, %v2209
        %v2238 = vpack.c.b16 %v2212, %v2210
        %v2239 = vpack.c.b16 %v2215, %v2213
        %v2240 = vpack.c.b16 %v2216, %v2214
        %v2241 = vpack.c.b16 %v2219, %v2217
        %v2242 = vpack.c.b16 %v2220, %v2218
        %v2243 = vpack.c.b16 %v2223, %v2221
        %v2244 = vpack.c.b16 %v2224, %v2222
        %v2245 = vpack.c.b16 %v2227, %v2225
        %v2246 = vpack.c.b16 %v2228, %v2226
        %v2247 = vpack.c.b16 %v2231, %v2229
        %v2248 = vpack.c.b16 %v2232, %v2230
        %2265 = vmatpush.bf16.msra.mxu0 %v2247
        %2266 = vmatpush.bf16.msra.mxu0 %v2245
        %2267 = vmatpush.bf16.msra.mxu0 %v2243
        %2268 = vmatpush.bf16.msra.mxu0 %v2241
        %2269 = vmatpush.bf16.msra.mxu0 %v2239
        %2270 = vmatpush.bf16.msra.mxu0 %v2237
        %2271 = vmatpush.bf16.msra.mxu0 %v2235
        %2272 = vmatpush.bf16.msra.mxu0 %v2233
        %2273 = vmatmul.bf16.gmra.mxu0 %v2147
        %v2274 = vpop.f32.mrf.mxu0
        %v2275 = vadd.f32 %v2181, %v2274
        %v2276 = vpop.f32.mrf.mxu0
        %v2277 = vadd.f32 %v2181, %v2276
        %2278 = vmatmul.bf16.gmra.mxu0 %v2148
        %v2279 = vpop.f32.mrf.mxu0
        %v2280 = vadd.f32 %v2181, %v2279
        %v2281 = vpop.f32.mrf.mxu0
        %v2282 = vadd.f32 %v2181, %v2281
        %2283 = vmatmul.bf16.gmra.mxu0 %v2149
        %v2284 = vpop.f32.mrf.mxu0
        %v2285 = vadd.f32 %v2181, %v2284
        %v2286 = vpop.f32.mrf.mxu0
        %v2287 = vadd.f32 %v2181, %v2286
        %2288 = vmatmul.bf16.gmra.mxu0 %v2150
        %v2289 = vpop.f32.mrf.mxu0
        %v2290 = vadd.f32 %v2181, %v2289
        %v2291 = vpop.f32.mrf.mxu0
        %v2292 = vadd.f32 %v2181, %v2291
        %2293 = vmatmul.bf16.gmra.mxu0 %v2151
        %v2294 = vpop.f32.mrf.mxu0
        %v2295 = vadd.f32 %v2181, %v2294
        %v2296 = vpop.f32.mrf.mxu0
        %v2297 = vadd.f32 %v2181, %v2296
        %2298 = vmatmul.bf16.gmra.mxu0 %v2152
        %v2299 = vpop.f32.mrf.mxu0
        %v2300 = vadd.f32 %v2181, %v2299
        %v2301 = vpop.f32.mrf.mxu0
        %v2302 = vadd.f32 %v2181, %v2301
        %2303 = vmatmul.bf16.gmra.mxu0 %v2153
        %v2304 = vpop.f32.mrf.mxu0
        %v2305 = vadd.f32 %v2181, %v2304
        %v2306 = vpop.f32.mrf.mxu0
        %v2307 = vadd.f32 %v2181, %v2306
        %2308 = vmatmul.bf16.gmra.mxu0 %v2154
        %v2309 = vpop.f32.mrf.mxu0
        %v2310 = vadd.f32 %v2181, %v2309
        %v2311 = vpop.f32.mrf.mxu0
        %v2312 = vadd.f32 %v2181, %v2311
        %2313 = vmatmul.bf16.gmra.mxu0 %v2155
        %v2314 = vpop.f32.mrf.mxu0
        %v2315 = vadd.f32 %v2181, %v2314
        %v2316 = vpop.f32.mrf.mxu0
        %v2317 = vadd.f32 %v2181, %v2316
        %2318 = vmatmul.bf16.gmra.mxu0 %v2156
        %v2319 = vpop.f32.mrf.mxu0
        %v2320 = vadd.f32 %v2181, %v2319
        %v2321 = vpop.f32.mrf.mxu0
        %v2322 = vadd.f32 %v2181, %v2321
        %2323 = vmatmul.bf16.gmra.mxu0 %v2157
        %v2324 = vpop.f32.mrf.mxu0
        %v2325 = vadd.f32 %v2181, %v2324
        %v2326 = vpop.f32.mrf.mxu0
        %v2327 = vadd.f32 %v2181, %v2326
        %2328 = vmatmul.bf16.gmra.mxu0 %v2158
        %v2329 = vpop.f32.mrf.mxu0
        %v2330 = vadd.f32 %v2181, %v2329
        %v2331 = vpop.f32.mrf.mxu0
        %v2332 = vadd.f32 %v2181, %v2331
        %2333 = vmatmul.bf16.gmra.mxu0 %v2159
        %v2334 = vpop.f32.mrf.mxu0
        %v2335 = vadd.f32 %v2181, %v2334
        %v2336 = vpop.f32.mrf.mxu0
        %v2337 = vadd.f32 %v2181, %v2336
        %2338 = vmatmul.bf16.gmra.mxu0 %v2160
        %v2339 = vpop.f32.mrf.mxu0
        %v2340 = vadd.f32 %v2181, %v2339
        %v2341 = vpop.f32.mrf.mxu0
        %v2342 = vadd.f32 %v2181, %v2341
        %2343 = vmatmul.bf16.gmra.mxu0 %v2161
        %v2344 = vpop.f32.mrf.mxu0
        %v2345 = vadd.f32 %v2181, %v2344
        %v2346 = vpop.f32.mrf.mxu0
        %v2347 = vadd.f32 %v2181, %v2346
        %2348 = vmatmul.bf16.gmra.mxu0 %v2162
        %v2349 = vpop.f32.mrf.mxu0
        %v2350 = vadd.f32 %v2181, %v2349
        %v2351 = vpop.f32.mrf.mxu0
        %v2352 = vadd.f32 %v2181, %v2351
        %2353 = vdwg.mxu0
        %2354 = vmatpush.bf16.msra.mxu0 %v2248
        %2355 = vmatpush.bf16.msra.mxu0 %v2246
        %2356 = vmatpush.bf16.msra.mxu0 %v2244
        %2357 = vmatpush.bf16.msra.mxu0 %v2242
        %2358 = vmatpush.bf16.msra.mxu0 %v2240
        %2359 = vmatpush.bf16.msra.mxu0 %v2238
        %2360 = vmatpush.bf16.msra.mxu0 %v2236
        %2361 = vmatpush.bf16.msra.mxu0 %v2234
        %2362 = vmatmul.bf16.gmra.mxu0 %v2147
        %v2363 = vpop.f32.mrf.mxu0
        %v2364 = vadd.f32 %v2182, %v2363
        %v2365 = vpop.f32.mrf.mxu0
        %v2366 = vadd.f32 %v2182, %v2365
        %2367 = vmatmul.bf16.gmra.mxu0 %v2148
        %v2368 = vpop.f32.mrf.mxu0
        %v2369 = vadd.f32 %v2182, %v2368
        %v2370 = vpop.f32.mrf.mxu0
        %v2371 = vadd.f32 %v2182, %v2370
        %2372 = vmatmul.bf16.gmra.mxu0 %v2149
        %v2373 = vpop.f32.mrf.mxu0
        %v2374 = vadd.f32 %v2182, %v2373
        %v2375 = vpop.f32.mrf.mxu0
        %v2376 = vadd.f32 %v2182, %v2375
        %2377 = vmatmul.bf16.gmra.mxu0 %v2150
        %v2378 = vpop.f32.mrf.mxu0
        %v2379 = vadd.f32 %v2182, %v2378
        %v2380 = vpop.f32.mrf.mxu0
        %v2381 = vadd.f32 %v2182, %v2380
        %2382 = vmatmul.bf16.gmra.mxu0 %v2151
        %v2383 = vpop.f32.mrf.mxu0
        %v2384 = vadd.f32 %v2182, %v2383
        %v2385 = vpop.f32.mrf.mxu0
        %v2386 = vadd.f32 %v2182, %v2385
        %2387 = vmatmul.bf16.gmra.mxu0 %v2152
        %v2388 = vpop.f32.mrf.mxu0
        %v2389 = vadd.f32 %v2182, %v2388
        %v2390 = vpop.f32.mrf.mxu0
        %v2391 = vadd.f32 %v2182, %v2390
        %2392 = vmatmul.bf16.gmra.mxu0 %v2153
        %v2393 = vpop.f32.mrf.mxu0
        %v2394 = vadd.f32 %v2182, %v2393
        %v2395 = vpop.f32.mrf.mxu0
        %v2396 = vadd.f32 %v2182, %v2395
        %2397 = vmatmul.bf16.gmra.mxu0 %v2154
        %v2398 = vpop.f32.mrf.mxu0
        %v2399 = vadd.f32 %v2182, %v2398
        %v2400 = vpop.f32.mrf.mxu0
        %v2401 = vadd.f32 %v2182, %v2400
        %2402 = vmatmul.bf16.gmra.mxu0 %v2155
        %v2403 = vpop.f32.mrf.mxu0
        %v2404 = vadd.f32 %v2182, %v2403
        %v2405 = vpop.f32.mrf.mxu0
        %v2406 = vadd.f32 %v2182, %v2405
        %2407 = vmatmul.bf16.gmra.mxu0 %v2156
        %v2408 = vpop.f32.mrf.mxu0
        %v2409 = vadd.f32 %v2182, %v2408
        %v2410 = vpop.f32.mrf.mxu0
        %v2411 = vadd.f32 %v2182, %v2410
        %2412 = vmatmul.bf16.gmra.mxu0 %v2157
        %v2413 = vpop.f32.mrf.mxu0
        %v2414 = vadd.f32 %v2182, %v2413
        %v2415 = vpop.f32.mrf.mxu0
        %v2416 = vadd.f32 %v2182, %v2415
        %2417 = vmatmul.bf16.gmra.mxu0 %v2158
        %v2418 = vpop.f32.mrf.mxu0
        %v2419 = vadd.f32 %v2182, %v2418
        %v2420 = vpop.f32.mrf.mxu0
        %v2421 = vadd.f32 %v2182, %v2420
        %2422 = vmatmul.bf16.gmra.mxu0 %v2159
        %v2423 = vpop.f32.mrf.mxu0
        %v2424 = vadd.f32 %v2182, %v2423
        %v2425 = vpop.f32.mrf.mxu0
        %v2426 = vadd.f32 %v2182, %v2425
        %2427 = vmatmul.bf16.gmra.mxu0 %v2160
        %v2428 = vpop.f32.mrf.mxu0
        %v2429 = vadd.f32 %v2182, %v2428
        %v2430 = vpop.f32.mrf.mxu0
        %v2431 = vadd.f32 %v2182, %v2430
        %2432 = vmatmul.bf16.gmra.mxu0 %v2161
        %v2433 = vpop.f32.mrf.mxu0
        %v2434 = vadd.f32 %v2182, %v2433
        %v2435 = vpop.f32.mrf.mxu0
        %v2436 = vadd.f32 %v2182, %v2435
        %2437 = vmatmul.bf16.gmra.mxu0 %v2162
        %v2438 = vpop.f32.mrf.mxu0
        %v2439 = vadd.f32 %v2182, %v2438
        %v2440 = vpop.f32.mrf.mxu0
        %v2441 = vadd.f32 %v2182, %v2440
        %2442 = vdwg.mxu0
        %v2443 = vmul.f32 %v2275, 0.5
        %v2444 = vmul.f32 %v2364, 0.5
        %v2445 = vmul.f32 %v2277, 0.5
        %v2446 = vmul.f32 %v2366, 0.5
        %v2447 = vmul.f32 %v2280, 0.5
        %v2448 = vmul.f32 %v2369, 0.5
        %v2449 = vmul.f32 %v2282, 0.5
        %v2450 = vmul.f32 %v2371, 0.5
        %v2451 = vmul.f32 %v2285, 0.5
        %v2452 = vmul.f32 %v2374, 0.5
        %v2453 = vmul.f32 %v2287, 0.5
        %v2454 = vmul.f32 %v2376, 0.5
        %v2455 = vmul.f32 %v2290, 0.5
        %v2456 = vmul.f32 %v2379, 0.5
        %v2457 = vmul.f32 %v2292, 0.5
        %v2458 = vmul.f32 %v2381, 0.5
        %v2459 = vmul.f32 %v2295, 0.5
        %v2460 = vmul.f32 %v2384, 0.5
        %v2461 = vmul.f32 %v2297, 0.5
        %v2462 = vmul.f32 %v2386, 0.5
        %v2463 = vmul.f32 %v2300, 0.5
        %v2464 = vmul.f32 %v2389, 0.5
        %v2465 = vmul.f32 %v2302, 0.5
        %v2466 = vmul.f32 %v2391, 0.5
        %v2467 = vmul.f32 %v2305, 0.5
        %v2468 = vmul.f32 %v2394, 0.5
        %v2469 = vmul.f32 %v2307, 0.5
        %v2470 = vmul.f32 %v2396, 0.5
        %v2471 = vmul.f32 %v2310, 0.5
        %v2472 = vmul.f32 %v2399, 0.5
        %v2473 = vmul.f32 %v2312, 0.5
        %v2474 = vmul.f32 %v2401, 0.5
        %v2475 = vmul.f32 %v2315, 0.5
        %v2476 = vmul.f32 %v2404, 0.5
        %v2477 = vmul.f32 %v2317, 0.5
        %v2478 = vmul.f32 %v2406, 0.5
        %v2479 = vmul.f32 %v2320, 0.5
        %v2480 = vmul.f32 %v2409, 0.5
        %v2481 = vmul.f32 %v2322, 0.5
        %v2482 = vmul.f32 %v2411, 0.5
        %v2483 = vmul.f32 %v2325, 0.5
        %v2484 = vmul.f32 %v2414, 0.5
        %v2485 = vmul.f32 %v2327, 0.5
        %v2486 = vmul.f32 %v2416, 0.5
        %v2487 = vmul.f32 %v2330, 0.5
        %v2488 = vmul.f32 %v2419, 0.5
        %v2489 = vmul.f32 %v2332, 0.5
        %v2490 = vmul.f32 %v2421, 0.5
        %v2491 = vmul.f32 %v2335, 0.5
        %v2492 = vmul.f32 %v2424, 0.5
        %v2493 = vmul.f32 %v2337, 0.5
        %v2494 = vmul.f32 %v2426, 0.5
        %v2495 = vmul.f32 %v2340, 0.5
        %v2496 = vmul.f32 %v2429, 0.5
        %v2497 = vmul.f32 %v2342, 0.5
        %v2498 = vmul.f32 %v2431, 0.5
        %v2499 = vmul.f32 %v2345, 0.5
        %v2500 = vmul.f32 %v2434, 0.5
        %v2501 = vmul.f32 %v2347, 0.5
        %v2502 = vmul.f32 %v2436, 0.5
        %v2503 = vmul.f32 %v2350, 0.5
        %v2504 = vmul.f32 %v2439, 0.5
        %v2505 = vmul.f32 %v2352, 0.5
        %v2506 = vmul.f32 %v2441, 0.5
        %v2507 = vmul.f32 %v2275, 0.70710677
        %v2508 = vmul.f32 %v2364, 0.70710677
        %v2509 = vmul.f32 %v2277, 0.70710677
        %v2510 = vmul.f32 %v2366, 0.70710677
        %v2511 = vmul.f32 %v2280, 0.70710677
        %v2512 = vmul.f32 %v2369, 0.70710677
        %v2513 = vmul.f32 %v2282, 0.70710677
        %v2514 = vmul.f32 %v2371, 0.70710677
        %v2515 = vmul.f32 %v2285, 0.70710677
        %v2516 = vmul.f32 %v2374, 0.70710677
        %v2517 = vmul.f32 %v2287, 0.70710677
        %v2518 = vmul.f32 %v2376, 0.70710677
        %v2519 = vmul.f32 %v2290, 0.70710677
        %v2520 = vmul.f32 %v2379, 0.70710677
        %v2521 = vmul.f32 %v2292, 0.70710677
        %v2522 = vmul.f32 %v2381, 0.70710677
        %v2523 = vmul.f32 %v2295, 0.70710677
        %v2524 = vmul.f32 %v2384, 0.70710677
        %v2525 = vmul.f32 %v2297, 0.70710677
        %v2526 = vmul.f32 %v2386, 0.70710677
        %v2527 = vmul.f32 %v2300, 0.70710677
        %v2528 = vmul.f32 %v2389, 0.70710677
        %v2529 = vmul.f32 %v2302, 0.70710677
        %v2530 = vmul.f32 %v2391, 0.70710677
        %v2531 = vmul.f32 %v2305, 0.70710677
        %v2532 = vmul.f32 %v2394, 0.70710677
        %v2533 = vmul.f32 %v2307, 0.70710677
        %v2534 = vmul.f32 %v2396, 0.70710677
        %v2535 = vmul.f32 %v2310, 0.70710677
        %v2536 = vmul.f32 %v2399, 0.70710677
        %v2537 = vmul.f32 %v2312, 0.70710677
        %v2538 = vmul.f32 %v2401, 0.70710677
        %v2539 = vmul.f32 %v2315, 0.70710677
        %v2540 = vmul.f32 %v2404, 0.70710677
        %v2541 = vmul.f32 %v2317, 0.70710677
        %v2542 = vmul.f32 %v2406, 0.70710677
        %v2543 = vmul.f32 %v2320, 0.70710677
        %v2544 = vmul.f32 %v2409, 0.70710677
        %v2545 = vmul.f32 %v2322, 0.70710677
        %v2546 = vmul.f32 %v2411, 0.70710677
        %v2547 = vmul.f32 %v2325, 0.70710677
        %v2548 = vmul.f32 %v2414, 0.70710677
        %v2549 = vmul.f32 %v2327, 0.70710677
        %v2550 = vmul.f32 %v2416, 0.70710677
        %v2551 = vmul.f32 %v2330, 0.70710677
        %v2552 = vmul.f32 %v2419, 0.70710677
        %v2553 = vmul.f32 %v2332, 0.70710677
        %v2554 = vmul.f32 %v2421, 0.70710677
        %v2555 = vmul.f32 %v2335, 0.70710677
        %v2556 = vmul.f32 %v2424, 0.70710677
        %v2557 = vmul.f32 %v2337, 0.70710677
        %v2558 = vmul.f32 %v2426, 0.70710677
        %v2559 = vmul.f32 %v2340, 0.70710677
        %v2560 = vmul.f32 %v2429, 0.70710677
        %v2561 = vmul.f32 %v2342, 0.70710677
        %v2562 = vmul.f32 %v2431, 0.70710677
        %v2563 = vmul.f32 %v2345, 0.70710677
        %v2564 = vmul.f32 %v2434, 0.70710677
        %v2565 = vmul.f32 %v2347, 0.70710677
        %v2566 = vmul.f32 %v2436, 0.70710677
        %v2567 = vmul.f32 %v2350, 0.70710677
        %v2568 = vmul.f32 %v2439, 0.70710677
        %v2569 = vmul.f32 %v2352, 0.70710677
        %v2570 = vmul.f32 %v2441, 0.70710677
        %v2571 = vmul.f32 %v2507, %v2507
        %v2572 = vmin.f32 16.0, %v2571
        %v2573 = vmul.f32 %v2572, 2.1237322e-06
        %v2574 = vadd.f32 %v2573, 0.00028619796
        %v2575 = vmul.f32 %v2572, %v2574
        %v2576 = vadd.f32 %v2575, 0.0036580483
        %v2577 = vmul.f32 %v2572, %v2576
        %v2578 = vadd.f32 %v2577, 0.05243302
        %v2579 = vmul.f32 %v2572, %v2578
        %v2580 = vadd.f32 %v2579, 0.18741608
        %v2581 = vmul.f32 %v2572, %v2580
        %v2582 = vadd.f32 %v2581, 1.1283791
        %v2583 = vmul.f32 %v2507, %v2582
        %v2584 = vmul.f32 %v2572, 3.8918573e-05
        %v2585 = vadd.f32 %v2584, 0.001143296
        %v2586 = vmul.f32 %v2572, %v2585
        %v2587 = vadd.f32 %v2586, 0.014752088
        %v2588 = vmul.f32 %v2572, %v2587
        %v2589 = vadd.f32 %v2588, 0.112945676
        %v2590 = vmul.f32 %v2572, %v2589
        %v2591 = vadd.f32 %v2590, 0.4994258
        %v2592 = vmul.f32 %v2572, %v2591
        %v2593 = vadd.f32 %v2592, 1.0
        %v2594 = vrcp.pop %v2593
        %v2595 = vmul.f32 %v2593, %v2594
        %v2596 = vsub.f32 1.0, %v2595
        %v2597 = vmul.f32 %v2594, %v2596
        %v2598 = vadd.f32 %v2594, %v2597
        %vm2599 = vweird.f32 %v2593
        %vm2600 = vweird.f32 %v2594
        %vm2601 = vmor %vm2599, %vm2600
        %v2602 = vsel %vm2601, %v2594, %v2598
        %v2603 = vand.u32 2147483647, %v2593
        %vm2604 = vcmp.eq.f32.partialorder %v2603, 8.507059e+37
        %v2605 = vand.u32 %v2593, 2147483648
        %v2606 = vor.u32 1.1754944e-38, %v2605
        %v2607 = vsel %vm2604, %v2606, %v2602
        %v2608 = vmul.f32 %v2583, %v2607
        %v2609 = vmin.f32 %v2608, 1.0
        %v2610 = vmax.f32 %v2609, -1.0
        %v2611 = vmul.f32 %v2508, %v2508
        %v2612 = vmin.f32 16.0, %v2611
        %v2613 = vmul.f32 %v2612, 2.1237322e-06
        %v2614 = vadd.f32 %v2613, 0.00028619796
        %v2615 = vmul.f32 %v2612, %v2614
        %v2616 = vadd.f32 %v2615, 0.0036580483
        %v2617 = vmul.f32 %v2612, %v2616
        %v2618 = vadd.f32 %v2617, 0.05243302
        %v2619 = vmul.f32 %v2612, %v2618
        %v2620 = vadd.f32 %v2619, 0.18741608
        %v2621 = vmul.f32 %v2612, %v2620
        %v2622 = vadd.f32 %v2621, 1.1283791
        %v2623 = vmul.f32 %v2508, %v2622
        %v2624 = vmul.f32 %v2612, 3.8918573e-05
        %v2625 = vadd.f32 %v2624, 0.001143296
        %v2626 = vmul.f32 %v2612, %v2625
        %v2627 = vadd.f32 %v2626, 0.014752088
        %v2628 = vmul.f32 %v2612, %v2627
        %v2629 = vadd.f32 %v2628, 0.112945676
        %v2630 = vmul.f32 %v2612, %v2629
        %v2631 = vadd.f32 %v2630, 0.4994258
        %v2632 = vmul.f32 %v2612, %v2631
        %v2633 = vadd.f32 %v2632, 1.0
        %v2634 = vrcp.pop %v2633
        %v2635 = vmul.f32 %v2633, %v2634
        %v2636 = vsub.f32 1.0, %v2635
        %v2637 = vmul.f32 %v2634, %v2636
        %v2638 = vadd.f32 %v2634, %v2637
        %vm2639 = vweird.f32 %v2633
        %vm2640 = vweird.f32 %v2634
        %vm2641 = vmor %vm2639, %vm2640
        %v2642 = vsel %vm2641, %v2634, %v2638
        %v2643 = vand.u32 2147483647, %v2633
        %vm2644 = vcmp.eq.f32.partialorder %v2643, 8.507059e+37
        %v2645 = vand.u32 %v2633, 2147483648
        %v2646 = vor.u32 1.1754944e-38, %v2645
        %v2647 = vsel %vm2644, %v2646, %v2642
        %v2648 = vmul.f32 %v2623, %v2647
        %v2649 = vmin.f32 %v2648, 1.0
        %v2650 = vmax.f32 %v2649, -1.0
        %v2651 = vmul.f32 %v2509, %v2509
        %v2652 = vmin.f32 16.0, %v2651
        %v2653 = vmul.f32 %v2652, 2.1237322e-06
        %v2654 = vadd.f32 %v2653, 0.00028619796
        %v2655 = vmul.f32 %v2652, %v2654
        %v2656 = vadd.f32 %v2655, 0.0036580483
        %v2657 = vmul.f32 %v2652, %v2656
        %v2658 = vadd.f32 %v2657, 0.05243302
        %v2659 = vmul.f32 %v2652, %v2658
        %v2660 = vadd.f32 %v2659, 0.18741608
        %v2661 = vmul.f32 %v2652, %v2660
        %v2662 = vadd.f32 %v2661, 1.1283791
        %v2663 = vmul.f32 %v2509, %v2662
        %v2664 = vmul.f32 %v2652, 3.8918573e-05
        %v2665 = vadd.f32 %v2664, 0.001143296
        %v2666 = vmul.f32 %v2652, %v2665
        %v2667 = vadd.f32 %v2666, 0.014752088
        %v2668 = vmul.f32 %v2652, %v2667
        %v2669 = vadd.f32 %v2668, 0.112945676
        %v2670 = vmul.f32 %v2652, %v2669
        %v2671 = vadd.f32 %v2670, 0.4994258
        %v2672 = vmul.f32 %v2652, %v2671
        %v2673 = vadd.f32 %v2672, 1.0
        %v2674 = vrcp.pop %v2673
        %v2675 = vmul.f32 %v2673, %v2674
        %v2676 = vsub.f32 1.0, %v2675
        %v2677 = vmul.f32 %v2674, %v2676
        %v2678 = vadd.f32 %v2674, %v2677
        %vm2679 = vweird.f32 %v2673
        %vm2680 = vweird.f32 %v2674
        %vm2681 = vmor %vm2679, %vm2680
        %v2682 = vsel %vm2681, %v2674, %v2678
        %v2683 = vand.u32 2147483647, %v2673
        %vm2684 = vcmp.eq.f32.partialorder %v2683, 8.507059e+37
        %v2685 = vand.u32 %v2673, 2147483648
        %v2686 = vor.u32 1.1754944e-38, %v2685
        %v2687 = vsel %vm2684, %v2686, %v2682
        %v2688 = vmul.f32 %v2663, %v2687
        %v2689 = vmin.f32 %v2688, 1.0
        %v2690 = vmax.f32 %v2689, -1.0
        %v2691 = vmul.f32 %v2510, %v2510
        %v2692 = vmin.f32 16.0, %v2691
        %v2693 = vmul.f32 %v2692, 2.1237322e-06
        %v2694 = vadd.f32 %v2693, 0.00028619796
        %v2695 = vmul.f32 %v2692, %v2694
        %v2696 = vadd.f32 %v2695, 0.0036580483
        %v2697 = vmul.f32 %v2692, %v2696
        %v2698 = vadd.f32 %v2697, 0.05243302
        %v2699 = vmul.f32 %v2692, %v2698
        %v2700 = vadd.f32 %v2699, 0.18741608
        %v2701 = vmul.f32 %v2692, %v2700
        %v2702 = vadd.f32 %v2701, 1.1283791
        %v2703 = vmul.f32 %v2510, %v2702
        %v2704 = vmul.f32 %v2692, 3.8918573e-05
        %v2705 = vadd.f32 %v2704, 0.001143296
        %v2706 = vmul.f32 %v2692, %v2705
        %v2707 = vadd.f32 %v2706, 0.014752088
        %v2708 = vmul.f32 %v2692, %v2707
        %v2709 = vadd.f32 %v2708, 0.112945676
        %v2710 = vmul.f32 %v2692, %v2709
        %v2711 = vadd.f32 %v2710, 0.4994258
        %v2712 = vmul.f32 %v2692, %v2711
        %v2713 = vadd.f32 %v2712, 1.0
        %v2714 = vrcp.pop %v2713
        %v2715 = vmul.f32 %v2713, %v2714
        %v2716 = vsub.f32 1.0, %v2715
        %v2717 = vmul.f32 %v2714, %v2716
        %v2718 = vadd.f32 %v2714, %v2717
        %vm2719 = vweird.f32 %v2713
        %vm2720 = vweird.f32 %v2714
        %vm2721 = vmor %vm2719, %vm2720
        %v2722 = vsel %vm2721, %v2714, %v2718
        %v2723 = vand.u32 2147483647, %v2713
        %vm2724 = vcmp.eq.f32.partialorder %v2723, 8.507059e+37
        %v2725 = vand.u32 %v2713, 2147483648
        %v2726 = vor.u32 1.1754944e-38, %v2725
        %v2727 = vsel %vm2724, %v2726, %v2722
        %v2728 = vmul.f32 %v2703, %v2727
        %v2729 = vmin.f32 %v2728, 1.0
        %v2730 = vmax.f32 %v2729, -1.0
        %v2731 = vmul.f32 %v2511, %v2511
        %v2732 = vmin.f32 16.0, %v2731
        %v2733 = vmul.f32 %v2732, 2.1237322e-06
        %v2734 = vadd.f32 %v2733, 0.00028619796
        %v2735 = vmul.f32 %v2732, %v2734
        %v2736 = vadd.f32 %v2735, 0.0036580483
        %v2737 = vmul.f32 %v2732, %v2736
        %v2738 = vadd.f32 %v2737, 0.05243302
        %v2739 = vmul.f32 %v2732, %v2738
        %v2740 = vadd.f32 %v2739, 0.18741608
        %v2741 = vmul.f32 %v2732, %v2740
        %v2742 = vadd.f32 %v2741, 1.1283791
        %v2743 = vmul.f32 %v2511, %v2742
        %v2744 = vmul.f32 %v2732, 3.8918573e-05
        %v2745 = vadd.f32 %v2744, 0.001143296
        %v2746 = vmul.f32 %v2732, %v2745
        %v2747 = vadd.f32 %v2746, 0.014752088
        %v2748 = vmul.f32 %v2732, %v2747
        %v2749 = vadd.f32 %v2748, 0.112945676
        %v2750 = vmul.f32 %v2732, %v2749
        %v2751 = vadd.f32 %v2750, 0.4994258
        %v2752 = vmul.f32 %v2732, %v2751
        %v2753 = vadd.f32 %v2752, 1.0
        %v2754 = vrcp.pop %v2753
        %v2755 = vmul.f32 %v2753, %v2754
        %v2756 = vsub.f32 1.0, %v2755
        %v2757 = vmul.f32 %v2754, %v2756
        %v2758 = vadd.f32 %v2754, %v2757
        %vm2759 = vweird.f32 %v2753
        %vm2760 = vweird.f32 %v2754
        %vm2761 = vmor %vm2759, %vm2760
        %v2762 = vsel %vm2761, %v2754, %v2758
        %v2763 = vand.u32 2147483647, %v2753
        %vm2764 = vcmp.eq.f32.partialorder %v2763, 8.507059e+37
        %v2765 = vand.u32 %v2753, 2147483648
        %v2766 = vor.u32 1.1754944e-38, %v2765
        %v2767 = vsel %vm2764, %v2766, %v2762
        %v2768 = vmul.f32 %v2743, %v2767
        %v2769 = vmin.f32 %v2768, 1.0
        %v2770 = vmax.f32 %v2769, -1.0
        %v2771 = vmul.f32 %v2512, %v2512
        %v2772 = vmin.f32 16.0, %v2771
        %v2773 = vmul.f32 %v2772, 2.1237322e-06
        %v2774 = vadd.f32 %v2773, 0.00028619796
        %v2775 = vmul.f32 %v2772, %v2774
        %v2776 = vadd.f32 %v2775, 0.0036580483
        %v2777 = vmul.f32 %v2772, %v2776
        %v2778 = vadd.f32 %v2777, 0.05243302
        %v2779 = vmul.f32 %v2772, %v2778
        %v2780 = vadd.f32 %v2779, 0.18741608
        %v2781 = vmul.f32 %v2772, %v2780
        %v2782 = vadd.f32 %v2781, 1.1283791
        %v2783 = vmul.f32 %v2512, %v2782
        %v2784 = vmul.f32 %v2772, 3.8918573e-05
        %v2785 = vadd.f32 %v2784, 0.001143296
        %v2786 = vmul.f32 %v2772, %v2785
        %v2787 = vadd.f32 %v2786, 0.014752088
        %v2788 = vmul.f32 %v2772, %v2787
        %v2789 = vadd.f32 %v2788, 0.112945676
        %v2790 = vmul.f32 %v2772, %v2789
        %v2791 = vadd.f32 %v2790, 0.4994258
        %v2792 = vmul.f32 %v2772, %v2791
        %v2793 = vadd.f32 %v2792, 1.0
        %v2794 = vrcp.pop %v2793
        %v2795 = vmul.f32 %v2793, %v2794
        %v2796 = vsub.f32 1.0, %v2795
        %v2797 = vmul.f32 %v2794, %v2796
        %v2798 = vadd.f32 %v2794, %v2797
        %vm2799 = vweird.f32 %v2793
        %vm2800 = vweird.f32 %v2794
        %vm2801 = vmor %vm2799, %vm2800
        %v2802 = vsel %vm2801, %v2794, %v2798
        %v2803 = vand.u32 2147483647, %v2793
        %vm2804 = vcmp.eq.f32.partialorder %v2803, 8.507059e+37
        %v2805 = vand.u32 %v2793, 2147483648
        %v2806 = vor.u32 1.1754944e-38, %v2805
        %v2807 = vsel %vm2804, %v2806, %v2802
        %v2808 = vmul.f32 %v2783, %v2807
        %v2809 = vmin.f32 %v2808, 1.0
        %v2810 = vmax.f32 %v2809, -1.0
        %v2811 = vmul.f32 %v2513, %v2513
        %v2812 = vmin.f32 16.0, %v2811
        %v2813 = vmul.f32 %v2812, 2.1237322e-06
        %v2814 = vadd.f32 %v2813, 0.00028619796
        %v2815 = vmul.f32 %v2812, %v2814
        %v2816 = vadd.f32 %v2815, 0.0036580483
        %v2817 = vmul.f32 %v2812, %v2816
        %v2818 = vadd.f32 %v2817, 0.05243302
        %v2819 = vmul.f32 %v2812, %v2818
        %v2820 = vadd.f32 %v2819, 0.18741608
        %v2821 = vmul.f32 %v2812, %v2820
        %v2822 = vadd.f32 %v2821, 1.1283791
        %v2823 = vmul.f32 %v2513, %v2822
        %v2824 = vmul.f32 %v2812, 3.8918573e-05
        %v2825 = vadd.f32 %v2824, 0.001143296
        %v2826 = vmul.f32 %v2812, %v2825
        %v2827 = vadd.f32 %v2826, 0.014752088
        %v2828 = vmul.f32 %v2812, %v2827
        %v2829 = vadd.f32 %v2828, 0.112945676
        %v2830 = vmul.f32 %v2812, %v2829
        %v2831 = vadd.f32 %v2830, 0.4994258
        %v2832 = vmul.f32 %v2812, %v2831
        %v2833 = vadd.f32 %v2832, 1.0
        %v2834 = vrcp.pop %v2833
        %v2835 = vmul.f32 %v2833, %v2834
        %v2836 = vsub.f32 1.0, %v2835
        %v2837 = vmul.f32 %v2834, %v2836
        %v2838 = vadd.f32 %v2834, %v2837
        %vm2839 = vweird.f32 %v2833
        %vm2840 = vweird.f32 %v2834
        %vm2841 = vmor %vm2839, %vm2840
        %v2842 = vsel %vm2841, %v2834, %v2838
        %v2843 = vand.u32 2147483647, %v2833
        %vm2844 = vcmp.eq.f32.partialorder %v2843, 8.507059e+37
        %v2845 = vand.u32 %v2833, 2147483648
        %v2846 = vor.u32 1.1754944e-38, %v2845
        %v2847 = vsel %vm2844, %v2846, %v2842
        %v2848 = vmul.f32 %v2823, %v2847
        %v2849 = vmin.f32 %v2848, 1.0
        %v2850 = vmax.f32 %v2849, -1.0
        %v2851 = vmul.f32 %v2514, %v2514
        %v2852 = vmin.f32 16.0, %v2851
        %v2853 = vmul.f32 %v2852, 2.1237322e-06
        %v2854 = vadd.f32 %v2853, 0.00028619796
        %v2855 = vmul.f32 %v2852, %v2854
        %v2856 = vadd.f32 %v2855, 0.0036580483
        %v2857 = vmul.f32 %v2852, %v2856
        %v2858 = vadd.f32 %v2857, 0.05243302
        %v2859 = vmul.f32 %v2852, %v2858
        %v2860 = vadd.f32 %v2859, 0.18741608
        %v2861 = vmul.f32 %v2852, %v2860
        %v2862 = vadd.f32 %v2861, 1.1283791
        %v2863 = vmul.f32 %v2514, %v2862
        %v2864 = vmul.f32 %v2852, 3.8918573e-05
        %v2865 = vadd.f32 %v2864, 0.001143296
        %v2866 = vmul.f32 %v2852, %v2865
        %v2867 = vadd.f32 %v2866, 0.014752088
        %v2868 = vmul.f32 %v2852, %v2867
        %v2869 = vadd.f32 %v2868, 0.112945676
        %v2870 = vmul.f32 %v2852, %v2869
        %v2871 = vadd.f32 %v2870, 0.4994258
        %v2872 = vmul.f32 %v2852, %v2871
        %v2873 = vadd.f32 %v2872, 1.0
        %v2874 = vrcp.pop %v2873
        %v2875 = vmul.f32 %v2873, %v2874
        %v2876 = vsub.f32 1.0, %v2875
        %v2877 = vmul.f32 %v2874, %v2876
        %v2878 = vadd.f32 %v2874, %v2877
        %vm2879 = vweird.f32 %v2873
        %vm2880 = vweird.f32 %v2874
        %vm2881 = vmor %vm2879, %vm2880
        %v2882 = vsel %vm2881, %v2874, %v2878
        %v2883 = vand.u32 2147483647, %v2873
        %vm2884 = vcmp.eq.f32.partialorder %v2883, 8.507059e+37
        %v2885 = vand.u32 %v2873, 2147483648
        %v2886 = vor.u32 1.1754944e-38, %v2885
        %v2887 = vsel %vm2884, %v2886, %v2882
        %v2888 = vmul.f32 %v2863, %v2887
        %v2889 = vmin.f32 %v2888, 1.0
        %v2890 = vmax.f32 %v2889, -1.0
        %v2891 = vmul.f32 %v2515, %v2515
        %v2892 = vmin.f32 16.0, %v2891
        %v2893 = vmul.f32 %v2892, 2.1237322e-06
        %v2894 = vadd.f32 %v2893, 0.00028619796
        %v2895 = vmul.f32 %v2892, %v2894
        %v2896 = vadd.f32 %v2895, 0.0036580483
        %v2897 = vmul.f32 %v2892, %v2896
        %v2898 = vadd.f32 %v2897, 0.05243302
        %v2899 = vmul.f32 %v2892, %v2898
        %v2900 = vadd.f32 %v2899, 0.18741608
        %v2901 = vmul.f32 %v2892, %v2900
        %v2902 = vadd.f32 %v2901, 1.1283791
        %v2903 = vmul.f32 %v2515, %v2902
        %v2904 = vmul.f32 %v2892, 3.8918573e-05
        %v2905 = vadd.f32 %v2904, 0.001143296
        %v2906 = vmul.f32 %v2892, %v2905
        %v2907 = vadd.f32 %v2906, 0.014752088
        %v2908 = vmul.f32 %v2892, %v2907
        %v2909 = vadd.f32 %v2908, 0.112945676
        %v2910 = vmul.f32 %v2892, %v2909
        %v2911 = vadd.f32 %v2910, 0.4994258
        %v2912 = vmul.f32 %v2892, %v2911
        %v2913 = vadd.f32 %v2912, 1.0
        %v2914 = vrcp.pop %v2913
        %v2915 = vmul.f32 %v2913, %v2914
        %v2916 = vsub.f32 1.0, %v2915
        %v2917 = vmul.f32 %v2914, %v2916
        %v2918 = vadd.f32 %v2914, %v2917
        %vm2919 = vweird.f32 %v2913
        %vm2920 = vweird.f32 %v2914
        %vm2921 = vmor %vm2919, %vm2920
        %v2922 = vsel %vm2921, %v2914, %v2918
        %v2923 = vand.u32 2147483647, %v2913
        %vm2924 = vcmp.eq.f32.partialorder %v2923, 8.507059e+37
        %v2925 = vand.u32 %v2913, 2147483648
        %v2926 = vor.u32 1.1754944e-38, %v2925
        %v2927 = vsel %vm2924, %v2926, %v2922
        %v2928 = vmul.f32 %v2903, %v2927
        %v2929 = vmin.f32 %v2928, 1.0
        %v2930 = vmax.f32 %v2929, -1.0
        %v2931 = vmul.f32 %v2516, %v2516
        %v2932 = vmin.f32 16.0, %v2931
        %v2933 = vmul.f32 %v2932, 2.1237322e-06
        %v2934 = vadd.f32 %v2933, 0.00028619796
        %v2935 = vmul.f32 %v2932, %v2934
        %v2936 = vadd.f32 %v2935, 0.0036580483
        %v2937 = vmul.f32 %v2932, %v2936
        %v2938 = vadd.f32 %v2937, 0.05243302
        %v2939 = vmul.f32 %v2932, %v2938
        %v2940 = vadd.f32 %v2939, 0.18741608
        %v2941 = vmul.f32 %v2932, %v2940
        %v2942 = vadd.f32 %v2941, 1.1283791
        %v2943 = vmul.f32 %v2516, %v2942
        %v2944 = vmul.f32 %v2932, 3.8918573e-05
        %v2945 = vadd.f32 %v2944, 0.001143296
        %v2946 = vmul.f32 %v2932, %v2945
        %v2947 = vadd.f32 %v2946, 0.014752088
        %v2948 = vmul.f32 %v2932, %v2947
        %v2949 = vadd.f32 %v2948, 0.112945676
        %v2950 = vmul.f32 %v2932, %v2949
        %v2951 = vadd.f32 %v2950, 0.4994258
        %v2952 = vmul.f32 %v2932, %v2951
        %v2953 = vadd.f32 %v2952, 1.0
        %v2954 = vrcp.pop %v2953
        %v2955 = vmul.f32 %v2953, %v2954
        %v2956 = vsub.f32 1.0, %v2955
        %v2957 = vmul.f32 %v2954, %v2956
        %v2958 = vadd.f32 %v2954, %v2957
        %vm2959 = vweird.f32 %v2953
        %vm2960 = vweird.f32 %v2954
        %vm2961 = vmor %vm2959, %vm2960
        %v2962 = vsel %vm2961, %v2954, %v2958
        %v2963 = vand.u32 2147483647, %v2953
        %vm2964 = vcmp.eq.f32.partialorder %v2963, 8.507059e+37
        %v2965 = vand.u32 %v2953, 2147483648
        %v2966 = vor.u32 1.1754944e-38, %v2965
        %v2967 = vsel %vm2964, %v2966, %v2962
        %v2968 = vmul.f32 %v2943, %v2967
        %v2969 = vmin.f32 %v2968, 1.0
        %v2970 = vmax.f32 %v2969, -1.0
        %v2971 = vmul.f32 %v2517, %v2517
        %v2972 = vmin.f32 16.0, %v2971
        %v2973 = vmul.f32 %v2972, 2.1237322e-06
        %v2974 = vadd.f32 %v2973, 0.00028619796
        %v2975 = vmul.f32 %v2972, %v2974
        %v2976 = vadd.f32 %v2975, 0.0036580483
        %v2977 = vmul.f32 %v2972, %v2976
        %v2978 = vadd.f32 %v2977, 0.05243302
        %v2979 = vmul.f32 %v2972, %v2978
        %v2980 = vadd.f32 %v2979, 0.18741608
        %v2981 = vmul.f32 %v2972, %v2980
        %v2982 = vadd.f32 %v2981, 1.1283791
        %v2983 = vmul.f32 %v2517, %v2982
        %v2984 = vmul.f32 %v2972, 3.8918573e-05
        %v2985 = vadd.f32 %v2984, 0.001143296
        %v2986 = vmul.f32 %v2972, %v2985
        %v2987 = vadd.f32 %v2986, 0.014752088
        %v2988 = vmul.f32 %v2972, %v2987
        %v2989 = vadd.f32 %v2988, 0.112945676
        %v2990 = vmul.f32 %v2972, %v2989
        %v2991 = vadd.f32 %v2990, 0.4994258
        %v2992 = vmul.f32 %v2972, %v2991
        %v2993 = vadd.f32 %v2992, 1.0
        %v2994 = vrcp.pop %v2993
        %v2995 = vmul.f32 %v2993, %v2994
        %v2996 = vsub.f32 1.0, %v2995
        %v2997 = vmul.f32 %v2994, %v2996
        %v2998 = vadd.f32 %v2994, %v2997
        %vm2999 = vweird.f32 %v2993
        %vm3000 = vweird.f32 %v2994
        %vm3001 = vmor %vm2999, %vm3000
        %v3002 = vsel %vm3001, %v2994, %v2998
        %v3003 = vand.u32 2147483647, %v2993
        %vm3004 = vcmp.eq.f32.partialorder %v3003, 8.507059e+37
        %v3005 = vand.u32 %v2993, 2147483648
        %v3006 = vor.u32 1.1754944e-38, %v3005
        %v3007 = vsel %vm3004, %v3006, %v3002
        %v3008 = vmul.f32 %v2983, %v3007
        %v3009 = vmin.f32 %v3008, 1.0
        %v3010 = vmax.f32 %v3009, -1.0
        %v3011 = vmul.f32 %v2518, %v2518
        %v3012 = vmin.f32 16.0, %v3011
        %v3013 = vmul.f32 %v3012, 2.1237322e-06
        %v3014 = vadd.f32 %v3013, 0.00028619796
        %v3015 = vmul.f32 %v3012, %v3014
        %v3016 = vadd.f32 %v3015, 0.0036580483
        %v3017 = vmul.f32 %v3012, %v3016
        %v3018 = vadd.f32 %v3017, 0.05243302
        %v3019 = vmul.f32 %v3012, %v3018
        %v3020 = vadd.f32 %v3019, 0.18741608
        %v3021 = vmul.f32 %v3012, %v3020
        %v3022 = vadd.f32 %v3021, 1.1283791
        %v3023 = vmul.f32 %v2518, %v3022
        %v3024 = vmul.f32 %v3012, 3.8918573e-05
        %v3025 = vadd.f32 %v3024, 0.001143296
        %v3026 = vmul.f32 %v3012, %v3025
        %v3027 = vadd.f32 %v3026, 0.014752088
        %v3028 = vmul.f32 %v3012, %v3027
        %v3029 = vadd.f32 %v3028, 0.112945676
        %v3030 = vmul.f32 %v3012, %v3029
        %v3031 = vadd.f32 %v3030, 0.4994258
        %v3032 = vmul.f32 %v3012, %v3031
        %v3033 = vadd.f32 %v3032, 1.0
        %v3034 = vrcp.pop %v3033
        %v3035 = vmul.f32 %v3033, %v3034
        %v3036 = vsub.f32 1.0, %v3035
        %v3037 = vmul.f32 %v3034, %v3036
        %v3038 = vadd.f32 %v3034, %v3037
        %vm3039 = vweird.f32 %v3033
        %vm3040 = vweird.f32 %v3034
        %vm3041 = vmor %vm3039, %vm3040
        %v3042 = vsel %vm3041, %v3034, %v3038
        %v3043 = vand.u32 2147483647, %v3033
        %vm3044 = vcmp.eq.f32.partialorder %v3043, 8.507059e+37
        %v3045 = vand.u32 %v3033, 2147483648
        %v3046 = vor.u32 1.1754944e-38, %v3045
        %v3047 = vsel %vm3044, %v3046, %v3042
        %v3048 = vmul.f32 %v3023, %v3047
        %v3049 = vmin.f32 %v3048, 1.0
        %v3050 = vmax.f32 %v3049, -1.0
        %v3051 = vmul.f32 %v2519, %v2519
        %v3052 = vmin.f32 16.0, %v3051
        %v3053 = vmul.f32 %v3052, 2.1237322e-06
        %v3054 = vadd.f32 %v3053, 0.00028619796
        %v3055 = vmul.f32 %v3052, %v3054
        %v3056 = vadd.f32 %v3055, 0.0036580483
        %v3057 = vmul.f32 %v3052, %v3056
        %v3058 = vadd.f32 %v3057, 0.05243302
        %v3059 = vmul.f32 %v3052, %v3058
        %v3060 = vadd.f32 %v3059, 0.18741608
        %v3061 = vmul.f32 %v3052, %v3060
        %v3062 = vadd.f32 %v3061, 1.1283791
        %v3063 = vmul.f32 %v2519, %v3062
        %v3064 = vmul.f32 %v3052, 3.8918573e-05
        %v3065 = vadd.f32 %v3064, 0.001143296
        %v3066 = vmul.f32 %v3052, %v3065
        %v3067 = vadd.f32 %v3066, 0.014752088
        %v3068 = vmul.f32 %v3052, %v3067
        %v3069 = vadd.f32 %v3068, 0.112945676
        %v3070 = vmul.f32 %v3052, %v3069
        %v3071 = vadd.f32 %v3070, 0.4994258
        %v3072 = vmul.f32 %v3052, %v3071
        %v3073 = vadd.f32 %v3072, 1.0
        %v3074 = vrcp.pop %v3073
        %v3075 = vmul.f32 %v3073, %v3074
        %v3076 = vsub.f32 1.0, %v3075
        %v3077 = vmul.f32 %v3074, %v3076
        %v3078 = vadd.f32 %v3074, %v3077
        %vm3079 = vweird.f32 %v3073
        %vm3080 = vweird.f32 %v3074
        %vm3081 = vmor %vm3079, %vm3080
        %v3082 = vsel %vm3081, %v3074, %v3078
        %v3083 = vand.u32 2147483647, %v3073
        %vm3084 = vcmp.eq.f32.partialorder %v3083, 8.507059e+37
        %v3085 = vand.u32 %v3073, 2147483648
        %v3086 = vor.u32 1.1754944e-38, %v3085
        %v3087 = vsel %vm3084, %v3086, %v3082
        %v3088 = vmul.f32 %v3063, %v3087
        %v3089 = vmin.f32 %v3088, 1.0
        %v3090 = vmax.f32 %v3089, -1.0
        %v3091 = vmul.f32 %v2520, %v2520
        %v3092 = vmin.f32 16.0, %v3091
        %v3093 = vmul.f32 %v3092, 2.1237322e-06
        %v3094 = vadd.f32 %v3093, 0.00028619796
        %v3095 = vmul.f32 %v3092, %v3094
        %v3096 = vadd.f32 %v3095, 0.0036580483
        %v3097 = vmul.f32 %v3092, %v3096
        %v3098 = vadd.f32 %v3097, 0.05243302
        %v3099 = vmul.f32 %v3092, %v3098
        %v3100 = vadd.f32 %v3099, 0.18741608
        %v3101 = vmul.f32 %v3092, %v3100
        %v3102 = vadd.f32 %v3101, 1.1283791
        %v3103 = vmul.f32 %v2520, %v3102
        %v3104 = vmul.f32 %v3092, 3.8918573e-05
        %v3105 = vadd.f32 %v3104, 0.001143296
        %v3106 = vmul.f32 %v3092, %v3105
        %v3107 = vadd.f32 %v3106, 0.014752088
        %v3108 = vmul.f32 %v3092, %v3107
        %v3109 = vadd.f32 %v3108, 0.112945676
        %v3110 = vmul.f32 %v3092, %v3109
        %v3111 = vadd.f32 %v3110, 0.4994258
        %v3112 = vmul.f32 %v3092, %v3111
        %v3113 = vadd.f32 %v3112, 1.0
        %v3114 = vrcp.pop %v3113
        %v3115 = vmul.f32 %v3113, %v3114
        %v3116 = vsub.f32 1.0, %v3115
        %v3117 = vmul.f32 %v3114, %v3116
        %v3118 = vadd.f32 %v3114, %v3117
        %vm3119 = vweird.f32 %v3113
        %vm3120 = vweird.f32 %v3114
        %vm3121 = vmor %vm3119, %vm3120
        %v3122 = vsel %vm3121, %v3114, %v3118
        %v3123 = vand.u32 2147483647, %v3113
        %vm3124 = vcmp.eq.f32.partialorder %v3123, 8.507059e+37
        %v3125 = vand.u32 %v3113, 2147483648
        %v3126 = vor.u32 1.1754944e-38, %v3125
        %v3127 = vsel %vm3124, %v3126, %v3122
        %v3128 = vmul.f32 %v3103, %v3127
        %v3129 = vmin.f32 %v3128, 1.0
        %v3130 = vmax.f32 %v3129, -1.0
        %v3131 = vmul.f32 %v2521, %v2521
        %v3132 = vmin.f32 16.0, %v3131
        %v3133 = vmul.f32 %v3132, 2.1237322e-06
        %v3134 = vadd.f32 %v3133, 0.00028619796
        %v3135 = vmul.f32 %v3132, %v3134
        %v3136 = vadd.f32 %v3135, 0.0036580483
        %v3137 = vmul.f32 %v3132, %v3136
        %v3138 = vadd.f32 %v3137, 0.05243302
        %v3139 = vmul.f32 %v3132, %v3138
        %v3140 = vadd.f32 %v3139, 0.18741608
        %v3141 = vmul.f32 %v3132, %v3140
        %v3142 = vadd.f32 %v3141, 1.1283791
        %v3143 = vmul.f32 %v2521, %v3142
        %v3144 = vmul.f32 %v3132, 3.8918573e-05
        %v3145 = vadd.f32 %v3144, 0.001143296
        %v3146 = vmul.f32 %v3132, %v3145
        %v3147 = vadd.f32 %v3146, 0.014752088
        %v3148 = vmul.f32 %v3132, %v3147
        %v3149 = vadd.f32 %v3148, 0.112945676
        %v3150 = vmul.f32 %v3132, %v3149
        %v3151 = vadd.f32 %v3150, 0.4994258
        %v3152 = vmul.f32 %v3132, %v3151
        %v3153 = vadd.f32 %v3152, 1.0
        %v3154 = vrcp.pop %v3153
        %v3155 = vmul.f32 %v3153, %v3154
        %v3156 = vsub.f32 1.0, %v3155
        %v3157 = vmul.f32 %v3154, %v3156
        %v3158 = vadd.f32 %v3154, %v3157
        %vm3159 = vweird.f32 %v3153
        %vm3160 = vweird.f32 %v3154
        %vm3161 = vmor %vm3159, %vm3160
        %v3162 = vsel %vm3161, %v3154, %v3158
        %v3163 = vand.u32 2147483647, %v3153
        %vm3164 = vcmp.eq.f32.partialorder %v3163, 8.507059e+37
        %v3165 = vand.u32 %v3153, 2147483648
        %v3166 = vor.u32 1.1754944e-38, %v3165
        %v3167 = vsel %vm3164, %v3166, %v3162
        %v3168 = vmul.f32 %v3143, %v3167
        %v3169 = vmin.f32 %v3168, 1.0
        %v3170 = vmax.f32 %v3169, -1.0
        %v3171 = vmul.f32 %v2522, %v2522
        %v3172 = vmin.f32 16.0, %v3171
        %v3173 = vmul.f32 %v3172, 2.1237322e-06
        %v3174 = vadd.f32 %v3173, 0.00028619796
        %v3175 = vmul.f32 %v3172, %v3174
        %v3176 = vadd.f32 %v3175, 0.0036580483
        %v3177 = vmul.f32 %v3172, %v3176
        %v3178 = vadd.f32 %v3177, 0.05243302
        %v3179 = vmul.f32 %v3172, %v3178
        %v3180 = vadd.f32 %v3179, 0.18741608
        %v3181 = vmul.f32 %v3172, %v3180
        %v3182 = vadd.f32 %v3181, 1.1283791
        %v3183 = vmul.f32 %v2522, %v3182
        %v3184 = vmul.f32 %v3172, 3.8918573e-05
        %v3185 = vadd.f32 %v3184, 0.001143296
        %v3186 = vmul.f32 %v3172, %v3185
        %v3187 = vadd.f32 %v3186, 0.014752088
        %v3188 = vmul.f32 %v3172, %v3187
        %v3189 = vadd.f32 %v3188, 0.112945676
        %v3190 = vmul.f32 %v3172, %v3189
        %v3191 = vadd.f32 %v3190, 0.4994258
        %v3192 = vmul.f32 %v3172, %v3191
        %v3193 = vadd.f32 %v3192, 1.0
        %v3194 = vrcp.pop %v3193
        %v3195 = vmul.f32 %v3193, %v3194
        %v3196 = vsub.f32 1.0, %v3195
        %v3197 = vmul.f32 %v3194, %v3196
        %v3198 = vadd.f32 %v3194, %v3197
        %vm3199 = vweird.f32 %v3193
        %vm3200 = vweird.f32 %v3194
        %vm3201 = vmor %vm3199, %vm3200
        %v3202 = vsel %vm3201, %v3194, %v3198
        %v3203 = vand.u32 2147483647, %v3193
        %vm3204 = vcmp.eq.f32.partialorder %v3203, 8.507059e+37
        %v3205 = vand.u32 %v3193, 2147483648
        %v3206 = vor.u32 1.1754944e-38, %v3205
        %v3207 = vsel %vm3204, %v3206, %v3202
        %v3208 = vmul.f32 %v3183, %v3207
        %v3209 = vmin.f32 %v3208, 1.0
        %v3210 = vmax.f32 %v3209, -1.0
        %v3211 = vmul.f32 %v2523, %v2523
        %v3212 = vmin.f32 16.0, %v3211
        %v3213 = vmul.f32 %v3212, 2.1237322e-06
        %v3214 = vadd.f32 %v3213, 0.00028619796
        %v3215 = vmul.f32 %v3212, %v3214
        %v3216 = vadd.f32 %v3215, 0.0036580483
        %v3217 = vmul.f32 %v3212, %v3216
        %v3218 = vadd.f32 %v3217, 0.05243302
        %v3219 = vmul.f32 %v3212, %v3218
        %v3220 = vadd.f32 %v3219, 0.18741608
        %v3221 = vmul.f32 %v3212, %v3220
        %v3222 = vadd.f32 %v3221, 1.1283791
        %v3223 = vmul.f32 %v2523, %v3222
        %v3224 = vmul.f32 %v3212, 3.8918573e-05
        %v3225 = vadd.f32 %v3224, 0.001143296
        %v3226 = vmul.f32 %v3212, %v3225
        %v3227 = vadd.f32 %v3226, 0.014752088
        %v3228 = vmul.f32 %v3212, %v3227
        %v3229 = vadd.f32 %v3228, 0.112945676
        %v3230 = vmul.f32 %v3212, %v3229
        %v3231 = vadd.f32 %v3230, 0.4994258
        %v3232 = vmul.f32 %v3212, %v3231
        %v3233 = vadd.f32 %v3232, 1.0
        %v3234 = vrcp.pop %v3233
        %v3235 = vmul.f32 %v3233, %v3234
        %v3236 = vsub.f32 1.0, %v3235
        %v3237 = vmul.f32 %v3234, %v3236
        %v3238 = vadd.f32 %v3234, %v3237
        %vm3239 = vweird.f32 %v3233
        %vm3240 = vweird.f32 %v3234
        %vm3241 = vmor %vm3239, %vm3240
        %v3242 = vsel %vm3241, %v3234, %v3238
        %v3243 = vand.u32 2147483647, %v3233
        %vm3244 = vcmp.eq.f32.partialorder %v3243, 8.507059e+37
        %v3245 = vand.u32 %v3233, 2147483648
        %v3246 = vor.u32 1.1754944e-38, %v3245
        %v3247 = vsel %vm3244, %v3246, %v3242
        %v3248 = vmul.f32 %v3223, %v3247
        %v3249 = vmin.f32 %v3248, 1.0
        %v3250 = vmax.f32 %v3249, -1.0
        %v3251 = vmul.f32 %v2524, %v2524
        %v3252 = vmin.f32 16.0, %v3251
        %v3253 = vmul.f32 %v3252, 2.1237322e-06
        %v3254 = vadd.f32 %v3253, 0.00028619796
        %v3255 = vmul.f32 %v3252, %v3254
        %v3256 = vadd.f32 %v3255, 0.0036580483
        %v3257 = vmul.f32 %v3252, %v3256
        %v3258 = vadd.f32 %v3257, 0.05243302
        %v3259 = vmul.f32 %v3252, %v3258
        %v3260 = vadd.f32 %v3259, 0.18741608
        %v3261 = vmul.f32 %v3252, %v3260
        %v3262 = vadd.f32 %v3261, 1.1283791
        %v3263 = vmul.f32 %v2524, %v3262
        %v3264 = vmul.f32 %v3252, 3.8918573e-05
        %v3265 = vadd.f32 %v3264, 0.001143296
        %v3266 = vmul.f32 %v3252, %v3265
        %v3267 = vadd.f32 %v3266, 0.014752088
        %v3268 = vmul.f32 %v3252, %v3267
        %v3269 = vadd.f32 %v3268, 0.112945676
        %v3270 = vmul.f32 %v3252, %v3269
        %v3271 = vadd.f32 %v3270, 0.4994258
        %v3272 = vmul.f32 %v3252, %v3271
        %v3273 = vadd.f32 %v3272, 1.0
        %v3274 = vrcp.pop %v3273
        %v3275 = vmul.f32 %v3273, %v3274
        %v3276 = vsub.f32 1.0, %v3275
        %v3277 = vmul.f32 %v3274, %v3276
        %v3278 = vadd.f32 %v3274, %v3277
        %vm3279 = vweird.f32 %v3273
        %vm3280 = vweird.f32 %v3274
        %vm3281 = vmor %vm3279, %vm3280
        %v3282 = vsel %vm3281, %v3274, %v3278
        %v3283 = vand.u32 2147483647, %v3273
        %vm3284 = vcmp.eq.f32.partialorder %v3283, 8.507059e+37
        %v3285 = vand.u32 %v3273, 2147483648
        %v3286 = vor.u32 1.1754944e-38, %v3285
        %v3287 = vsel %vm3284, %v3286, %v3282
        %v3288 = vmul.f32 %v3263, %v3287
        %v3289 = vmin.f32 %v3288, 1.0
        %v3290 = vmax.f32 %v3289, -1.0
        %v3291 = vmul.f32 %v2525, %v2525
        %v3292 = vmin.f32 16.0, %v3291
        %v3293 = vmul.f32 %v3292, 2.1237322e-06
        %v3294 = vadd.f32 %v3293, 0.00028619796
        %v3295 = vmul.f32 %v3292, %v3294
        %v3296 = vadd.f32 %v3295, 0.0036580483
        %v3297 = vmul.f32 %v3292, %v3296
        %v3298 = vadd.f32 %v3297, 0.05243302
        %v3299 = vmul.f32 %v3292, %v3298
        %v3300 = vadd.f32 %v3299, 0.18741608
        %v3301 = vmul.f32 %v3292, %v3300
        %v3302 = vadd.f32 %v3301, 1.1283791
        %v3303 = vmul.f32 %v2525, %v3302
        %v3304 = vmul.f32 %v3292, 3.8918573e-05
        %v3305 = vadd.f32 %v3304, 0.001143296
        %v3306 = vmul.f32 %v3292, %v3305
        %v3307 = vadd.f32 %v3306, 0.014752088
        %v3308 = vmul.f32 %v3292, %v3307
        %v3309 = vadd.f32 %v3308, 0.112945676
        %v3310 = vmul.f32 %v3292, %v3309
        %v3311 = vadd.f32 %v3310, 0.4994258
        %v3312 = vmul.f32 %v3292, %v3311
        %v3313 = vadd.f32 %v3312, 1.0
        %v3314 = vrcp.pop %v3313
        %v3315 = vmul.f32 %v3313, %v3314
        %v3316 = vsub.f32 1.0, %v3315
        %v3317 = vmul.f32 %v3314, %v3316
        %v3318 = vadd.f32 %v3314, %v3317
        %vm3319 = vweird.f32 %v3313
        %vm3320 = vweird.f32 %v3314
        %vm3321 = vmor %vm3319, %vm3320
        %v3322 = vsel %vm3321, %v3314, %v3318
        %v3323 = vand.u32 2147483647, %v3313
        %vm3324 = vcmp.eq.f32.partialorder %v3323, 8.507059e+37
        %v3325 = vand.u32 %v3313, 2147483648
        %v3326 = vor.u32 1.1754944e-38, %v3325
        %v3327 = vsel %vm3324, %v3326, %v3322
        %v3328 = vmul.f32 %v3303, %v3327
        %v3329 = vmin.f32 %v3328, 1.0
        %v3330 = vmax.f32 %v3329, -1.0
        %v3331 = vmul.f32 %v2526, %v2526
        %v3332 = vmin.f32 16.0, %v3331
        %v3333 = vmul.f32 %v3332, 2.1237322e-06
        %v3334 = vadd.f32 %v3333, 0.00028619796
        %v3335 = vmul.f32 %v3332, %v3334
        %v3336 = vadd.f32 %v3335, 0.0036580483
        %v3337 = vmul.f32 %v3332, %v3336
        %v3338 = vadd.f32 %v3337, 0.05243302
        %v3339 = vmul.f32 %v3332, %v3338
        %v3340 = vadd.f32 %v3339, 0.18741608
        %v3341 = vmul.f32 %v3332, %v3340
        %v3342 = vadd.f32 %v3341, 1.1283791
        %v3343 = vmul.f32 %v2526, %v3342
        %v3344 = vmul.f32 %v3332, 3.8918573e-05
        %v3345 = vadd.f32 %v3344, 0.001143296
        %v3346 = vmul.f32 %v3332, %v3345
        %v3347 = vadd.f32 %v3346, 0.014752088
        %v3348 = vmul.f32 %v3332, %v3347
        %v3349 = vadd.f32 %v3348, 0.112945676
        %v3350 = vmul.f32 %v3332, %v3349
        %v3351 = vadd.f32 %v3350, 0.4994258
        %v3352 = vmul.f32 %v3332, %v3351
        %v3353 = vadd.f32 %v3352, 1.0
        %v3354 = vrcp.pop %v3353
        %v3355 = vmul.f32 %v3353, %v3354
        %v3356 = vsub.f32 1.0, %v3355
        %v3357 = vmul.f32 %v3354, %v3356
        %v3358 = vadd.f32 %v3354, %v3357
        %vm3359 = vweird.f32 %v3353
        %vm3360 = vweird.f32 %v3354
        %vm3361 = vmor %vm3359, %vm3360
        %v3362 = vsel %vm3361, %v3354, %v3358
        %v3363 = vand.u32 2147483647, %v3353
        %vm3364 = vcmp.eq.f32.partialorder %v3363, 8.507059e+37
        %v3365 = vand.u32 %v3353, 2147483648
        %v3366 = vor.u32 1.1754944e-38, %v3365
        %v3367 = vsel %vm3364, %v3366, %v3362
        %v3368 = vmul.f32 %v3343, %v3367
        %v3369 = vmin.f32 %v3368, 1.0
        %v3370 = vmax.f32 %v3369, -1.0
        %v3371 = vmul.f32 %v2527, %v2527
        %v3372 = vmin.f32 16.0, %v3371
        %v3373 = vmul.f32 %v3372, 2.1237322e-06
        %v3374 = vadd.f32 %v3373, 0.00028619796
        %v3375 = vmul.f32 %v3372, %v3374
        %v3376 = vadd.f32 %v3375, 0.0036580483
        %v3377 = vmul.f32 %v3372, %v3376
        %v3378 = vadd.f32 %v3377, 0.05243302
        %v3379 = vmul.f32 %v3372, %v3378
        %v3380 = vadd.f32 %v3379, 0.18741608
        %v3381 = vmul.f32 %v3372, %v3380
        %v3382 = vadd.f32 %v3381, 1.1283791
        %v3383 = vmul.f32 %v2527, %v3382
        %v3384 = vmul.f32 %v3372, 3.8918573e-05
        %v3385 = vadd.f32 %v3384, 0.001143296
        %v3386 = vmul.f32 %v3372, %v3385
        %v3387 = vadd.f32 %v3386, 0.014752088
        %v3388 = vmul.f32 %v3372, %v3387
        %v3389 = vadd.f32 %v3388, 0.112945676
        %v3390 = vmul.f32 %v3372, %v3389
        %v3391 = vadd.f32 %v3390, 0.4994258
        %v3392 = vmul.f32 %v3372, %v3391
        %v3393 = vadd.f32 %v3392, 1.0
        %v3394 = vrcp.pop %v3393
        %v3395 = vmul.f32 %v3393, %v3394
        %v3396 = vsub.f32 1.0, %v3395
        %v3397 = vmul.f32 %v3394, %v3396
        %v3398 = vadd.f32 %v3394, %v3397
        %vm3399 = vweird.f32 %v3393
        %vm3400 = vweird.f32 %v3394
        %vm3401 = vmor %vm3399, %vm3400
        %v3402 = vsel %vm3401, %v3394, %v3398
        %v3403 = vand.u32 2147483647, %v3393
        %vm3404 = vcmp.eq.f32.partialorder %v3403, 8.507059e+37
        %v3405 = vand.u32 %v3393, 2147483648
        %v3406 = vor.u32 1.1754944e-38, %v3405
        %v3407 = vsel %vm3404, %v3406, %v3402
        %v3408 = vmul.f32 %v3383, %v3407
        %v3409 = vmin.f32 %v3408, 1.0
        %v3410 = vmax.f32 %v3409, -1.0
        %v3411 = vmul.f32 %v2528, %v2528
        %v3412 = vmin.f32 16.0, %v3411
        %v3413 = vmul.f32 %v3412, 2.1237322e-06
        %v3414 = vadd.f32 %v3413, 0.00028619796
        %v3415 = vmul.f32 %v3412, %v3414
        %v3416 = vadd.f32 %v3415, 0.0036580483
        %v3417 = vmul.f32 %v3412, %v3416
        %v3418 = vadd.f32 %v3417, 0.05243302
        %v3419 = vmul.f32 %v3412, %v3418
        %v3420 = vadd.f32 %v3419, 0.18741608
        %v3421 = vmul.f32 %v3412, %v3420
        %v3422 = vadd.f32 %v3421, 1.1283791
        %v3423 = vmul.f32 %v2528, %v3422
        %v3424 = vmul.f32 %v3412, 3.8918573e-05
        %v3425 = vadd.f32 %v3424, 0.001143296
        %v3426 = vmul.f32 %v3412, %v3425
        %v3427 = vadd.f32 %v3426, 0.014752088
        %v3428 = vmul.f32 %v3412, %v3427
        %v3429 = vadd.f32 %v3428, 0.112945676
        %v3430 = vmul.f32 %v3412, %v3429
        %v3431 = vadd.f32 %v3430, 0.4994258
        %v3432 = vmul.f32 %v3412, %v3431
        %v3433 = vadd.f32 %v3432, 1.0
        %v3434 = vrcp.pop %v3433
        %v3435 = vmul.f32 %v3433, %v3434
        %v3436 = vsub.f32 1.0, %v3435
        %v3437 = vmul.f32 %v3434, %v3436
        %v3438 = vadd.f32 %v3434, %v3437
        %vm3439 = vweird.f32 %v3433
        %vm3440 = vweird.f32 %v3434
        %vm3441 = vmor %vm3439, %vm3440
        %v3442 = vsel %vm3441, %v3434, %v3438
        %v3443 = vand.u32 2147483647, %v3433
        %vm3444 = vcmp.eq.f32.partialorder %v3443, 8.507059e+37
        %v3445 = vand.u32 %v3433, 2147483648
        %v3446 = vor.u32 1.1754944e-38, %v3445
        %v3447 = vsel %vm3444, %v3446, %v3442
        %v3448 = vmul.f32 %v3423, %v3447
        %v3449 = vmin.f32 %v3448, 1.0
        %v3450 = vmax.f32 %v3449, -1.0
        %v3451 = vmul.f32 %v2529, %v2529
        %v3452 = vmin.f32 16.0, %v3451
        %v3453 = vmul.f32 %v3452, 2.1237322e-06
        %v3454 = vadd.f32 %v3453, 0.00028619796
        %v3455 = vmul.f32 %v3452, %v3454
        %v3456 = vadd.f32 %v3455, 0.0036580483
        %v3457 = vmul.f32 %v3452, %v3456
        %v3458 = vadd.f32 %v3457, 0.05243302
        %v3459 = vmul.f32 %v3452, %v3458
        %v3460 = vadd.f32 %v3459, 0.18741608
        %v3461 = vmul.f32 %v3452, %v3460
        %v3462 = vadd.f32 %v3461, 1.1283791
        %v3463 = vmul.f32 %v2529, %v3462
        %v3464 = vmul.f32 %v3452, 3.8918573e-05
        %v3465 = vadd.f32 %v3464, 0.001143296
        %v3466 = vmul.f32 %v3452, %v3465
        %v3467 = vadd.f32 %v3466, 0.014752088
        %v3468 = vmul.f32 %v3452, %v3467
        %v3469 = vadd.f32 %v3468, 0.112945676
        %v3470 = vmul.f32 %v3452, %v3469
        %v3471 = vadd.f32 %v3470, 0.4994258
        %v3472 = vmul.f32 %v3452, %v3471
        %v3473 = vadd.f32 %v3472, 1.0
        %v3474 = vrcp.pop %v3473
        %v3475 = vmul.f32 %v3473, %v3474
        %v3476 = vsub.f32 1.0, %v3475
        %v3477 = vmul.f32 %v3474, %v3476
        %v3478 = vadd.f32 %v3474, %v3477
        %vm3479 = vweird.f32 %v3473
        %vm3480 = vweird.f32 %v3474
        %vm3481 = vmor %vm3479, %vm3480
        %v3482 = vsel %vm3481, %v3474, %v3478
        %v3483 = vand.u32 2147483647, %v3473
        %vm3484 = vcmp.eq.f32.partialorder %v3483, 8.507059e+37
        %v3485 = vand.u32 %v3473, 2147483648
        %v3486 = vor.u32 1.1754944e-38, %v3485
        %v3487 = vsel %vm3484, %v3486, %v3482
        %v3488 = vmul.f32 %v3463, %v3487
        %v3489 = vmin.f32 %v3488, 1.0
        %v3490 = vmax.f32 %v3489, -1.0
        %v3491 = vmul.f32 %v2530, %v2530
        %v3492 = vmin.f32 16.0, %v3491
        %v3493 = vmul.f32 %v3492, 2.1237322e-06
        %v3494 = vadd.f32 %v3493, 0.00028619796
        %v3495 = vmul.f32 %v3492, %v3494
        %v3496 = vadd.f32 %v3495, 0.0036580483
        %v3497 = vmul.f32 %v3492, %v3496
        %v3498 = vadd.f32 %v3497, 0.05243302
        %v3499 = vmul.f32 %v3492, %v3498
        %v3500 = vadd.f32 %v3499, 0.18741608
        %v3501 = vmul.f32 %v3492, %v3500
        %v3502 = vadd.f32 %v3501, 1.1283791
        %v3503 = vmul.f32 %v2530, %v3502
        %v3504 = vmul.f32 %v3492, 3.8918573e-05
        %v3505 = vadd.f32 %v3504, 0.001143296
        %v3506 = vmul.f32 %v3492, %v3505
        %v3507 = vadd.f32 %v3506, 0.014752088
        %v3508 = vmul.f32 %v3492, %v3507
        %v3509 = vadd.f32 %v3508, 0.112945676
        %v3510 = vmul.f32 %v3492, %v3509
        %v3511 = vadd.f32 %v3510, 0.4994258
        %v3512 = vmul.f32 %v3492, %v3511
        %v3513 = vadd.f32 %v3512, 1.0
        %v3514 = vrcp.pop %v3513
        %v3515 = vmul.f32 %v3513, %v3514
        %v3516 = vsub.f32 1.0, %v3515
        %v3517 = vmul.f32 %v3514, %v3516
        %v3518 = vadd.f32 %v3514, %v3517
        %vm3519 = vweird.f32 %v3513
        %vm3520 = vweird.f32 %v3514
        %vm3521 = vmor %vm3519, %vm3520
        %v3522 = vsel %vm3521, %v3514, %v3518
        %v3523 = vand.u32 2147483647, %v3513
        %vm3524 = vcmp.eq.f32.partialorder %v3523, 8.507059e+37
        %v3525 = vand.u32 %v3513, 2147483648
        %v3526 = vor.u32 1.1754944e-38, %v3525
        %v3527 = vsel %vm3524, %v3526, %v3522
        %v3528 = vmul.f32 %v3503, %v3527
        %v3529 = vmin.f32 %v3528, 1.0
        %v3530 = vmax.f32 %v3529, -1.0
        %v3531 = vmul.f32 %v2531, %v2531
        %v3532 = vmin.f32 16.0, %v3531
        %v3533 = vmul.f32 %v3532, 2.1237322e-06
        %v3534 = vadd.f32 %v3533, 0.00028619796
        %v3535 = vmul.f32 %v3532, %v3534
        %v3536 = vadd.f32 %v3535, 0.0036580483
        %v3537 = vmul.f32 %v3532, %v3536
        %v3538 = vadd.f32 %v3537, 0.05243302
        %v3539 = vmul.f32 %v3532, %v3538
        %v3540 = vadd.f32 %v3539, 0.18741608
        %v3541 = vmul.f32 %v3532, %v3540
        %v3542 = vadd.f32 %v3541, 1.1283791
        %v3543 = vmul.f32 %v2531, %v3542
        %v3544 = vmul.f32 %v3532, 3.8918573e-05
        %v3545 = vadd.f32 %v3544, 0.001143296
        %v3546 = vmul.f32 %v3532, %v3545
        %v3547 = vadd.f32 %v3546, 0.014752088
        %v3548 = vmul.f32 %v3532, %v3547
        %v3549 = vadd.f32 %v3548, 0.112945676
        %v3550 = vmul.f32 %v3532, %v3549
        %v3551 = vadd.f32 %v3550, 0.4994258
        %v3552 = vmul.f32 %v3532, %v3551
        %v3553 = vadd.f32 %v3552, 1.0
        %v3554 = vrcp.pop %v3553
        %v3555 = vmul.f32 %v3553, %v3554
        %v3556 = vsub.f32 1.0, %v3555
        %v3557 = vmul.f32 %v3554, %v3556
        %v3558 = vadd.f32 %v3554, %v3557
        %vm3559 = vweird.f32 %v3553
        %vm3560 = vweird.f32 %v3554
        %vm3561 = vmor %vm3559, %vm3560
        %v3562 = vsel %vm3561, %v3554, %v3558
        %v3563 = vand.u32 2147483647, %v3553
        %vm3564 = vcmp.eq.f32.partialorder %v3563, 8.507059e+37
        %v3565 = vand.u32 %v3553, 2147483648
        %v3566 = vor.u32 1.1754944e-38, %v3565
        %v3567 = vsel %vm3564, %v3566, %v3562
        %v3568 = vmul.f32 %v3543, %v3567
        %v3569 = vmin.f32 %v3568, 1.0
        %v3570 = vmax.f32 %v3569, -1.0
        %v3571 = vmul.f32 %v2532, %v2532
        %v3572 = vmin.f32 16.0, %v3571
        %v3573 = vmul.f32 %v3572, 2.1237322e-06
        %v3574 = vadd.f32 %v3573, 0.00028619796
        %v3575 = vmul.f32 %v3572, %v3574
        %v3576 = vadd.f32 %v3575, 0.0036580483
        %v3577 = vmul.f32 %v3572, %v3576
        %v3578 = vadd.f32 %v3577, 0.05243302
        %v3579 = vmul.f32 %v3572, %v3578
        %v3580 = vadd.f32 %v3579, 0.18741608
        %v3581 = vmul.f32 %v3572, %v3580
        %v3582 = vadd.f32 %v3581, 1.1283791
        %v3583 = vmul.f32 %v2532, %v3582
        %v3584 = vmul.f32 %v3572, 3.8918573e-05
        %v3585 = vadd.f32 %v3584, 0.001143296
        %v3586 = vmul.f32 %v3572, %v3585
        %v3587 = vadd.f32 %v3586, 0.014752088
        %v3588 = vmul.f32 %v3572, %v3587
        %v3589 = vadd.f32 %v3588, 0.112945676
        %v3590 = vmul.f32 %v3572, %v3589
        %v3591 = vadd.f32 %v3590, 0.4994258
        %v3592 = vmul.f32 %v3572, %v3591
        %v3593 = vadd.f32 %v3592, 1.0
        %v3594 = vrcp.pop %v3593
        %v3595 = vmul.f32 %v3593, %v3594
        %v3596 = vsub.f32 1.0, %v3595
        %v3597 = vmul.f32 %v3594, %v3596
        %v3598 = vadd.f32 %v3594, %v3597
        %vm3599 = vweird.f32 %v3593
        %vm3600 = vweird.f32 %v3594
        %vm3601 = vmor %vm3599, %vm3600
        %v3602 = vsel %vm3601, %v3594, %v3598
        %v3603 = vand.u32 2147483647, %v3593
        %vm3604 = vcmp.eq.f32.partialorder %v3603, 8.507059e+37
        %v3605 = vand.u32 %v3593, 2147483648
        %v3606 = vor.u32 1.1754944e-38, %v3605
        %v3607 = vsel %vm3604, %v3606, %v3602
        %v3608 = vmul.f32 %v3583, %v3607
        %v3609 = vmin.f32 %v3608, 1.0
        %v3610 = vmax.f32 %v3609, -1.0
        %v3611 = vmul.f32 %v2533, %v2533
        %v3612 = vmin.f32 16.0, %v3611
        %v3613 = vmul.f32 %v3612, 2.1237322e-06
        %v3614 = vadd.f32 %v3613, 0.00028619796
        %v3615 = vmul.f32 %v3612, %v3614
        %v3616 = vadd.f32 %v3615, 0.0036580483
        %v3617 = vmul.f32 %v3612, %v3616
        %v3618 = vadd.f32 %v3617, 0.05243302
        %v3619 = vmul.f32 %v3612, %v3618
        %v3620 = vadd.f32 %v3619, 0.18741608
        %v3621 = vmul.f32 %v3612, %v3620
        %v3622 = vadd.f32 %v3621, 1.1283791
        %v3623 = vmul.f32 %v2533, %v3622
        %v3624 = vmul.f32 %v3612, 3.8918573e-05
        %v3625 = vadd.f32 %v3624, 0.001143296
        %v3626 = vmul.f32 %v3612, %v3625
        %v3627 = vadd.f32 %v3626, 0.014752088
        %v3628 = vmul.f32 %v3612, %v3627
        %v3629 = vadd.f32 %v3628, 0.112945676
        %v3630 = vmul.f32 %v3612, %v3629
        %v3631 = vadd.f32 %v3630, 0.4994258
        %v3632 = vmul.f32 %v3612, %v3631
        %v3633 = vadd.f32 %v3632, 1.0
        %v3634 = vrcp.pop %v3633
        %v3635 = vmul.f32 %v3633, %v3634
        %v3636 = vsub.f32 1.0, %v3635
        %v3637 = vmul.f32 %v3634, %v3636
        %v3638 = vadd.f32 %v3634, %v3637
        %vm3639 = vweird.f32 %v3633
        %vm3640 = vweird.f32 %v3634
        %vm3641 = vmor %vm3639, %vm3640
        %v3642 = vsel %vm3641, %v3634, %v3638
        %v3643 = vand.u32 2147483647, %v3633
        %vm3644 = vcmp.eq.f32.partialorder %v3643, 8.507059e+37
        %v3645 = vand.u32 %v3633, 2147483648
        %v3646 = vor.u32 1.1754944e-38, %v3645
        %v3647 = vsel %vm3644, %v3646, %v3642
        %v3648 = vmul.f32 %v3623, %v3647
        %v3649 = vmin.f32 %v3648, 1.0
        %v3650 = vmax.f32 %v3649, -1.0
        %v3651 = vmul.f32 %v2534, %v2534
        %v3652 = vmin.f32 16.0, %v3651
        %v3653 = vmul.f32 %v3652, 2.1237322e-06
        %v3654 = vadd.f32 %v3653, 0.00028619796
        %v3655 = vmul.f32 %v3652, %v3654
        %v3656 = vadd.f32 %v3655, 0.0036580483
        %v3657 = vmul.f32 %v3652, %v3656
        %v3658 = vadd.f32 %v3657, 0.05243302
        %v3659 = vmul.f32 %v3652, %v3658
        %v3660 = vadd.f32 %v3659, 0.18741608
        %v3661 = vmul.f32 %v3652, %v3660
        %v3662 = vadd.f32 %v3661, 1.1283791
        %v3663 = vmul.f32 %v2534, %v3662
        %v3664 = vmul.f32 %v3652, 3.8918573e-05
        %v3665 = vadd.f32 %v3664, 0.001143296
        %v3666 = vmul.f32 %v3652, %v3665
        %v3667 = vadd.f32 %v3666, 0.014752088
        %v3668 = vmul.f32 %v3652, %v3667
        %v3669 = vadd.f32 %v3668, 0.112945676
        %v3670 = vmul.f32 %v3652, %v3669
        %v3671 = vadd.f32 %v3670, 0.4994258
        %v3672 = vmul.f32 %v3652, %v3671
        %v3673 = vadd.f32 %v3672, 1.0
        %v3674 = vrcp.pop %v3673
        %v3675 = vmul.f32 %v3673, %v3674
        %v3676 = vsub.f32 1.0, %v3675
        %v3677 = vmul.f32 %v3674, %v3676
        %v3678 = vadd.f32 %v3674, %v3677
        %vm3679 = vweird.f32 %v3673
        %vm3680 = vweird.f32 %v3674
        %vm3681 = vmor %vm3679, %vm3680
        %v3682 = vsel %vm3681, %v3674, %v3678
        %v3683 = vand.u32 2147483647, %v3673
        %vm3684 = vcmp.eq.f32.partialorder %v3683, 8.507059e+37
        %v3685 = vand.u32 %v3673, 2147483648
        %v3686 = vor.u32 1.1754944e-38, %v3685
        %v3687 = vsel %vm3684, %v3686, %v3682
        %v3688 = vmul.f32 %v3663, %v3687
        %v3689 = vmin.f32 %v3688, 1.0
        %v3690 = vmax.f32 %v3689, -1.0
        %v3691 = vmul.f32 %v2535, %v2535
        %v3692 = vmin.f32 16.0, %v3691
        %v3693 = vmul.f32 %v3692, 2.1237322e-06
        %v3694 = vadd.f32 %v3693, 0.00028619796
        %v3695 = vmul.f32 %v3692, %v3694
        %v3696 = vadd.f32 %v3695, 0.0036580483
        %v3697 = vmul.f32 %v3692, %v3696
        %v3698 = vadd.f32 %v3697, 0.05243302
        %v3699 = vmul.f32 %v3692, %v3698
        %v3700 = vadd.f32 %v3699, 0.18741608
        %v3701 = vmul.f32 %v3692, %v3700
        %v3702 = vadd.f32 %v3701, 1.1283791
        %v3703 = vmul.f32 %v2535, %v3702
        %v3704 = vmul.f32 %v3692, 3.8918573e-05
        %v3705 = vadd.f32 %v3704, 0.001143296
        %v3706 = vmul.f32 %v3692, %v3705
        %v3707 = vadd.f32 %v3706, 0.014752088
        %v3708 = vmul.f32 %v3692, %v3707
        %v3709 = vadd.f32 %v3708, 0.112945676
        %v3710 = vmul.f32 %v3692, %v3709
        %v3711 = vadd.f32 %v3710, 0.4994258
        %v3712 = vmul.f32 %v3692, %v3711
        %v3713 = vadd.f32 %v3712, 1.0
        %v3714 = vrcp.pop %v3713
        %v3715 = vmul.f32 %v3713, %v3714
        %v3716 = vsub.f32 1.0, %v3715
        %v3717 = vmul.f32 %v3714, %v3716
        %v3718 = vadd.f32 %v3714, %v3717
        %vm3719 = vweird.f32 %v3713
        %vm3720 = vweird.f32 %v3714
        %vm3721 = vmor %vm3719, %vm3720
        %v3722 = vsel %vm3721, %v3714, %v3718
        %v3723 = vand.u32 2147483647, %v3713
        %vm3724 = vcmp.eq.f32.partialorder %v3723, 8.507059e+37
        %v3725 = vand.u32 %v3713, 2147483648
        %v3726 = vor.u32 1.1754944e-38, %v3725
        %v3727 = vsel %vm3724, %v3726, %v3722
        %v3728 = vmul.f32 %v3703, %v3727
        %v3729 = vmin.f32 %v3728, 1.0
        %v3730 = vmax.f32 %v3729, -1.0
        %v3731 = vmul.f32 %v2536, %v2536
        %v3732 = vmin.f32 16.0, %v3731
        %v3733 = vmul.f32 %v3732, 2.1237322e-06
        %v3734 = vadd.f32 %v3733, 0.00028619796
        %v3735 = vmul.f32 %v3732, %v3734
        %v3736 = vadd.f32 %v3735, 0.0036580483
        %v3737 = vmul.f32 %v3732, %v3736
        %v3738 = vadd.f32 %v3737, 0.05243302
        %v3739 = vmul.f32 %v3732, %v3738
        %v3740 = vadd.f32 %v3739, 0.18741608
        %v3741 = vmul.f32 %v3732, %v3740
        %v3742 = vadd.f32 %v3741, 1.1283791
        %v3743 = vmul.f32 %v2536, %v3742
        %v3744 = vmul.f32 %v3732, 3.8918573e-05
        %v3745 = vadd.f32 %v3744, 0.001143296
        %v3746 = vmul.f32 %v3732, %v3745
        %v3747 = vadd.f32 %v3746, 0.014752088
        %v3748 = vmul.f32 %v3732, %v3747
        %v3749 = vadd.f32 %v3748, 0.112945676
        %v3750 = vmul.f32 %v3732, %v3749
        %v3751 = vadd.f32 %v3750, 0.4994258
        %v3752 = vmul.f32 %v3732, %v3751
        %v3753 = vadd.f32 %v3752, 1.0
        %v3754 = vrcp.pop %v3753
        %v3755 = vmul.f32 %v3753, %v3754
        %v3756 = vsub.f32 1.0, %v3755
        %v3757 = vmul.f32 %v3754, %v3756
        %v3758 = vadd.f32 %v3754, %v3757
        %vm3759 = vweird.f32 %v3753
        %vm3760 = vweird.f32 %v3754
        %vm3761 = vmor %vm3759, %vm3760
        %v3762 = vsel %vm3761, %v3754, %v3758
        %v3763 = vand.u32 2147483647, %v3753
        %vm3764 = vcmp.eq.f32.partialorder %v3763, 8.507059e+37
        %v3765 = vand.u32 %v3753, 2147483648
        %v3766 = vor.u32 1.1754944e-38, %v3765
        %v3767 = vsel %vm3764, %v3766, %v3762
        %v3768 = vmul.f32 %v3743, %v3767
        %v3769 = vmin.f32 %v3768, 1.0
        %v3770 = vmax.f32 %v3769, -1.0
        %v3771 = vmul.f32 %v2537, %v2537
        %v3772 = vmin.f32 16.0, %v3771
        %v3773 = vmul.f32 %v3772, 2.1237322e-06
        %v3774 = vadd.f32 %v3773, 0.00028619796
        %v3775 = vmul.f32 %v3772, %v3774
        %v3776 = vadd.f32 %v3775, 0.0036580483
        %v3777 = vmul.f32 %v3772, %v3776
        %v3778 = vadd.f32 %v3777, 0.05243302
        %v3779 = vmul.f32 %v3772, %v3778
        %v3780 = vadd.f32 %v3779, 0.18741608
        %v3781 = vmul.f32 %v3772, %v3780
        %v3782 = vadd.f32 %v3781, 1.1283791
        %v3783 = vmul.f32 %v2537, %v3782
        %v3784 = vmul.f32 %v3772, 3.8918573e-05
        %v3785 = vadd.f32 %v3784, 0.001143296
        %v3786 = vmul.f32 %v3772, %v3785
        %v3787 = vadd.f32 %v3786, 0.014752088
        %v3788 = vmul.f32 %v3772, %v3787
        %v3789 = vadd.f32 %v3788, 0.112945676
        %v3790 = vmul.f32 %v3772, %v3789
        %v3791 = vadd.f32 %v3790, 0.4994258
        %v3792 = vmul.f32 %v3772, %v3791
        %v3793 = vadd.f32 %v3792, 1.0
        %v3794 = vrcp.pop %v3793
        %v3795 = vmul.f32 %v3793, %v3794
        %v3796 = vsub.f32 1.0, %v3795
        %v3797 = vmul.f32 %v3794, %v3796
        %v3798 = vadd.f32 %v3794, %v3797
        %vm3799 = vweird.f32 %v3793
        %vm3800 = vweird.f32 %v3794
        %vm3801 = vmor %vm3799, %vm3800
        %v3802 = vsel %vm3801, %v3794, %v3798
        %v3803 = vand.u32 2147483647, %v3793
        %vm3804 = vcmp.eq.f32.partialorder %v3803, 8.507059e+37
        %v3805 = vand.u32 %v3793, 2147483648
        %v3806 = vor.u32 1.1754944e-38, %v3805
        %v3807 = vsel %vm3804, %v3806, %v3802
        %v3808 = vmul.f32 %v3783, %v3807
        %v3809 = vmin.f32 %v3808, 1.0
        %v3810 = vmax.f32 %v3809, -1.0
        %v3811 = vmul.f32 %v2538, %v2538
        %v3812 = vmin.f32 16.0, %v3811
        %v3813 = vmul.f32 %v3812, 2.1237322e-06
        %v3814 = vadd.f32 %v3813, 0.00028619796
        %v3815 = vmul.f32 %v3812, %v3814
        %v3816 = vadd.f32 %v3815, 0.0036580483
        %v3817 = vmul.f32 %v3812, %v3816
        %v3818 = vadd.f32 %v3817, 0.05243302
        %v3819 = vmul.f32 %v3812, %v3818
        %v3820 = vadd.f32 %v3819, 0.18741608
        %v3821 = vmul.f32 %v3812, %v3820
        %v3822 = vadd.f32 %v3821, 1.1283791
        %v3823 = vmul.f32 %v2538, %v3822
        %v3824 = vmul.f32 %v3812, 3.8918573e-05
        %v3825 = vadd.f32 %v3824, 0.001143296
        %v3826 = vmul.f32 %v3812, %v3825
        %v3827 = vadd.f32 %v3826, 0.014752088
        %v3828 = vmul.f32 %v3812, %v3827
        %v3829 = vadd.f32 %v3828, 0.112945676
        %v3830 = vmul.f32 %v3812, %v3829
        %v3831 = vadd.f32 %v3830, 0.4994258
        %v3832 = vmul.f32 %v3812, %v3831
        %v3833 = vadd.f32 %v3832, 1.0
        %v3834 = vrcp.pop %v3833
        %v3835 = vmul.f32 %v3833, %v3834
        %v3836 = vsub.f32 1.0, %v3835
        %v3837 = vmul.f32 %v3834, %v3836
        %v3838 = vadd.f32 %v3834, %v3837
        %vm3839 = vweird.f32 %v3833
        %vm3840 = vweird.f32 %v3834
        %vm3841 = vmor %vm3839, %vm3840
        %v3842 = vsel %vm3841, %v3834, %v3838
        %v3843 = vand.u32 2147483647, %v3833
        %vm3844 = vcmp.eq.f32.partialorder %v3843, 8.507059e+37
        %v3845 = vand.u32 %v3833, 2147483648
        %v3846 = vor.u32 1.1754944e-38, %v3845
        %v3847 = vsel %vm3844, %v3846, %v3842
        %v3848 = vmul.f32 %v3823, %v3847
        %v3849 = vmin.f32 %v3848, 1.0
        %v3850 = vmax.f32 %v3849, -1.0
        %v3851 = vmul.f32 %v2539, %v2539
        %v3852 = vmin.f32 16.0, %v3851
        %v3853 = vmul.f32 %v3852, 2.1237322e-06
        %v3854 = vadd.f32 %v3853, 0.00028619796
        %v3855 = vmul.f32 %v3852, %v3854
        %v3856 = vadd.f32 %v3855, 0.0036580483
        %v3857 = vmul.f32 %v3852, %v3856
        %v3858 = vadd.f32 %v3857, 0.05243302
        %v3859 = vmul.f32 %v3852, %v3858
        %v3860 = vadd.f32 %v3859, 0.18741608
        %v3861 = vmul.f32 %v3852, %v3860
        %v3862 = vadd.f32 %v3861, 1.1283791
        %v3863 = vmul.f32 %v2539, %v3862
        %v3864 = vmul.f32 %v3852, 3.8918573e-05
        %v3865 = vadd.f32 %v3864, 0.001143296
        %v3866 = vmul.f32 %v3852, %v3865
        %v3867 = vadd.f32 %v3866, 0.014752088
        %v3868 = vmul.f32 %v3852, %v3867
        %v3869 = vadd.f32 %v3868, 0.112945676
        %v3870 = vmul.f32 %v3852, %v3869
        %v3871 = vadd.f32 %v3870, 0.4994258
        %v3872 = vmul.f32 %v3852, %v3871
        %v3873 = vadd.f32 %v3872, 1.0
        %v3874 = vrcp.pop %v3873
        %v3875 = vmul.f32 %v3873, %v3874
        %v3876 = vsub.f32 1.0, %v3875
        %v3877 = vmul.f32 %v3874, %v3876
        %v3878 = vadd.f32 %v3874, %v3877
        %vm3879 = vweird.f32 %v3873
        %vm3880 = vweird.f32 %v3874
        %vm3881 = vmor %vm3879, %vm3880
        %v3882 = vsel %vm3881, %v3874, %v3878
        %v3883 = vand.u32 2147483647, %v3873
        %vm3884 = vcmp.eq.f32.partialorder %v3883, 8.507059e+37
        %v3885 = vand.u32 %v3873, 2147483648
        %v3886 = vor.u32 1.1754944e-38, %v3885
        %v3887 = vsel %vm3884, %v3886, %v3882
        %v3888 = vmul.f32 %v3863, %v3887
        %v3889 = vmin.f32 %v3888, 1.0
        %v3890 = vmax.f32 %v3889, -1.0
        %v3891 = vmul.f32 %v2540, %v2540
        %v3892 = vmin.f32 16.0, %v3891
        %v3893 = vmul.f32 %v3892, 2.1237322e-06
        %v3894 = vadd.f32 %v3893, 0.00028619796
        %v3895 = vmul.f32 %v3892, %v3894
        %v3896 = vadd.f32 %v3895, 0.0036580483
        %v3897 = vmul.f32 %v3892, %v3896
        %v3898 = vadd.f32 %v3897, 0.05243302
        %v3899 = vmul.f32 %v3892, %v3898
        %v3900 = vadd.f32 %v3899, 0.18741608
        %v3901 = vmul.f32 %v3892, %v3900
        %v3902 = vadd.f32 %v3901, 1.1283791
        %v3903 = vmul.f32 %v2540, %v3902
        %v3904 = vmul.f32 %v3892, 3.8918573e-05
        %v3905 = vadd.f32 %v3904, 0.001143296
        %v3906 = vmul.f32 %v3892, %v3905
        %v3907 = vadd.f32 %v3906, 0.014752088
        %v3908 = vmul.f32 %v3892, %v3907
        %v3909 = vadd.f32 %v3908, 0.112945676
        %v3910 = vmul.f32 %v3892, %v3909
        %v3911 = vadd.f32 %v3910, 0.4994258
        %v3912 = vmul.f32 %v3892, %v3911
        %v3913 = vadd.f32 %v3912, 1.0
        %v3914 = vrcp.pop %v3913
        %v3915 = vmul.f32 %v3913, %v3914
        %v3916 = vsub.f32 1.0, %v3915
        %v3917 = vmul.f32 %v3914, %v3916
        %v3918 = vadd.f32 %v3914, %v3917
        %vm3919 = vweird.f32 %v3913
        %vm3920 = vweird.f32 %v3914
        %vm3921 = vmor %vm3919, %vm3920
        %v3922 = vsel %vm3921, %v3914, %v3918
        %v3923 = vand.u32 2147483647, %v3913
        %vm3924 = vcmp.eq.f32.partialorder %v3923, 8.507059e+37
        %v3925 = vand.u32 %v3913, 2147483648
        %v3926 = vor.u32 1.1754944e-38, %v3925
        %v3927 = vsel %vm3924, %v3926, %v3922
        %v3928 = vmul.f32 %v3903, %v3927
        %v3929 = vmin.f32 %v3928, 1.0
        %v3930 = vmax.f32 %v3929, -1.0
        %v3931 = vmul.f32 %v2541, %v2541
        %v3932 = vmin.f32 16.0, %v3931
        %v3933 = vmul.f32 %v3932, 2.1237322e-06
        %v3934 = vadd.f32 %v3933, 0.00028619796
        %v3935 = vmul.f32 %v3932, %v3934
        %v3936 = vadd.f32 %v3935, 0.0036580483
        %v3937 = vmul.f32 %v3932, %v3936
        %v3938 = vadd.f32 %v3937, 0.05243302
        %v3939 = vmul.f32 %v3932, %v3938
        %v3940 = vadd.f32 %v3939, 0.18741608
        %v3941 = vmul.f32 %v3932, %v3940
        %v3942 = vadd.f32 %v3941, 1.1283791
        %v3943 = vmul.f32 %v2541, %v3942
        %v3944 = vmul.f32 %v3932, 3.8918573e-05
        %v3945 = vadd.f32 %v3944, 0.001143296
        %v3946 = vmul.f32 %v3932, %v3945
        %v3947 = vadd.f32 %v3946, 0.014752088
        %v3948 = vmul.f32 %v3932, %v3947
        %v3949 = vadd.f32 %v3948, 0.112945676
        %v3950 = vmul.f32 %v3932, %v3949
        %v3951 = vadd.f32 %v3950, 0.4994258
        %v3952 = vmul.f32 %v3932, %v3951
        %v3953 = vadd.f32 %v3952, 1.0
        %v3954 = vrcp.pop %v3953
        %v3955 = vmul.f32 %v3953, %v3954
        %v3956 = vsub.f32 1.0, %v3955
        %v3957 = vmul.f32 %v3954, %v3956
        %v3958 = vadd.f32 %v3954, %v3957
        %vm3959 = vweird.f32 %v3953
        %vm3960 = vweird.f32 %v3954
        %vm3961 = vmor %vm3959, %vm3960
        %v3962 = vsel %vm3961, %v3954, %v3958
        %v3963 = vand.u32 2147483647, %v3953
        %vm3964 = vcmp.eq.f32.partialorder %v3963, 8.507059e+37
        %v3965 = vand.u32 %v3953, 2147483648
        %v3966 = vor.u32 1.1754944e-38, %v3965
        %v3967 = vsel %vm3964, %v3966, %v3962
        %v3968 = vmul.f32 %v3943, %v3967
        %v3969 = vmin.f32 %v3968, 1.0
        %v3970 = vmax.f32 %v3969, -1.0
        %v3971 = vmul.f32 %v2542, %v2542
        %v3972 = vmin.f32 16.0, %v3971
        %v3973 = vmul.f32 %v3972, 2.1237322e-06
        %v3974 = vadd.f32 %v3973, 0.00028619796
        %v3975 = vmul.f32 %v3972, %v3974
        %v3976 = vadd.f32 %v3975, 0.0036580483
        %v3977 = vmul.f32 %v3972, %v3976
        %v3978 = vadd.f32 %v3977, 0.05243302
        %v3979 = vmul.f32 %v3972, %v3978
        %v3980 = vadd.f32 %v3979, 0.18741608
        %v3981 = vmul.f32 %v3972, %v3980
        %v3982 = vadd.f32 %v3981, 1.1283791
        %v3983 = vmul.f32 %v2542, %v3982
        %v3984 = vmul.f32 %v3972, 3.8918573e-05
        %v3985 = vadd.f32 %v3984, 0.001143296
        %v3986 = vmul.f32 %v3972, %v3985
        %v3987 = vadd.f32 %v3986, 0.014752088
        %v3988 = vmul.f32 %v3972, %v3987
        %v3989 = vadd.f32 %v3988, 0.112945676
        %v3990 = vmul.f32 %v3972, %v3989
        %v3991 = vadd.f32 %v3990, 0.4994258
        %v3992 = vmul.f32 %v3972, %v3991
        %v3993 = vadd.f32 %v3992, 1.0
        %v3994 = vrcp.pop %v3993
        %v3995 = vmul.f32 %v3993, %v3994
        %v3996 = vsub.f32 1.0, %v3995
        %v3997 = vmul.f32 %v3994, %v3996
        %v3998 = vadd.f32 %v3994, %v3997
        %vm3999 = vweird.f32 %v3993
        %vm4000 = vweird.f32 %v3994
        %vm4001 = vmor %vm3999, %vm4000
        %v4002 = vsel %vm4001, %v3994, %v3998
        %v4003 = vand.u32 2147483647, %v3993
        %vm4004 = vcmp.eq.f32.partialorder %v4003, 8.507059e+37
        %v4005 = vand.u32 %v3993, 2147483648
        %v4006 = vor.u32 1.1754944e-38, %v4005
        %v4007 = vsel %vm4004, %v4006, %v4002
        %v4008 = vmul.f32 %v3983, %v4007
        %v4009 = vmin.f32 %v4008, 1.0
        %v4010 = vmax.f32 %v4009, -1.0
        %v4011 = vmul.f32 %v2543, %v2543
        %v4012 = vmin.f32 16.0, %v4011
        %v4013 = vmul.f32 %v4012, 2.1237322e-06
        %v4014 = vadd.f32 %v4013, 0.00028619796
        %v4015 = vmul.f32 %v4012, %v4014
        %v4016 = vadd.f32 %v4015, 0.0036580483
        %v4017 = vmul.f32 %v4012, %v4016
        %v4018 = vadd.f32 %v4017, 0.05243302
        %v4019 = vmul.f32 %v4012, %v4018
        %v4020 = vadd.f32 %v4019, 0.18741608
        %v4021 = vmul.f32 %v4012, %v4020
        %v4022 = vadd.f32 %v4021, 1.1283791
        %v4023 = vmul.f32 %v2543, %v4022
        %v4024 = vmul.f32 %v4012, 3.8918573e-05
        %v4025 = vadd.f32 %v4024, 0.001143296
        %v4026 = vmul.f32 %v4012, %v4025
        %v4027 = vadd.f32 %v4026, 0.014752088
        %v4028 = vmul.f32 %v4012, %v4027
        %v4029 = vadd.f32 %v4028, 0.112945676
        %v4030 = vmul.f32 %v4012, %v4029
        %v4031 = vadd.f32 %v4030, 0.4994258
        %v4032 = vmul.f32 %v4012, %v4031
        %v4033 = vadd.f32 %v4032, 1.0
        %v4034 = vrcp.pop %v4033
        %v4035 = vmul.f32 %v4033, %v4034
        %v4036 = vsub.f32 1.0, %v4035
        %v4037 = vmul.f32 %v4034, %v4036
        %v4038 = vadd.f32 %v4034, %v4037
        %vm4039 = vweird.f32 %v4033
        %vm4040 = vweird.f32 %v4034
        %vm4041 = vmor %vm4039, %vm4040
        %v4042 = vsel %vm4041, %v4034, %v4038
        %v4043 = vand.u32 2147483647, %v4033
        %vm4044 = vcmp.eq.f32.partialorder %v4043, 8.507059e+37
        %v4045 = vand.u32 %v4033, 2147483648
        %v4046 = vor.u32 1.1754944e-38, %v4045
        %v4047 = vsel %vm4044, %v4046, %v4042
        %v4048 = vmul.f32 %v4023, %v4047
        %v4049 = vmin.f32 %v4048, 1.0
        %v4050 = vmax.f32 %v4049, -1.0
        %v4051 = vmul.f32 %v2544, %v2544
        %v4052 = vmin.f32 16.0, %v4051
        %v4053 = vmul.f32 %v4052, 2.1237322e-06
        %v4054 = vadd.f32 %v4053, 0.00028619796
        %v4055 = vmul.f32 %v4052, %v4054
        %v4056 = vadd.f32 %v4055, 0.0036580483
        %v4057 = vmul.f32 %v4052, %v4056
        %v4058 = vadd.f32 %v4057, 0.05243302
        %v4059 = vmul.f32 %v4052, %v4058
        %v4060 = vadd.f32 %v4059, 0.18741608
        %v4061 = vmul.f32 %v4052, %v4060
        %v4062 = vadd.f32 %v4061, 1.1283791
        %v4063 = vmul.f32 %v2544, %v4062
        %v4064 = vmul.f32 %v4052, 3.8918573e-05
        %v4065 = vadd.f32 %v4064, 0.001143296
        %v4066 = vmul.f32 %v4052, %v4065
        %v4067 = vadd.f32 %v4066, 0.014752088
        %v4068 = vmul.f32 %v4052, %v4067
        %v4069 = vadd.f32 %v4068, 0.112945676
        %v4070 = vmul.f32 %v4052, %v4069
        %v4071 = vadd.f32 %v4070, 0.4994258
        %v4072 = vmul.f32 %v4052, %v4071
        %v4073 = vadd.f32 %v4072, 1.0
        %v4074 = vrcp.pop %v4073
        %v4075 = vmul.f32 %v4073, %v4074
        %v4076 = vsub.f32 1.0, %v4075
        %v4077 = vmul.f32 %v4074, %v4076
        %v4078 = vadd.f32 %v4074, %v4077
        %vm4079 = vweird.f32 %v4073
        %vm4080 = vweird.f32 %v4074
        %vm4081 = vmor %vm4079, %vm4080
        %v4082 = vsel %vm4081, %v4074, %v4078
        %v4083 = vand.u32 2147483647, %v4073
        %vm4084 = vcmp.eq.f32.partialorder %v4083, 8.507059e+37
        %v4085 = vand.u32 %v4073, 2147483648
        %v4086 = vor.u32 1.1754944e-38, %v4085
        %v4087 = vsel %vm4084, %v4086, %v4082
        %v4088 = vmul.f32 %v4063, %v4087
        %v4089 = vmin.f32 %v4088, 1.0
        %v4090 = vmax.f32 %v4089, -1.0
        %v4091 = vmul.f32 %v2545, %v2545
        %v4092 = vmin.f32 16.0, %v4091
        %v4093 = vmul.f32 %v4092, 2.1237322e-06
        %v4094 = vadd.f32 %v4093, 0.00028619796
        %v4095 = vmul.f32 %v4092, %v4094
        %v4096 = vadd.f32 %v4095, 0.0036580483
        %v4097 = vmul.f32 %v4092, %v4096
        %v4098 = vadd.f32 %v4097, 0.05243302
        %v4099 = vmul.f32 %v4092, %v4098
        %v4100 = vadd.f32 %v4099, 0.18741608
        %v4101 = vmul.f32 %v4092, %v4100
        %v4102 = vadd.f32 %v4101, 1.1283791
        %v4103 = vmul.f32 %v2545, %v4102
        %v4104 = vmul.f32 %v4092, 3.8918573e-05
        %v4105 = vadd.f32 %v4104, 0.001143296
        %v4106 = vmul.f32 %v4092, %v4105
        %v4107 = vadd.f32 %v4106, 0.014752088
        %v4108 = vmul.f32 %v4092, %v4107
        %v4109 = vadd.f32 %v4108, 0.112945676
        %v4110 = vmul.f32 %v4092, %v4109
        %v4111 = vadd.f32 %v4110, 0.4994258
        %v4112 = vmul.f32 %v4092, %v4111
        %v4113 = vadd.f32 %v4112, 1.0
        %v4114 = vrcp.pop %v4113
        %v4115 = vmul.f32 %v4113, %v4114
        %v4116 = vsub.f32 1.0, %v4115
        %v4117 = vmul.f32 %v4114, %v4116
        %v4118 = vadd.f32 %v4114, %v4117
        %vm4119 = vweird.f32 %v4113
        %vm4120 = vweird.f32 %v4114
        %vm4121 = vmor %vm4119, %vm4120
        %v4122 = vsel %vm4121, %v4114, %v4118
        %v4123 = vand.u32 2147483647, %v4113
        %vm4124 = vcmp.eq.f32.partialorder %v4123, 8.507059e+37
        %v4125 = vand.u32 %v4113, 2147483648
        %v4126 = vor.u32 1.1754944e-38, %v4125
        %v4127 = vsel %vm4124, %v4126, %v4122
        %v4128 = vmul.f32 %v4103, %v4127
        %v4129 = vmin.f32 %v4128, 1.0
        %v4130 = vmax.f32 %v4129, -1.0
        %v4131 = vmul.f32 %v2546, %v2546
        %v4132 = vmin.f32 16.0, %v4131
        %v4133 = vmul.f32 %v4132, 2.1237322e-06
        %v4134 = vadd.f32 %v4133, 0.00028619796
        %v4135 = vmul.f32 %v4132, %v4134
        %v4136 = vadd.f32 %v4135, 0.0036580483
        %v4137 = vmul.f32 %v4132, %v4136
        %v4138 = vadd.f32 %v4137, 0.05243302
        %v4139 = vmul.f32 %v4132, %v4138
        %v4140 = vadd.f32 %v4139, 0.18741608
        %v4141 = vmul.f32 %v4132, %v4140
        %v4142 = vadd.f32 %v4141, 1.1283791
        %v4143 = vmul.f32 %v2546, %v4142
        %v4144 = vmul.f32 %v4132, 3.8918573e-05
        %v4145 = vadd.f32 %v4144, 0.001143296
        %v4146 = vmul.f32 %v4132, %v4145
        %v4147 = vadd.f32 %v4146, 0.014752088
        %v4148 = vmul.f32 %v4132, %v4147
        %v4149 = vadd.f32 %v4148, 0.112945676
        %v4150 = vmul.f32 %v4132, %v4149
        %v4151 = vadd.f32 %v4150, 0.4994258
        %v4152 = vmul.f32 %v4132, %v4151
        %v4153 = vadd.f32 %v4152, 1.0
        %v4154 = vrcp.pop %v4153
        %v4155 = vmul.f32 %v4153, %v4154
        %v4156 = vsub.f32 1.0, %v4155
        %v4157 = vmul.f32 %v4154, %v4156
        %v4158 = vadd.f32 %v4154, %v4157
        %vm4159 = vweird.f32 %v4153
        %vm4160 = vweird.f32 %v4154
        %vm4161 = vmor %vm4159, %vm4160
        %v4162 = vsel %vm4161, %v4154, %v4158
        %v4163 = vand.u32 2147483647, %v4153
        %vm4164 = vcmp.eq.f32.partialorder %v4163, 8.507059e+37
        %v4165 = vand.u32 %v4153, 2147483648
        %v4166 = vor.u32 1.1754944e-38, %v4165
        %v4167 = vsel %vm4164, %v4166, %v4162
        %v4168 = vmul.f32 %v4143, %v4167
        %v4169 = vmin.f32 %v4168, 1.0
        %v4170 = vmax.f32 %v4169, -1.0
        %v4171 = vmul.f32 %v2547, %v2547
        %v4172 = vmin.f32 16.0, %v4171
        %v4173 = vmul.f32 %v4172, 2.1237322e-06
        %v4174 = vadd.f32 %v4173, 0.00028619796
        %v4175 = vmul.f32 %v4172, %v4174
        %v4176 = vadd.f32 %v4175, 0.0036580483
        %v4177 = vmul.f32 %v4172, %v4176
        %v4178 = vadd.f32 %v4177, 0.05243302
        %v4179 = vmul.f32 %v4172, %v4178
        %v4180 = vadd.f32 %v4179, 0.18741608
        %v4181 = vmul.f32 %v4172, %v4180
        %v4182 = vadd.f32 %v4181, 1.1283791
        %v4183 = vmul.f32 %v2547, %v4182
        %v4184 = vmul.f32 %v4172, 3.8918573e-05
        %v4185 = vadd.f32 %v4184, 0.001143296
        %v4186 = vmul.f32 %v4172, %v4185
        %v4187 = vadd.f32 %v4186, 0.014752088
        %v4188 = vmul.f32 %v4172, %v4187
        %v4189 = vadd.f32 %v4188, 0.112945676
        %v4190 = vmul.f32 %v4172, %v4189
        %v4191 = vadd.f32 %v4190, 0.4994258
        %v4192 = vmul.f32 %v4172, %v4191
        %v4193 = vadd.f32 %v4192, 1.0
        %v4194 = vrcp.pop %v4193
        %v4195 = vmul.f32 %v4193, %v4194
        %v4196 = vsub.f32 1.0, %v4195
        %v4197 = vmul.f32 %v4194, %v4196
        %v4198 = vadd.f32 %v4194, %v4197
        %vm4199 = vweird.f32 %v4193
        %vm4200 = vweird.f32 %v4194
        %vm4201 = vmor %vm4199, %vm4200
        %v4202 = vsel %vm4201, %v4194, %v4198
        %v4203 = vand.u32 2147483647, %v4193
        %vm4204 = vcmp.eq.f32.partialorder %v4203, 8.507059e+37
        %v4205 = vand.u32 %v4193, 2147483648
        %v4206 = vor.u32 1.1754944e-38, %v4205
        %v4207 = vsel %vm4204, %v4206, %v4202
        %v4208 = vmul.f32 %v4183, %v4207
        %v4209 = vmin.f32 %v4208, 1.0
        %v4210 = vmax.f32 %v4209, -1.0
        %v4211 = vmul.f32 %v2548, %v2548
        %v4212 = vmin.f32 16.0, %v4211
        %v4213 = vmul.f32 %v4212, 2.1237322e-06
        %v4214 = vadd.f32 %v4213, 0.00028619796
        %v4215 = vmul.f32 %v4212, %v4214
        %v4216 = vadd.f32 %v4215, 0.0036580483
        %v4217 = vmul.f32 %v4212, %v4216
        %v4218 = vadd.f32 %v4217, 0.05243302
        %v4219 = vmul.f32 %v4212, %v4218
        %v4220 = vadd.f32 %v4219, 0.18741608
        %v4221 = vmul.f32 %v4212, %v4220
        %v4222 = vadd.f32 %v4221, 1.1283791
        %v4223 = vmul.f32 %v2548, %v4222
        %v4224 = vmul.f32 %v4212, 3.8918573e-05
        %v4225 = vadd.f32 %v4224, 0.001143296
        %v4226 = vmul.f32 %v4212, %v4225
        %v4227 = vadd.f32 %v4226, 0.014752088
        %v4228 = vmul.f32 %v4212, %v4227
        %v4229 = vadd.f32 %v4228, 0.112945676
        %v4230 = vmul.f32 %v4212, %v4229
        %v4231 = vadd.f32 %v4230, 0.4994258
        %v4232 = vmul.f32 %v4212, %v4231
        %v4233 = vadd.f32 %v4232, 1.0
        %v4234 = vrcp.pop %v4233
        %v4235 = vmul.f32 %v4233, %v4234
        %v4236 = vsub.f32 1.0, %v4235
        %v4237 = vmul.f32 %v4234, %v4236
        %v4238 = vadd.f32 %v4234, %v4237
        %vm4239 = vweird.f32 %v4233
        %vm4240 = vweird.f32 %v4234
        %vm4241 = vmor %vm4239, %vm4240
        %v4242 = vsel %vm4241, %v4234, %v4238
        %v4243 = vand.u32 2147483647, %v4233
        %vm4244 = vcmp.eq.f32.partialorder %v4243, 8.507059e+37
        %v4245 = vand.u32 %v4233, 2147483648
        %v4246 = vor.u32 1.1754944e-38, %v4245
        %v4247 = vsel %vm4244, %v4246, %v4242
        %v4248 = vmul.f32 %v4223, %v4247
        %v4249 = vmin.f32 %v4248, 1.0
        %v4250 = vmax.f32 %v4249, -1.0
        %v4251 = vmul.f32 %v2549, %v2549
        %v4252 = vmin.f32 16.0, %v4251
        %v4253 = vmul.f32 %v4252, 2.1237322e-06
        %v4254 = vadd.f32 %v4253, 0.00028619796
        %v4255 = vmul.f32 %v4252, %v4254
        %v4256 = vadd.f32 %v4255, 0.0036580483
        %v4257 = vmul.f32 %v4252, %v4256
        %v4258 = vadd.f32 %v4257, 0.05243302
        %v4259 = vmul.f32 %v4252, %v4258
        %v4260 = vadd.f32 %v4259, 0.18741608
        %v4261 = vmul.f32 %v4252, %v4260
        %v4262 = vadd.f32 %v4261, 1.1283791
        %v4263 = vmul.f32 %v2549, %v4262
        %v4264 = vmul.f32 %v4252, 3.8918573e-05
        %v4265 = vadd.f32 %v4264, 0.001143296
        %v4266 = vmul.f32 %v4252, %v4265
        %v4267 = vadd.f32 %v4266, 0.014752088
        %v4268 = vmul.f32 %v4252, %v4267
        %v4269 = vadd.f32 %v4268, 0.112945676
        %v4270 = vmul.f32 %v4252, %v4269
        %v4271 = vadd.f32 %v4270, 0.4994258
        %v4272 = vmul.f32 %v4252, %v4271
        %v4273 = vadd.f32 %v4272, 1.0
        %v4274 = vrcp.pop %v4273
        %v4275 = vmul.f32 %v4273, %v4274
        %v4276 = vsub.f32 1.0, %v4275
        %v4277 = vmul.f32 %v4274, %v4276
        %v4278 = vadd.f32 %v4274, %v4277
        %vm4279 = vweird.f32 %v4273
        %vm4280 = vweird.f32 %v4274
        %vm4281 = vmor %vm4279, %vm4280
        %v4282 = vsel %vm4281, %v4274, %v4278
        %v4283 = vand.u32 2147483647, %v4273
        %vm4284 = vcmp.eq.f32.partialorder %v4283, 8.507059e+37
        %v4285 = vand.u32 %v4273, 2147483648
        %v4286 = vor.u32 1.1754944e-38, %v4285
        %v4287 = vsel %vm4284, %v4286, %v4282
        %v4288 = vmul.f32 %v4263, %v4287
        %v4289 = vmin.f32 %v4288, 1.0
        %v4290 = vmax.f32 %v4289, -1.0
        %v4291 = vmul.f32 %v2550, %v2550
        %v4292 = vmin.f32 16.0, %v4291
        %v4293 = vmul.f32 %v4292, 2.1237322e-06
        %v4294 = vadd.f32 %v4293, 0.00028619796
        %v4295 = vmul.f32 %v4292, %v4294
        %v4296 = vadd.f32 %v4295, 0.0036580483
        %v4297 = vmul.f32 %v4292, %v4296
        %v4298 = vadd.f32 %v4297, 0.05243302
        %v4299 = vmul.f32 %v4292, %v4298
        %v4300 = vadd.f32 %v4299, 0.18741608
        %v4301 = vmul.f32 %v4292, %v4300
        %v4302 = vadd.f32 %v4301, 1.1283791
        %v4303 = vmul.f32 %v2550, %v4302
        %v4304 = vmul.f32 %v4292, 3.8918573e-05
        %v4305 = vadd.f32 %v4304, 0.001143296
        %v4306 = vmul.f32 %v4292, %v4305
        %v4307 = vadd.f32 %v4306, 0.014752088
        %v4308 = vmul.f32 %v4292, %v4307
        %v4309 = vadd.f32 %v4308, 0.112945676
        %v4310 = vmul.f32 %v4292, %v4309
        %v4311 = vadd.f32 %v4310, 0.4994258
        %v4312 = vmul.f32 %v4292, %v4311
        %v4313 = vadd.f32 %v4312, 1.0
        %v4314 = vrcp.pop %v4313
        %v4315 = vmul.f32 %v4313, %v4314
        %v4316 = vsub.f32 1.0, %v4315
        %v4317 = vmul.f32 %v4314, %v4316
        %v4318 = vadd.f32 %v4314, %v4317
        %vm4319 = vweird.f32 %v4313
        %vm4320 = vweird.f32 %v4314
        %vm4321 = vmor %vm4319, %vm4320
        %v4322 = vsel %vm4321, %v4314, %v4318
        %v4323 = vand.u32 2147483647, %v4313
        %vm4324 = vcmp.eq.f32.partialorder %v4323, 8.507059e+37
        %v4325 = vand.u32 %v4313, 2147483648
        %v4326 = vor.u32 1.1754944e-38, %v4325
        %v4327 = vsel %vm4324, %v4326, %v4322
        %v4328 = vmul.f32 %v4303, %v4327
        %v4329 = vmin.f32 %v4328, 1.0
        %v4330 = vmax.f32 %v4329, -1.0
        %v4331 = vmul.f32 %v2551, %v2551
        %v4332 = vmin.f32 16.0, %v4331
        %v4333 = vmul.f32 %v4332, 2.1237322e-06
        %v4334 = vadd.f32 %v4333, 0.00028619796
        %v4335 = vmul.f32 %v4332, %v4334
        %v4336 = vadd.f32 %v4335, 0.0036580483
        %v4337 = vmul.f32 %v4332, %v4336
        %v4338 = vadd.f32 %v4337, 0.05243302
        %v4339 = vmul.f32 %v4332, %v4338
        %v4340 = vadd.f32 %v4339, 0.18741608
        %v4341 = vmul.f32 %v4332, %v4340
        %v4342 = vadd.f32 %v4341, 1.1283791
        %v4343 = vmul.f32 %v2551, %v4342
        %v4344 = vmul.f32 %v4332, 3.8918573e-05
        %v4345 = vadd.f32 %v4344, 0.001143296
        %v4346 = vmul.f32 %v4332, %v4345
        %v4347 = vadd.f32 %v4346, 0.014752088
        %v4348 = vmul.f32 %v4332, %v4347
        %v4349 = vadd.f32 %v4348, 0.112945676
        %v4350 = vmul.f32 %v4332, %v4349
        %v4351 = vadd.f32 %v4350, 0.4994258
        %v4352 = vmul.f32 %v4332, %v4351
        %v4353 = vadd.f32 %v4352, 1.0
        %v4354 = vrcp.pop %v4353
        %v4355 = vmul.f32 %v4353, %v4354
        %v4356 = vsub.f32 1.0, %v4355
        %v4357 = vmul.f32 %v4354, %v4356
        %v4358 = vadd.f32 %v4354, %v4357
        %vm4359 = vweird.f32 %v4353
        %vm4360 = vweird.f32 %v4354
        %vm4361 = vmor %vm4359, %vm4360
        %v4362 = vsel %vm4361, %v4354, %v4358
        %v4363 = vand.u32 2147483647, %v4353
        %vm4364 = vcmp.eq.f32.partialorder %v4363, 8.507059e+37
        %v4365 = vand.u32 %v4353, 2147483648
        %v4366 = vor.u32 1.1754944e-38, %v4365
        %v4367 = vsel %vm4364, %v4366, %v4362
        %v4368 = vmul.f32 %v4343, %v4367
        %v4369 = vmin.f32 %v4368, 1.0
        %v4370 = vmax.f32 %v4369, -1.0
        %v4371 = vmul.f32 %v2552, %v2552
        %v4372 = vmin.f32 16.0, %v4371
        %v4373 = vmul.f32 %v4372, 2.1237322e-06
        %v4374 = vadd.f32 %v4373, 0.00028619796
        %v4375 = vmul.f32 %v4372, %v4374
        %v4376 = vadd.f32 %v4375, 0.0036580483
        %v4377 = vmul.f32 %v4372, %v4376
        %v4378 = vadd.f32 %v4377, 0.05243302
        %v4379 = vmul.f32 %v4372, %v4378
        %v4380 = vadd.f32 %v4379, 0.18741608
        %v4381 = vmul.f32 %v4372, %v4380
        %v4382 = vadd.f32 %v4381, 1.1283791
        %v4383 = vmul.f32 %v2552, %v4382
        %v4384 = vmul.f32 %v4372, 3.8918573e-05
        %v4385 = vadd.f32 %v4384, 0.001143296
        %v4386 = vmul.f32 %v4372, %v4385
        %v4387 = vadd.f32 %v4386, 0.014752088
        %v4388 = vmul.f32 %v4372, %v4387
        %v4389 = vadd.f32 %v4388, 0.112945676
        %v4390 = vmul.f32 %v4372, %v4389
        %v4391 = vadd.f32 %v4390, 0.4994258
        %v4392 = vmul.f32 %v4372, %v4391
        %v4393 = vadd.f32 %v4392, 1.0
        %v4394 = vrcp.pop %v4393
        %v4395 = vmul.f32 %v4393, %v4394
        %v4396 = vsub.f32 1.0, %v4395
        %v4397 = vmul.f32 %v4394, %v4396
        %v4398 = vadd.f32 %v4394, %v4397
        %vm4399 = vweird.f32 %v4393
        %vm4400 = vweird.f32 %v4394
        %vm4401 = vmor %vm4399, %vm4400
        %v4402 = vsel %vm4401, %v4394, %v4398
        %v4403 = vand.u32 2147483647, %v4393
        %vm4404 = vcmp.eq.f32.partialorder %v4403, 8.507059e+37
        %v4405 = vand.u32 %v4393, 2147483648
        %v4406 = vor.u32 1.1754944e-38, %v4405
        %v4407 = vsel %vm4404, %v4406, %v4402
        %v4408 = vmul.f32 %v4383, %v4407
        %v4409 = vmin.f32 %v4408, 1.0
        %v4410 = vmax.f32 %v4409, -1.0
        %v4411 = vmul.f32 %v2553, %v2553
        %v4412 = vmin.f32 16.0, %v4411
        %v4413 = vmul.f32 %v4412, 2.1237322e-06
        %v4414 = vadd.f32 %v4413, 0.00028619796
        %v4415 = vmul.f32 %v4412, %v4414
        %v4416 = vadd.f32 %v4415, 0.0036580483
        %v4417 = vmul.f32 %v4412, %v4416
        %v4418 = vadd.f32 %v4417, 0.05243302
        %v4419 = vmul.f32 %v4412, %v4418
        %v4420 = vadd.f32 %v4419, 0.18741608
        %v4421 = vmul.f32 %v4412, %v4420
        %v4422 = vadd.f32 %v4421, 1.1283791
        %v4423 = vmul.f32 %v2553, %v4422
        %v4424 = vmul.f32 %v4412, 3.8918573e-05
        %v4425 = vadd.f32 %v4424, 0.001143296
        %v4426 = vmul.f32 %v4412, %v4425
        %v4427 = vadd.f32 %v4426, 0.014752088
        %v4428 = vmul.f32 %v4412, %v4427
        %v4429 = vadd.f32 %v4428, 0.112945676
        %v4430 = vmul.f32 %v4412, %v4429
        %v4431 = vadd.f32 %v4430, 0.4994258
        %v4432 = vmul.f32 %v4412, %v4431
        %v4433 = vadd.f32 %v4432, 1.0
        %v4434 = vrcp.pop %v4433
        %v4435 = vmul.f32 %v4433, %v4434
        %v4436 = vsub.f32 1.0, %v4435
        %v4437 = vmul.f32 %v4434, %v4436
        %v4438 = vadd.f32 %v4434, %v4437
        %vm4439 = vweird.f32 %v4433
        %vm4440 = vweird.f32 %v4434
        %vm4441 = vmor %vm4439, %vm4440
        %v4442 = vsel %vm4441, %v4434, %v4438
        %v4443 = vand.u32 2147483647, %v4433
        %vm4444 = vcmp.eq.f32.partialorder %v4443, 8.507059e+37
        %v4445 = vand.u32 %v4433, 2147483648
        %v4446 = vor.u32 1.1754944e-38, %v4445
        %v4447 = vsel %vm4444, %v4446, %v4442
        %v4448 = vmul.f32 %v4423, %v4447
        %v4449 = vmin.f32 %v4448, 1.0
        %v4450 = vmax.f32 %v4449, -1.0
        %v4451 = vmul.f32 %v2554, %v2554
        %v4452 = vmin.f32 16.0, %v4451
        %v4453 = vmul.f32 %v4452, 2.1237322e-06
        %v4454 = vadd.f32 %v4453, 0.00028619796
        %v4455 = vmul.f32 %v4452, %v4454
        %v4456 = vadd.f32 %v4455, 0.0036580483
        %v4457 = vmul.f32 %v4452, %v4456
        %v4458 = vadd.f32 %v4457, 0.05243302
        %v4459 = vmul.f32 %v4452, %v4458
        %v4460 = vadd.f32 %v4459, 0.18741608
        %v4461 = vmul.f32 %v4452, %v4460
        %v4462 = vadd.f32 %v4461, 1.1283791
        %v4463 = vmul.f32 %v2554, %v4462
        %v4464 = vmul.f32 %v4452, 3.8918573e-05
        %v4465 = vadd.f32 %v4464, 0.001143296
        %v4466 = vmul.f32 %v4452, %v4465
        %v4467 = vadd.f32 %v4466, 0.014752088
        %v4468 = vmul.f32 %v4452, %v4467
        %v4469 = vadd.f32 %v4468, 0.112945676
        %v4470 = vmul.f32 %v4452, %v4469
        %v4471 = vadd.f32 %v4470, 0.4994258
        %v4472 = vmul.f32 %v4452, %v4471
        %v4473 = vadd.f32 %v4472, 1.0
        %v4474 = vrcp.pop %v4473
        %v4475 = vmul.f32 %v4473, %v4474
        %v4476 = vsub.f32 1.0, %v4475
        %v4477 = vmul.f32 %v4474, %v4476
        %v4478 = vadd.f32 %v4474, %v4477
        %vm4479 = vweird.f32 %v4473
        %vm4480 = vweird.f32 %v4474
        %vm4481 = vmor %vm4479, %vm4480
        %v4482 = vsel %vm4481, %v4474, %v4478
        %v4483 = vand.u32 2147483647, %v4473
        %vm4484 = vcmp.eq.f32.partialorder %v4483, 8.507059e+37
        %v4485 = vand.u32 %v4473, 2147483648
        %v4486 = vor.u32 1.1754944e-38, %v4485
        %v4487 = vsel %vm4484, %v4486, %v4482
        %v4488 = vmul.f32 %v4463, %v4487
        %v4489 = vmin.f32 %v4488, 1.0
        %v4490 = vmax.f32 %v4489, -1.0
        %v4491 = vmul.f32 %v2555, %v2555
        %v4492 = vmin.f32 16.0, %v4491
        %v4493 = vmul.f32 %v4492, 2.1237322e-06
        %v4494 = vadd.f32 %v4493, 0.00028619796
        %v4495 = vmul.f32 %v4492, %v4494
        %v4496 = vadd.f32 %v4495, 0.0036580483
        %v4497 = vmul.f32 %v4492, %v4496
        %v4498 = vadd.f32 %v4497, 0.05243302
        %v4499 = vmul.f32 %v4492, %v4498
        %v4500 = vadd.f32 %v4499, 0.18741608
        %v4501 = vmul.f32 %v4492, %v4500
        %v4502 = vadd.f32 %v4501, 1.1283791
        %v4503 = vmul.f32 %v2555, %v4502
        %v4504 = vmul.f32 %v4492, 3.8918573e-05
        %v4505 = vadd.f32 %v4504, 0.001143296
        %v4506 = vmul.f32 %v4492, %v4505
        %v4507 = vadd.f32 %v4506, 0.014752088
        %v4508 = vmul.f32 %v4492, %v4507
        %v4509 = vadd.f32 %v4508, 0.112945676
        %v4510 = vmul.f32 %v4492, %v4509
        %v4511 = vadd.f32 %v4510, 0.4994258
        %v4512 = vmul.f32 %v4492, %v4511
        %v4513 = vadd.f32 %v4512, 1.0
        %v4514 = vrcp.pop %v4513
        %v4515 = vmul.f32 %v4513, %v4514
        %v4516 = vsub.f32 1.0, %v4515
        %v4517 = vmul.f32 %v4514, %v4516
        %v4518 = vadd.f32 %v4514, %v4517
        %vm4519 = vweird.f32 %v4513
        %vm4520 = vweird.f32 %v4514
        %vm4521 = vmor %vm4519, %vm4520
        %v4522 = vsel %vm4521, %v4514, %v4518
        %v4523 = vand.u32 2147483647, %v4513
        %vm4524 = vcmp.eq.f32.partialorder %v4523, 8.507059e+37
        %v4525 = vand.u32 %v4513, 2147483648
        %v4526 = vor.u32 1.1754944e-38, %v4525
        %v4527 = vsel %vm4524, %v4526, %v4522
        %v4528 = vmul.f32 %v4503, %v4527
        %v4529 = vmin.f32 %v4528, 1.0
        %v4530 = vmax.f32 %v4529, -1.0
        %v4531 = vmul.f32 %v2556, %v2556
        %v4532 = vmin.f32 16.0, %v4531
        %v4533 = vmul.f32 %v4532, 2.1237322e-06
        %v4534 = vadd.f32 %v4533, 0.00028619796
        %v4535 = vmul.f32 %v4532, %v4534
        %v4536 = vadd.f32 %v4535, 0.0036580483
        %v4537 = vmul.f32 %v4532, %v4536
        %v4538 = vadd.f32 %v4537, 0.05243302
        %v4539 = vmul.f32 %v4532, %v4538
        %v4540 = vadd.f32 %v4539, 0.18741608
        %v4541 = vmul.f32 %v4532, %v4540
        %v4542 = vadd.f32 %v4541, 1.1283791
        %v4543 = vmul.f32 %v2556, %v4542
        %v4544 = vmul.f32 %v4532, 3.8918573e-05
        %v4545 = vadd.f32 %v4544, 0.001143296
        %v4546 = vmul.f32 %v4532, %v4545
        %v4547 = vadd.f32 %v4546, 0.014752088
        %v4548 = vmul.f32 %v4532, %v4547
        %v4549 = vadd.f32 %v4548, 0.112945676
        %v4550 = vmul.f32 %v4532, %v4549
        %v4551 = vadd.f32 %v4550, 0.4994258
        %v4552 = vmul.f32 %v4532, %v4551
        %v4553 = vadd.f32 %v4552, 1.0
        %v4554 = vrcp.pop %v4553
        %v4555 = vmul.f32 %v4553, %v4554
        %v4556 = vsub.f32 1.0, %v4555
        %v4557 = vmul.f32 %v4554, %v4556
        %v4558 = vadd.f32 %v4554, %v4557
        %vm4559 = vweird.f32 %v4553
        %vm4560 = vweird.f32 %v4554
        %vm4561 = vmor %vm4559, %vm4560
        %v4562 = vsel %vm4561, %v4554, %v4558
        %v4563 = vand.u32 2147483647, %v4553
        %vm4564 = vcmp.eq.f32.partialorder %v4563, 8.507059e+37
        %v4565 = vand.u32 %v4553, 2147483648
        %v4566 = vor.u32 1.1754944e-38, %v4565
        %v4567 = vsel %vm4564, %v4566, %v4562
        %v4568 = vmul.f32 %v4543, %v4567
        %v4569 = vmin.f32 %v4568, 1.0
        %v4570 = vmax.f32 %v4569, -1.0
        %v4571 = vmul.f32 %v2557, %v2557
        %v4572 = vmin.f32 16.0, %v4571
        %v4573 = vmul.f32 %v4572, 2.1237322e-06
        %v4574 = vadd.f32 %v4573, 0.00028619796
        %v4575 = vmul.f32 %v4572, %v4574
        %v4576 = vadd.f32 %v4575, 0.0036580483
        %v4577 = vmul.f32 %v4572, %v4576
        %v4578 = vadd.f32 %v4577, 0.05243302
        %v4579 = vmul.f32 %v4572, %v4578
        %v4580 = vadd.f32 %v4579, 0.18741608
        %v4581 = vmul.f32 %v4572, %v4580
        %v4582 = vadd.f32 %v4581, 1.1283791
        %v4583 = vmul.f32 %v2557, %v4582
        %v4584 = vmul.f32 %v4572, 3.8918573e-05
        %v4585 = vadd.f32 %v4584, 0.001143296
        %v4586 = vmul.f32 %v4572, %v4585
        %v4587 = vadd.f32 %v4586, 0.014752088
        %v4588 = vmul.f32 %v4572, %v4587
        %v4589 = vadd.f32 %v4588, 0.112945676
        %v4590 = vmul.f32 %v4572, %v4589
        %v4591 = vadd.f32 %v4590, 0.4994258
        %v4592 = vmul.f32 %v4572, %v4591
        %v4593 = vadd.f32 %v4592, 1.0
        %v4594 = vrcp.pop %v4593
        %v4595 = vmul.f32 %v4593, %v4594
        %v4596 = vsub.f32 1.0, %v4595
        %v4597 = vmul.f32 %v4594, %v4596
        %v4598 = vadd.f32 %v4594, %v4597
        %vm4599 = vweird.f32 %v4593
        %vm4600 = vweird.f32 %v4594
        %vm4601 = vmor %vm4599, %vm4600
        %v4602 = vsel %vm4601, %v4594, %v4598
        %v4603 = vand.u32 2147483647, %v4593
        %vm4604 = vcmp.eq.f32.partialorder %v4603, 8.507059e+37
        %v4605 = vand.u32 %v4593, 2147483648
        %v4606 = vor.u32 1.1754944e-38, %v4605
        %v4607 = vsel %vm4604, %v4606, %v4602
        %v4608 = vmul.f32 %v4583, %v4607
        %v4609 = vmin.f32 %v4608, 1.0
        %v4610 = vmax.f32 %v4609, -1.0
        %v4611 = vmul.f32 %v2558, %v2558
        %v4612 = vmin.f32 16.0, %v4611
        %v4613 = vmul.f32 %v4612, 2.1237322e-06
        %v4614 = vadd.f32 %v4613, 0.00028619796
        %v4615 = vmul.f32 %v4612, %v4614
        %v4616 = vadd.f32 %v4615, 0.0036580483
        %v4617 = vmul.f32 %v4612, %v4616
        %v4618 = vadd.f32 %v4617, 0.05243302
        %v4619 = vmul.f32 %v4612, %v4618
        %v4620 = vadd.f32 %v4619, 0.18741608
        %v4621 = vmul.f32 %v4612, %v4620
        %v4622 = vadd.f32 %v4621, 1.1283791
        %v4623 = vmul.f32 %v2558, %v4622
        %v4624 = vmul.f32 %v4612, 3.8918573e-05
        %v4625 = vadd.f32 %v4624, 0.001143296
        %v4626 = vmul.f32 %v4612, %v4625
        %v4627 = vadd.f32 %v4626, 0.014752088
        %v4628 = vmul.f32 %v4612, %v4627
        %v4629 = vadd.f32 %v4628, 0.112945676
        %v4630 = vmul.f32 %v4612, %v4629
        %v4631 = vadd.f32 %v4630, 0.4994258
        %v4632 = vmul.f32 %v4612, %v4631
        %v4633 = vadd.f32 %v4632, 1.0
        %v4634 = vrcp.pop %v4633
        %v4635 = vmul.f32 %v4633, %v4634
        %v4636 = vsub.f32 1.0, %v4635
        %v4637 = vmul.f32 %v4634, %v4636
        %v4638 = vadd.f32 %v4634, %v4637
        %vm4639 = vweird.f32 %v4633
        %vm4640 = vweird.f32 %v4634
        %vm4641 = vmor %vm4639, %vm4640
        %v4642 = vsel %vm4641, %v4634, %v4638
        %v4643 = vand.u32 2147483647, %v4633
        %vm4644 = vcmp.eq.f32.partialorder %v4643, 8.507059e+37
        %v4645 = vand.u32 %v4633, 2147483648
        %v4646 = vor.u32 1.1754944e-38, %v4645
        %v4647 = vsel %vm4644, %v4646, %v4642
        %v4648 = vmul.f32 %v4623, %v4647
        %v4649 = vmin.f32 %v4648, 1.0
        %v4650 = vmax.f32 %v4649, -1.0
        %v4651 = vmul.f32 %v2559, %v2559
        %v4652 = vmin.f32 16.0, %v4651
        %v4653 = vmul.f32 %v4652, 2.1237322e-06
        %v4654 = vadd.f32 %v4653, 0.00028619796
        %v4655 = vmul.f32 %v4652, %v4654
        %v4656 = vadd.f32 %v4655, 0.0036580483
        %v4657 = vmul.f32 %v4652, %v4656
        %v4658 = vadd.f32 %v4657, 0.05243302
        %v4659 = vmul.f32 %v4652, %v4658
        %v4660 = vadd.f32 %v4659, 0.18741608
        %v4661 = vmul.f32 %v4652, %v4660
        %v4662 = vadd.f32 %v4661, 1.1283791
        %v4663 = vmul.f32 %v2559, %v4662
        %v4664 = vmul.f32 %v4652, 3.8918573e-05
        %v4665 = vadd.f32 %v4664, 0.001143296
        %v4666 = vmul.f32 %v4652, %v4665
        %v4667 = vadd.f32 %v4666, 0.014752088
        %v4668 = vmul.f32 %v4652, %v4667
        %v4669 = vadd.f32 %v4668, 0.112945676
        %v4670 = vmul.f32 %v4652, %v4669
        %v4671 = vadd.f32 %v4670, 0.4994258
        %v4672 = vmul.f32 %v4652, %v4671
        %v4673 = vadd.f32 %v4672, 1.0
        %v4674 = vrcp.pop %v4673
        %v4675 = vmul.f32 %v4673, %v4674
        %v4676 = vsub.f32 1.0, %v4675
        %v4677 = vmul.f32 %v4674, %v4676
        %v4678 = vadd.f32 %v4674, %v4677
        %vm4679 = vweird.f32 %v4673
        %vm4680 = vweird.f32 %v4674
        %vm4681 = vmor %vm4679, %vm4680
        %v4682 = vsel %vm4681, %v4674, %v4678
        %v4683 = vand.u32 2147483647, %v4673
        %vm4684 = vcmp.eq.f32.partialorder %v4683, 8.507059e+37
        %v4685 = vand.u32 %v4673, 2147483648
        %v4686 = vor.u32 1.1754944e-38, %v4685
        %v4687 = vsel %vm4684, %v4686, %v4682
        %v4688 = vmul.f32 %v4663, %v4687
        %v4689 = vmin.f32 %v4688, 1.0
        %v4690 = vmax.f32 %v4689, -1.0
        %v4691 = vmul.f32 %v2560, %v2560
        %v4692 = vmin.f32 16.0, %v4691
        %v4693 = vmul.f32 %v4692, 2.1237322e-06
        %v4694 = vadd.f32 %v4693, 0.00028619796
        %v4695 = vmul.f32 %v4692, %v4694
        %v4696 = vadd.f32 %v4695, 0.0036580483
        %v4697 = vmul.f32 %v4692, %v4696
        %v4698 = vadd.f32 %v4697, 0.05243302
        %v4699 = vmul.f32 %v4692, %v4698
        %v4700 = vadd.f32 %v4699, 0.18741608
        %v4701 = vmul.f32 %v4692, %v4700
        %v4702 = vadd.f32 %v4701, 1.1283791
        %v4703 = vmul.f32 %v2560, %v4702
        %v4704 = vmul.f32 %v4692, 3.8918573e-05
        %v4705 = vadd.f32 %v4704, 0.001143296
        %v4706 = vmul.f32 %v4692, %v4705
        %v4707 = vadd.f32 %v4706, 0.014752088
        %v4708 = vmul.f32 %v4692, %v4707
        %v4709 = vadd.f32 %v4708, 0.112945676
        %v4710 = vmul.f32 %v4692, %v4709
        %v4711 = vadd.f32 %v4710, 0.4994258
        %v4712 = vmul.f32 %v4692, %v4711
        %v4713 = vadd.f32 %v4712, 1.0
        %v4714 = vrcp.pop %v4713
        %v4715 = vmul.f32 %v4713, %v4714
        %v4716 = vsub.f32 1.0, %v4715
        %v4717 = vmul.f32 %v4714, %v4716
        %v4718 = vadd.f32 %v4714, %v4717
        %vm4719 = vweird.f32 %v4713
        %vm4720 = vweird.f32 %v4714
        %vm4721 = vmor %vm4719, %vm4720
        %v4722 = vsel %vm4721, %v4714, %v4718
        %v4723 = vand.u32 2147483647, %v4713
        %vm4724 = vcmp.eq.f32.partialorder %v4723, 8.507059e+37
        %v4725 = vand.u32 %v4713, 2147483648
        %v4726 = vor.u32 1.1754944e-38, %v4725
        %v4727 = vsel %vm4724, %v4726, %v4722
        %v4728 = vmul.f32 %v4703, %v4727
        %v4729 = vmin.f32 %v4728, 1.0
        %v4730 = vmax.f32 %v4729, -1.0
        %v4731 = vmul.f32 %v2561, %v2561
        %v4732 = vmin.f32 16.0, %v4731
        %v4733 = vmul.f32 %v4732, 2.1237322e-06
        %v4734 = vadd.f32 %v4733, 0.00028619796
        %v4735 = vmul.f32 %v4732, %v4734
        %v4736 = vadd.f32 %v4735, 0.0036580483
        %v4737 = vmul.f32 %v4732, %v4736
        %v4738 = vadd.f32 %v4737, 0.05243302
        %v4739 = vmul.f32 %v4732, %v4738
        %v4740 = vadd.f32 %v4739, 0.18741608
        %v4741 = vmul.f32 %v4732, %v4740
        %v4742 = vadd.f32 %v4741, 1.1283791
        %v4743 = vmul.f32 %v2561, %v4742
        %v4744 = vmul.f32 %v4732, 3.8918573e-05
        %v4745 = vadd.f32 %v4744, 0.001143296
        %v4746 = vmul.f32 %v4732, %v4745
        %v4747 = vadd.f32 %v4746, 0.014752088
        %v4748 = vmul.f32 %v4732, %v4747
        %v4749 = vadd.f32 %v4748, 0.112945676
        %v4750 = vmul.f32 %v4732, %v4749
        %v4751 = vadd.f32 %v4750, 0.4994258
        %v4752 = vmul.f32 %v4732, %v4751
        %v4753 = vadd.f32 %v4752, 1.0
        %v4754 = vrcp.pop %v4753
        %v4755 = vmul.f32 %v4753, %v4754
        %v4756 = vsub.f32 1.0, %v4755
        %v4757 = vmul.f32 %v4754, %v4756
        %v4758 = vadd.f32 %v4754, %v4757
        %vm4759 = vweird.f32 %v4753
        %vm4760 = vweird.f32 %v4754
        %vm4761 = vmor %vm4759, %vm4760
        %v4762 = vsel %vm4761, %v4754, %v4758
        %v4763 = vand.u32 2147483647, %v4753
        %vm4764 = vcmp.eq.f32.partialorder %v4763, 8.507059e+37
        %v4765 = vand.u32 %v4753, 2147483648
        %v4766 = vor.u32 1.1754944e-38, %v4765
        %v4767 = vsel %vm4764, %v4766, %v4762
        %v4768 = vmul.f32 %v4743, %v4767
        %v4769 = vmin.f32 %v4768, 1.0
        %v4770 = vmax.f32 %v4769, -1.0
        %v4771 = vmul.f32 %v2562, %v2562
        %v4772 = vmin.f32 16.0, %v4771
        %v4773 = vmul.f32 %v4772, 2.1237322e-06
        %v4774 = vadd.f32 %v4773, 0.00028619796
        %v4775 = vmul.f32 %v4772, %v4774
        %v4776 = vadd.f32 %v4775, 0.0036580483
        %v4777 = vmul.f32 %v4772, %v4776
        %v4778 = vadd.f32 %v4777, 0.05243302
        %v4779 = vmul.f32 %v4772, %v4778
        %v4780 = vadd.f32 %v4779, 0.18741608
        %v4781 = vmul.f32 %v4772, %v4780
        %v4782 = vadd.f32 %v4781, 1.1283791
        %v4783 = vmul.f32 %v2562, %v4782
        %v4784 = vmul.f32 %v4772, 3.8918573e-05
        %v4785 = vadd.f32 %v4784, 0.001143296
        %v4786 = vmul.f32 %v4772, %v4785
        %v4787 = vadd.f32 %v4786, 0.014752088
        %v4788 = vmul.f32 %v4772, %v4787
        %v4789 = vadd.f32 %v4788, 0.112945676
        %v4790 = vmul.f32 %v4772, %v4789
        %v4791 = vadd.f32 %v4790, 0.4994258
        %v4792 = vmul.f32 %v4772, %v4791
        %v4793 = vadd.f32 %v4792, 1.0
        %v4794 = vrcp.pop %v4793
        %v4795 = vmul.f32 %v4793, %v4794
        %v4796 = vsub.f32 1.0, %v4795
        %v4797 = vmul.f32 %v4794, %v4796
        %v4798 = vadd.f32 %v4794, %v4797
        %vm4799 = vweird.f32 %v4793
        %vm4800 = vweird.f32 %v4794
        %vm4801 = vmor %vm4799, %vm4800
        %v4802 = vsel %vm4801, %v4794, %v4798
        %v4803 = vand.u32 2147483647, %v4793
        %vm4804 = vcmp.eq.f32.partialorder %v4803, 8.507059e+37
        %v4805 = vand.u32 %v4793, 2147483648
        %v4806 = vor.u32 1.1754944e-38, %v4805
        %v4807 = vsel %vm4804, %v4806, %v4802
        %v4808 = vmul.f32 %v4783, %v4807
        %v4809 = vmin.f32 %v4808, 1.0
        %v4810 = vmax.f32 %v4809, -1.0
        %v4811 = vmul.f32 %v2563, %v2563
        %v4812 = vmin.f32 16.0, %v4811
        %v4813 = vmul.f32 %v4812, 2.1237322e-06
        %v4814 = vadd.f32 %v4813, 0.00028619796
        %v4815 = vmul.f32 %v4812, %v4814
        %v4816 = vadd.f32 %v4815, 0.0036580483
        %v4817 = vmul.f32 %v4812, %v4816
        %v4818 = vadd.f32 %v4817, 0.05243302
        %v4819 = vmul.f32 %v4812, %v4818
        %v4820 = vadd.f32 %v4819, 0.18741608
        %v4821 = vmul.f32 %v4812, %v4820
        %v4822 = vadd.f32 %v4821, 1.1283791
        %v4823 = vmul.f32 %v2563, %v4822
        %v4824 = vmul.f32 %v4812, 3.8918573e-05
        %v4825 = vadd.f32 %v4824, 0.001143296
        %v4826 = vmul.f32 %v4812, %v4825
        %v4827 = vadd.f32 %v4826, 0.014752088
        %v4828 = vmul.f32 %v4812, %v4827
        %v4829 = vadd.f32 %v4828, 0.112945676
        %v4830 = vmul.f32 %v4812, %v4829
        %v4831 = vadd.f32 %v4830, 0.4994258
        %v4832 = vmul.f32 %v4812, %v4831
        %v4833 = vadd.f32 %v4832, 1.0
        %v4834 = vrcp.pop %v4833
        %v4835 = vmul.f32 %v4833, %v4834
        %v4836 = vsub.f32 1.0, %v4835
        %v4837 = vmul.f32 %v4834, %v4836
        %v4838 = vadd.f32 %v4834, %v4837
        %vm4839 = vweird.f32 %v4833
        %vm4840 = vweird.f32 %v4834
        %vm4841 = vmor %vm4839, %vm4840
        %v4842 = vsel %vm4841, %v4834, %v4838
        %v4843 = vand.u32 2147483647, %v4833
        %vm4844 = vcmp.eq.f32.partialorder %v4843, 8.507059e+37
        %v4845 = vand.u32 %v4833, 2147483648
        %v4846 = vor.u32 1.1754944e-38, %v4845
        %v4847 = vsel %vm4844, %v4846, %v4842
        %v4848 = vmul.f32 %v4823, %v4847
        %v4849 = vmin.f32 %v4848, 1.0
        %v4850 = vmax.f32 %v4849, -1.0
        %v4851 = vmul.f32 %v2564, %v2564
        %v4852 = vmin.f32 16.0, %v4851
        %v4853 = vmul.f32 %v4852, 2.1237322e-06
        %v4854 = vadd.f32 %v4853, 0.00028619796
        %v4855 = vmul.f32 %v4852, %v4854
        %v4856 = vadd.f32 %v4855, 0.0036580483
        %v4857 = vmul.f32 %v4852, %v4856
        %v4858 = vadd.f32 %v4857, 0.05243302
        %v4859 = vmul.f32 %v4852, %v4858
        %v4860 = vadd.f32 %v4859, 0.18741608
        %v4861 = vmul.f32 %v4852, %v4860
        %v4862 = vadd.f32 %v4861, 1.1283791
        %v4863 = vmul.f32 %v2564, %v4862
        %v4864 = vmul.f32 %v4852, 3.8918573e-05
        %v4865 = vadd.f32 %v4864, 0.001143296
        %v4866 = vmul.f32 %v4852, %v4865
        %v4867 = vadd.f32 %v4866, 0.014752088
        %v4868 = vmul.f32 %v4852, %v4867
        %v4869 = vadd.f32 %v4868, 0.112945676
        %v4870 = vmul.f32 %v4852, %v4869
        %v4871 = vadd.f32 %v4870, 0.4994258
        %v4872 = vmul.f32 %v4852, %v4871
        %v4873 = vadd.f32 %v4872, 1.0
        %v4874 = vrcp.pop %v4873
        %v4875 = vmul.f32 %v4873, %v4874
        %v4876 = vsub.f32 1.0, %v4875
        %v4877 = vmul.f32 %v4874, %v4876
        %v4878 = vadd.f32 %v4874, %v4877
        %vm4879 = vweird.f32 %v4873
        %vm4880 = vweird.f32 %v4874
        %vm4881 = vmor %vm4879, %vm4880
        %v4882 = vsel %vm4881, %v4874, %v4878
        %v4883 = vand.u32 2147483647, %v4873
        %vm4884 = vcmp.eq.f32.partialorder %v4883, 8.507059e+37
        %v4885 = vand.u32 %v4873, 2147483648
        %v4886 = vor.u32 1.1754944e-38, %v4885
        %v4887 = vsel %vm4884, %v4886, %v4882
        %v4888 = vmul.f32 %v4863, %v4887
        %v4889 = vmin.f32 %v4888, 1.0
        %v4890 = vmax.f32 %v4889, -1.0
        %v4891 = vmul.f32 %v2565, %v2565
        %v4892 = vmin.f32 16.0, %v4891
        %v4893 = vmul.f32 %v4892, 2.1237322e-06
        %v4894 = vadd.f32 %v4893, 0.00028619796
        %v4895 = vmul.f32 %v4892, %v4894
        %v4896 = vadd.f32 %v4895, 0.0036580483
        %v4897 = vmul.f32 %v4892, %v4896
        %v4898 = vadd.f32 %v4897, 0.05243302
        %v4899 = vmul.f32 %v4892, %v4898
        %v4900 = vadd.f32 %v4899, 0.18741608
        %v4901 = vmul.f32 %v4892, %v4900
        %v4902 = vadd.f32 %v4901, 1.1283791
        %v4903 = vmul.f32 %v2565, %v4902
        %v4904 = vmul.f32 %v4892, 3.8918573e-05
        %v4905 = vadd.f32 %v4904, 0.001143296
        %v4906 = vmul.f32 %v4892, %v4905
        %v4907 = vadd.f32 %v4906, 0.014752088
        %v4908 = vmul.f32 %v4892, %v4907
        %v4909 = vadd.f32 %v4908, 0.112945676
        %v4910 = vmul.f32 %v4892, %v4909
        %v4911 = vadd.f32 %v4910, 0.4994258
        %v4912 = vmul.f32 %v4892, %v4911
        %v4913 = vadd.f32 %v4912, 1.0
        %v4914 = vrcp.pop %v4913
        %v4915 = vmul.f32 %v4913, %v4914
        %v4916 = vsub.f32 1.0, %v4915
        %v4917 = vmul.f32 %v4914, %v4916
        %v4918 = vadd.f32 %v4914, %v4917
        %vm4919 = vweird.f32 %v4913
        %vm4920 = vweird.f32 %v4914
        %vm4921 = vmor %vm4919, %vm4920
        %v4922 = vsel %vm4921, %v4914, %v4918
        %v4923 = vand.u32 2147483647, %v4913
        %vm4924 = vcmp.eq.f32.partialorder %v4923, 8.507059e+37
        %v4925 = vand.u32 %v4913, 2147483648
        %v4926 = vor.u32 1.1754944e-38, %v4925
        %v4927 = vsel %vm4924, %v4926, %v4922
        %v4928 = vmul.f32 %v4903, %v4927
        %v4929 = vmin.f32 %v4928, 1.0
        %v4930 = vmax.f32 %v4929, -1.0
        %v4931 = vmul.f32 %v2566, %v2566
        %v4932 = vmin.f32 16.0, %v4931
        %v4933 = vmul.f32 %v4932, 2.1237322e-06
        %v4934 = vadd.f32 %v4933, 0.00028619796
        %v4935 = vmul.f32 %v4932, %v4934
        %v4936 = vadd.f32 %v4935, 0.0036580483
        %v4937 = vmul.f32 %v4932, %v4936
        %v4938 = vadd.f32 %v4937, 0.05243302
        %v4939 = vmul.f32 %v4932, %v4938
        %v4940 = vadd.f32 %v4939, 0.18741608
        %v4941 = vmul.f32 %v4932, %v4940
        %v4942 = vadd.f32 %v4941, 1.1283791
        %v4943 = vmul.f32 %v2566, %v4942
        %v4944 = vmul.f32 %v4932, 3.8918573e-05
        %v4945 = vadd.f32 %v4944, 0.001143296
        %v4946 = vmul.f32 %v4932, %v4945
        %v4947 = vadd.f32 %v4946, 0.014752088
        %v4948 = vmul.f32 %v4932, %v4947
        %v4949 = vadd.f32 %v4948, 0.112945676
        %v4950 = vmul.f32 %v4932, %v4949
        %v4951 = vadd.f32 %v4950, 0.4994258
        %v4952 = vmul.f32 %v4932, %v4951
        %v4953 = vadd.f32 %v4952, 1.0
        %v4954 = vrcp.pop %v4953
        %v4955 = vmul.f32 %v4953, %v4954
        %v4956 = vsub.f32 1.0, %v4955
        %v4957 = vmul.f32 %v4954, %v4956
        %v4958 = vadd.f32 %v4954, %v4957
        %vm4959 = vweird.f32 %v4953
        %vm4960 = vweird.f32 %v4954
        %vm4961 = vmor %vm4959, %vm4960
        %v4962 = vsel %vm4961, %v4954, %v4958
        %v4963 = vand.u32 2147483647, %v4953
        %vm4964 = vcmp.eq.f32.partialorder %v4963, 8.507059e+37
        %v4965 = vand.u32 %v4953, 2147483648
        %v4966 = vor.u32 1.1754944e-38, %v4965
        %v4967 = vsel %vm4964, %v4966, %v4962
        %v4968 = vmul.f32 %v4943, %v4967
        %v4969 = vmin.f32 %v4968, 1.0
        %v4970 = vmax.f32 %v4969, -1.0
        %v4971 = vmul.f32 %v2567, %v2567
        %v4972 = vmin.f32 16.0, %v4971
        %v4973 = vmul.f32 %v4972, 2.1237322e-06
        %v4974 = vadd.f32 %v4973, 0.00028619796
        %v4975 = vmul.f32 %v4972, %v4974
        %v4976 = vadd.f32 %v4975, 0.0036580483
        %v4977 = vmul.f32 %v4972, %v4976
        %v4978 = vadd.f32 %v4977, 0.05243302
        %v4979 = vmul.f32 %v4972, %v4978
        %v4980 = vadd.f32 %v4979, 0.18741608
        %v4981 = vmul.f32 %v4972, %v4980
        %v4982 = vadd.f32 %v4981, 1.1283791
        %v4983 = vmul.f32 %v2567, %v4982
        %v4984 = vmul.f32 %v4972, 3.8918573e-05
        %v4985 = vadd.f32 %v4984, 0.001143296
        %v4986 = vmul.f32 %v4972, %v4985
        %v4987 = vadd.f32 %v4986, 0.014752088
        %v4988 = vmul.f32 %v4972, %v4987
        %v4989 = vadd.f32 %v4988, 0.112945676
        %v4990 = vmul.f32 %v4972, %v4989
        %v4991 = vadd.f32 %v4990, 0.4994258
        %v4992 = vmul.f32 %v4972, %v4991
        %v4993 = vadd.f32 %v4992, 1.0
        %v4994 = vrcp.pop %v4993
        %v4995 = vmul.f32 %v4993, %v4994
        %v4996 = vsub.f32 1.0, %v4995
        %v4997 = vmul.f32 %v4994, %v4996
        %v4998 = vadd.f32 %v4994, %v4997
        %vm4999 = vweird.f32 %v4993
        %vm5000 = vweird.f32 %v4994
        %vm5001 = vmor %vm4999, %vm5000
        %v5002 = vsel %vm5001, %v4994, %v4998
        %v5003 = vand.u32 2147483647, %v4993
        %vm5004 = vcmp.eq.f32.partialorder %v5003, 8.507059e+37
        %v5005 = vand.u32 %v4993, 2147483648
        %v5006 = vor.u32 1.1754944e-38, %v5005
        %v5007 = vsel %vm5004, %v5006, %v5002
        %v5008 = vmul.f32 %v4983, %v5007
        %v5009 = vmin.f32 %v5008, 1.0
        %v5010 = vmax.f32 %v5009, -1.0
        %v5011 = vmul.f32 %v2568, %v2568
        %v5012 = vmin.f32 16.0, %v5011
        %v5013 = vmul.f32 %v5012, 2.1237322e-06
        %v5014 = vadd.f32 %v5013, 0.00028619796
        %v5015 = vmul.f32 %v5012, %v5014
        %v5016 = vadd.f32 %v5015, 0.0036580483
        %v5017 = vmul.f32 %v5012, %v5016
        %v5018 = vadd.f32 %v5017, 0.05243302
        %v5019 = vmul.f32 %v5012, %v5018
        %v5020 = vadd.f32 %v5019, 0.18741608
        %v5021 = vmul.f32 %v5012, %v5020
        %v5022 = vadd.f32 %v5021, 1.1283791
        %v5023 = vmul.f32 %v2568, %v5022
        %v5024 = vmul.f32 %v5012, 3.8918573e-05
        %v5025 = vadd.f32 %v5024, 0.001143296
        %v5026 = vmul.f32 %v5012, %v5025
        %v5027 = vadd.f32 %v5026, 0.014752088
        %v5028 = vmul.f32 %v5012, %v5027
        %v5029 = vadd.f32 %v5028, 0.112945676
        %v5030 = vmul.f32 %v5012, %v5029
        %v5031 = vadd.f32 %v5030, 0.4994258
        %v5032 = vmul.f32 %v5012, %v5031
        %v5033 = vadd.f32 %v5032, 1.0
        %v5034 = vrcp.pop %v5033
        %v5035 = vmul.f32 %v5033, %v5034
        %v5036 = vsub.f32 1.0, %v5035
        %v5037 = vmul.f32 %v5034, %v5036
        %v5038 = vadd.f32 %v5034, %v5037
        %vm5039 = vweird.f32 %v5033
        %vm5040 = vweird.f32 %v5034
        %vm5041 = vmor %vm5039, %vm5040
        %v5042 = vsel %vm5041, %v5034, %v5038
        %v5043 = vand.u32 2147483647, %v5033
        %vm5044 = vcmp.eq.f32.partialorder %v5043, 8.507059e+37
        %v5045 = vand.u32 %v5033, 2147483648
        %v5046 = vor.u32 1.1754944e-38, %v5045
        %v5047 = vsel %vm5044, %v5046, %v5042
        %v5048 = vmul.f32 %v5023, %v5047
        %v5049 = vmin.f32 %v5048, 1.0
        %v5050 = vmax.f32 %v5049, -1.0
        %v5051 = vmul.f32 %v2569, %v2569
        %v5052 = vmin.f32 16.0, %v5051
        %v5053 = vmul.f32 %v5052, 2.1237322e-06
        %v5054 = vadd.f32 %v5053, 0.00028619796
        %v5055 = vmul.f32 %v5052, %v5054
        %v5056 = vadd.f32 %v5055, 0.0036580483
        %v5057 = vmul.f32 %v5052, %v5056
        %v5058 = vadd.f32 %v5057, 0.05243302
        %v5059 = vmul.f32 %v5052, %v5058
        %v5060 = vadd.f32 %v5059, 0.18741608
        %v5061 = vmul.f32 %v5052, %v5060
        %v5062 = vadd.f32 %v5061, 1.1283791
        %v5063 = vmul.f32 %v2569, %v5062
        %v5064 = vmul.f32 %v5052, 3.8918573e-05
        %v5065 = vadd.f32 %v5064, 0.001143296
        %v5066 = vmul.f32 %v5052, %v5065
        %v5067 = vadd.f32 %v5066, 0.014752088
        %v5068 = vmul.f32 %v5052, %v5067
        %v5069 = vadd.f32 %v5068, 0.112945676
        %v5070 = vmul.f32 %v5052, %v5069
        %v5071 = vadd.f32 %v5070, 0.4994258
        %v5072 = vmul.f32 %v5052, %v5071
        %v5073 = vadd.f32 %v5072, 1.0
        %v5074 = vrcp.pop %v5073
        %v5075 = vmul.f32 %v5073, %v5074
        %v5076 = vsub.f32 1.0, %v5075
        %v5077 = vmul.f32 %v5074, %v5076
        %v5078 = vadd.f32 %v5074, %v5077
        %vm5079 = vweird.f32 %v5073
        %vm5080 = vweird.f32 %v5074
        %vm5081 = vmor %vm5079, %vm5080
        %v5082 = vsel %vm5081, %v5074, %v5078
        %v5083 = vand.u32 2147483647, %v5073
        %vm5084 = vcmp.eq.f32.partialorder %v5083, 8.507059e+37
        %v5085 = vand.u32 %v5073, 2147483648
        %v5086 = vor.u32 1.1754944e-38, %v5085
        %v5087 = vsel %vm5084, %v5086, %v5082
        %v5088 = vmul.f32 %v5063, %v5087
        %v5089 = vmin.f32 %v5088, 1.0
        %v5090 = vmax.f32 %v5089, -1.0
        %v5091 = vmul.f32 %v2570, %v2570
        %v5092 = vmin.f32 16.0, %v5091
        %v5093 = vmul.f32 %v5092, 2.1237322e-06
        %v5094 = vadd.f32 %v5093, 0.00028619796
        %v5095 = vmul.f32 %v5092, %v5094
        %v5096 = vadd.f32 %v5095, 0.0036580483
        %v5097 = vmul.f32 %v5092, %v5096
        %v5098 = vadd.f32 %v5097, 0.05243302
        %v5099 = vmul.f32 %v5092, %v5098
        %v5100 = vadd.f32 %v5099, 0.18741608
        %v5101 = vmul.f32 %v5092, %v5100
        %v5102 = vadd.f32 %v5101, 1.1283791
        %v5103 = vmul.f32 %v2570, %v5102
        %v5104 = vmul.f32 %v5092, 3.8918573e-05
        %v5105 = vadd.f32 %v5104, 0.001143296
        %v5106 = vmul.f32 %v5092, %v5105
        %v5107 = vadd.f32 %v5106, 0.014752088
        %v5108 = vmul.f32 %v5092, %v5107
        %v5109 = vadd.f32 %v5108, 0.112945676
        %v5110 = vmul.f32 %v5092, %v5109
        %v5111 = vadd.f32 %v5110, 0.4994258
        %v5112 = vmul.f32 %v5092, %v5111
        %v5113 = vadd.f32 %v5112, 1.0
        %v5114 = vrcp.pop %v5113
        %v5115 = vmul.f32 %v5113, %v5114
        %v5116 = vsub.f32 1.0, %v5115
        %v5117 = vmul.f32 %v5114, %v5116
        %v5118 = vadd.f32 %v5114, %v5117
        %vm5119 = vweird.f32 %v5113
        %vm5120 = vweird.f32 %v5114
        %vm5121 = vmor %vm5119, %vm5120
        %v5122 = vsel %vm5121, %v5114, %v5118
        %v5123 = vand.u32 2147483647, %v5113
        %vm5124 = vcmp.eq.f32.partialorder %v5123, 8.507059e+37
        %v5125 = vand.u32 %v5113, 2147483648
        %v5126 = vor.u32 1.1754944e-38, %v5125
        %v5127 = vsel %vm5124, %v5126, %v5122
        %v5128 = vmul.f32 %v5103, %v5127
        %v5129 = vmin.f32 %v5128, 1.0
        %v5130 = vmax.f32 %v5129, -1.0
        %v5131 = vadd.f32 %v2610, 1.0
        %v5132 = vadd.f32 %v2650, 1.0
        %v5133 = vadd.f32 %v2690, 1.0
        %v5134 = vadd.f32 %v2730, 1.0
        %v5135 = vadd.f32 %v2770, 1.0
        %v5136 = vadd.f32 %v2810, 1.0
        %v5137 = vadd.f32 %v2850, 1.0
        %v5138 = vadd.f32 %v2890, 1.0
        %v5139 = vadd.f32 %v2930, 1.0
        %v5140 = vadd.f32 %v2970, 1.0
        %v5141 = vadd.f32 %v3010, 1.0
        %v5142 = vadd.f32 %v3050, 1.0
        %v5143 = vadd.f32 %v3090, 1.0
        %v5144 = vadd.f32 %v3130, 1.0
        %v5145 = vadd.f32 %v3170, 1.0
        %v5146 = vadd.f32 %v3210, 1.0
        %v5147 = vadd.f32 %v3250, 1.0
        %v5148 = vadd.f32 %v3290, 1.0
        %v5149 = vadd.f32 %v3330, 1.0
        %v5150 = vadd.f32 %v3370, 1.0
        %v5151 = vadd.f32 %v3410, 1.0
        %v5152 = vadd.f32 %v3450, 1.0
        %v5153 = vadd.f32 %v3490, 1.0
        %v5154 = vadd.f32 %v3530, 1.0
        %v5155 = vadd.f32 %v3570, 1.0
        %v5156 = vadd.f32 %v3610, 1.0
        %v5157 = vadd.f32 %v3650, 1.0
        %v5158 = vadd.f32 %v3690, 1.0
        %v5159 = vadd.f32 %v3730, 1.0
        %v5160 = vadd.f32 %v3770, 1.0
        %v5161 = vadd.f32 %v3810, 1.0
        %v5162 = vadd.f32 %v3850, 1.0
        %v5163 = vadd.f32 %v3890, 1.0
        %v5164 = vadd.f32 %v3930, 1.0
        %v5165 = vadd.f32 %v3970, 1.0
        %v5166 = vadd.f32 %v4010, 1.0
        %v5167 = vadd.f32 %v4050, 1.0
        %v5168 = vadd.f32 %v4090, 1.0
        %v5169 = vadd.f32 %v4130, 1.0
        %v5170 = vadd.f32 %v4170, 1.0
        %v5171 = vadd.f32 %v4210, 1.0
        %v5172 = vadd.f32 %v4250, 1.0
        %v5173 = vadd.f32 %v4290, 1.0
        %v5174 = vadd.f32 %v4330, 1.0
        %v5175 = vadd.f32 %v4370, 1.0
        %v5176 = vadd.f32 %v4410, 1.0
        %v5177 = vadd.f32 %v4450, 1.0
        %v5178 = vadd.f32 %v4490, 1.0
        %v5179 = vadd.f32 %v4530, 1.0
        %v5180 = vadd.f32 %v4570, 1.0
        %v5181 = vadd.f32 %v4610, 1.0
        %v5182 = vadd.f32 %v4650, 1.0
        %v5183 = vadd.f32 %v4690, 1.0
        %v5184 = vadd.f32 %v4730, 1.0
        %v5185 = vadd.f32 %v4770, 1.0
        %v5186 = vadd.f32 %v4810, 1.0
        %v5187 = vadd.f32 %v4850, 1.0
        %v5188 = vadd.f32 %v4890, 1.0
        %v5189 = vadd.f32 %v4930, 1.0
        %v5190 = vadd.f32 %v4970, 1.0
        %v5191 = vadd.f32 %v5010, 1.0
        %v5192 = vadd.f32 %v5050, 1.0
        %v5193 = vadd.f32 %v5090, 1.0
        %v5194 = vadd.f32 %v5130, 1.0
        %v5195 = vmul.f32 %v2443, %v5131
        %v5196 = vmul.f32 %v2444, %v5132
        %v5197 = vmul.f32 %v2445, %v5133
        %v5198 = vmul.f32 %v2446, %v5134
        %v5199 = vmul.f32 %v2447, %v5135
        %v5200 = vmul.f32 %v2448, %v5136
        %v5201 = vmul.f32 %v2449, %v5137
        %v5202 = vmul.f32 %v2450, %v5138
        %v5203 = vmul.f32 %v2451, %v5139
        %v5204 = vmul.f32 %v2452, %v5140
        %v5205 = vmul.f32 %v2453, %v5141
        %v5206 = vmul.f32 %v2454, %v5142
        %v5207 = vmul.f32 %v2455, %v5143
        %v5208 = vmul.f32 %v2456, %v5144
        %v5209 = vmul.f32 %v2457, %v5145
        %v5210 = vmul.f32 %v2458, %v5146
        %v5211 = vmul.f32 %v2459, %v5147
        %v5212 = vmul.f32 %v2460, %v5148
        %v5213 = vmul.f32 %v2461, %v5149
        %v5214 = vmul.f32 %v2462, %v5150
        %v5215 = vmul.f32 %v2463, %v5151
        %v5216 = vmul.f32 %v2464, %v5152
        %v5217 = vmul.f32 %v2465, %v5153
        %v5218 = vmul.f32 %v2466, %v5154
        %v5219 = vmul.f32 %v2467, %v5155
        %v5220 = vmul.f32 %v2468, %v5156
        %v5221 = vmul.f32 %v2469, %v5157
        %v5222 = vmul.f32 %v2470, %v5158
        %v5223 = vmul.f32 %v2471, %v5159
        %v5224 = vmul.f32 %v2472, %v5160
        %v5225 = vmul.f32 %v2473, %v5161
        %v5226 = vmul.f32 %v2474, %v5162
        %v5227 = vmul.f32 %v2475, %v5163
        %v5228 = vmul.f32 %v2476, %v5164
        %v5229 = vmul.f32 %v2477, %v5165
        %v5230 = vmul.f32 %v2478, %v5166
        %v5231 = vmul.f32 %v2479, %v5167
        %v5232 = vmul.f32 %v2480, %v5168
        %v5233 = vmul.f32 %v2481, %v5169
        %v5234 = vmul.f32 %v2482, %v5170
        %v5235 = vmul.f32 %v2483, %v5171
        %v5236 = vmul.f32 %v2484, %v5172
        %v5237 = vmul.f32 %v2485, %v5173
        %v5238 = vmul.f32 %v2486, %v5174
        %v5239 = vmul.f32 %v2487, %v5175
        %v5240 = vmul.f32 %v2488, %v5176
        %v5241 = vmul.f32 %v2489, %v5177
        %v5242 = vmul.f32 %v2490, %v5178
        %v5243 = vmul.f32 %v2491, %v5179
        %v5244 = vmul.f32 %v2492, %v5180
        %v5245 = vmul.f32 %v2493, %v5181
        %v5246 = vmul.f32 %v2494, %v5182
        %v5247 = vmul.f32 %v2495, %v5183
        %v5248 = vmul.f32 %v2496, %v5184
        %v5249 = vmul.f32 %v2497, %v5185
        %v5250 = vmul.f32 %v2498, %v5186
        %v5251 = vmul.f32 %v2499, %v5187
        %v5252 = vmul.f32 %v2500, %v5188
        %v5253 = vmul.f32 %v2501, %v5189
        %v5254 = vmul.f32 %v2502, %v5190
        %v5255 = vmul.f32 %v2503, %v5191
        %v5256 = vmul.f32 %v2504, %v5192
        %v5257 = vmul.f32 %v2505, %v5193
        %v5258 = vmul.f32 %v2506, %v5194
        %v5259 = vpack.c.bf16 %v5197, %v5195
        %v5260 = vpack.c.bf16 %v5198, %v5196
        %v5261 = vpack.c.bf16 %v5201, %v5199
        %v5262 = vpack.c.bf16 %v5202, %v5200
        %v5263 = vpack.c.bf16 %v5205, %v5203
        %v5264 = vpack.c.bf16 %v5206, %v5204
        %v5265 = vpack.c.bf16 %v5209, %v5207
        %v5266 = vpack.c.bf16 %v5210, %v5208
        %v5267 = vpack.c.bf16 %v5213, %v5211
        %v5268 = vpack.c.bf16 %v5214, %v5212
        %v5269 = vpack.c.bf16 %v5217, %v5215
        %v5270 = vpack.c.bf16 %v5218, %v5216
        %v5271 = vpack.c.bf16 %v5221, %v5219
        %v5272 = vpack.c.bf16 %v5222, %v5220
        %v5273 = vpack.c.bf16 %v5225, %v5223
        %v5274 = vpack.c.bf16 %v5226, %v5224
        %v5275 = vpack.c.bf16 %v5229, %v5227
        %v5276 = vpack.c.bf16 %v5230, %v5228
        %v5277 = vpack.c.bf16 %v5233, %v5231
        %v5278 = vpack.c.bf16 %v5234, %v5232
        %v5279 = vpack.c.bf16 %v5237, %v5235
        %v5280 = vpack.c.bf16 %v5238, %v5236
        %v5281 = vpack.c.bf16 %v5241, %v5239
        %v5282 = vpack.c.bf16 %v5242, %v5240
        %v5283 = vpack.c.bf16 %v5245, %v5243
        %v5284 = vpack.c.bf16 %v5246, %v5244
        %v5285 = vpack.c.bf16 %v5249, %v5247
        %v5286 = vpack.c.bf16 %v5250, %v5248
        %v5287 = vpack.c.bf16 %v5253, %v5251
        %v5288 = vpack.c.bf16 %v5254, %v5252
        %v5289 = vpack.c.bf16 %v5257, %v5255
        %v5290 = vpack.c.bf16 %v5258, %v5256
        %v5291 = vld [vmem:[#allocation12] sm:$0xf]
        %v5292 = vld [vmem:[#allocation12 + $0x4] sm:$0xf]
        %v5293 = vld [vmem:[#allocation12 + $0x8] sm:$0xf]
        %v5294 = vld [vmem:[#allocation12 + $0xc] sm:$0xf]
        %v5295 = vld [vmem:[#allocation12 + $0x10] sm:$0xf]
        %v5296 = vld [vmem:[#allocation12 + $0x14] sm:$0xf]
        %v5297 = vld [vmem:[#allocation12 + $0x18] sm:$0xf]
        %v5298 = vld [vmem:[#allocation12 + $0x1c] sm:$0xf]
        %v5299 = vld [vmem:[#allocation12 + $0x20] sm:$0xf]
        %v5300 = vld [vmem:[#allocation12 + $0x24] sm:$0xf]
        %v5301 = vld [vmem:[#allocation12 + $0x28] sm:$0xf]
        %v5302 = vld [vmem:[#allocation12 + $0x2c] sm:$0xf]
        %v5303 = vld [vmem:[#allocation12 + $0x30] sm:$0xf]
        %v5304 = vld [vmem:[#allocation12 + $0x34] sm:$0xf]
        %v5305 = vld [vmem:[#allocation12 + $0x38] sm:$0xf]
        %v5306 = vld [vmem:[#allocation12 + $0x3c] sm:$0xf]
        %v5307 = vld [vmem:[#allocation12 + $0x40] sm:$0xf]
        %v5308 = vld [vmem:[#allocation12 + $0x44] sm:$0xf]
        %v5309 = vld [vmem:[#allocation12 + $0x48] sm:$0xf]
        %v5310 = vld [vmem:[#allocation12 + $0x4c] sm:$0xf]
        %v5311 = vld [vmem:[#allocation12 + $0x50] sm:$0xf]
        %v5312 = vld [vmem:[#allocation12 + $0x54] sm:$0xf]
        %v5313 = vld [vmem:[#allocation12 + $0x58] sm:$0xf]
        %v5314 = vld [vmem:[#allocation12 + $0x5c] sm:$0xf]
        %v5315 = vld [vmem:[#allocation12 + $0x60] sm:$0xf]
        %v5316 = vld [vmem:[#allocation12 + $0x64] sm:$0xf]
        %v5317 = vld [vmem:[#allocation12 + $0x68] sm:$0xf]
        %v5318 = vld [vmem:[#allocation12 + $0x6c] sm:$0xf]
        %v5319 = vld [vmem:[#allocation12 + $0x70] sm:$0xf]
        %v5320 = vld [vmem:[#allocation12 + $0x74] sm:$0xf]
        %v5321 = vld [vmem:[#allocation12 + $0x78] sm:$0xf]
        %v5322 = vld [vmem:[#allocation12 + $0x7c] sm:$0xf]
        %v5323 = vld [vmem:[#allocation11 + $0x8] sm:$0xf]
        %v5324 = vld [vmem:[#allocation11 + $0x14] sm:$0xf]
        %v5325 = vld [vmem:[#allocation11 + $0x20] sm:$0xf]
        %v5326 = vld [vmem:[#allocation11 + $0x2c] sm:$0xf]
        %v5327 = vld [vmem:[#allocation11 + $0x38] sm:$0xf]
        %v5328 = vld [vmem:[#allocation11 + $0x44] sm:$0xf]
        %v5329 = vld [vmem:[#allocation11 + $0x50] sm:$0xf]
        %v5330 = vld [vmem:[#allocation11 + $0x5c] sm:$0xf]
        %v5331 = vld [vmem:[#allocation11 + $0x68] sm:$0xf]
        %v5332 = vld [vmem:[#allocation11 + $0x74] sm:$0xf]
        %v5333 = vld [vmem:[#allocation11 + $0x80] sm:$0xf]
        %v5334 = vld [vmem:[#allocation11 + $0x8c] sm:$0xf]
        %v5335 = vld [vmem:[#allocation11 + $0x98] sm:$0xf]
        %v5336 = vld [vmem:[#allocation11 + $0xa4] sm:$0xf]
        %v5337 = vld [vmem:[#allocation11 + $0xb0] sm:$0xf]
        %v5338 = vld [vmem:[#allocation11 + $0xbc] sm:$0xf]
        %v5339 = vld [vmem:[%s7 + $0x2] sm:$0x1]
        %v5341 = vperm.slane %v5339, 0
        %v5359 = vunpack.c.l.b16 %v5323
        %v5360 = vunpack.c.l.b16 %v5324
        %v5361 = vunpack.c.l.b16 %v5325
        %v5362 = vunpack.c.l.b16 %v5326
        %v5363 = vunpack.c.l.b16 %v5327
        %v5364 = vunpack.c.l.b16 %v5328
        %v5365 = vunpack.c.l.b16 %v5329
        %v5366 = vunpack.c.l.b16 %v5330
        %v5367 = vunpack.c.l.b16 %v5331
        %v5368 = vunpack.c.l.b16 %v5332
        %v5369 = vunpack.c.l.b16 %v5333
        %v5370 = vunpack.c.l.b16 %v5334
        %v5371 = vunpack.c.l.b16 %v5335
        %v5372 = vunpack.c.l.b16 %v5336
        %v5373 = vunpack.c.l.b16 %v5337
        %v5374 = vunpack.c.l.b16 %v5338
        %v5375 = vpack.c.b16 %v5360, %v5359
        %v5376 = vpack.c.b16 %v5362, %v5361
        %v5377 = vpack.c.b16 %v5364, %v5363
        %v5378 = vpack.c.b16 %v5366, %v5365
        %v5379 = vpack.c.b16 %v5368, %v5367
        %v5380 = vpack.c.b16 %v5370, %v5369
        %v5381 = vpack.c.b16 %v5372, %v5371
        %v5382 = vpack.c.b16 %v5374, %v5373
        %5391 = vmatpush.bf16.msra.mxu0 %v5382
        %5392 = vmatpush.bf16.msra.mxu0 %v5381
        %5393 = vmatpush.bf16.msra.mxu0 %v5380
        %5394 = vmatpush.bf16.msra.mxu0 %v5379
        %5395 = vmatpush.bf16.msra.mxu0 %v5378
        %5396 = vmatpush.bf16.msra.mxu0 %v5377
        %5397 = vmatpush.bf16.msra.mxu0 %v5376
        %5398 = vmatpush.bf16.msra.mxu0 %v5375
        %5399 = vmatmul.bf16.gmra.mxu0 %v2147
        %v5400 = vpop.f32.mrf.mxu0
        %v5401 = vadd.f32 %v5341, %v5400
        %v5402 = vpop.f32.mrf.mxu0
        %v5403 = vadd.f32 %v5341, %v5402
        %5404 = vmatmul.bf16.gmra.mxu0 %v2148
        %v5405 = vpop.f32.mrf.mxu0
        %v5406 = vadd.f32 %v5341, %v5405
        %v5407 = vpop.f32.mrf.mxu0
        %v5408 = vadd.f32 %v5341, %v5407
        %5409 = vmatmul.bf16.gmra.mxu0 %v2149
        %v5410 = vpop.f32.mrf.mxu0
        %v5411 = vadd.f32 %v5341, %v5410
        %v5412 = vpop.f32.mrf.mxu0
        %v5413 = vadd.f32 %v5341, %v5412
        %5414 = vmatmul.bf16.gmra.mxu0 %v2150
        %v5415 = vpop.f32.mrf.mxu0
        %v5416 = vadd.f32 %v5341, %v5415
        %v5417 = vpop.f32.mrf.mxu0
        %v5418 = vadd.f32 %v5341, %v5417
        %5419 = vmatmul.bf16.gmra.mxu0 %v2151
        %v5420 = vpop.f32.mrf.mxu0
        %v5421 = vadd.f32 %v5341, %v5420
        %v5422 = vpop.f32.mrf.mxu0
        %v5423 = vadd.f32 %v5341, %v5422
        %5424 = vmatmul.bf16.gmra.mxu0 %v2152
        %v5425 = vpop.f32.mrf.mxu0
        %v5426 = vadd.f32 %v5341, %v5425
        %v5427 = vpop.f32.mrf.mxu0
        %v5428 = vadd.f32 %v5341, %v5427
        %5429 = vmatmul.bf16.gmra.mxu0 %v2153
        %v5430 = vpop.f32.mrf.mxu0
        %v5431 = vadd.f32 %v5341, %v5430
        %v5432 = vpop.f32.mrf.mxu0
        %v5433 = vadd.f32 %v5341, %v5432
        %5434 = vmatmul.bf16.gmra.mxu0 %v2154
        %v5435 = vpop.f32.mrf.mxu0
        %v5436 = vadd.f32 %v5341, %v5435
        %v5437 = vpop.f32.mrf.mxu0
        %v5438 = vadd.f32 %v5341, %v5437
        %5439 = vmatmul.bf16.gmra.mxu0 %v2155
        %v5440 = vpop.f32.mrf.mxu0
        %v5441 = vadd.f32 %v5341, %v5440
        %v5442 = vpop.f32.mrf.mxu0
        %v5443 = vadd.f32 %v5341, %v5442
        %5444 = vmatmul.bf16.gmra.mxu0 %v2156
        %v5445 = vpop.f32.mrf.mxu0
        %v5446 = vadd.f32 %v5341, %v5445
        %v5447 = vpop.f32.mrf.mxu0
        %v5448 = vadd.f32 %v5341, %v5447
        %5449 = vmatmul.bf16.gmra.mxu0 %v2157
        %v5450 = vpop.f32.mrf.mxu0
        %v5451 = vadd.f32 %v5341, %v5450
        %v5452 = vpop.f32.mrf.mxu0
        %v5453 = vadd.f32 %v5341, %v5452
        %5454 = vmatmul.bf16.gmra.mxu0 %v2158
        %v5455 = vpop.f32.mrf.mxu0
        %v5456 = vadd.f32 %v5341, %v5455
        %v5457 = vpop.f32.mrf.mxu0
        %v5458 = vadd.f32 %v5341, %v5457
        %5459 = vmatmul.bf16.gmra.mxu0 %v2159
        %v5460 = vpop.f32.mrf.mxu0
        %v5461 = vadd.f32 %v5341, %v5460
        %v5462 = vpop.f32.mrf.mxu0
        %v5463 = vadd.f32 %v5341, %v5462
        %5464 = vmatmul.bf16.gmra.mxu0 %v2160
        %v5465 = vpop.f32.mrf.mxu0
        %v5466 = vadd.f32 %v5341, %v5465
        %v5467 = vpop.f32.mrf.mxu0
        %v5468 = vadd.f32 %v5341, %v5467
        %5469 = vmatmul.bf16.gmra.mxu0 %v2161
        %v5470 = vpop.f32.mrf.mxu0
        %v5471 = vadd.f32 %v5341, %v5470
        %v5472 = vpop.f32.mrf.mxu0
        %v5473 = vadd.f32 %v5341, %v5472
        %5474 = vmatmul.bf16.gmra.mxu0 %v2162
        %v5475 = vpop.f32.mrf.mxu0
        %v5476 = vadd.f32 %v5341, %v5475
        %v5477 = vpop.f32.mrf.mxu0
        %v5478 = vadd.f32 %v5341, %v5477
        %5479 = vdwg.mxu0
        %v5480 = vmul.f32 %v5401, 0.5
        %v5481 = vmul.f32 %v5403, 0.5
        %v5482 = vmul.f32 %v5406, 0.5
        %v5483 = vmul.f32 %v5408, 0.5
        %v5484 = vmul.f32 %v5411, 0.5
        %v5485 = vmul.f32 %v5413, 0.5
        %v5486 = vmul.f32 %v5416, 0.5
        %v5487 = vmul.f32 %v5418, 0.5
        %v5488 = vmul.f32 %v5421, 0.5
        %v5489 = vmul.f32 %v5423, 0.5
        %v5490 = vmul.f32 %v5426, 0.5
        %v5491 = vmul.f32 %v5428, 0.5
        %v5492 = vmul.f32 %v5431, 0.5
        %v5493 = vmul.f32 %v5433, 0.5
        %v5494 = vmul.f32 %v5436, 0.5
        %v5495 = vmul.f32 %v5438, 0.5
        %v5496 = vmul.f32 %v5441, 0.5
        %v5497 = vmul.f32 %v5443, 0.5
        %v5498 = vmul.f32 %v5446, 0.5
        %v5499 = vmul.f32 %v5448, 0.5
        %v5500 = vmul.f32 %v5451, 0.5
        %v5501 = vmul.f32 %v5453, 0.5
        %v5502 = vmul.f32 %v5456, 0.5
        %v5503 = vmul.f32 %v5458, 0.5
        %v5504 = vmul.f32 %v5461, 0.5
        %v5505 = vmul.f32 %v5463, 0.5
        %v5506 = vmul.f32 %v5466, 0.5
        %v5507 = vmul.f32 %v5468, 0.5
        %v5508 = vmul.f32 %v5471, 0.5
        %v5509 = vmul.f32 %v5473, 0.5
        %v5510 = vmul.f32 %v5476, 0.5
        %v5511 = vmul.f32 %v5478, 0.5
        %v5512 = vmul.f32 %v5401, 0.70710677
        %v5513 = vmul.f32 %v5403, 0.70710677
        %v5514 = vmul.f32 %v5406, 0.70710677
        %v5515 = vmul.f32 %v5408, 0.70710677
        %v5516 = vmul.f32 %v5411, 0.70710677
        %v5517 = vmul.f32 %v5413, 0.70710677
        %v5518 = vmul.f32 %v5416, 0.70710677
        %v5519 = vmul.f32 %v5418, 0.70710677
        %v5520 = vmul.f32 %v5421, 0.70710677
        %v5521 = vmul.f32 %v5423, 0.70710677
        %v5522 = vmul.f32 %v5426, 0.70710677
        %v5523 = vmul.f32 %v5428, 0.70710677
        %v5524 = vmul.f32 %v5431, 0.70710677
        %v5525 = vmul.f32 %v5433, 0.70710677
        %v5526 = vmul.f32 %v5436, 0.70710677
        %v5527 = vmul.f32 %v5438, 0.70710677
        %v5528 = vmul.f32 %v5441, 0.70710677
        %v5529 = vmul.f32 %v5443, 0.70710677
        %v5530 = vmul.f32 %v5446, 0.70710677
        %v5531 = vmul.f32 %v5448, 0.70710677
        %v5532 = vmul.f32 %v5451, 0.70710677
        %v5533 = vmul.f32 %v5453, 0.70710677
        %v5534 = vmul.f32 %v5456, 0.70710677
        %v5535 = vmul.f32 %v5458, 0.70710677
        %v5536 = vmul.f32 %v5461, 0.70710677
        %v5537 = vmul.f32 %v5463, 0.70710677
        %v5538 = vmul.f32 %v5466, 0.70710677
        %v5539 = vmul.f32 %v5468, 0.70710677
        %v5540 = vmul.f32 %v5471, 0.70710677
        %v5541 = vmul.f32 %v5473, 0.70710677
        %v5542 = vmul.f32 %v5476, 0.70710677
        %v5543 = vmul.f32 %v5478, 0.70710677
        %v5544 = vmul.f32 %v5512, %v5512
        %v5545 = vmin.f32 16.0, %v5544
        %v5546 = vmul.f32 %v5545, 2.1237322e-06
        %v5547 = vadd.f32 %v5546, 0.00028619796
        %v5548 = vmul.f32 %v5545, %v5547
        %v5549 = vadd.f32 %v5548, 0.0036580483
        %v5550 = vmul.f32 %v5545, %v5549
        %v5551 = vadd.f32 %v5550, 0.05243302
        %v5552 = vmul.f32 %v5545, %v5551
        %v5553 = vadd.f32 %v5552, 0.18741608
        %v5554 = vmul.f32 %v5545, %v5553
        %v5555 = vadd.f32 %v5554, 1.1283791
        %v5556 = vmul.f32 %v5512, %v5555
        %v5557 = vmul.f32 %v5545, 3.8918573e-05
        %v5558 = vadd.f32 %v5557, 0.001143296
        %v5559 = vmul.f32 %v5545, %v5558
        %v5560 = vadd.f32 %v5559, 0.014752088
        %v5561 = vmul.f32 %v5545, %v5560
        %v5562 = vadd.f32 %v5561, 0.112945676
        %v5563 = vmul.f32 %v5545, %v5562
        %v5564 = vadd.f32 %v5563, 0.4994258
        %v5565 = vmul.f32 %v5545, %v5564
        %v5566 = vadd.f32 %v5565, 1.0
        %v5567 = vrcp.pop %v5566
        %v5568 = vmul.f32 %v5566, %v5567
        %v5569 = vsub.f32 1.0, %v5568
        %v5570 = vmul.f32 %v5567, %v5569
        %v5571 = vadd.f32 %v5567, %v5570
        %vm5572 = vweird.f32 %v5566
        %vm5573 = vweird.f32 %v5567
        %vm5574 = vmor %vm5572, %vm5573
        %v5575 = vsel %vm5574, %v5567, %v5571
        %v5576 = vand.u32 2147483647, %v5566
        %vm5577 = vcmp.eq.f32.partialorder %v5576, 8.507059e+37
        %v5578 = vand.u32 %v5566, 2147483648
        %v5579 = vor.u32 1.1754944e-38, %v5578
        %v5580 = vsel %vm5577, %v5579, %v5575
        %v5581 = vmul.f32 %v5556, %v5580
        %v5582 = vmin.f32 %v5581, 1.0
        %v5583 = vmax.f32 %v5582, -1.0
        %v5584 = vmul.f32 %v5513, %v5513
        %v5585 = vmin.f32 16.0, %v5584
        %v5586 = vmul.f32 %v5585, 2.1237322e-06
        %v5587 = vadd.f32 %v5586, 0.00028619796
        %v5588 = vmul.f32 %v5585, %v5587
        %v5589 = vadd.f32 %v5588, 0.0036580483
        %v5590 = vmul.f32 %v5585, %v5589
        %v5591 = vadd.f32 %v5590, 0.05243302
        %v5592 = vmul.f32 %v5585, %v5591
        %v5593 = vadd.f32 %v5592, 0.18741608
        %v5594 = vmul.f32 %v5585, %v5593
        %v5595 = vadd.f32 %v5594, 1.1283791
        %v5596 = vmul.f32 %v5513, %v5595
        %v5597 = vmul.f32 %v5585, 3.8918573e-05
        %v5598 = vadd.f32 %v5597, 0.001143296
        %v5599 = vmul.f32 %v5585, %v5598
        %v5600 = vadd.f32 %v5599, 0.014752088
        %v5601 = vmul.f32 %v5585, %v5600
        %v5602 = vadd.f32 %v5601, 0.112945676
        %v5603 = vmul.f32 %v5585, %v5602
        %v5604 = vadd.f32 %v5603, 0.4994258
        %v5605 = vmul.f32 %v5585, %v5604
        %v5606 = vadd.f32 %v5605, 1.0
        %v5607 = vrcp.pop %v5606
        %v5608 = vmul.f32 %v5606, %v5607
        %v5609 = vsub.f32 1.0, %v5608
        %v5610 = vmul.f32 %v5607, %v5609
        %v5611 = vadd.f32 %v5607, %v5610
        %vm5612 = vweird.f32 %v5606
        %vm5613 = vweird.f32 %v5607
        %vm5614 = vmor %vm5612, %vm5613
        %v5615 = vsel %vm5614, %v5607, %v5611
        %v5616 = vand.u32 2147483647, %v5606
        %vm5617 = vcmp.eq.f32.partialorder %v5616, 8.507059e+37
        %v5618 = vand.u32 %v5606, 2147483648
        %v5619 = vor.u32 1.1754944e-38, %v5618
        %v5620 = vsel %vm5617, %v5619, %v5615
        %v5621 = vmul.f32 %v5596, %v5620
        %v5622 = vmin.f32 %v5621, 1.0
        %v5623 = vmax.f32 %v5622, -1.0
        %v5624 = vmul.f32 %v5514, %v5514
        %v5625 = vmin.f32 16.0, %v5624
        %v5626 = vmul.f32 %v5625, 2.1237322e-06
        %v5627 = vadd.f32 %v5626, 0.00028619796
        %v5628 = vmul.f32 %v5625, %v5627
        %v5629 = vadd.f32 %v5628, 0.0036580483
        %v5630 = vmul.f32 %v5625, %v5629
        %v5631 = vadd.f32 %v5630, 0.05243302
        %v5632 = vmul.f32 %v5625, %v5631
        %v5633 = vadd.f32 %v5632, 0.18741608
        %v5634 = vmul.f32 %v5625, %v5633
        %v5635 = vadd.f32 %v5634, 1.1283791
        %v5636 = vmul.f32 %v5514, %v5635
        %v5637 = vmul.f32 %v5625, 3.8918573e-05
        %v5638 = vadd.f32 %v5637, 0.001143296
        %v5639 = vmul.f32 %v5625, %v5638
        %v5640 = vadd.f32 %v5639, 0.014752088
        %v5641 = vmul.f32 %v5625, %v5640
        %v5642 = vadd.f32 %v5641, 0.112945676
        %v5643 = vmul.f32 %v5625, %v5642
        %v5644 = vadd.f32 %v5643, 0.4994258
        %v5645 = vmul.f32 %v5625, %v5644
        %v5646 = vadd.f32 %v5645, 1.0
        %v5647 = vrcp.pop %v5646
        %v5648 = vmul.f32 %v5646, %v5647
        %v5649 = vsub.f32 1.0, %v5648
        %v5650 = vmul.f32 %v5647, %v5649
        %v5651 = vadd.f32 %v5647, %v5650
        %vm5652 = vweird.f32 %v5646
        %vm5653 = vweird.f32 %v5647
        %vm5654 = vmor %vm5652, %vm5653
        %v5655 = vsel %vm5654, %v5647, %v5651
        %v5656 = vand.u32 2147483647, %v5646
        %vm5657 = vcmp.eq.f32.partialorder %v5656, 8.507059e+37
        %v5658 = vand.u32 %v5646, 2147483648
        %v5659 = vor.u32 1.1754944e-38, %v5658
        %v5660 = vsel %vm5657, %v5659, %v5655
        %v5661 = vmul.f32 %v5636, %v5660
        %v5662 = vmin.f32 %v5661, 1.0
        %v5663 = vmax.f32 %v5662, -1.0
        %v5664 = vmul.f32 %v5515, %v5515
        %v5665 = vmin.f32 16.0, %v5664
        %v5666 = vmul.f32 %v5665, 2.1237322e-06
        %v5667 = vadd.f32 %v5666, 0.00028619796
        %v5668 = vmul.f32 %v5665, %v5667
        %v5669 = vadd.f32 %v5668, 0.0036580483
        %v5670 = vmul.f32 %v5665, %v5669
        %v5671 = vadd.f32 %v5670, 0.05243302
        %v5672 = vmul.f32 %v5665, %v5671
        %v5673 = vadd.f32 %v5672, 0.18741608
        %v5674 = vmul.f32 %v5665, %v5673
        %v5675 = vadd.f32 %v5674, 1.1283791
        %v5676 = vmul.f32 %v5515, %v5675
        %v5677 = vmul.f32 %v5665, 3.8918573e-05
        %v5678 = vadd.f32 %v5677, 0.001143296
        %v5679 = vmul.f32 %v5665, %v5678
        %v5680 = vadd.f32 %v5679, 0.014752088
        %v5681 = vmul.f32 %v5665, %v5680
        %v5682 = vadd.f32 %v5681, 0.112945676
        %v5683 = vmul.f32 %v5665, %v5682
        %v5684 = vadd.f32 %v5683, 0.4994258
        %v5685 = vmul.f32 %v5665, %v5684
        %v5686 = vadd.f32 %v5685, 1.0
        %v5687 = vrcp.pop %v5686
        %v5688 = vmul.f32 %v5686, %v5687
        %v5689 = vsub.f32 1.0, %v5688
        %v5690 = vmul.f32 %v5687, %v5689
        %v5691 = vadd.f32 %v5687, %v5690
        %vm5692 = vweird.f32 %v5686
        %vm5693 = vweird.f32 %v5687
        %vm5694 = vmor %vm5692, %vm5693
        %v5695 = vsel %vm5694, %v5687, %v5691
        %v5696 = vand.u32 2147483647, %v5686
        %vm5697 = vcmp.eq.f32.partialorder %v5696, 8.507059e+37
        %v5698 = vand.u32 %v5686, 2147483648
        %v5699 = vor.u32 1.1754944e-38, %v5698
        %v5700 = vsel %vm5697, %v5699, %v5695
        %v5701 = vmul.f32 %v5676, %v5700
        %v5702 = vmin.f32 %v5701, 1.0
        %v5703 = vmax.f32 %v5702, -1.0
        %v5704 = vmul.f32 %v5516, %v5516
        %v5705 = vmin.f32 16.0, %v5704
        %v5706 = vmul.f32 %v5705, 2.1237322e-06
        %v5707 = vadd.f32 %v5706, 0.00028619796
        %v5708 = vmul.f32 %v5705, %v5707
        %v5709 = vadd.f32 %v5708, 0.0036580483
        %v5710 = vmul.f32 %v5705, %v5709
        %v5711 = vadd.f32 %v5710, 0.05243302
        %v5712 = vmul.f32 %v5705, %v5711
        %v5713 = vadd.f32 %v5712, 0.18741608
        %v5714 = vmul.f32 %v5705, %v5713
        %v5715 = vadd.f32 %v5714, 1.1283791
        %v5716 = vmul.f32 %v5516, %v5715
        %v5717 = vmul.f32 %v5705, 3.8918573e-05
        %v5718 = vadd.f32 %v5717, 0.001143296
        %v5719 = vmul.f32 %v5705, %v5718
        %v5720 = vadd.f32 %v5719, 0.014752088
        %v5721 = vmul.f32 %v5705, %v5720
        %v5722 = vadd.f32 %v5721, 0.112945676
        %v5723 = vmul.f32 %v5705, %v5722
        %v5724 = vadd.f32 %v5723, 0.4994258
        %v5725 = vmul.f32 %v5705, %v5724
        %v5726 = vadd.f32 %v5725, 1.0
        %v5727 = vrcp.pop %v5726
        %v5728 = vmul.f32 %v5726, %v5727
        %v5729 = vsub.f32 1.0, %v5728
        %v5730 = vmul.f32 %v5727, %v5729
        %v5731 = vadd.f32 %v5727, %v5730
        %vm5732 = vweird.f32 %v5726
        %vm5733 = vweird.f32 %v5727
        %vm5734 = vmor %vm5732, %vm5733
        %v5735 = vsel %vm5734, %v5727, %v5731
        %v5736 = vand.u32 2147483647, %v5726
        %vm5737 = vcmp.eq.f32.partialorder %v5736, 8.507059e+37
        %v5738 = vand.u32 %v5726, 2147483648
        %v5739 = vor.u32 1.1754944e-38, %v5738
        %v5740 = vsel %vm5737, %v5739, %v5735
        %v5741 = vmul.f32 %v5716, %v5740
        %v5742 = vmin.f32 %v5741, 1.0
        %v5743 = vmax.f32 %v5742, -1.0
        %v5744 = vmul.f32 %v5517, %v5517
        %v5745 = vmin.f32 16.0, %v5744
        %v5746 = vmul.f32 %v5745, 2.1237322e-06
        %v5747 = vadd.f32 %v5746, 0.00028619796
        %v5748 = vmul.f32 %v5745, %v5747
        %v5749 = vadd.f32 %v5748, 0.0036580483
        %v5750 = vmul.f32 %v5745, %v5749
        %v5751 = vadd.f32 %v5750, 0.05243302
        %v5752 = vmul.f32 %v5745, %v5751
        %v5753 = vadd.f32 %v5752, 0.18741608
        %v5754 = vmul.f32 %v5745, %v5753
        %v5755 = vadd.f32 %v5754, 1.1283791
        %v5756 = vmul.f32 %v5517, %v5755
        %v5757 = vmul.f32 %v5745, 3.8918573e-05
        %v5758 = vadd.f32 %v5757, 0.001143296
        %v5759 = vmul.f32 %v5745, %v5758
        %v5760 = vadd.f32 %v5759, 0.014752088
        %v5761 = vmul.f32 %v5745, %v5760
        %v5762 = vadd.f32 %v5761, 0.112945676
        %v5763 = vmul.f32 %v5745, %v5762
        %v5764 = vadd.f32 %v5763, 0.4994258
        %v5765 = vmul.f32 %v5745, %v5764
        %v5766 = vadd.f32 %v5765, 1.0
        %v5767 = vrcp.pop %v5766
        %v5768 = vmul.f32 %v5766, %v5767
        %v5769 = vsub.f32 1.0, %v5768
        %v5770 = vmul.f32 %v5767, %v5769
        %v5771 = vadd.f32 %v5767, %v5770
        %vm5772 = vweird.f32 %v5766
        %vm5773 = vweird.f32 %v5767
        %vm5774 = vmor %vm5772, %vm5773
        %v5775 = vsel %vm5774, %v5767, %v5771
        %v5776 = vand.u32 2147483647, %v5766
        %vm5777 = vcmp.eq.f32.partialorder %v5776, 8.507059e+37
        %v5778 = vand.u32 %v5766, 2147483648
        %v5779 = vor.u32 1.1754944e-38, %v5778
        %v5780 = vsel %vm5777, %v5779, %v5775
        %v5781 = vmul.f32 %v5756, %v5780
        %v5782 = vmin.f32 %v5781, 1.0
        %v5783 = vmax.f32 %v5782, -1.0
        %v5784 = vmul.f32 %v5518, %v5518
        %v5785 = vmin.f32 16.0, %v5784
        %v5786 = vmul.f32 %v5785, 2.1237322e-06
        %v5787 = vadd.f32 %v5786, 0.00028619796
        %v5788 = vmul.f32 %v5785, %v5787
        %v5789 = vadd.f32 %v5788, 0.0036580483
        %v5790 = vmul.f32 %v5785, %v5789
        %v5791 = vadd.f32 %v5790, 0.05243302
        %v5792 = vmul.f32 %v5785, %v5791
        %v5793 = vadd.f32 %v5792, 0.18741608
        %v5794 = vmul.f32 %v5785, %v5793
        %v5795 = vadd.f32 %v5794, 1.1283791
        %v5796 = vmul.f32 %v5518, %v5795
        %v5797 = vmul.f32 %v5785, 3.8918573e-05
        %v5798 = vadd.f32 %v5797, 0.001143296
        %v5799 = vmul.f32 %v5785, %v5798
        %v5800 = vadd.f32 %v5799, 0.014752088
        %v5801 = vmul.f32 %v5785, %v5800
        %v5802 = vadd.f32 %v5801, 0.112945676
        %v5803 = vmul.f32 %v5785, %v5802
        %v5804 = vadd.f32 %v5803, 0.4994258
        %v5805 = vmul.f32 %v5785, %v5804
        %v5806 = vadd.f32 %v5805, 1.0
        %v5807 = vrcp.pop %v5806
        %v5808 = vmul.f32 %v5806, %v5807
        %v5809 = vsub.f32 1.0, %v5808
        %v5810 = vmul.f32 %v5807, %v5809
        %v5811 = vadd.f32 %v5807, %v5810
        %vm5812 = vweird.f32 %v5806
        %vm5813 = vweird.f32 %v5807
        %vm5814 = vmor %vm5812, %vm5813
        %v5815 = vsel %vm5814, %v5807, %v5811
        %v5816 = vand.u32 2147483647, %v5806
        %vm5817 = vcmp.eq.f32.partialorder %v5816, 8.507059e+37
        %v5818 = vand.u32 %v5806, 2147483648
        %v5819 = vor.u32 1.1754944e-38, %v5818
        %v5820 = vsel %vm5817, %v5819, %v5815
        %v5821 = vmul.f32 %v5796, %v5820
        %v5822 = vmin.f32 %v5821, 1.0
        %v5823 = vmax.f32 %v5822, -1.0
        %v5824 = vmul.f32 %v5519, %v5519
        %v5825 = vmin.f32 16.0, %v5824
        %v5826 = vmul.f32 %v5825, 2.1237322e-06
        %v5827 = vadd.f32 %v5826, 0.00028619796
        %v5828 = vmul.f32 %v5825, %v5827
        %v5829 = vadd.f32 %v5828, 0.0036580483
        %v5830 = vmul.f32 %v5825, %v5829
        %v5831 = vadd.f32 %v5830, 0.05243302
        %v5832 = vmul.f32 %v5825, %v5831
        %v5833 = vadd.f32 %v5832, 0.18741608
        %v5834 = vmul.f32 %v5825, %v5833
        %v5835 = vadd.f32 %v5834, 1.1283791
        %v5836 = vmul.f32 %v5519, %v5835
        %v5837 = vmul.f32 %v5825, 3.8918573e-05
        %v5838 = vadd.f32 %v5837, 0.001143296
        %v5839 = vmul.f32 %v5825, %v5838
        %v5840 = vadd.f32 %v5839, 0.014752088
        %v5841 = vmul.f32 %v5825, %v5840
        %v5842 = vadd.f32 %v5841, 0.112945676
        %v5843 = vmul.f32 %v5825, %v5842
        %v5844 = vadd.f32 %v5843, 0.4994258
        %v5845 = vmul.f32 %v5825, %v5844
        %v5846 = vadd.f32 %v5845, 1.0
        %v5847 = vrcp.pop %v5846
        %v5848 = vmul.f32 %v5846, %v5847
        %v5849 = vsub.f32 1.0, %v5848
        %v5850 = vmul.f32 %v5847, %v5849
        %v5851 = vadd.f32 %v5847, %v5850
        %vm5852 = vweird.f32 %v5846
        %vm5853 = vweird.f32 %v5847
        %vm5854 = vmor %vm5852, %vm5853
        %v5855 = vsel %vm5854, %v5847, %v5851
        %v5856 = vand.u32 2147483647, %v5846
        %vm5857 = vcmp.eq.f32.partialorder %v5856, 8.507059e+37
        %v5858 = vand.u32 %v5846, 2147483648
        %v5859 = vor.u32 1.1754944e-38, %v5858
        %v5860 = vsel %vm5857, %v5859, %v5855
        %v5861 = vmul.f32 %v5836, %v5860
        %v5862 = vmin.f32 %v5861, 1.0
        %v5863 = vmax.f32 %v5862, -1.0
        %v5864 = vmul.f32 %v5520, %v5520
        %v5865 = vmin.f32 16.0, %v5864
        %v5866 = vmul.f32 %v5865, 2.1237322e-06
        %v5867 = vadd.f32 %v5866, 0.00028619796
        %v5868 = vmul.f32 %v5865, %v5867
        %v5869 = vadd.f32 %v5868, 0.0036580483
        %v5870 = vmul.f32 %v5865, %v5869
        %v5871 = vadd.f32 %v5870, 0.05243302
        %v5872 = vmul.f32 %v5865, %v5871
        %v5873 = vadd.f32 %v5872, 0.18741608
        %v5874 = vmul.f32 %v5865, %v5873
        %v5875 = vadd.f32 %v5874, 1.1283791
        %v5876 = vmul.f32 %v5520, %v5875
        %v5877 = vmul.f32 %v5865, 3.8918573e-05
        %v5878 = vadd.f32 %v5877, 0.001143296
        %v5879 = vmul.f32 %v5865, %v5878
        %v5880 = vadd.f32 %v5879, 0.014752088
        %v5881 = vmul.f32 %v5865, %v5880
        %v5882 = vadd.f32 %v5881, 0.112945676
        %v5883 = vmul.f32 %v5865, %v5882
        %v5884 = vadd.f32 %v5883, 0.4994258
        %v5885 = vmul.f32 %v5865, %v5884
        %v5886 = vadd.f32 %v5885, 1.0
        %v5887 = vrcp.pop %v5886
        %v5888 = vmul.f32 %v5886, %v5887
        %v5889 = vsub.f32 1.0, %v5888
        %v5890 = vmul.f32 %v5887, %v5889
        %v5891 = vadd.f32 %v5887, %v5890
        %vm5892 = vweird.f32 %v5886
        %vm5893 = vweird.f32 %v5887
        %vm5894 = vmor %vm5892, %vm5893
        %v5895 = vsel %vm5894, %v5887, %v5891
        %v5896 = vand.u32 2147483647, %v5886
        %vm5897 = vcmp.eq.f32.partialorder %v5896, 8.507059e+37
        %v5898 = vand.u32 %v5886, 2147483648
        %v5899 = vor.u32 1.1754944e-38, %v5898
        %v5900 = vsel %vm5897, %v5899, %v5895
        %v5901 = vmul.f32 %v5876, %v5900
        %v5902 = vmin.f32 %v5901, 1.0
        %v5903 = vmax.f32 %v5902, -1.0
        %v5904 = vmul.f32 %v5521, %v5521
        %v5905 = vmin.f32 16.0, %v5904
        %v5906 = vmul.f32 %v5905, 2.1237322e-06
        %v5907 = vadd.f32 %v5906, 0.00028619796
        %v5908 = vmul.f32 %v5905, %v5907
        %v5909 = vadd.f32 %v5908, 0.0036580483
        %v5910 = vmul.f32 %v5905, %v5909
        %v5911 = vadd.f32 %v5910, 0.05243302
        %v5912 = vmul.f32 %v5905, %v5911
        %v5913 = vadd.f32 %v5912, 0.18741608
        %v5914 = vmul.f32 %v5905, %v5913
        %v5915 = vadd.f32 %v5914, 1.1283791
        %v5916 = vmul.f32 %v5521, %v5915
        %v5917 = vmul.f32 %v5905, 3.8918573e-05
        %v5918 = vadd.f32 %v5917, 0.001143296
        %v5919 = vmul.f32 %v5905, %v5918
        %v5920 = vadd.f32 %v5919, 0.014752088
        %v5921 = vmul.f32 %v5905, %v5920
        %v5922 = vadd.f32 %v5921, 0.112945676
        %v5923 = vmul.f32 %v5905, %v5922
        %v5924 = vadd.f32 %v5923, 0.4994258
        %v5925 = vmul.f32 %v5905, %v5924
        %v5926 = vadd.f32 %v5925, 1.0
        %v5927 = vrcp.pop %v5926
        %v5928 = vmul.f32 %v5926, %v5927
        %v5929 = vsub.f32 1.0, %v5928
        %v5930 = vmul.f32 %v5927, %v5929
        %v5931 = vadd.f32 %v5927, %v5930
        %vm5932 = vweird.f32 %v5926
        %vm5933 = vweird.f32 %v5927
        %vm5934 = vmor %vm5932, %vm5933
        %v5935 = vsel %vm5934, %v5927, %v5931
        %v5936 = vand.u32 2147483647, %v5926
        %vm5937 = vcmp.eq.f32.partialorder %v5936, 8.507059e+37
        %v5938 = vand.u32 %v5926, 2147483648
        %v5939 = vor.u32 1.1754944e-38, %v5938
        %v5940 = vsel %vm5937, %v5939, %v5935
        %v5941 = vmul.f32 %v5916, %v5940
        %v5942 = vmin.f32 %v5941, 1.0
        %v5943 = vmax.f32 %v5942, -1.0
        %v5944 = vmul.f32 %v5522, %v5522
        %v5945 = vmin.f32 16.0, %v5944
        %v5946 = vmul.f32 %v5945, 2.1237322e-06
        %v5947 = vadd.f32 %v5946, 0.00028619796
        %v5948 = vmul.f32 %v5945, %v5947
        %v5949 = vadd.f32 %v5948, 0.0036580483
        %v5950 = vmul.f32 %v5945, %v5949
        %v5951 = vadd.f32 %v5950, 0.05243302
        %v5952 = vmul.f32 %v5945, %v5951
        %v5953 = vadd.f32 %v5952, 0.18741608
        %v5954 = vmul.f32 %v5945, %v5953
        %v5955 = vadd.f32 %v5954, 1.1283791
        %v5956 = vmul.f32 %v5522, %v5955
        %v5957 = vmul.f32 %v5945, 3.8918573e-05
        %v5958 = vadd.f32 %v5957, 0.001143296
        %v5959 = vmul.f32 %v5945, %v5958
        %v5960 = vadd.f32 %v5959, 0.014752088
        %v5961 = vmul.f32 %v5945, %v5960
        %v5962 = vadd.f32 %v5961, 0.112945676
        %v5963 = vmul.f32 %v5945, %v5962
        %v5964 = vadd.f32 %v5963, 0.4994258
        %v5965 = vmul.f32 %v5945, %v5964
        %v5966 = vadd.f32 %v5965, 1.0
        %v5967 = vrcp.pop %v5966
        %v5968 = vmul.f32 %v5966, %v5967
        %v5969 = vsub.f32 1.0, %v5968
        %v5970 = vmul.f32 %v5967, %v5969
        %v5971 = vadd.f32 %v5967, %v5970
        %vm5972 = vweird.f32 %v5966
        %vm5973 = vweird.f32 %v5967
        %vm5974 = vmor %vm5972, %vm5973
        %v5975 = vsel %vm5974, %v5967, %v5971
        %v5976 = vand.u32 2147483647, %v5966
        %vm5977 = vcmp.eq.f32.partialorder %v5976, 8.507059e+37
        %v5978 = vand.u32 %v5966, 2147483648
        %v5979 = vor.u32 1.1754944e-38, %v5978
        %v5980 = vsel %vm5977, %v5979, %v5975
        %v5981 = vmul.f32 %v5956, %v5980
        %v5982 = vmin.f32 %v5981, 1.0
        %v5983 = vmax.f32 %v5982, -1.0
        %v5984 = vmul.f32 %v5523, %v5523
        %v5985 = vmin.f32 16.0, %v5984
        %v5986 = vmul.f32 %v5985, 2.1237322e-06
        %v5987 = vadd.f32 %v5986, 0.00028619796
        %v5988 = vmul.f32 %v5985, %v5987
        %v5989 = vadd.f32 %v5988, 0.0036580483
        %v5990 = vmul.f32 %v5985, %v5989
        %v5991 = vadd.f32 %v5990, 0.05243302
        %v5992 = vmul.f32 %v5985, %v5991
        %v5993 = vadd.f32 %v5992, 0.18741608
        %v5994 = vmul.f32 %v5985, %v5993
        %v5995 = vadd.f32 %v5994, 1.1283791
        %v5996 = vmul.f32 %v5523, %v5995
        %v5997 = vmul.f32 %v5985, 3.8918573e-05
        %v5998 = vadd.f32 %v5997, 0.001143296
        %v5999 = vmul.f32 %v5985, %v5998
        %v6000 = vadd.f32 %v5999, 0.014752088
        %v6001 = vmul.f32 %v5985, %v6000
        %v6002 = vadd.f32 %v6001, 0.112945676
        %v6003 = vmul.f32 %v5985, %v6002
        %v6004 = vadd.f32 %v6003, 0.4994258
        %v6005 = vmul.f32 %v5985, %v6004
        %v6006 = vadd.f32 %v6005, 1.0
        %v6007 = vrcp.pop %v6006
        %v6008 = vmul.f32 %v6006, %v6007
        %v6009 = vsub.f32 1.0, %v6008
        %v6010 = vmul.f32 %v6007, %v6009
        %v6011 = vadd.f32 %v6007, %v6010
        %vm6012 = vweird.f32 %v6006
        %vm6013 = vweird.f32 %v6007
        %vm6014 = vmor %vm6012, %vm6013
        %v6015 = vsel %vm6014, %v6007, %v6011
        %v6016 = vand.u32 2147483647, %v6006
        %vm6017 = vcmp.eq.f32.partialorder %v6016, 8.507059e+37
        %v6018 = vand.u32 %v6006, 2147483648
        %v6019 = vor.u32 1.1754944e-38, %v6018
        %v6020 = vsel %vm6017, %v6019, %v6015
        %v6021 = vmul.f32 %v5996, %v6020
        %v6022 = vmin.f32 %v6021, 1.0
        %v6023 = vmax.f32 %v6022, -1.0
        %v6024 = vmul.f32 %v5524, %v5524
        %v6025 = vmin.f32 16.0, %v6024
        %v6026 = vmul.f32 %v6025, 2.1237322e-06
        %v6027 = vadd.f32 %v6026, 0.00028619796
        %v6028 = vmul.f32 %v6025, %v6027
        %v6029 = vadd.f32 %v6028, 0.0036580483
        %v6030 = vmul.f32 %v6025, %v6029
        %v6031 = vadd.f32 %v6030, 0.05243302
        %v6032 = vmul.f32 %v6025, %v6031
        %v6033 = vadd.f32 %v6032, 0.18741608
        %v6034 = vmul.f32 %v6025, %v6033
        %v6035 = vadd.f32 %v6034, 1.1283791
        %v6036 = vmul.f32 %v5524, %v6035
        %v6037 = vmul.f32 %v6025, 3.8918573e-05
        %v6038 = vadd.f32 %v6037, 0.001143296
        %v6039 = vmul.f32 %v6025, %v6038
        %v6040 = vadd.f32 %v6039, 0.014752088
        %v6041 = vmul.f32 %v6025, %v6040
        %v6042 = vadd.f32 %v6041, 0.112945676
        %v6043 = vmul.f32 %v6025, %v6042
        %v6044 = vadd.f32 %v6043, 0.4994258
        %v6045 = vmul.f32 %v6025, %v6044
        %v6046 = vadd.f32 %v6045, 1.0
        %v6047 = vrcp.pop %v6046
        %v6048 = vmul.f32 %v6046, %v6047
        %v6049 = vsub.f32 1.0, %v6048
        %v6050 = vmul.f32 %v6047, %v6049
        %v6051 = vadd.f32 %v6047, %v6050
        %vm6052 = vweird.f32 %v6046
        %vm6053 = vweird.f32 %v6047
        %vm6054 = vmor %vm6052, %vm6053
        %v6055 = vsel %vm6054, %v6047, %v6051
        %v6056 = vand.u32 2147483647, %v6046
        %vm6057 = vcmp.eq.f32.partialorder %v6056, 8.507059e+37
        %v6058 = vand.u32 %v6046, 2147483648
        %v6059 = vor.u32 1.1754944e-38, %v6058
        %v6060 = vsel %vm6057, %v6059, %v6055
        %v6061 = vmul.f32 %v6036, %v6060
        %v6062 = vmin.f32 %v6061, 1.0
        %v6063 = vmax.f32 %v6062, -1.0
        %v6064 = vmul.f32 %v5525, %v5525
        %v6065 = vmin.f32 16.0, %v6064
        %v6066 = vmul.f32 %v6065, 2.1237322e-06
        %v6067 = vadd.f32 %v6066, 0.00028619796
        %v6068 = vmul.f32 %v6065, %v6067
        %v6069 = vadd.f32 %v6068, 0.0036580483
        %v6070 = vmul.f32 %v6065, %v6069
        %v6071 = vadd.f32 %v6070, 0.05243302
        %v6072 = vmul.f32 %v6065, %v6071
        %v6073 = vadd.f32 %v6072, 0.18741608
        %v6074 = vmul.f32 %v6065, %v6073
        %v6075 = vadd.f32 %v6074, 1.1283791
        %v6076 = vmul.f32 %v5525, %v6075
        %v6077 = vmul.f32 %v6065, 3.8918573e-05
        %v6078 = vadd.f32 %v6077, 0.001143296
        %v6079 = vmul.f32 %v6065, %v6078
        %v6080 = vadd.f32 %v6079, 0.014752088
        %v6081 = vmul.f32 %v6065, %v6080
        %v6082 = vadd.f32 %v6081, 0.112945676
        %v6083 = vmul.f32 %v6065, %v6082
        %v6084 = vadd.f32 %v6083, 0.4994258
        %v6085 = vmul.f32 %v6065, %v6084
        %v6086 = vadd.f32 %v6085, 1.0
        %v6087 = vrcp.pop %v6086
        %v6088 = vmul.f32 %v6086, %v6087
        %v6089 = vsub.f32 1.0, %v6088
        %v6090 = vmul.f32 %v6087, %v6089
        %v6091 = vadd.f32 %v6087, %v6090
        %vm6092 = vweird.f32 %v6086
        %vm6093 = vweird.f32 %v6087
        %vm6094 = vmor %vm6092, %vm6093
        %v6095 = vsel %vm6094, %v6087, %v6091
        %v6096 = vand.u32 2147483647, %v6086
        %vm6097 = vcmp.eq.f32.partialorder %v6096, 8.507059e+37
        %v6098 = vand.u32 %v6086, 2147483648
        %v6099 = vor.u32 1.1754944e-38, %v6098
        %v6100 = vsel %vm6097, %v6099, %v6095
        %v6101 = vmul.f32 %v6076, %v6100
        %v6102 = vmin.f32 %v6101, 1.0
        %v6103 = vmax.f32 %v6102, -1.0
        %v6104 = vmul.f32 %v5526, %v5526
        %v6105 = vmin.f32 16.0, %v6104
        %v6106 = vmul.f32 %v6105, 2.1237322e-06
        %v6107 = vadd.f32 %v6106, 0.00028619796
        %v6108 = vmul.f32 %v6105, %v6107
        %v6109 = vadd.f32 %v6108, 0.0036580483
        %v6110 = vmul.f32 %v6105, %v6109
        %v6111 = vadd.f32 %v6110, 0.05243302
        %v6112 = vmul.f32 %v6105, %v6111
        %v6113 = vadd.f32 %v6112, 0.18741608
        %v6114 = vmul.f32 %v6105, %v6113
        %v6115 = vadd.f32 %v6114, 1.1283791
        %v6116 = vmul.f32 %v5526, %v6115
        %v6117 = vmul.f32 %v6105, 3.8918573e-05
        %v6118 = vadd.f32 %v6117, 0.001143296
        %v6119 = vmul.f32 %v6105, %v6118
        %v6120 = vadd.f32 %v6119, 0.014752088
        %v6121 = vmul.f32 %v6105, %v6120
        %v6122 = vadd.f32 %v6121, 0.112945676
        %v6123 = vmul.f32 %v6105, %v6122
        %v6124 = vadd.f32 %v6123, 0.4994258
        %v6125 = vmul.f32 %v6105, %v6124
        %v6126 = vadd.f32 %v6125, 1.0
        %v6127 = vrcp.pop %v6126
        %v6128 = vmul.f32 %v6126, %v6127
        %v6129 = vsub.f32 1.0, %v6128
        %v6130 = vmul.f32 %v6127, %v6129
        %v6131 = vadd.f32 %v6127, %v6130
        %vm6132 = vweird.f32 %v6126
        %vm6133 = vweird.f32 %v6127
        %vm6134 = vmor %vm6132, %vm6133
        %v6135 = vsel %vm6134, %v6127, %v6131
        %v6136 = vand.u32 2147483647, %v6126
        %vm6137 = vcmp.eq.f32.partialorder %v6136, 8.507059e+37
        %v6138 = vand.u32 %v6126, 2147483648
        %v6139 = vor.u32 1.1754944e-38, %v6138
        %v6140 = vsel %vm6137, %v6139, %v6135
        %v6141 = vmul.f32 %v6116, %v6140
        %v6142 = vmin.f32 %v6141, 1.0
        %v6143 = vmax.f32 %v6142, -1.0
        %v6144 = vmul.f32 %v5527, %v5527
        %v6145 = vmin.f32 16.0, %v6144
        %v6146 = vmul.f32 %v6145, 2.1237322e-06
        %v6147 = vadd.f32 %v6146, 0.00028619796
        %v6148 = vmul.f32 %v6145, %v6147
        %v6149 = vadd.f32 %v6148, 0.0036580483
        %v6150 = vmul.f32 %v6145, %v6149
        %v6151 = vadd.f32 %v6150, 0.05243302
        %v6152 = vmul.f32 %v6145, %v6151
        %v6153 = vadd.f32 %v6152, 0.18741608
        %v6154 = vmul.f32 %v6145, %v6153
        %v6155 = vadd.f32 %v6154, 1.1283791
        %v6156 = vmul.f32 %v5527, %v6155
        %v6157 = vmul.f32 %v6145, 3.8918573e-05
        %v6158 = vadd.f32 %v6157, 0.001143296
        %v6159 = vmul.f32 %v6145, %v6158
        %v6160 = vadd.f32 %v6159, 0.014752088
        %v6161 = vmul.f32 %v6145, %v6160
        %v6162 = vadd.f32 %v6161, 0.112945676
        %v6163 = vmul.f32 %v6145, %v6162
        %v6164 = vadd.f32 %v6163, 0.4994258
        %v6165 = vmul.f32 %v6145, %v6164
        %v6166 = vadd.f32 %v6165, 1.0
        %v6167 = vrcp.pop %v6166
        %v6168 = vmul.f32 %v6166, %v6167
        %v6169 = vsub.f32 1.0, %v6168
        %v6170 = vmul.f32 %v6167, %v6169
        %v6171 = vadd.f32 %v6167, %v6170
        %vm6172 = vweird.f32 %v6166
        %vm6173 = vweird.f32 %v6167
        %vm6174 = vmor %vm6172, %vm6173
        %v6175 = vsel %vm6174, %v6167, %v6171
        %v6176 = vand.u32 2147483647, %v6166
        %vm6177 = vcmp.eq.f32.partialorder %v6176, 8.507059e+37
        %v6178 = vand.u32 %v6166, 2147483648
        %v6179 = vor.u32 1.1754944e-38, %v6178
        %v6180 = vsel %vm6177, %v6179, %v6175
        %v6181 = vmul.f32 %v6156, %v6180
        %v6182 = vmin.f32 %v6181, 1.0
        %v6183 = vmax.f32 %v6182, -1.0
        %v6184 = vmul.f32 %v5528, %v5528
        %v6185 = vmin.f32 16.0, %v6184
        %v6186 = vmul.f32 %v6185, 2.1237322e-06
        %v6187 = vadd.f32 %v6186, 0.00028619796
        %v6188 = vmul.f32 %v6185, %v6187
        %v6189 = vadd.f32 %v6188, 0.0036580483
        %v6190 = vmul.f32 %v6185, %v6189
        %v6191 = vadd.f32 %v6190, 0.05243302
        %v6192 = vmul.f32 %v6185, %v6191
        %v6193 = vadd.f32 %v6192, 0.18741608
        %v6194 = vmul.f32 %v6185, %v6193
        %v6195 = vadd.f32 %v6194, 1.1283791
        %v6196 = vmul.f32 %v5528, %v6195
        %v6197 = vmul.f32 %v6185, 3.8918573e-05
        %v6198 = vadd.f32 %v6197, 0.001143296
        %v6199 = vmul.f32 %v6185, %v6198
        %v6200 = vadd.f32 %v6199, 0.014752088
        %v6201 = vmul.f32 %v6185, %v6200
        %v6202 = vadd.f32 %v6201, 0.112945676
        %v6203 = vmul.f32 %v6185, %v6202
        %v6204 = vadd.f32 %v6203, 0.4994258
        %v6205 = vmul.f32 %v6185, %v6204
        %v6206 = vadd.f32 %v6205, 1.0
        %v6207 = vrcp.pop %v6206
        %v6208 = vmul.f32 %v6206, %v6207
        %v6209 = vsub.f32 1.0, %v6208
        %v6210 = vmul.f32 %v6207, %v6209
        %v6211 = vadd.f32 %v6207, %v6210
        %vm6212 = vweird.f32 %v6206
        %vm6213 = vweird.f32 %v6207
        %vm6214 = vmor %vm6212, %vm6213
        %v6215 = vsel %vm6214, %v6207, %v6211
        %v6216 = vand.u32 2147483647, %v6206
        %vm6217 = vcmp.eq.f32.partialorder %v6216, 8.507059e+37
        %v6218 = vand.u32 %v6206, 2147483648
        %v6219 = vor.u32 1.1754944e-38, %v6218
        %v6220 = vsel %vm6217, %v6219, %v6215
        %v6221 = vmul.f32 %v6196, %v6220
        %v6222 = vmin.f32 %v6221, 1.0
        %v6223 = vmax.f32 %v6222, -1.0
        %v6224 = vmul.f32 %v5529, %v5529
        %v6225 = vmin.f32 16.0, %v6224
        %v6226 = vmul.f32 %v6225, 2.1237322e-06
        %v6227 = vadd.f32 %v6226, 0.00028619796
        %v6228 = vmul.f32 %v6225, %v6227
        %v6229 = vadd.f32 %v6228, 0.0036580483
        %v6230 = vmul.f32 %v6225, %v6229
        %v6231 = vadd.f32 %v6230, 0.05243302
        %v6232 = vmul.f32 %v6225, %v6231
        %v6233 = vadd.f32 %v6232, 0.18741608
        %v6234 = vmul.f32 %v6225, %v6233
        %v6235 = vadd.f32 %v6234, 1.1283791
        %v6236 = vmul.f32 %v5529, %v6235
        %v6237 = vmul.f32 %v6225, 3.8918573e-05
        %v6238 = vadd.f32 %v6237, 0.001143296
        %v6239 = vmul.f32 %v6225, %v6238
        %v6240 = vadd.f32 %v6239, 0.014752088
        %v6241 = vmul.f32 %v6225, %v6240
        %v6242 = vadd.f32 %v6241, 0.112945676
        %v6243 = vmul.f32 %v6225, %v6242
        %v6244 = vadd.f32 %v6243, 0.4994258
        %v6245 = vmul.f32 %v6225, %v6244
        %v6246 = vadd.f32 %v6245, 1.0
        %v6247 = vrcp.pop %v6246
        %v6248 = vmul.f32 %v6246, %v6247
        %v6249 = vsub.f32 1.0, %v6248
        %v6250 = vmul.f32 %v6247, %v6249
        %v6251 = vadd.f32 %v6247, %v6250
        %vm6252 = vweird.f32 %v6246
        %vm6253 = vweird.f32 %v6247
        %vm6254 = vmor %vm6252, %vm6253
        %v6255 = vsel %vm6254, %v6247, %v6251
        %v6256 = vand.u32 2147483647, %v6246
        %vm6257 = vcmp.eq.f32.partialorder %v6256, 8.507059e+37
        %v6258 = vand.u32 %v6246, 2147483648
        %v6259 = vor.u32 1.1754944e-38, %v6258
        %v6260 = vsel %vm6257, %v6259, %v6255
        %v6261 = vmul.f32 %v6236, %v6260
        %v6262 = vmin.f32 %v6261, 1.0
        %v6263 = vmax.f32 %v6262, -1.0
        %v6264 = vmul.f32 %v5530, %v5530
        %v6265 = vmin.f32 16.0, %v6264
        %v6266 = vmul.f32 %v6265, 2.1237322e-06
        %v6267 = vadd.f32 %v6266, 0.00028619796
        %v6268 = vmul.f32 %v6265, %v6267
        %v6269 = vadd.f32 %v6268, 0.0036580483
        %v6270 = vmul.f32 %v6265, %v6269
        %v6271 = vadd.f32 %v6270, 0.05243302
        %v6272 = vmul.f32 %v6265, %v6271
        %v6273 = vadd.f32 %v6272, 0.18741608
        %v6274 = vmul.f32 %v6265, %v6273
        %v6275 = vadd.f32 %v6274, 1.1283791
        %v6276 = vmul.f32 %v5530, %v6275
        %v6277 = vmul.f32 %v6265, 3.8918573e-05
        %v6278 = vadd.f32 %v6277, 0.001143296
        %v6279 = vmul.f32 %v6265, %v6278
        %v6280 = vadd.f32 %v6279, 0.014752088
        %v6281 = vmul.f32 %v6265, %v6280
        %v6282 = vadd.f32 %v6281, 0.112945676
        %v6283 = vmul.f32 %v6265, %v6282
        %v6284 = vadd.f32 %v6283, 0.4994258
        %v6285 = vmul.f32 %v6265, %v6284
        %v6286 = vadd.f32 %v6285, 1.0
        %v6287 = vrcp.pop %v6286
        %v6288 = vmul.f32 %v6286, %v6287
        %v6289 = vsub.f32 1.0, %v6288
        %v6290 = vmul.f32 %v6287, %v6289
        %v6291 = vadd.f32 %v6287, %v6290
        %vm6292 = vweird.f32 %v6286
        %vm6293 = vweird.f32 %v6287
        %vm6294 = vmor %vm6292, %vm6293
        %v6295 = vsel %vm6294, %v6287, %v6291
        %v6296 = vand.u32 2147483647, %v6286
        %vm6297 = vcmp.eq.f32.partialorder %v6296, 8.507059e+37
        %v6298 = vand.u32 %v6286, 2147483648
        %v6299 = vor.u32 1.1754944e-38, %v6298
        %v6300 = vsel %vm6297, %v6299, %v6295
        %v6301 = vmul.f32 %v6276, %v6300
        %v6302 = vmin.f32 %v6301, 1.0
        %v6303 = vmax.f32 %v6302, -1.0
        %v6304 = vmul.f32 %v5531, %v5531
        %v6305 = vmin.f32 16.0, %v6304
        %v6306 = vmul.f32 %v6305, 2.1237322e-06
        %v6307 = vadd.f32 %v6306, 0.00028619796
        %v6308 = vmul.f32 %v6305, %v6307
        %v6309 = vadd.f32 %v6308, 0.0036580483
        %v6310 = vmul.f32 %v6305, %v6309
        %v6311 = vadd.f32 %v6310, 0.05243302
        %v6312 = vmul.f32 %v6305, %v6311
        %v6313 = vadd.f32 %v6312, 0.18741608
        %v6314 = vmul.f32 %v6305, %v6313
        %v6315 = vadd.f32 %v6314, 1.1283791
        %v6316 = vmul.f32 %v5531, %v6315
        %v6317 = vmul.f32 %v6305, 3.8918573e-05
        %v6318 = vadd.f32 %v6317, 0.001143296
        %v6319 = vmul.f32 %v6305, %v6318
        %v6320 = vadd.f32 %v6319, 0.014752088
        %v6321 = vmul.f32 %v6305, %v6320
        %v6322 = vadd.f32 %v6321, 0.112945676
        %v6323 = vmul.f32 %v6305, %v6322
        %v6324 = vadd.f32 %v6323, 0.4994258
        %v6325 = vmul.f32 %v6305, %v6324
        %v6326 = vadd.f32 %v6325, 1.0
        %v6327 = vrcp.pop %v6326
        %v6328 = vmul.f32 %v6326, %v6327
        %v6329 = vsub.f32 1.0, %v6328
        %v6330 = vmul.f32 %v6327, %v6329
        %v6331 = vadd.f32 %v6327, %v6330
        %vm6332 = vweird.f32 %v6326
        %vm6333 = vweird.f32 %v6327
        %vm6334 = vmor %vm6332, %vm6333
        %v6335 = vsel %vm6334, %v6327, %v6331
        %v6336 = vand.u32 2147483647, %v6326
        %vm6337 = vcmp.eq.f32.partialorder %v6336, 8.507059e+37
        %v6338 = vand.u32 %v6326, 2147483648
        %v6339 = vor.u32 1.1754944e-38, %v6338
        %v6340 = vsel %vm6337, %v6339, %v6335
        %v6341 = vmul.f32 %v6316, %v6340
        %v6342 = vmin.f32 %v6341, 1.0
        %v6343 = vmax.f32 %v6342, -1.0
        %v6344 = vmul.f32 %v5532, %v5532
        %v6345 = vmin.f32 16.0, %v6344
        %v6346 = vmul.f32 %v6345, 2.1237322e-06
        %v6347 = vadd.f32 %v6346, 0.00028619796
        %v6348 = vmul.f32 %v6345, %v6347
        %v6349 = vadd.f32 %v6348, 0.0036580483
        %v6350 = vmul.f32 %v6345, %v6349
        %v6351 = vadd.f32 %v6350, 0.05243302
        %v6352 = vmul.f32 %v6345, %v6351
        %v6353 = vadd.f32 %v6352, 0.18741608
        %v6354 = vmul.f32 %v6345, %v6353
        %v6355 = vadd.f32 %v6354, 1.1283791
        %v6356 = vmul.f32 %v5532, %v6355
        %v6357 = vmul.f32 %v6345, 3.8918573e-05
        %v6358 = vadd.f32 %v6357, 0.001143296
        %v6359 = vmul.f32 %v6345, %v6358
        %v6360 = vadd.f32 %v6359, 0.014752088
        %v6361 = vmul.f32 %v6345, %v6360
        %v6362 = vadd.f32 %v6361, 0.112945676
        %v6363 = vmul.f32 %v6345, %v6362
        %v6364 = vadd.f32 %v6363, 0.4994258
        %v6365 = vmul.f32 %v6345, %v6364
        %v6366 = vadd.f32 %v6365, 1.0
        %v6367 = vrcp.pop %v6366
        %v6368 = vmul.f32 %v6366, %v6367
        %v6369 = vsub.f32 1.0, %v6368
        %v6370 = vmul.f32 %v6367, %v6369
        %v6371 = vadd.f32 %v6367, %v6370
        %vm6372 = vweird.f32 %v6366
        %vm6373 = vweird.f32 %v6367
        %vm6374 = vmor %vm6372, %vm6373
        %v6375 = vsel %vm6374, %v6367, %v6371
        %v6376 = vand.u32 2147483647, %v6366
        %vm6377 = vcmp.eq.f32.partialorder %v6376, 8.507059e+37
        %v6378 = vand.u32 %v6366, 2147483648
        %v6379 = vor.u32 1.1754944e-38, %v6378
        %v6380 = vsel %vm6377, %v6379, %v6375
        %v6381 = vmul.f32 %v6356, %v6380
        %v6382 = vmin.f32 %v6381, 1.0
        %v6383 = vmax.f32 %v6382, -1.0
        %v6384 = vmul.f32 %v5533, %v5533
        %v6385 = vmin.f32 16.0, %v6384
        %v6386 = vmul.f32 %v6385, 2.1237322e-06
        %v6387 = vadd.f32 %v6386, 0.00028619796
        %v6388 = vmul.f32 %v6385, %v6387
        %v6389 = vadd.f32 %v6388, 0.0036580483
        %v6390 = vmul.f32 %v6385, %v6389
        %v6391 = vadd.f32 %v6390, 0.05243302
        %v6392 = vmul.f32 %v6385, %v6391
        %v6393 = vadd.f32 %v6392, 0.18741608
        %v6394 = vmul.f32 %v6385, %v6393
        %v6395 = vadd.f32 %v6394, 1.1283791
        %v6396 = vmul.f32 %v5533, %v6395
        %v6397 = vmul.f32 %v6385, 3.8918573e-05
        %v6398 = vadd.f32 %v6397, 0.001143296
        %v6399 = vmul.f32 %v6385, %v6398
        %v6400 = vadd.f32 %v6399, 0.014752088
        %v6401 = vmul.f32 %v6385, %v6400
        %v6402 = vadd.f32 %v6401, 0.112945676
        %v6403 = vmul.f32 %v6385, %v6402
        %v6404 = vadd.f32 %v6403, 0.4994258
        %v6405 = vmul.f32 %v6385, %v6404
        %v6406 = vadd.f32 %v6405, 1.0
        %v6407 = vrcp.pop %v6406
        %v6408 = vmul.f32 %v6406, %v6407
        %v6409 = vsub.f32 1.0, %v6408
        %v6410 = vmul.f32 %v6407, %v6409
        %v6411 = vadd.f32 %v6407, %v6410
        %vm6412 = vweird.f32 %v6406
        %vm6413 = vweird.f32 %v6407
        %vm6414 = vmor %vm6412, %vm6413
        %v6415 = vsel %vm6414, %v6407, %v6411
        %v6416 = vand.u32 2147483647, %v6406
        %vm6417 = vcmp.eq.f32.partialorder %v6416, 8.507059e+37
        %v6418 = vand.u32 %v6406, 2147483648
        %v6419 = vor.u32 1.1754944e-38, %v6418
        %v6420 = vsel %vm6417, %v6419, %v6415
        %v6421 = vmul.f32 %v6396, %v6420
        %v6422 = vmin.f32 %v6421, 1.0
        %v6423 = vmax.f32 %v6422, -1.0
        %v6424 = vmul.f32 %v5534, %v5534
        %v6425 = vmin.f32 16.0, %v6424
        %v6426 = vmul.f32 %v6425, 2.1237322e-06
        %v6427 = vadd.f32 %v6426, 0.00028619796
        %v6428 = vmul.f32 %v6425, %v6427
        %v6429 = vadd.f32 %v6428, 0.0036580483
        %v6430 = vmul.f32 %v6425, %v6429
        %v6431 = vadd.f32 %v6430, 0.05243302
        %v6432 = vmul.f32 %v6425, %v6431
        %v6433 = vadd.f32 %v6432, 0.18741608
        %v6434 = vmul.f32 %v6425, %v6433
        %v6435 = vadd.f32 %v6434, 1.1283791
        %v6436 = vmul.f32 %v5534, %v6435
        %v6437 = vmul.f32 %v6425, 3.8918573e-05
        %v6438 = vadd.f32 %v6437, 0.001143296
        %v6439 = vmul.f32 %v6425, %v6438
        %v6440 = vadd.f32 %v6439, 0.014752088
        %v6441 = vmul.f32 %v6425, %v6440
        %v6442 = vadd.f32 %v6441, 0.112945676
        %v6443 = vmul.f32 %v6425, %v6442
        %v6444 = vadd.f32 %v6443, 0.4994258
        %v6445 = vmul.f32 %v6425, %v6444
        %v6446 = vadd.f32 %v6445, 1.0
        %v6447 = vrcp.pop %v6446
        %v6448 = vmul.f32 %v6446, %v6447
        %v6449 = vsub.f32 1.0, %v6448
        %v6450 = vmul.f32 %v6447, %v6449
        %v6451 = vadd.f32 %v6447, %v6450
        %vm6452 = vweird.f32 %v6446
        %vm6453 = vweird.f32 %v6447
        %vm6454 = vmor %vm6452, %vm6453
        %v6455 = vsel %vm6454, %v6447, %v6451
        %v6456 = vand.u32 2147483647, %v6446
        %vm6457 = vcmp.eq.f32.partialorder %v6456, 8.507059e+37
        %v6458 = vand.u32 %v6446, 2147483648
        %v6459 = vor.u32 1.1754944e-38, %v6458
        %v6460 = vsel %vm6457, %v6459, %v6455
        %v6461 = vmul.f32 %v6436, %v6460
        %v6462 = vmin.f32 %v6461, 1.0
        %v6463 = vmax.f32 %v6462, -1.0
        %v6464 = vmul.f32 %v5535, %v5535
        %v6465 = vmin.f32 16.0, %v6464
        %v6466 = vmul.f32 %v6465, 2.1237322e-06
        %v6467 = vadd.f32 %v6466, 0.00028619796
        %v6468 = vmul.f32 %v6465, %v6467
        %v6469 = vadd.f32 %v6468, 0.0036580483
        %v6470 = vmul.f32 %v6465, %v6469
        %v6471 = vadd.f32 %v6470, 0.05243302
        %v6472 = vmul.f32 %v6465, %v6471
        %v6473 = vadd.f32 %v6472, 0.18741608
        %v6474 = vmul.f32 %v6465, %v6473
        %v6475 = vadd.f32 %v6474, 1.1283791
        %v6476 = vmul.f32 %v5535, %v6475
        %v6477 = vmul.f32 %v6465, 3.8918573e-05
        %v6478 = vadd.f32 %v6477, 0.001143296
        %v6479 = vmul.f32 %v6465, %v6478
        %v6480 = vadd.f32 %v6479, 0.014752088
        %v6481 = vmul.f32 %v6465, %v6480
        %v6482 = vadd.f32 %v6481, 0.112945676
        %v6483 = vmul.f32 %v6465, %v6482
        %v6484 = vadd.f32 %v6483, 0.4994258
        %v6485 = vmul.f32 %v6465, %v6484
        %v6486 = vadd.f32 %v6485, 1.0
        %v6487 = vrcp.pop %v6486
        %v6488 = vmul.f32 %v6486, %v6487
        %v6489 = vsub.f32 1.0, %v6488
        %v6490 = vmul.f32 %v6487, %v6489
        %v6491 = vadd.f32 %v6487, %v6490
        %vm6492 = vweird.f32 %v6486
        %vm6493 = vweird.f32 %v6487
        %vm6494 = vmor %vm6492, %vm6493
        %v6495 = vsel %vm6494, %v6487, %v6491
        %v6496 = vand.u32 2147483647, %v6486
        %vm6497 = vcmp.eq.f32.partialorder %v6496, 8.507059e+37
        %v6498 = vand.u32 %v6486, 2147483648
        %v6499 = vor.u32 1.1754944e-38, %v6498
        %v6500 = vsel %vm6497, %v6499, %v6495
        %v6501 = vmul.f32 %v6476, %v6500
        %v6502 = vmin.f32 %v6501, 1.0
        %v6503 = vmax.f32 %v6502, -1.0
        %v6504 = vmul.f32 %v5536, %v5536
        %v6505 = vmin.f32 16.0, %v6504
        %v6506 = vmul.f32 %v6505, 2.1237322e-06
        %v6507 = vadd.f32 %v6506, 0.00028619796
        %v6508 = vmul.f32 %v6505, %v6507
        %v6509 = vadd.f32 %v6508, 0.0036580483
        %v6510 = vmul.f32 %v6505, %v6509
        %v6511 = vadd.f32 %v6510, 0.05243302
        %v6512 = vmul.f32 %v6505, %v6511
        %v6513 = vadd.f32 %v6512, 0.18741608
        %v6514 = vmul.f32 %v6505, %v6513
        %v6515 = vadd.f32 %v6514, 1.1283791
        %v6516 = vmul.f32 %v5536, %v6515
        %v6517 = vmul.f32 %v6505, 3.8918573e-05
        %v6518 = vadd.f32 %v6517, 0.001143296
        %v6519 = vmul.f32 %v6505, %v6518
        %v6520 = vadd.f32 %v6519, 0.014752088
        %v6521 = vmul.f32 %v6505, %v6520
        %v6522 = vadd.f32 %v6521, 0.112945676
        %v6523 = vmul.f32 %v6505, %v6522
        %v6524 = vadd.f32 %v6523, 0.4994258
        %v6525 = vmul.f32 %v6505, %v6524
        %v6526 = vadd.f32 %v6525, 1.0
        %v6527 = vrcp.pop %v6526
        %v6528 = vmul.f32 %v6526, %v6527
        %v6529 = vsub.f32 1.0, %v6528
        %v6530 = vmul.f32 %v6527, %v6529
        %v6531 = vadd.f32 %v6527, %v6530
        %vm6532 = vweird.f32 %v6526
        %vm6533 = vweird.f32 %v6527
        %vm6534 = vmor %vm6532, %vm6533
        %v6535 = vsel %vm6534, %v6527, %v6531
        %v6536 = vand.u32 2147483647, %v6526
        %vm6537 = vcmp.eq.f32.partialorder %v6536, 8.507059e+37
        %v6538 = vand.u32 %v6526, 2147483648
        %v6539 = vor.u32 1.1754944e-38, %v6538
        %v6540 = vsel %vm6537, %v6539, %v6535
        %v6541 = vmul.f32 %v6516, %v6540
        %v6542 = vmin.f32 %v6541, 1.0
        %v6543 = vmax.f32 %v6542, -1.0
        %v6544 = vmul.f32 %v5537, %v5537
        %v6545 = vmin.f32 16.0, %v6544
        %v6546 = vmul.f32 %v6545, 2.1237322e-06
        %v6547 = vadd.f32 %v6546, 0.00028619796
        %v6548 = vmul.f32 %v6545, %v6547
        %v6549 = vadd.f32 %v6548, 0.0036580483
        %v6550 = vmul.f32 %v6545, %v6549
        %v6551 = vadd.f32 %v6550, 0.05243302
        %v6552 = vmul.f32 %v6545, %v6551
        %v6553 = vadd.f32 %v6552, 0.18741608
        %v6554 = vmul.f32 %v6545, %v6553
        %v6555 = vadd.f32 %v6554, 1.1283791
        %v6556 = vmul.f32 %v5537, %v6555
        %v6557 = vmul.f32 %v6545, 3.8918573e-05
        %v6558 = vadd.f32 %v6557, 0.001143296
        %v6559 = vmul.f32 %v6545, %v6558
        %v6560 = vadd.f32 %v6559, 0.014752088
        %v6561 = vmul.f32 %v6545, %v6560
        %v6562 = vadd.f32 %v6561, 0.112945676
        %v6563 = vmul.f32 %v6545, %v6562
        %v6564 = vadd.f32 %v6563, 0.4994258
        %v6565 = vmul.f32 %v6545, %v6564
        %v6566 = vadd.f32 %v6565, 1.0
        %v6567 = vrcp.pop %v6566
        %v6568 = vmul.f32 %v6566, %v6567
        %v6569 = vsub.f32 1.0, %v6568
        %v6570 = vmul.f32 %v6567, %v6569
        %v6571 = vadd.f32 %v6567, %v6570
        %vm6572 = vweird.f32 %v6566
        %vm6573 = vweird.f32 %v6567
        %vm6574 = vmor %vm6572, %vm6573
        %v6575 = vsel %vm6574, %v6567, %v6571
        %v6576 = vand.u32 2147483647, %v6566
        %vm6577 = vcmp.eq.f32.partialorder %v6576, 8.507059e+37
        %v6578 = vand.u32 %v6566, 2147483648
        %v6579 = vor.u32 1.1754944e-38, %v6578
        %v6580 = vsel %vm6577, %v6579, %v6575
        %v6581 = vmul.f32 %v6556, %v6580
        %v6582 = vmin.f32 %v6581, 1.0
        %v6583 = vmax.f32 %v6582, -1.0
        %v6584 = vmul.f32 %v5538, %v5538
        %v6585 = vmin.f32 16.0, %v6584
        %v6586 = vmul.f32 %v6585, 2.1237322e-06
        %v6587 = vadd.f32 %v6586, 0.00028619796
        %v6588 = vmul.f32 %v6585, %v6587
        %v6589 = vadd.f32 %v6588, 0.0036580483
        %v6590 = vmul.f32 %v6585, %v6589
        %v6591 = vadd.f32 %v6590, 0.05243302
        %v6592 = vmul.f32 %v6585, %v6591
        %v6593 = vadd.f32 %v6592, 0.18741608
        %v6594 = vmul.f32 %v6585, %v6593
        %v6595 = vadd.f32 %v6594, 1.1283791
        %v6596 = vmul.f32 %v5538, %v6595
        %v6597 = vmul.f32 %v6585, 3.8918573e-05
        %v6598 = vadd.f32 %v6597, 0.001143296
        %v6599 = vmul.f32 %v6585, %v6598
        %v6600 = vadd.f32 %v6599, 0.014752088
        %v6601 = vmul.f32 %v6585, %v6600
        %v6602 = vadd.f32 %v6601, 0.112945676
        %v6603 = vmul.f32 %v6585, %v6602
        %v6604 = vadd.f32 %v6603, 0.4994258
        %v6605 = vmul.f32 %v6585, %v6604
        %v6606 = vadd.f32 %v6605, 1.0
        %v6607 = vrcp.pop %v6606
        %v6608 = vmul.f32 %v6606, %v6607
        %v6609 = vsub.f32 1.0, %v6608
        %v6610 = vmul.f32 %v6607, %v6609
        %v6611 = vadd.f32 %v6607, %v6610
        %vm6612 = vweird.f32 %v6606
        %vm6613 = vweird.f32 %v6607
        %vm6614 = vmor %vm6612, %vm6613
        %v6615 = vsel %vm6614, %v6607, %v6611
        %v6616 = vand.u32 2147483647, %v6606
        %vm6617 = vcmp.eq.f32.partialorder %v6616, 8.507059e+37
        %v6618 = vand.u32 %v6606, 2147483648
        %v6619 = vor.u32 1.1754944e-38, %v6618
        %v6620 = vsel %vm6617, %v6619, %v6615
        %v6621 = vmul.f32 %v6596, %v6620
        %v6622 = vmin.f32 %v6621, 1.0
        %v6623 = vmax.f32 %v6622, -1.0
        %v6624 = vmul.f32 %v5539, %v5539
        %v6625 = vmin.f32 16.0, %v6624
        %v6626 = vmul.f32 %v6625, 2.1237322e-06
        %v6627 = vadd.f32 %v6626, 0.00028619796
        %v6628 = vmul.f32 %v6625, %v6627
        %v6629 = vadd.f32 %v6628, 0.0036580483
        %v6630 = vmul.f32 %v6625, %v6629
        %v6631 = vadd.f32 %v6630, 0.05243302
        %v6632 = vmul.f32 %v6625, %v6631
        %v6633 = vadd.f32 %v6632, 0.18741608
        %v6634 = vmul.f32 %v6625, %v6633
        %v6635 = vadd.f32 %v6634, 1.1283791
        %v6636 = vmul.f32 %v5539, %v6635
        %v6637 = vmul.f32 %v6625, 3.8918573e-05
        %v6638 = vadd.f32 %v6637, 0.001143296
        %v6639 = vmul.f32 %v6625, %v6638
        %v6640 = vadd.f32 %v6639, 0.014752088
        %v6641 = vmul.f32 %v6625, %v6640
        %v6642 = vadd.f32 %v6641, 0.112945676
        %v6643 = vmul.f32 %v6625, %v6642
        %v6644 = vadd.f32 %v6643, 0.4994258
        %v6645 = vmul.f32 %v6625, %v6644
        %v6646 = vadd.f32 %v6645, 1.0
        %v6647 = vrcp.pop %v6646
        %v6648 = vmul.f32 %v6646, %v6647
        %v6649 = vsub.f32 1.0, %v6648
        %v6650 = vmul.f32 %v6647, %v6649
        %v6651 = vadd.f32 %v6647, %v6650
        %vm6652 = vweird.f32 %v6646
        %vm6653 = vweird.f32 %v6647
        %vm6654 = vmor %vm6652, %vm6653
        %v6655 = vsel %vm6654, %v6647, %v6651
        %v6656 = vand.u32 2147483647, %v6646
        %vm6657 = vcmp.eq.f32.partialorder %v6656, 8.507059e+37
        %v6658 = vand.u32 %v6646, 2147483648
        %v6659 = vor.u32 1.1754944e-38, %v6658
        %v6660 = vsel %vm6657, %v6659, %v6655
        %v6661 = vmul.f32 %v6636, %v6660
        %v6662 = vmin.f32 %v6661, 1.0
        %v6663 = vmax.f32 %v6662, -1.0
        %v6664 = vmul.f32 %v5540, %v5540
        %v6665 = vmin.f32 16.0, %v6664
        %v6666 = vmul.f32 %v6665, 2.1237322e-06
        %v6667 = vadd.f32 %v6666, 0.00028619796
        %v6668 = vmul.f32 %v6665, %v6667
        %v6669 = vadd.f32 %v6668, 0.0036580483
        %v6670 = vmul.f32 %v6665, %v6669
        %v6671 = vadd.f32 %v6670, 0.05243302
        %v6672 = vmul.f32 %v6665, %v6671
        %v6673 = vadd.f32 %v6672, 0.18741608
        %v6674 = vmul.f32 %v6665, %v6673
        %v6675 = vadd.f32 %v6674, 1.1283791
        %v6676 = vmul.f32 %v5540, %v6675
        %v6677 = vmul.f32 %v6665, 3.8918573e-05
        %v6678 = vadd.f32 %v6677, 0.001143296
        %v6679 = vmul.f32 %v6665, %v6678
        %v6680 = vadd.f32 %v6679, 0.014752088
        %v6681 = vmul.f32 %v6665, %v6680
        %v6682 = vadd.f32 %v6681, 0.112945676
        %v6683 = vmul.f32 %v6665, %v6682
        %v6684 = vadd.f32 %v6683, 0.4994258
        %v6685 = vmul.f32 %v6665, %v6684
        %v6686 = vadd.f32 %v6685, 1.0
        %v6687 = vrcp.pop %v6686
        %v6688 = vmul.f32 %v6686, %v6687
        %v6689 = vsub.f32 1.0, %v6688
        %v6690 = vmul.f32 %v6687, %v6689
        %v6691 = vadd.f32 %v6687, %v6690
        %vm6692 = vweird.f32 %v6686
        %vm6693 = vweird.f32 %v6687
        %vm6694 = vmor %vm6692, %vm6693
        %v6695 = vsel %vm6694, %v6687, %v6691
        %v6696 = vand.u32 2147483647, %v6686
        %vm6697 = vcmp.eq.f32.partialorder %v6696, 8.507059e+37
        %v6698 = vand.u32 %v6686, 2147483648
        %v6699 = vor.u32 1.1754944e-38, %v6698
        %v6700 = vsel %vm6697, %v6699, %v6695
        %v6701 = vmul.f32 %v6676, %v6700
        %v6702 = vmin.f32 %v6701, 1.0
        %v6703 = vmax.f32 %v6702, -1.0
        %v6704 = vmul.f32 %v5541, %v5541
        %v6705 = vmin.f32 16.0, %v6704
        %v6706 = vmul.f32 %v6705, 2.1237322e-06
        %v6707 = vadd.f32 %v6706, 0.00028619796
        %v6708 = vmul.f32 %v6705, %v6707
        %v6709 = vadd.f32 %v6708, 0.0036580483
        %v6710 = vmul.f32 %v6705, %v6709
        %v6711 = vadd.f32 %v6710, 0.05243302
        %v6712 = vmul.f32 %v6705, %v6711
        %v6713 = vadd.f32 %v6712, 0.18741608
        %v6714 = vmul.f32 %v6705, %v6713
        %v6715 = vadd.f32 %v6714, 1.1283791
        %v6716 = vmul.f32 %v5541, %v6715
        %v6717 = vmul.f32 %v6705, 3.8918573e-05
        %v6718 = vadd.f32 %v6717, 0.001143296
        %v6719 = vmul.f32 %v6705, %v6718
        %v6720 = vadd.f32 %v6719, 0.014752088
        %v6721 = vmul.f32 %v6705, %v6720
        %v6722 = vadd.f32 %v6721, 0.112945676
        %v6723 = vmul.f32 %v6705, %v6722
        %v6724 = vadd.f32 %v6723, 0.4994258
        %v6725 = vmul.f32 %v6705, %v6724
        %v6726 = vadd.f32 %v6725, 1.0
        %v6727 = vrcp.pop %v6726
        %v6728 = vmul.f32 %v6726, %v6727
        %v6729 = vsub.f32 1.0, %v6728
        %v6730 = vmul.f32 %v6727, %v6729
        %v6731 = vadd.f32 %v6727, %v6730
        %vm6732 = vweird.f32 %v6726
        %vm6733 = vweird.f32 %v6727
        %vm6734 = vmor %vm6732, %vm6733
        %v6735 = vsel %vm6734, %v6727, %v6731
        %v6736 = vand.u32 2147483647, %v6726
        %vm6737 = vcmp.eq.f32.partialorder %v6736, 8.507059e+37
        %v6738 = vand.u32 %v6726, 2147483648
        %v6739 = vor.u32 1.1754944e-38, %v6738
        %v6740 = vsel %vm6737, %v6739, %v6735
        %v6741 = vmul.f32 %v6716, %v6740
        %v6742 = vmin.f32 %v6741, 1.0
        %v6743 = vmax.f32 %v6742, -1.0
        %v6744 = vmul.f32 %v5542, %v5542
        %v6745 = vmin.f32 16.0, %v6744
        %v6746 = vmul.f32 %v6745, 2.1237322e-06
        %v6747 = vadd.f32 %v6746, 0.00028619796
        %v6748 = vmul.f32 %v6745, %v6747
        %v6749 = vadd.f32 %v6748, 0.0036580483
        %v6750 = vmul.f32 %v6745, %v6749
        %v6751 = vadd.f32 %v6750, 0.05243302
        %v6752 = vmul.f32 %v6745, %v6751
        %v6753 = vadd.f32 %v6752, 0.18741608
        %v6754 = vmul.f32 %v6745, %v6753
        %v6755 = vadd.f32 %v6754, 1.1283791
        %v6756 = vmul.f32 %v5542, %v6755
        %v6757 = vmul.f32 %v6745, 3.8918573e-05
        %v6758 = vadd.f32 %v6757, 0.001143296
        %v6759 = vmul.f32 %v6745, %v6758
        %v6760 = vadd.f32 %v6759, 0.014752088
        %v6761 = vmul.f32 %v6745, %v6760
        %v6762 = vadd.f32 %v6761, 0.112945676
        %v6763 = vmul.f32 %v6745, %v6762
        %v6764 = vadd.f32 %v6763, 0.4994258
        %v6765 = vmul.f32 %v6745, %v6764
        %v6766 = vadd.f32 %v6765, 1.0
        %v6767 = vrcp.pop %v6766
        %v6768 = vmul.f32 %v6766, %v6767
        %v6769 = vsub.f32 1.0, %v6768
        %v6770 = vmul.f32 %v6767, %v6769
        %v6771 = vadd.f32 %v6767, %v6770
        %vm6772 = vweird.f32 %v6766
        %vm6773 = vweird.f32 %v6767
        %vm6774 = vmor %vm6772, %vm6773
        %v6775 = vsel %vm6774, %v6767, %v6771
        %v6776 = vand.u32 2147483647, %v6766
        %vm6777 = vcmp.eq.f32.partialorder %v6776, 8.507059e+37
        %v6778 = vand.u32 %v6766, 2147483648
        %v6779 = vor.u32 1.1754944e-38, %v6778
        %v6780 = vsel %vm6777, %v6779, %v6775
        %v6781 = vmul.f32 %v6756, %v6780
        %v6782 = vmin.f32 %v6781, 1.0
        %v6783 = vmax.f32 %v6782, -1.0
        %v6784 = vmul.f32 %v5543, %v5543
        %v6785 = vmin.f32 16.0, %v6784
        %v6786 = vmul.f32 %v6785, 2.1237322e-06
        %v6787 = vadd.f32 %v6786, 0.00028619796
        %v6788 = vmul.f32 %v6785, %v6787
        %v6789 = vadd.f32 %v6788, 0.0036580483
        %v6790 = vmul.f32 %v6785, %v6789
        %v6791 = vadd.f32 %v6790, 0.05243302
        %v6792 = vmul.f32 %v6785, %v6791
        %v6793 = vadd.f32 %v6792, 0.18741608
        %v6794 = vmul.f32 %v6785, %v6793
        %v6795 = vadd.f32 %v6794, 1.1283791
        %v6796 = vmul.f32 %v5543, %v6795
        %v6797 = vmul.f32 %v6785, 3.8918573e-05
        %v6798 = vadd.f32 %v6797, 0.001143296
        %v6799 = vmul.f32 %v6785, %v6798
        %v6800 = vadd.f32 %v6799, 0.014752088
        %v6801 = vmul.f32 %v6785, %v6800
        %v6802 = vadd.f32 %v6801, 0.112945676
        %v6803 = vmul.f32 %v6785, %v6802
        %v6804 = vadd.f32 %v6803, 0.4994258
        %v6805 = vmul.f32 %v6785, %v6804
        %v6806 = vadd.f32 %v6805, 1.0
        %v6807 = vrcp.pop %v6806
        %v6808 = vmul.f32 %v6806, %v6807
        %v6809 = vsub.f32 1.0, %v6808
        %v6810 = vmul.f32 %v6807, %v6809
        %v6811 = vadd.f32 %v6807, %v6810
        %vm6812 = vweird.f32 %v6806
        %vm6813 = vweird.f32 %v6807
        %vm6814 = vmor %vm6812, %vm6813
        %v6815 = vsel %vm6814, %v6807, %v6811
        %v6816 = vand.u32 2147483647, %v6806
        %vm6817 = vcmp.eq.f32.partialorder %v6816, 8.507059e+37
        %v6818 = vand.u32 %v6806, 2147483648
        %v6819 = vor.u32 1.1754944e-38, %v6818
        %v6820 = vsel %vm6817, %v6819, %v6815
        %v6821 = vmul.f32 %v6796, %v6820
        %v6822 = vmin.f32 %v6821, 1.0
        %v6823 = vmax.f32 %v6822, -1.0
        %v6824 = vadd.f32 %v5583, 1.0
        %v6825 = vadd.f32 %v5623, 1.0
        %v6826 = vadd.f32 %v5663, 1.0
        %v6827 = vadd.f32 %v5703, 1.0
        %v6828 = vadd.f32 %v5743, 1.0
        %v6829 = vadd.f32 %v5783, 1.0
        %v6830 = vadd.f32 %v5823, 1.0
        %v6831 = vadd.f32 %v5863, 1.0
        %v6832 = vadd.f32 %v5903, 1.0
        %v6833 = vadd.f32 %v5943, 1.0
        %v6834 = vadd.f32 %v5983, 1.0
        %v6835 = vadd.f32 %v6023, 1.0
        %v6836 = vadd.f32 %v6063, 1.0
        %v6837 = vadd.f32 %v6103, 1.0
        %v6838 = vadd.f32 %v6143, 1.0
        %v6839 = vadd.f32 %v6183, 1.0
        %v6840 = vadd.f32 %v6223, 1.0
        %v6841 = vadd.f32 %v6263, 1.0
        %v6842 = vadd.f32 %v6303, 1.0
        %v6843 = vadd.f32 %v6343, 1.0
        %v6844 = vadd.f32 %v6383, 1.0
        %v6845 = vadd.f32 %v6423, 1.0
        %v6846 = vadd.f32 %v6463, 1.0
        %v6847 = vadd.f32 %v6503, 1.0
        %v6848 = vadd.f32 %v6543, 1.0
        %v6849 = vadd.f32 %v6583, 1.0
        %v6850 = vadd.f32 %v6623, 1.0
        %v6851 = vadd.f32 %v6663, 1.0
        %v6852 = vadd.f32 %v6703, 1.0
        %v6853 = vadd.f32 %v6743, 1.0
        %v6854 = vadd.f32 %v6783, 1.0
        %v6855 = vadd.f32 %v6823, 1.0
        %v6856 = vmul.f32 %v5480, %v6824
        %v6857 = vmul.f32 %v5481, %v6825
        %v6858 = vmul.f32 %v5482, %v6826
        %v6859 = vmul.f32 %v5483, %v6827
        %v6860 = vmul.f32 %v5484, %v6828
        %v6861 = vmul.f32 %v5485, %v6829
        %v6862 = vmul.f32 %v5486, %v6830
        %v6863 = vmul.f32 %v5487, %v6831
        %v6864 = vmul.f32 %v5488, %v6832
        %v6865 = vmul.f32 %v5489, %v6833
        %v6866 = vmul.f32 %v5490, %v6834
        %v6867 = vmul.f32 %v5491, %v6835
        %v6868 = vmul.f32 %v5492, %v6836
        %v6869 = vmul.f32 %v5493, %v6837
        %v6870 = vmul.f32 %v5494, %v6838
        %v6871 = vmul.f32 %v5495, %v6839
        %v6872 = vmul.f32 %v5496, %v6840
        %v6873 = vmul.f32 %v5497, %v6841
        %v6874 = vmul.f32 %v5498, %v6842
        %v6875 = vmul.f32 %v5499, %v6843
        %v6876 = vmul.f32 %v5500, %v6844
        %v6877 = vmul.f32 %v5501, %v6845
        %v6878 = vmul.f32 %v5502, %v6846
        %v6879 = vmul.f32 %v5503, %v6847
        %v6880 = vmul.f32 %v5504, %v6848
        %v6881 = vmul.f32 %v5505, %v6849
        %v6882 = vmul.f32 %v5506, %v6850
        %v6883 = vmul.f32 %v5507, %v6851
        %v6884 = vmul.f32 %v5508, %v6852
        %v6885 = vmul.f32 %v5509, %v6853
        %v6886 = vmul.f32 %v5510, %v6854
        %v6887 = vmul.f32 %v5511, %v6855
        %v6888 = vpack.c.bf16 %v6857, %v6856
        %v6889 = vpack.c.bf16 %v6859, %v6858
        %v6890 = vpack.c.bf16 %v6861, %v6860
        %v6891 = vpack.c.bf16 %v6863, %v6862
        %v6892 = vpack.c.bf16 %v6865, %v6864
        %v6893 = vpack.c.bf16 %v6867, %v6866
        %v6894 = vpack.c.bf16 %v6869, %v6868
        %v6895 = vpack.c.bf16 %v6871, %v6870
        %v6896 = vpack.c.bf16 %v6873, %v6872
        %v6897 = vpack.c.bf16 %v6875, %v6874
        %v6898 = vpack.c.bf16 %v6877, %v6876
        %v6899 = vpack.c.bf16 %v6879, %v6878
        %v6900 = vpack.c.bf16 %v6881, %v6880
        %v6901 = vpack.c.bf16 %v6883, %v6882
        %v6902 = vpack.c.bf16 %v6885, %v6884
        %v6903 = vpack.c.bf16 %v6887, %v6886
        %v6904 = vld [vmem:[#allocation12 + $0x80] sm:$0xf]
        %v6905 = vld [vmem:[#allocation12 + $0x84] sm:$0xf]
        %v6906 = vld [vmem:[#allocation12 + $0x88] sm:$0xf]
        %v6907 = vld [vmem:[#allocation12 + $0x8c] sm:$0xf]
        %v6908 = vld [vmem:[#allocation12 + $0x90] sm:$0xf]
        %v6909 = vld [vmem:[#allocation12 + $0x94] sm:$0xf]
        %v6910 = vld [vmem:[#allocation12 + $0x98] sm:$0xf]
        %v6911 = vld [vmem:[#allocation12 + $0x9c] sm:$0xf]
        %v6912 = vld [vmem:[#allocation12 + $0xa0] sm:$0xf]
        %v6913 = vld [vmem:[#allocation12 + $0xa4] sm:$0xf]
        %v6914 = vld [vmem:[#allocation12 + $0xa8] sm:$0xf]
        %v6915 = vld [vmem:[#allocation12 + $0xac] sm:$0xf]
        %v6916 = vld [vmem:[#allocation12 + $0xb0] sm:$0xf]
        %v6917 = vld [vmem:[#allocation12 + $0xb4] sm:$0xf]
        %v6918 = vld [vmem:[#allocation12 + $0xb8] sm:$0xf]
        %v6919 = vld [vmem:[#allocation12 + $0xbc] sm:$0xf]
        %v6936 = vunpack.c.l.b16 %v6904
        %v6937 = vunpack.c.l.b16 %v6905
        %v6938 = vunpack.c.l.b16 %v6906
        %v6939 = vunpack.c.l.b16 %v6907
        %v6940 = vunpack.c.l.b16 %v6908
        %v6941 = vunpack.c.l.b16 %v6909
        %v6942 = vunpack.c.l.b16 %v6910
        %v6943 = vunpack.c.l.b16 %v6911
        %v6944 = vunpack.c.l.b16 %v6912
        %v6945 = vunpack.c.l.b16 %v6913
        %v6946 = vunpack.c.l.b16 %v6914
        %v6947 = vunpack.c.l.b16 %v6915
        %v6948 = vunpack.c.l.b16 %v6916
        %v6949 = vunpack.c.l.b16 %v6917
        %v6950 = vunpack.c.l.b16 %v6918
        %v6951 = vunpack.c.l.b16 %v6919
        %v6952 = vpack.c.b16 %v6937, %v6936
        %v6953 = vpack.c.b16 %v6939, %v6938
        %v6954 = vpack.c.b16 %v6941, %v6940
        %v6955 = vpack.c.b16 %v6943, %v6942
        %v6956 = vpack.c.b16 %v6945, %v6944
        %v6957 = vpack.c.b16 %v6947, %v6946
        %v6958 = vpack.c.b16 %v6949, %v6948
        %v6959 = vpack.c.b16 %v6951, %v6950
        %6968 = vmatpush.bf16.msra.mxu0 %v6959
        %6969 = vmatpush.bf16.msra.mxu0 %v6958
        %6970 = vmatpush.bf16.msra.mxu0 %v6957
        %6971 = vmatpush.bf16.msra.mxu0 %v6956
        %6972 = vmatpush.bf16.msra.mxu0 %v6955
        %6973 = vmatpush.bf16.msra.mxu0 %v6954
        %6974 = vmatpush.bf16.msra.mxu0 %v6953
        %6975 = vmatpush.bf16.msra.mxu0 %v6952
        %6976 = vmatmul.bf16.gmra.mxu0 %v6888
        %v6977 = vpop.f32.mrf.mxu0
        %v6978 = vadd.f32 0.0, %v6977
        %v6979 = vpop.f32.mrf.mxu0
        %v6980 = vadd.f32 0.0, %v6979
        %6981 = vmatmul.bf16.gmra.mxu0 %v6889
        %v6982 = vpop.f32.mrf.mxu0
        %v6983 = vadd.f32 0.0, %v6982
        %v6984 = vpop.f32.mrf.mxu0
        %v6985 = vadd.f32 0.0, %v6984
        %6986 = vmatmul.bf16.gmra.mxu0 %v6890
        %v6987 = vpop.f32.mrf.mxu0
        %v6988 = vadd.f32 0.0, %v6987
        %v6989 = vpop.f32.mrf.mxu0
        %v6990 = vadd.f32 0.0, %v6989
        %6991 = vmatmul.bf16.gmra.mxu0 %v6891
        %v6992 = vpop.f32.mrf.mxu0
        %v6993 = vadd.f32 0.0, %v6992
        %v6994 = vpop.f32.mrf.mxu0
        %v6995 = vadd.f32 0.0, %v6994
        %6996 = vmatmul.bf16.gmra.mxu0 %v6892
        %v6997 = vpop.f32.mrf.mxu0
        %v6998 = vadd.f32 0.0, %v6997
        %v6999 = vpop.f32.mrf.mxu0
        %v7000 = vadd.f32 0.0, %v6999
        %7001 = vmatmul.bf16.gmra.mxu0 %v6893
        %v7002 = vpop.f32.mrf.mxu0
        %v7003 = vadd.f32 0.0, %v7002
        %v7004 = vpop.f32.mrf.mxu0
        %v7005 = vadd.f32 0.0, %v7004
        %7006 = vmatmul.bf16.gmra.mxu0 %v6894
        %v7007 = vpop.f32.mrf.mxu0
        %v7008 = vadd.f32 0.0, %v7007
        %v7009 = vpop.f32.mrf.mxu0
        %v7010 = vadd.f32 0.0, %v7009
        %7011 = vmatmul.bf16.gmra.mxu0 %v6895
        %v7012 = vpop.f32.mrf.mxu0
        %v7013 = vadd.f32 0.0, %v7012
        %v7014 = vpop.f32.mrf.mxu0
        %v7015 = vadd.f32 0.0, %v7014
        %7016 = vmatmul.bf16.gmra.mxu0 %v6896
        %v7017 = vpop.f32.mrf.mxu0
        %v7018 = vadd.f32 0.0, %v7017
        %v7019 = vpop.f32.mrf.mxu0
        %v7020 = vadd.f32 0.0, %v7019
        %7021 = vmatmul.bf16.gmra.mxu0 %v6897
        %v7022 = vpop.f32.mrf.mxu0
        %v7023 = vadd.f32 0.0, %v7022
        %v7024 = vpop.f32.mrf.mxu0
        %v7025 = vadd.f32 0.0, %v7024
        %7026 = vmatmul.bf16.gmra.mxu0 %v6898
        %v7027 = vpop.f32.mrf.mxu0
        %v7028 = vadd.f32 0.0, %v7027
        %v7029 = vpop.f32.mrf.mxu0
        %v7030 = vadd.f32 0.0, %v7029
        %7031 = vmatmul.bf16.gmra.mxu0 %v6899
        %v7032 = vpop.f32.mrf.mxu0
        %v7033 = vadd.f32 0.0, %v7032
        %v7034 = vpop.f32.mrf.mxu0
        %v7035 = vadd.f32 0.0, %v7034
        %7036 = vmatmul.bf16.gmra.mxu0 %v6900
        %v7037 = vpop.f32.mrf.mxu0
        %v7038 = vadd.f32 0.0, %v7037
        %v7039 = vpop.f32.mrf.mxu0
        %v7040 = vadd.f32 0.0, %v7039
        %7041 = vmatmul.bf16.gmra.mxu0 %v6901
        %v7042 = vpop.f32.mrf.mxu0
        %v7043 = vadd.f32 0.0, %v7042
        %v7044 = vpop.f32.mrf.mxu0
        %v7045 = vadd.f32 0.0, %v7044
        %7046 = vmatmul.bf16.gmra.mxu0 %v6902
        %v7047 = vpop.f32.mrf.mxu0
        %v7048 = vadd.f32 0.0, %v7047
        %v7049 = vpop.f32.mrf.mxu0
        %v7050 = vadd.f32 0.0, %v7049
        %7051 = vmatmul.bf16.gmra.mxu0 %v6903
        %v7052 = vpop.f32.mrf.mxu0
        %v7053 = vadd.f32 0.0, %v7052
        %v7054 = vpop.f32.mrf.mxu0
        %v7055 = vadd.f32 0.0, %v7054
        %7056 = vdwg.mxu0
        %v7089 = vunpack.c.l.b16 %v5291
        %v7090 = vunpack.c.l.b16 %v5292
        %v7091 = vunpack.c.l.b16 %v5293
        %v7092 = vunpack.c.l.b16 %v5294
        %v7093 = vunpack.c.l.b16 %v5295
        %v7094 = vunpack.c.l.b16 %v5296
        %v7095 = vunpack.c.l.b16 %v5297
        %v7096 = vunpack.c.l.b16 %v5298
        %v7097 = vunpack.c.l.b16 %v5299
        %v7098 = vunpack.c.l.b16 %v5300
        %v7099 = vunpack.c.l.b16 %v5301
        %v7100 = vunpack.c.l.b16 %v5302
        %v7101 = vunpack.c.l.b16 %v5303
        %v7102 = vunpack.c.l.b16 %v5304
        %v7103 = vunpack.c.l.b16 %v5305
        %v7104 = vunpack.c.l.b16 %v5306
        %v7105 = vunpack.c.l.b16 %v5307
        %v7106 = vunpack.c.l.b16 %v5308
        %v7107 = vunpack.c.l.b16 %v5309
        %v7108 = vunpack.c.l.b16 %v5310
        %v7109 = vunpack.c.l.b16 %v5311
        %v7110 = vunpack.c.l.b16 %v5312
        %v7111 = vunpack.c.l.b16 %v5313
        %v7112 = vunpack.c.l.b16 %v5314
        %v7113 = vunpack.c.l.b16 %v5315
        %v7114 = vunpack.c.l.b16 %v5316
        %v7115 = vunpack.c.l.b16 %v5317
        %v7116 = vunpack.c.l.b16 %v5318
        %v7117 = vunpack.c.l.b16 %v5319
        %v7118 = vunpack.c.l.b16 %v5320
        %v7119 = vunpack.c.l.b16 %v5321
        %v7120 = vunpack.c.l.b16 %v5322
        %v7121 = vpack.c.b16 %v7090, %v7089
        %v7122 = vpack.c.b16 %v7092, %v7091
        %v7123 = vpack.c.b16 %v7094, %v7093
        %v7124 = vpack.c.b16 %v7096, %v7095
        %v7125 = vpack.c.b16 %v7098, %v7097
        %v7126 = vpack.c.b16 %v7100, %v7099
        %v7127 = vpack.c.b16 %v7102, %v7101
        %v7128 = vpack.c.b16 %v7104, %v7103
        %v7129 = vpack.c.b16 %v7106, %v7105
        %v7130 = vpack.c.b16 %v7108, %v7107
        %v7131 = vpack.c.b16 %v7110, %v7109
        %v7132 = vpack.c.b16 %v7112, %v7111
        %v7133 = vpack.c.b16 %v7114, %v7113
        %v7134 = vpack.c.b16 %v7116, %v7115
        %v7135 = vpack.c.b16 %v7118, %v7117
        %v7136 = vpack.c.b16 %v7120, %v7119
        %7153 = vmatpush.bf16.msra.mxu0 %v7128
        %7154 = vmatpush.bf16.msra.mxu0 %v7127
        %7155 = vmatpush.bf16.msra.mxu0 %v7126
        %7156 = vmatpush.bf16.msra.mxu0 %v7125
        %7157 = vmatpush.bf16.msra.mxu0 %v7124
        %7158 = vmatpush.bf16.msra.mxu0 %v7123
        %7159 = vmatpush.bf16.msra.mxu0 %v7122
        %7160 = vmatpush.bf16.msra.mxu0 %v7121
        %7161 = vmatmul.bf16.gmra.mxu0 %v5259
        %v7162 = vpop.f32.mrf.mxu0
        %v7163 = vadd.f32 %v6978, %v7162
        %v7164 = vpop.f32.mrf.mxu0
        %v7165 = vadd.f32 %v6980, %v7164
        %7166 = vmatmul.bf16.gmra.mxu0 %v5261
        %v7167 = vpop.f32.mrf.mxu0
        %v7168 = vadd.f32 %v6983, %v7167
        %v7169 = vpop.f32.mrf.mxu0
        %v7170 = vadd.f32 %v6985, %v7169
        %7171 = vmatmul.bf16.gmra.mxu0 %v5263
        %v7172 = vpop.f32.mrf.mxu0
        %v7173 = vadd.f32 %v6988, %v7172
        %v7174 = vpop.f32.mrf.mxu0
        %v7175 = vadd.f32 %v6990, %v7174
        %7176 = vmatmul.bf16.gmra.mxu0 %v5265
        %v7177 = vpop.f32.mrf.mxu0
        %v7178 = vadd.f32 %v6993, %v7177
        %v7179 = vpop.f32.mrf.mxu0
        %v7180 = vadd.f32 %v6995, %v7179
        %7181 = vmatmul.bf16.gmra.mxu0 %v5267
        %v7182 = vpop.f32.mrf.mxu0
        %v7183 = vadd.f32 %v6998, %v7182
        %v7184 = vpop.f32.mrf.mxu0
        %v7185 = vadd.f32 %v7000, %v7184
        %7186 = vmatmul.bf16.gmra.mxu0 %v5269
        %v7187 = vpop.f32.mrf.mxu0
        %v7188 = vadd.f32 %v7003, %v7187
        %v7189 = vpop.f32.mrf.mxu0
        %v7190 = vadd.f32 %v7005, %v7189
        %7191 = vmatmul.bf16.gmra.mxu0 %v5271
        %v7192 = vpop.f32.mrf.mxu0
        %v7193 = vadd.f32 %v7008, %v7192
        %v7194 = vpop.f32.mrf.mxu0
        %v7195 = vadd.f32 %v7010, %v7194
        %7196 = vmatmul.bf16.gmra.mxu0 %v5273
        %v7197 = vpop.f32.mrf.mxu0
        %v7198 = vadd.f32 %v7013, %v7197
        %v7199 = vpop.f32.mrf.mxu0
        %v7200 = vadd.f32 %v7015, %v7199
        %7201 = vmatmul.bf16.gmra.mxu0 %v5275
        %v7202 = vpop.f32.mrf.mxu0
        %v7203 = vadd.f32 %v7018, %v7202
        %v7204 = vpop.f32.mrf.mxu0
        %v7205 = vadd.f32 %v7020, %v7204
        %7206 = vmatmul.bf16.gmra.mxu0 %v5277
        %v7207 = vpop.f32.mrf.mxu0
        %v7208 = vadd.f32 %v7023, %v7207
        %v7209 = vpop.f32.mrf.mxu0
        %v7210 = vadd.f32 %v7025, %v7209
        %7211 = vmatmul.bf16.gmra.mxu0 %v5279
        %v7212 = vpop.f32.mrf.mxu0
        %v7213 = vadd.f32 %v7028, %v7212
        %v7214 = vpop.f32.mrf.mxu0
        %v7215 = vadd.f32 %v7030, %v7214
        %7216 = vmatmul.bf16.gmra.mxu0 %v5281
        %v7217 = vpop.f32.mrf.mxu0
        %v7218 = vadd.f32 %v7033, %v7217
        %v7219 = vpop.f32.mrf.mxu0
        %v7220 = vadd.f32 %v7035, %v7219
        %7221 = vmatmul.bf16.gmra.mxu0 %v5283
        %v7222 = vpop.f32.mrf.mxu0
        %v7223 = vadd.f32 %v7038, %v7222
        %v7224 = vpop.f32.mrf.mxu0
        %v7225 = vadd.f32 %v7040, %v7224
        %7226 = vmatmul.bf16.gmra.mxu0 %v5285
        %v7227 = vpop.f32.mrf.mxu0
        %v7228 = vadd.f32 %v7043, %v7227
        %v7229 = vpop.f32.mrf.mxu0
        %v7230 = vadd.f32 %v7045, %v7229
        %7231 = vmatmul.bf16.gmra.mxu0 %v5287
        %v7232 = vpop.f32.mrf.mxu0
        %v7233 = vadd.f32 %v7048, %v7232
        %v7234 = vpop.f32.mrf.mxu0
        %v7235 = vadd.f32 %v7050, %v7234
        %7236 = vmatmul.bf16.gmra.mxu0 %v5289
        %v7237 = vpop.f32.mrf.mxu0
        %v7238 = vadd.f32 %v7053, %v7237
        %v7239 = vpop.f32.mrf.mxu0
        %v7240 = vadd.f32 %v7055, %v7239
        %7241 = vdwg.mxu0
        %7242 = vmatpush.bf16.msra.mxu0 %v7136
        %7243 = vmatpush.bf16.msra.mxu0 %v7135
        %7244 = vmatpush.bf16.msra.mxu0 %v7134
        %7245 = vmatpush.bf16.msra.mxu0 %v7133
        %7246 = vmatpush.bf16.msra.mxu0 %v7132
        %7247 = vmatpush.bf16.msra.mxu0 %v7131
        %7248 = vmatpush.bf16.msra.mxu0 %v7130
        %7249 = vmatpush.bf16.msra.mxu0 %v7129
        %7250 = vmatmul.bf16.gmra.mxu0 %v5260
        %v7251 = vpop.f32.mrf.mxu0
        %v7252 = vadd.f32 %v7163, %v7251
        %v7253 = vpop.f32.mrf.mxu0
        %v7254 = vadd.f32 %v7165, %v7253
        %7255 = vmatmul.bf16.gmra.mxu0 %v5262
        %v7256 = vpop.f32.mrf.mxu0
        %v7257 = vadd.f32 %v7168, %v7256
        %v7258 = vpop.f32.mrf.mxu0
        %v7259 = vadd.f32 %v7170, %v7258
        %7260 = vmatmul.bf16.gmra.mxu0 %v5264
        %v7261 = vpop.f32.mrf.mxu0
        %v7262 = vadd.f32 %v7173, %v7261
        %v7263 = vpop.f32.mrf.mxu0
        %v7264 = vadd.f32 %v7175, %v7263
        %7265 = vmatmul.bf16.gmra.mxu0 %v5266
        %v7266 = vpop.f32.mrf.mxu0
        %v7267 = vadd.f32 %v7178, %v7266
        %v7268 = vpop.f32.mrf.mxu0
        %v7269 = vadd.f32 %v7180, %v7268
        %7270 = vmatmul.bf16.gmra.mxu0 %v5268
        %v7271 = vpop.f32.mrf.mxu0
        %v7272 = vadd.f32 %v7183, %v7271
        %v7273 = vpop.f32.mrf.mxu0
        %v7274 = vadd.f32 %v7185, %v7273
        %7275 = vmatmul.bf16.gmra.mxu0 %v5270
        %v7276 = vpop.f32.mrf.mxu0
        %v7277 = vadd.f32 %v7188, %v7276
        %v7278 = vpop.f32.mrf.mxu0
        %v7279 = vadd.f32 %v7190, %v7278
        %7280 = vmatmul.bf16.gmra.mxu0 %v5272
        %v7281 = vpop.f32.mrf.mxu0
        %v7282 = vadd.f32 %v7193, %v7281
        %v7283 = vpop.f32.mrf.mxu0
        %v7284 = vadd.f32 %v7195, %v7283
        %7285 = vmatmul.bf16.gmra.mxu0 %v5274
        %v7286 = vpop.f32.mrf.mxu0
        %v7287 = vadd.f32 %v7198, %v7286
        %v7288 = vpop.f32.mrf.mxu0
        %v7289 = vadd.f32 %v7200, %v7288
        %7290 = vmatmul.bf16.gmra.mxu0 %v5276
        %v7291 = vpop.f32.mrf.mxu0
        %v7292 = vadd.f32 %v7203, %v7291
        %v7293 = vpop.f32.mrf.mxu0
        %v7294 = vadd.f32 %v7205, %v7293
        %7295 = vmatmul.bf16.gmra.mxu0 %v5278
        %v7296 = vpop.f32.mrf.mxu0
        %v7297 = vadd.f32 %v7208, %v7296
        %v7298 = vpop.f32.mrf.mxu0
        %v7299 = vadd.f32 %v7210, %v7298
        %7300 = vmatmul.bf16.gmra.mxu0 %v5280
        %v7301 = vpop.f32.mrf.mxu0
        %v7302 = vadd.f32 %v7213, %v7301
        %v7303 = vpop.f32.mrf.mxu0
        %v7304 = vadd.f32 %v7215, %v7303
        %7305 = vmatmul.bf16.gmra.mxu0 %v5282
        %v7306 = vpop.f32.mrf.mxu0
        %v7307 = vadd.f32 %v7218, %v7306
        %v7308 = vpop.f32.mrf.mxu0
        %v7309 = vadd.f32 %v7220, %v7308
        %7310 = vmatmul.bf16.gmra.mxu0 %v5284
        %v7311 = vpop.f32.mrf.mxu0
        %v7312 = vadd.f32 %v7223, %v7311
        %v7313 = vpop.f32.mrf.mxu0
        %v7314 = vadd.f32 %v7225, %v7313
        %7315 = vmatmul.bf16.gmra.mxu0 %v5286
        %v7316 = vpop.f32.mrf.mxu0
        %v7317 = vadd.f32 %v7228, %v7316
        %v7318 = vpop.f32.mrf.mxu0
        %v7319 = vadd.f32 %v7230, %v7318
        %7320 = vmatmul.bf16.gmra.mxu0 %v5288
        %v7321 = vpop.f32.mrf.mxu0
        %v7322 = vadd.f32 %v7233, %v7321
        %v7323 = vpop.f32.mrf.mxu0
        %v7324 = vadd.f32 %v7235, %v7323
        %7325 = vmatmul.bf16.gmra.mxu0 %v5290
        %v7326 = vpop.f32.mrf.mxu0
        %v7327 = vadd.f32 %v7238, %v7326
        %v7328 = vpop.f32.mrf.mxu0
        %v7329 = vadd.f32 %v7240, %v7328
        %7330 = vdwg.mxu0
        %v7331 = vld [vmem:[%s9] sm:$0x1]
        %v7333 = vperm.slane %v7331, 0
        %v7335 = vadd.f32 %v7252, %v7333
        %v7336 = vadd.f32 %v7254, %v7333
        %v7337 = vadd.f32 %v7257, %v7333
        %v7338 = vadd.f32 %v7259, %v7333
        %v7339 = vadd.f32 %v7262, %v7333
        %v7340 = vadd.f32 %v7264, %v7333
        %v7341 = vadd.f32 %v7267, %v7333
        %v7342 = vadd.f32 %v7269, %v7333
        %v7343 = vadd.f32 %v7272, %v7333
        %v7344 = vadd.f32 %v7274, %v7333
        %v7345 = vadd.f32 %v7277, %v7333
        %v7346 = vadd.f32 %v7279, %v7333
        %v7347 = vadd.f32 %v7282, %v7333
        %v7348 = vadd.f32 %v7284, %v7333
        %v7349 = vadd.f32 %v7287, %v7333
        %v7350 = vadd.f32 %v7289, %v7333
        %v7351 = vadd.f32 %v7292, %v7333
        %v7352 = vadd.f32 %v7294, %v7333
        %v7353 = vadd.f32 %v7297, %v7333
        %v7354 = vadd.f32 %v7299, %v7333
        %v7355 = vadd.f32 %v7302, %v7333
        %v7356 = vadd.f32 %v7304, %v7333
        %v7357 = vadd.f32 %v7307, %v7333
        %v7358 = vadd.f32 %v7309, %v7333
        %v7359 = vadd.f32 %v7312, %v7333
        %v7360 = vadd.f32 %v7314, %v7333
        %v7361 = vadd.f32 %v7317, %v7333
        %v7362 = vadd.f32 %v7319, %v7333
        %v7363 = vadd.f32 %v7322, %v7333
        %v7364 = vadd.f32 %v7324, %v7333
        %v7365 = vadd.f32 %v7327, %v7333
        %v7366 = vadd.f32 %v7329, %v7333
        %v7367 = vld [vmem:[%s10] sm:$0x1]
        %v7369 = vperm.slane %v7367, 0
        %v7371 = vmul.f32 %v7369, %v7335
        %v7372 = vmul.f32 %v7369, %v7336
        %v7373 = vmul.f32 %v7369, %v7337
        %v7374 = vmul.f32 %v7369, %v7338
        %v7375 = vmul.f32 %v7369, %v7339
        %v7376 = vmul.f32 %v7369, %v7340
        %v7377 = vmul.f32 %v7369, %v7341
        %v7378 = vmul.f32 %v7369, %v7342
        %v7379 = vmul.f32 %v7369, %v7343
        %v7380 = vmul.f32 %v7369, %v7344
        %v7381 = vmul.f32 %v7369, %v7345
        %v7382 = vmul.f32 %v7369, %v7346
        %v7383 = vmul.f32 %v7369, %v7347
        %v7384 = vmul.f32 %v7369, %v7348
        %v7385 = vmul.f32 %v7369, %v7349
        %v7386 = vmul.f32 %v7369, %v7350
        %v7387 = vmul.f32 %v7369, %v7351
        %v7388 = vmul.f32 %v7369, %v7352
        %v7389 = vmul.f32 %v7369, %v7353
        %v7390 = vmul.f32 %v7369, %v7354
        %v7391 = vmul.f32 %v7369, %v7355
        %v7392 = vmul.f32 %v7369, %v7356
        %v7393 = vmul.f32 %v7369, %v7357
        %v7394 = vmul.f32 %v7369, %v7358
        %v7395 = vmul.f32 %v7369, %v7359
        %v7396 = vmul.f32 %v7369, %v7360
        %v7397 = vmul.f32 %v7369, %v7361
        %v7398 = vmul.f32 %v7369, %v7362
        %v7399 = vmul.f32 %v7369, %v7363
        %v7400 = vmul.f32 %v7369, %v7364
        %v7401 = vmul.f32 %v7369, %v7365
        %v7402 = vmul.f32 %v7369, %v7366
        %v7403 = vadd.f32 %v911, %v7371
        %v7404 = vadd.f32 %v912, %v7372
        %v7405 = vadd.f32 %v913, %v7373
        %v7406 = vadd.f32 %v914, %v7374
        %v7407 = vadd.f32 %v915, %v7375
        %v7408 = vadd.f32 %v916, %v7376
        %v7409 = vadd.f32 %v917, %v7377
        %v7410 = vadd.f32 %v918, %v7378
        %v7411 = vadd.f32 %v919, %v7379
        %v7412 = vadd.f32 %v920, %v7380
        %v7413 = vadd.f32 %v921, %v7381
        %v7414 = vadd.f32 %v922, %v7382
        %v7415 = vadd.f32 %v923, %v7383
        %v7416 = vadd.f32 %v924, %v7384
        %v7417 = vadd.f32 %v925, %v7385
        %v7418 = vadd.f32 %v926, %v7386
        %v7419 = vadd.f32 %v927, %v7387
        %v7420 = vadd.f32 %v928, %v7388
        %v7421 = vadd.f32 %v929, %v7389
        %v7422 = vadd.f32 %v930, %v7390
        %v7423 = vadd.f32 %v931, %v7391
        %v7424 = vadd.f32 %v932, %v7392
        %v7425 = vadd.f32 %v933, %v7393
        %v7426 = vadd.f32 %v934, %v7394
        %v7427 = vadd.f32 %v935, %v7395
        %v7428 = vadd.f32 %v936, %v7396
        %v7429 = vadd.f32 %v937, %v7397
        %v7430 = vadd.f32 %v938, %v7398
        %v7431 = vadd.f32 %v939, %v7399
        %v7432 = vadd.f32 %v940, %v7400
        %v7433 = vadd.f32 %v941, %v7401
        %v7434 = vadd.f32 %v942, %v7402
        %7435 = vst [vmem:[%s542] sm:$0xff] %v7403
        %7436 = vst [vmem:[%s542 + $0x8] sm:$0xff] %v7404
        %7437 = vst [vmem:[%s542 + $0x10] sm:$0xff] %v7405
        %7438 = vst [vmem:[%s542 + $0x18] sm:$0xff] %v7406
        %7439 = vst [vmem:[%s542 + $0x20] sm:$0xff] %v7407
        %7440 = vst [vmem:[%s542 + $0x28] sm:$0xff] %v7408
        %7441 = vst [vmem:[%s542 + $0x30] sm:$0xff] %v7409
        %7442 = vst [vmem:[%s542 + $0x38] sm:$0xff] %v7410
        %7443 = vst [vmem:[%s542 + $0x40] sm:$0xff] %v7411
        %7444 = vst [vmem:[%s542 + $0x48] sm:$0xff] %v7412
        %7445 = vst [vmem:[%s542 + $0x50] sm:$0xff] %v7413
        %7446 = vst [vmem:[%s542 + $0x58] sm:$0xff] %v7414
        %7447 = vst [vmem:[%s542 + $0x60] sm:$0xff] %v7415
        %7448 = vst [vmem:[%s542 + $0x68] sm:$0xff] %v7416
        %7449 = vst [vmem:[%s542 + $0x70] sm:$0xff] %v7417
        %7450 = vst [vmem:[%s542 + $0x78] sm:$0xff] %v7418
        %7451 = vst [vmem:[%s542 + $0x80] sm:$0xff] %v7419
        %7452 = vst [vmem:[%s542 + $0x88] sm:$0xff] %v7420
        %7453 = vst [vmem:[%s542 + $0x90] sm:$0xff] %v7421
        %7454 = vst [vmem:[%s542 + $0x98] sm:$0xff] %v7422
        %7455 = vst [vmem:[%s542 + $0xa0] sm:$0xff] %v7423
        %7456 = vst [vmem:[%s542 + $0xa8] sm:$0xff] %v7424
        %7457 = vst [vmem:[%s542 + $0xb0] sm:$0xff] %v7425
        %7458 = vst [vmem:[%s542 + $0xb8] sm:$0xff] %v7426
        %7459 = vst [vmem:[%s542 + $0xc0] sm:$0xff] %v7427
        %7460 = vst [vmem:[%s542 + $0xc8] sm:$0xff] %v7428
        %7461 = vst [vmem:[%s542 + $0xd0] sm:$0xff] %v7429
        %7462 = vst [vmem:[%s542 + $0xd8] sm:$0xff] %v7430
        %7463 = vst [vmem:[%s542 + $0xe0] sm:$0xff] %v7431
        %7464 = vst [vmem:[%s542 + $0xe8] sm:$0xff] %v7432
        %7465 = vst [vmem:[%s542 + $0xf0] sm:$0xff] %v7433
        %7466 = vst [vmem:[%s542 + $0xf8] sm:$0xff] %v7434
        %s7467 = sand.u32 %s304, 1
        %s7468 = scalar_lea.sflag [#allocation5], %s7467
        %s7469 = sand.u32 %s304, 1
        %s7470 = smul.addr %s7469, 256
        %s7471 = scalar_lea.vmem [#allocation14], %s7470
        // Predicated region
        $region89: #{tpu_custom_call.1} parent=63 // pred_check
          %p7472 = pneg %p314
        $region90: #{tpu_custom_call.1} parent=63 // pred_check_branch
          %7474 = sbr.rel (%p7472) target = $region92
        $region91: #{tpu_custom_call.1} parent=63 // pred_region
          %s7475 = smul.u32 32, %s38
          %7477 = vsyncadd %s7468, 0
          %s7478 = smul.addr %s37, 64
          %s7479 = sadd.s32 %s7475, %s7478
          %s7480 = smul.addr %s7479, 8
          %s7481 = scalar_lea.hbm %s11, %s7480
          %s7482 = sshll.u32 %s7471, 4
          %s7483 = int_to_ptr.vmem [resolvable:$true] %s7482
          %s7484 = sshll.u32 %s7481, 4
          %s7485 = int_to_ptr.hbm [resolvable:$true] %s7484
          %7490 = dma.vmem_to_hbm [thread:$0]  %s7483, 4096, %s7485, %s7468, 128, 128, 8
        $region92: #{tpu_custom_call.1} parent=63 // pred_fallthru
          _
      $region64: #{tpu_custom_call.1} parent=5 // pred_fallthru
        _
      %p7491 = scmp.le.s32.totalorder 2, %s28
      // Predicated region
      $region93: #{tpu_custom_call.1} parent=5 // pred_check
        %p7492 = pneg %p7491
      $region94: #{tpu_custom_call.1} parent=5 // pred_check_branch
        %7494 = sbr.rel (%p7492) target = $region96
      $region95: #{tpu_custom_call.1} parent=5 // pred_region
        %s7495 = ssub.s32 %s28, 2
        // Predicated region
        $region97: #{tpu_custom_call.1} parent=95 // pred_check
          %p7496 = pneg %p320
        $region98: #{tpu_custom_call.1} parent=95 // pred_check_branch
          %7498 = sbr.rel (%p7496) target = $region100
        $region99: #{tpu_custom_call.1} parent=95 // pred_region
          %s7499 = sand.u32 %s305, 1
          %s7500 = scalar_lea.sflag [#allocation5], %s7499
          %s7501 = sand.u32 %s305, 1
          %s7502 = smul.addr %s7501, 256
          %s7503 = scalar_lea.vmem [#allocation14], %s7502
          %7505 = dma.done %s7500, 4096
        $region100: #{tpu_custom_call.1} parent=95 // pred_fallthru
          _
      $region96: #{tpu_custom_call.1} parent=5 // pred_fallthru
        _
    $region6: #{tpu_custom_call.1} parent=1 // loop_footer
      %s32 = sadd.s32 1, %s28
    $region7: #{tpu_custom_call.1} parent=1 // loop_footer_branch
      %27 = sbr.rel target = $region3
    $region8: #{tpu_custom_call.1} parent=1 // loop_exit
      _
    %7506 = vsyncpa [#allocation4], 1
    %s7507 = scalar_lea.sflag [#allocation4], 1
    %7508 = vsyncpa %s7507, 1
    %7509 = vsyncpa [#allocation7], 1
    %s7510 = scalar_lea.sflag [#allocation7], 1
    %7511 = vsyncpa %s7510, 1
    %7512 = vsyncpa [#allocation10], 1
    %7513 = vsyncpa [#allocation13], 1
    %7514 = vsyncpa [#allocation5], 1
    %s7515 = scalar_lea.sflag [#allocation5], 1
    %7516 = vsyncpa %s7515, 1

</llo_original>
